<compile_context>
chip_gen: v6e
topology: v6e:2x2x1
jax: 0.10.0
libtpu: 0.0.40
codegen_flags: <defaults>
</compile_context>

<pallas_src>
import jax
import jax.numpy as jnp
from jax.experimental import pallas as pl
from jax.experimental.pallas import tpu as pltpu


# --------------------------------------------------------------------------
# Pallas kernel: 2-layer LSTM recurrence + MLP head.
# --------------------------------------------------------------------------
def _lstm_mlp_kernel(x_ref,                       # (T, TB, I) time-major input
                     wih0_ref, whh0_ref, b0_ref,  # (I,4H), (H,4H), (1,4H)
                     wcat1_ref, b1_ref,           # (2H,4H), (1,4H)
                     hw1_ref, hb1_ref,            # head (BN folded into Linear)
                     hw2_ref, hb2_ref,
                     hw3_ref, hb3_ref,
                     hw4_ref, hb4_ref,            # final Linear padded to 128 lanes
                     out_ref,                     # (TB, 128)
                     xs_ref):                     # VMEM scratch (T*TB, I)
    f32 = jnp.float32
    T, TB, _ = x_ref.shape
    H = whh0_ref.shape[0]

    # ---- Hoisted layer-0 input projection: ONE matmul for all timesteps ----
    # Pack the time-major block into a 2-D (T*TB, I) scratch with static,
    # contiguous stores, then a single (T*TB, I) @ (I, 4H) MXU pass.
    for t in range(T):
        xs_ref[t * TB:(t + 1) * TB, :] = x_ref[t]
    px_all = (jnp.dot(xs_ref[...], wih0_ref[...], preferred_element_type=f32)
              + b0_ref[...])                      # (T*TB, 4H); b0 = b_ih0 + b_hh0

    # Hoist recurrent weights out of the (unrolled) time loop.
    whh0 = whh0_ref[...]
    wcat1 = wcat1_ref[...]
    b1 = b1_ref[...]

    def lstm_cell(gates, c_prev):
        # One full-width sigmoid pass + one tanh on the g slice.
        # PyTorch gate order: i, f, g, o.
        sig = jax.nn.sigmoid(gates)               # (TB, 4H)
        g_g = jnp.tanh(gates[:, 2 * H:3 * H])     # (TB, H)
        i_g = sig[:, 0 * H:1 * H]
        f_g = sig[:, 1 * H:2 * H]
        o_g = sig[:, 3 * H:4 * H]
        c_new = f_g * c_prev + i_g * g_g
        h_new = o_g * jnp.tanh(c_new)
        return h_new, c_new

    h0 = jnp.zeros((TB, H), f32)
    c0 = jnp.zeros((TB, H), f32)
    h1 = jnp.zeros((TB, H), f32)
    c1 = jnp.zeros((TB, H), f32)

    # Fully unrolled recurrence (T is a small static constant).
    for t in range(T):
        # Layer 0: input projection precomputed; only the recurrent matmul left.
        gates0 = px_all[t * TB:(t + 1) * TB, :] + jnp.dot(
            h0, whh0, preferred_element_type=f32)
        h0, c0 = lstm_cell(gates0, c0)
        # Layer 1: single fused matmul on concat([h0_new, h1_prev]).
        inp1 = jnp.concatenate([h0, h1], axis=-1)               # (TB, 2H)
        gates1 = jnp.dot(inp1, wcat1, preferred_element_type=f32) + b1
        h1, c1 = lstm_cell(gates1, c1)

    last = h1   # == out[-1, :, :] for a stacked unidirectional LSTM
    # Dropout: eval mode -> identity.

    # MLP head: eval-mode BatchNorm already folded into the Linear weights.
    y = jnp.maximum(jnp.dot(last, hw1_ref[...], preferred_element_type=f32)
                    + hb1_ref[...], 0.0)                        # (TB, 128)
    y = jnp.maximum(jnp.dot(y, hw2_ref[...], preferred_element_type=f32)
                    + hb2_ref[...], 0.0)                        # (TB, 64)
    y = jnp.maximum(jnp.dot(y, hw3_ref[...], preferred_element_type=f32)
                    + hb3_ref[...], 0.0)                        # (TB, 32)
    # Final Linear, zero-padded to a lane-dense 128-wide slab (unmasked store).
    out_ref[...] = (jnp.dot(y, hw4_ref[...], preferred_element_type=f32)
                    + hb4_ref[...])                             # (TB, 128)


# --------------------------------------------------------------------------
# Raw, PyTorch-shaped parameters (deterministic, PyTorch-default-like init,
# with non-trivial BatchNorm running stats so the BN fold is really tested).
# --------------------------------------------------------------------------
def init_raw_params(key, input_size, hidden_size):
    H = hidden_size
    keys = jax.random.split(key, 32)
    ki = iter(range(32))

    def uni(shape, bound):
        return jax.random.uniform(keys[next(ki)], shape, jnp.float32,
                                  -bound, bound)

    kb = float(H) ** -0.5
    p = {
        "w_ih0": uni((4 * H, input_size), kb), "w_hh0": uni((4 * H, H), kb),
        "b_ih0": uni((4 * H,), kb),            "b_hh0": uni((4 * H,), kb),
        "w_ih1": uni((4 * H, H), kb),          "w_hh1": uni((4 * H, H), kb),
        "b_ih1": uni((4 * H,), kb),            "b_hh1": uni((4 * H,), kb),
    }

    def linear(fan_in, fan_out):
        bound = float(fan_in) ** -0.5
        return uni((fan_out, fan_in), bound), uni((fan_out,), bound)

    def bn(features):
        k1, k2, k3, k4 = jax.random.split(keys[next(ki)], 4)
        gamma = jax.random.uniform(k1, (features,), jnp.float32, 0.5, 1.5)
        beta = jax.random.uniform(k2, (features,), jnp.float32, -0.5, 0.5)
        mean = jax.random.uniform(k3, (features,), jnp.float32, -0.5, 0.5)
        var = jax.random.uniform(k4, (features,), jnp.float32, 0.5, 1.5)
        return gamma, beta, mean, var

    p["l1_w"], p["l1_b"] = linear(H, 128)
    p["l1_g"], p["l1_beta"], p["l1_m"], p["l1_v"] = bn(128)
    p["l2_w"], p["l2_b"] = linear(128, 64)
    p["l2_g"], p["l2_beta"], p["l2_m"], p["l2_v"] = bn(64)
    p["l3_w"], p["l3_b"] = linear(64, 32)
    p["l3_g"], p["l3_beta"], p["l3_m"], p["l3_v"] = bn(32)
    p["l4_w"], p["l4_b"] = linear(32, 3)
    return p


# --------------------------------------------------------------------------
# Fold / transpose / pad the raw parameters into kernel operands.
# --------------------------------------------------------------------------
def prepare_kernel_params(p, eps=1e-5, out_pad=128):
    f32 = jnp.float32

    def fold(w, b, gamma, beta, mean, var):
        # Eval-mode BatchNorm1d folded into the preceding Linear (exact).
        scale = gamma / jnp.sqrt(var + eps)                     # (F,)
        w_f = (w.T * scale[None, :]).astype(f32)                # (fan_in, F)
        b_f = (b * scale + beta - mean * scale).reshape(1, -1).astype(f32)
        return w_f, b_f

    kp = {
        "wih0": p["w_ih0"].T.astype(f32),                       # (I, 4H)
        "whh0": p["w_hh0"].T.astype(f32),                       # (H, 4H)
        "b0": (p["b_ih0"] + p["b_hh0"]).reshape(1, -1).astype(f32),
        # Layer-1: fuse the two per-step matmuls via weight concat.
        "wcat1": jnp.concatenate([p["w_ih1"].T, p["w_hh1"].T],
                                 axis=0).astype(f32),           # (2H, 4H)
        "b1": (p["b_ih1"] + p["b_hh1"]).reshape(1, -1).astype(f32),
    }
    kp["hw1"], kp["hb1"] = fold(p["l1_w"], p["l1_b"], p["l1_g"], p["l1_beta"],
                                p["l1_m"], p["l1_v"])
    kp["hw2"], kp["hb2"] = fold(p["l2_w"], p["l2_b"], p["l2_g"], p["l2_beta"],
                                p["l2_m"], p["l2_v"])
    kp["hw3"], kp["hb3"] = fold(p["l3_w"], p["l3_b"], p["l3_g"], p["l3_beta"],
                                p["l3_m"], p["l3_v"])
    # Final Linear padded to a lane-dense 128-wide output.
    w4t = p["l4_w"].T.astype(f32)                               # (32, 3)
    n_out = w4t.shape[1]
    kp["hw4"] = jnp.zeros((w4t.shape[0], out_pad), f32).at[:, :n_out].set(w4t)
    kp["hb4"] = jnp.zeros((1, out_pad), f32).at[0, :n_out].set(
        p["l4_b"].astype(f32))
    return kp


# --------------------------------------------------------------------------
# Wrapper: layout plumbing + pallas_call.
# --------------------------------------------------------------------------
def driver_monitor_forward(x, kp, num_outputs=3):
    x = x.astype(jnp.float32)
    B, T, _ = x.shape
    # Time-major layout (matches the module's permute) so every timestep is a
    # contiguous (B, I) slab that the kernel slices with static indices.
    xt = jnp.transpose(x, (1, 0, 2))                            # (T, B, I)
    I = xt.shape[2]

    # Batch tile: the whole batch when it is tiny (one grid step), otherwise
    # an 8-sublane-aligned tile so the grid can pipeline / use both cores.
    tb = B if B <= 8 else 8
    grid = (pl.cdiv(B, tb),)
    out_pad = kp["hw4"].shape[1]

    def resident(a):
        # Full-array block, same block every grid step -> stays in VMEM.
        return pl.BlockSpec(a.shape, lambda i: (0,) * a.ndim)

    operands = (xt,
                kp["wih0"], kp["whh0"], kp["b0"],
                kp["wcat1"], kp["b1"],
                kp["hw1"], kp["hb1"], kp["hw2"], kp["hb2"],
                kp["hw3"], kp["hb3"], kp["hw4"], kp["hb4"])

    in_specs = [pl.BlockSpec((T, tb, I), lambda i: (0, i, 0))] + \
               [resident(a) for a in operands[1:]]

    out = pl.pallas_call(
        _lstm_mlp_kernel,
        out_shape=jax.ShapeDtypeStruct((B, out_pad), jnp.float32),
        grid=grid,
        in_specs=in_specs,
        out_specs=pl.BlockSpec((tb, out_pad), lambda i: (i, 0)),
        scratch_shapes=[pltpu.VMEM((T * tb, I), jnp.float32)],
        compiler_params=pltpu.CompilerParams(
            dimension_semantics=("parallel",)),
    )(*operands)
    return out[:, :num_outputs]


# --------------------------------------------------------------------------
# Pure-JAX reference straight from the raw PyTorch-shaped parameters
# (independent of the folds / fusions done for the kernel).
# --------------------------------------------------------------------------
def reference_forward(x, p, hidden_size, eps=1e-5):
    H = hidden_size
    xt = jnp.transpose(x.astype(jnp.float32), (1, 0, 2))
    T, B, _ = xt.shape
    hs = [jnp.zeros((B, H), jnp.float32) for _ in range(2)]
    cs = [jnp.zeros((B, H), jnp.float32) for _ in range(2)]
    w_ih = [p["w_ih0"], p["w_ih1"]]
    w_hh = [p["w_hh0"], p["w_hh1"]]
    b_ih = [p["b_ih0"], p["b_ih1"]]
    b_hh = [p["b_hh0"], p["b_hh1"]]
    for t in range(T):
        inp = xt[t]
        for l in range(2):
            g = inp @ w_ih[l].T + b_ih[l] + hs[l] @ w_hh[l].T + b_hh[l]
            i_g = jax.nn.sigmoid(g[:, 0 * H:1 * H])
            f_g = jax.nn.sigmoid(g[:, 1 * H:2 * H])
            g_g = jnp.tanh(g[:, 2 * H:3 * H])
            o_g = jax.nn.sigmoid(g[:, 3 * H:4 * H])
            cs[l] = f_g * cs[l] + i_g * g_g
            hs[l] = o_g * jnp.tanh(cs[l])
            inp = hs[l]
    y = hs[1]

    def lin_bn_relu(z, w, b, gamma, beta, mean, var):
        z = z @ w.T + b
        z = (z - mean) / jnp.sqrt(var + eps) * gamma + beta
        return jnp.maximum(z, 0.0)

    y = lin_bn_relu(y, p["l1_w"], p["l1_b"], p["l1_g"], p["l1_beta"],
                    p["l1_m"], p["l1_v"])
    y = lin_bn_relu(y, p["l2_w"], p["l2_b"], p["l2_g"], p["l2_beta"],
                    p["l2_m"], p["l2_v"])
    y = lin_bn_relu(y, p["l3_w"], p["l3_b"], p["l3_g"], p["l3_beta"],
                    p["l3_m"], p["l3_v"])
    return y @ p["l4_w"].T + p["l4_b"]


if __name__ == "__main__":
    # Full-f32 matmuls everywhere (reference + kernel) so the comparison is
    # apples-to-apples.
    jax.config.update("jax_default_matmul_precision", "highest")

    BATCH, SEQ, INPUT_SIZE, HIDDEN_SIZE = 2, 8, 16, 32

    key = jax.random.PRNGKey(0)
    k_x, k_p = jax.random.split(key)
    x = jax.random.normal(k_x, (BATCH, SEQ, INPUT_SIZE), jnp.float32)

    raw = init_raw_params(k_p, INPUT_SIZE, HIDDEN_SIZE)
    kparams = prepare_kernel_params(raw)

    fwd = jax.jit(driver_monitor_forward)
    out = jax.block_until_ready(fwd(x, kparams))
    assert out.shape == (BATCH, 3), out.shape
    assert bool(jnp.all(jnp.isfinite(out))), "non-finite kernel output"

    ref = jax.block_until_ready(reference_forward(x, raw, HIDDEN_SIZE))
    # Small slack for transcendental-unit / fold rounding differences.
    assert jnp.allclose(out, ref, atol=1e-4, rtol=1e-3), (out, ref)

    print("KERNEL_OK")
</pallas_src>

<mosaic_0001>
module attributes {stable_mosaic.version = 11 : i64} {
  func.func @_lstm_mlp_kernel(%arg0: i32, %arg1: memref<8x2x16xf32, #tpu.memory_space<vmem>>, %arg2: memref<16x128xf32, #tpu.memory_space<vmem>>, %arg3: memref<32x128xf32, #tpu.memory_space<vmem>>, %arg4: memref<1x128xf32, #tpu.memory_space<vmem>>, %arg5: memref<64x128xf32, #tpu.memory_space<vmem>>, %arg6: memref<1x128xf32, #tpu.memory_space<vmem>>, %arg7: memref<32x128xf32, #tpu.memory_space<vmem>>, %arg8: memref<1x128xf32, #tpu.memory_space<vmem>>, %arg9: memref<128x64xf32, #tpu.memory_space<vmem>>, %arg10: memref<1x64xf32, #tpu.memory_space<vmem>>, %arg11: memref<64x32xf32, #tpu.memory_space<vmem>>, %arg12: memref<1x32xf32, #tpu.memory_space<vmem>>, %arg13: memref<32x128xf32, #tpu.memory_space<vmem>>, %arg14: memref<1x128xf32, #tpu.memory_space<vmem>>, %arg15: memref<2x128xf32, #tpu.memory_space<vmem>>, %arg16: memref<16x16xf32, #tpu.memory_space<vmem>>) attributes {dimension_semantics = [#tpu.dimension_semantics<parallel>], iteration_bounds = array<i64: 1>, scalar_prefetch = 0 : i64, scratch_operands = 1 : i64, tpu.core_type = #tpu.core_type<tc>, window_params = [{transform_indices = @transform_0, window_bounds = array<i64: 8, 2, 16>}, {pipeline_mode = #tpu.pipeline_mode<synchronous>, transform_indices = @transform_1, window_bounds = array<i64: 16, 128>}, {pipeline_mode = #tpu.pipeline_mode<synchronous>, transform_indices = @transform_2, window_bounds = array<i64: 32, 128>}, {pipeline_mode = #tpu.pipeline_mode<synchronous>, transform_indices = @transform_3, window_bounds = array<i64: 1, 128>}, {pipeline_mode = #tpu.pipeline_mode<synchronous>, transform_indices = @transform_4, window_bounds = array<i64: 64, 128>}, {pipeline_mode = #tpu.pipeline_mode<synchronous>, transform_indices = @transform_5, window_bounds = array<i64: 1, 128>}, {pipeline_mode = #tpu.pipeline_mode<synchronous>, transform_indices = @transform_6, window_bounds = array<i64: 32, 128>}, {pipeline_mode = #tpu.pipeline_mode<synchronous>, transform_indices = @transform_7, window_bounds = array<i64: 1, 128>}, {pipeline_mode = #tpu.pipeline_mode<synchronous>, transform_indices = @transform_8, window_bounds = array<i64: 128, 64>}, {pipeline_mode = #tpu.pipeline_mode<synchronous>, transform_indices = @transform_9, window_bounds = array<i64: 1, 64>}, {pipeline_mode = #tpu.pipeline_mode<synchronous>, transform_indices = @transform_10, window_bounds = array<i64: 64, 32>}, {pipeline_mode = #tpu.pipeline_mode<synchronous>, transform_indices = @transform_11, window_bounds = array<i64: 1, 32>}, {pipeline_mode = #tpu.pipeline_mode<synchronous>, transform_indices = @transform_12, window_bounds = array<i64: 32, 128>}, {pipeline_mode = #tpu.pipeline_mode<synchronous>, transform_indices = @transform_13, window_bounds = array<i64: 1, 128>}, {transform_indices = @transform_14, window_bounds = array<i64: 2, 128>}]} {
    %c0 = arith.constant 0 : index
    %c0_0 = arith.constant 0 : index
    %c0_1 = arith.constant 0 : index
    %0 = vector.load %arg1[%c0, %c0_0, %c0_1] : memref<8x2x16xf32, #tpu.memory_space<vmem>>, vector<1x2x16xf32>
    %1 = vector.shape_cast %0 : vector<1x2x16xf32> to vector<2x16xf32>
    %c0_2 = arith.constant 0 : index
    %c0_3 = arith.constant 0 : index
    %2 = vector.load %arg16[%c0_2, %c0_3] : memref<16x16xf32, #tpu.memory_space<vmem>>, vector<2x16xf32>
    tpu.vector_store %arg16[%c0_2, %c0_3], %1 {strides = array<i32>} : memref<16x16xf32, #tpu.memory_space<vmem>>, vector<2x16xf32>,
    %c1 = arith.constant 1 : index
    %c0_4 = arith.constant 0 : index
    %c0_5 = arith.constant 0 : index
    %3 = vector.load %arg1[%c1, %c0_4, %c0_5] : memref<8x2x16xf32, #tpu.memory_space<vmem>>, vector<1x2x16xf32>
    %4 = vector.shape_cast %3 : vector<1x2x16xf32> to vector<2x16xf32>
    %c2 = arith.constant 2 : index
    %c0_6 = arith.constant 0 : index
    %5 = vector.load %arg16[%c2, %c0_6] : memref<16x16xf32, #tpu.memory_space<vmem>>, vector<2x16xf32>
    tpu.vector_store %arg16[%c2, %c0_6], %4 {strides = array<i32>} : memref<16x16xf32, #tpu.memory_space<vmem>>, vector<2x16xf32>,
    %c2_7 = arith.constant 2 : index
    %c0_8 = arith.constant 0 : index
    %c0_9 = arith.constant 0 : index
    %6 = vector.load %arg1[%c2_7, %c0_8, %c0_9] : memref<8x2x16xf32, #tpu.memory_space<vmem>>, vector<1x2x16xf32>
    %7 = vector.shape_cast %6 : vector<1x2x16xf32> to vector<2x16xf32>
    %c4 = arith.constant 4 : index
    %c0_10 = arith.constant 0 : index
    %8 = vector.load %arg16[%c4, %c0_10] : memref<16x16xf32, #tpu.memory_space<vmem>>, vector<2x16xf32>
    tpu.vector_store %arg16[%c4, %c0_10], %7 {strides = array<i32>} : memref<16x16xf32, #tpu.memory_space<vmem>>, vector<2x16xf32>,
    %c3 = arith.constant 3 : index
    %c0_11 = arith.constant 0 : index
    %c0_12 = arith.constant 0 : index
    %9 = vector.load %arg1[%c3, %c0_11, %c0_12] : memref<8x2x16xf32, #tpu.memory_space<vmem>>, vector<1x2x16xf32>
    %10 = vector.shape_cast %9 : vector<1x2x16xf32> to vector<2x16xf32>
    %c6 = arith.constant 6 : index
    %c0_13 = arith.constant 0 : index
    %11 = vector.load %arg16[%c6, %c0_13] : memref<16x16xf32, #tpu.memory_space<vmem>>, vector<2x16xf32>
    tpu.vector_store %arg16[%c6, %c0_13], %10 {strides = array<i32>} : memref<16x16xf32, #tpu.memory_space<vmem>>, vector<2x16xf32>,
    %c4_14 = arith.constant 4 : index
    %c0_15 = arith.constant 0 : index
    %c0_16 = arith.constant 0 : index
    %12 = vector.load %arg1[%c4_14, %c0_15, %c0_16] : memref<8x2x16xf32, #tpu.memory_space<vmem>>, vector<1x2x16xf32>
    %13 = vector.shape_cast %12 : vector<1x2x16xf32> to vector<2x16xf32>
    %c8 = arith.constant 8 : index
    %c0_17 = arith.constant 0 : index
    %14 = vector.load %arg16[%c8, %c0_17] : memref<16x16xf32, #tpu.memory_space<vmem>>, vector<2x16xf32>
    tpu.vector_store %arg16[%c8, %c0_17], %13 {strides = array<i32>} : memref<16x16xf32, #tpu.memory_space<vmem>>, vector<2x16xf32>,
    %c5 = arith.constant 5 : index
    %c0_18 = arith.constant 0 : index
    %c0_19 = arith.constant 0 : index
    %15 = vector.load %arg1[%c5, %c0_18, %c0_19] : memref<8x2x16xf32, #tpu.memory_space<vmem>>, vector<1x2x16xf32>
    %16 = vector.shape_cast %15 : vector<1x2x16xf32> to vector<2x16xf32>
    %c10 = arith.constant 10 : index
    %c0_20 = arith.constant 0 : index
    %17 = vector.load %arg16[%c10, %c0_20] : memref<16x16xf32, #tpu.memory_space<vmem>>, vector<2x16xf32>
    tpu.vector_store %arg16[%c10, %c0_20], %16 {strides = array<i32>} : memref<16x16xf32, #tpu.memory_space<vmem>>, vector<2x16xf32>,
    %c6_21 = arith.constant 6 : index
    %c0_22 = arith.constant 0 : index
    %c0_23 = arith.constant 0 : index
    %18 = vector.load %arg1[%c6_21, %c0_22, %c0_23] : memref<8x2x16xf32, #tpu.memory_space<vmem>>, vector<1x2x16xf32>
    %19 = vector.shape_cast %18 : vector<1x2x16xf32> to vector<2x16xf32>
    %c12 = arith.constant 12 : index
    %c0_24 = arith.constant 0 : index
    %20 = vector.load %arg16[%c12, %c0_24] : memref<16x16xf32, #tpu.memory_space<vmem>>, vector<2x16xf32>
    tpu.vector_store %arg16[%c12, %c0_24], %19 {strides = array<i32>} : memref<16x16xf32, #tpu.memory_space<vmem>>, vector<2x16xf32>,
    %c7 = arith.constant 7 : index
    %c0_25 = arith.constant 0 : index
    %c0_26 = arith.constant 0 : index
    %21 = vector.load %arg1[%c7, %c0_25, %c0_26] : memref<8x2x16xf32, #tpu.memory_space<vmem>>, vector<1x2x16xf32>
    %22 = vector.shape_cast %21 : vector<1x2x16xf32> to vector<2x16xf32>
    %c14 = arith.constant 14 : index
    %c0_27 = arith.constant 0 : index
    %23 = vector.load %arg16[%c14, %c0_27] : memref<16x16xf32, #tpu.memory_space<vmem>>, vector<2x16xf32>
    tpu.vector_store %arg16[%c14, %c0_27], %22 {strides = array<i32>} : memref<16x16xf32, #tpu.memory_space<vmem>>, vector<2x16xf32>,
    %c0_28 = arith.constant 0 : index
    %c0_29 = arith.constant 0 : index
    %24 = vector.load %arg16[%c0_28, %c0_29] : memref<16x16xf32, #tpu.memory_space<vmem>>, vector<16x16xf32>
    %c0_30 = arith.constant 0 : index
    %c0_31 = arith.constant 0 : index
    %25 = vector.load %arg2[%c0_30, %c0_31] : memref<16x128xf32, #tpu.memory_space<vmem>>, vector<16x128xf32>
    %cst = arith.constant dense<0.000000e+00> : vector<16x128xf32>
    %26 = tpu.matmul %24, %25, %cst {dimension_numbers = #tpu.dot_dimension_numbers<[1], [0], [0], [1], [0, 0, 1, 1], [], []>, precision = #tpu.contract_precision<fp32>} : vector<16x16xf32>, vector<16x128xf32>, vector<16x128xf32> -> vector<16x128xf32>
    %c0_32 = arith.constant 0 : index
    %c0_33 = arith.constant 0 : index
    %27 = vector.load %arg4[%c0_32, %c0_33] : memref<1x128xf32, #tpu.memory_space<vmem>>, vector<1x128xf32>
    %28 = vector.broadcast %27 : vector<1x128xf32> to vector<16x128xf32>
    %29 = arith.addf %26, %28 : vector<16x128xf32>
    %c0_34 = arith.constant 0 : index
    %c0_35 = arith.constant 0 : index
    %30 = vector.load %arg3[%c0_34, %c0_35] : memref<32x128xf32, #tpu.memory_space<vmem>>, vector<32x128xf32>
    %c0_36 = arith.constant 0 : index
    %c0_37 = arith.constant 0 : index
    %31 = vector.load %arg5[%c0_36, %c0_37] : memref<64x128xf32, #tpu.memory_space<vmem>>, vector<64x128xf32>
    %c0_38 = arith.constant 0 : index
    %c0_39 = arith.constant 0 : index
    %32 = vector.load %arg6[%c0_38, %c0_39] : memref<1x128xf32, #tpu.memory_space<vmem>>, vector<1x128xf32>
    %cst_40 = arith.constant 0.000000e+00 : f32
    %33 = vector.broadcast %cst_40 : f32 to vector<2x32xf32>
    %cst_41 = arith.constant 0.000000e+00 : f32
    %34 = vector.broadcast %cst_41 : f32 to vector<2x32xf32>
    %cst_42 = arith.constant 0.000000e+00 : f32
    %35 = vector.broadcast %cst_42 : f32 to vector<2x32xf32>
    %cst_43 = arith.constant 0.000000e+00 : f32
    %36 = vector.broadcast %cst_43 : f32 to vector<2x32xf32>
    %37 = vector.extract_strided_slice %29 {offsets = [0, 0], sizes = [2, 128], strides = [1, 1]} : vector<16x128xf32> to vector<2x128xf32>
    %cst_44 = arith.constant dense<0.000000e+00> : vector<2x128xf32>
    %38 = tpu.matmul %33, %30, %cst_44 {dimension_numbers = #tpu.dot_dimension_numbers<[1], [0], [0], [1], [0, 0, 1, 1], [], []>, precision = #tpu.contract_precision<fp32>} : vector<2x32xf32>, vector<32x128xf32>, vector<2x128xf32> -> vector<2x128xf32>
    %39 = arith.addf %37, %38 : vector<2x128xf32>
    %40 = arith.negf %39 : vector<2x128xf32>
    %41 = math.exp %40 : vector<2x128xf32>
    %cst_45 = arith.constant 1.000000e+00 : f32
    %42 = vector.broadcast %cst_45 : f32 to vector<2x128xf32>
    %43 = arith.addf %42, %41 : vector<2x128xf32>
    %44 = arith.divf %42, %43 : vector<2x128xf32>
    %45 = vector.extract_strided_slice %39 {offsets = [0, 64], sizes = [2, 32], strides = [1, 1]} : vector<2x128xf32> to vector<2x32xf32>
    %46 = math.tanh %45 : vector<2x32xf32>
    %47 = vector.extract_strided_slice %44 {offsets = [0, 0], sizes = [2, 32], strides = [1, 1]} : vector<2x128xf32> to vector<2x32xf32>
    %48 = vector.extract_strided_slice %44 {offsets = [0, 32], sizes = [2, 32], strides = [1, 1]} : vector<2x128xf32> to vector<2x32xf32>
    %49 = vector.extract_strided_slice %44 {offsets = [0, 96], sizes = [2, 32], strides = [1, 1]} : vector<2x128xf32> to vector<2x32xf32>
    %50 = arith.mulf %48, %34 : vector<2x32xf32>
    %51 = arith.mulf %47, %46 : vector<2x32xf32>
    %52 = arith.addf %50, %51 : vector<2x32xf32>
    %53 = math.tanh %52 : vector<2x32xf32>
    %54 = arith.mulf %49, %53 : vector<2x32xf32>
    %55 = tpu.concatenate %54, %35 in 1 : vector<2x32xf32>, vector<2x32xf32> -> vector<2x64xf32>
    %cst_46 = arith.constant dense<0.000000e+00> : vector<2x128xf32>
    %56 = tpu.matmul %55, %31, %cst_46 {dimension_numbers = #tpu.dot_dimension_numbers<[1], [0], [0], [1], [0, 0, 1, 1], [], []>, precision = #tpu.contract_precision<fp32>} : vector<2x64xf32>, vector<64x128xf32>, vector<2x128xf32> -> vector<2x128xf32>
    %57 = vector.broadcast %32 : vector<1x128xf32> to vector<2x128xf32>
    %58 = arith.addf %56, %57 : vector<2x128xf32>
    %59 = arith.negf %58 : vector<2x128xf32>
    %60 = math.exp %59 : vector<2x128xf32>
    %cst_47 = arith.constant 1.000000e+00 : f32
    %61 = vector.broadcast %cst_47 : f32 to vector<2x128xf32>
    %62 = arith.addf %61, %60 : vector<2x128xf32>
    %63 = arith.divf %61, %62 : vector<2x128xf32>
    %64 = vector.extract_strided_slice %58 {offsets = [0, 64], sizes = [2, 32], strides = [1, 1]} : vector<2x128xf32> to vector<2x32xf32>
    %65 = math.tanh %64 : vector<2x32xf32>
    %66 = vector.extract_strided_slice %63 {offsets = [0, 0], sizes = [2, 32], strides = [1, 1]} : vector<2x128xf32> to vector<2x32xf32>
    %67 = vector.extract_strided_slice %63 {offsets = [0, 32], sizes = [2, 32], strides = [1, 1]} : vector<2x128xf32> to vector<2x32xf32>
    %68 = vector.extract_strided_slice %63 {offsets = [0, 96], sizes = [2, 32], strides = [1, 1]} : vector<2x128xf32> to vector<2x32xf32>
    %69 = arith.mulf %67, %36 : vector<2x32xf32>
    %70 = arith.mulf %66, %65 : vector<2x32xf32>
    %71 = arith.addf %69, %70 : vector<2x32xf32>
    %72 = math.tanh %71 : vector<2x32xf32>
    %73 = arith.mulf %68, %72 : vector<2x32xf32>
    %74 = vector.extract_strided_slice %29 {offsets = [2, 0], sizes = [2, 128], strides = [1, 1]} : vector<16x128xf32> to vector<2x128xf32>
    %cst_48 = arith.constant dense<0.000000e+00> : vector<2x128xf32>
    %75 = tpu.matmul %54, %30, %cst_48 {dimension_numbers = #tpu.dot_dimension_numbers<[1], [0], [0], [1], [0, 0, 1, 1], [], []>, precision = #tpu.contract_precision<fp32>} : vector<2x32xf32>, vector<32x128xf32>, vector<2x128xf32> -> vector<2x128xf32>
    %76 = arith.addf %74, %75 : vector<2x128xf32>
    %77 = arith.negf %76 : vector<2x128xf32>
    %78 = math.exp %77 : vector<2x128xf32>
    %cst_49 = arith.constant 1.000000e+00 : f32
    %79 = vector.broadcast %cst_49 : f32 to vector<2x128xf32>
    %80 = arith.addf %79, %78 : vector<2x128xf32>
    %81 = arith.divf %79, %80 : vector<2x128xf32>
    %82 = vector.extract_strided_slice %76 {offsets = [0, 64], sizes = [2, 32], strides = [1, 1]} : vector<2x128xf32> to vector<2x32xf32>
    %83 = math.tanh %82 : vector<2x32xf32>
    %84 = vector.extract_strided_slice %81 {offsets = [0, 0], sizes = [2, 32], strides = [1, 1]} : vector<2x128xf32> to vector<2x32xf32>
    %85 = vector.extract_strided_slice %81 {offsets = [0, 32], sizes = [2, 32], strides = [1, 1]} : vector<2x128xf32> to vector<2x32xf32>
    %86 = vector.extract_strided_slice %81 {offsets = [0, 96], sizes = [2, 32], strides = [1, 1]} : vector<2x128xf32> to vector<2x32xf32>
    %87 = arith.mulf %85, %52 : vector<2x32xf32>
    %88 = arith.mulf %84, %83 : vector<2x32xf32>
    %89 = arith.addf %87, %88 : vector<2x32xf32>
    %90 = math.tanh %89 : vector<2x32xf32>
    %91 = arith.mulf %86, %90 : vector<2x32xf32>
    %92 = tpu.concatenate %91, %73 in 1 : vector<2x32xf32>, vector<2x32xf32> -> vector<2x64xf32>
    %cst_50 = arith.constant dense<0.000000e+00> : vector<2x128xf32>
    %93 = tpu.matmul %92, %31, %cst_50 {dimension_numbers = #tpu.dot_dimension_numbers<[1], [0], [0], [1], [0, 0, 1, 1], [], []>, precision = #tpu.contract_precision<fp32>} : vector<2x64xf32>, vector<64x128xf32>, vector<2x128xf32> -> vector<2x128xf32>
    %94 = vector.broadcast %32 : vector<1x128xf32> to vector<2x128xf32>
    %95 = arith.addf %93, %94 : vector<2x128xf32>
    %96 = arith.negf %95 : vector<2x128xf32>
    %97 = math.exp %96 : vector<2x128xf32>
    %cst_51 = arith.constant 1.000000e+00 : f32
    %98 = vector.broadcast %cst_51 : f32 to vector<2x128xf32>
    %99 = arith.addf %98, %97 : vector<2x128xf32>
    %100 = arith.divf %98, %99 : vector<2x128xf32>
    %101 = vector.extract_strided_slice %95 {offsets = [0, 64], sizes = [2, 32], strides = [1, 1]} : vector<2x128xf32> to vector<2x32xf32>
    %102 = math.tanh %101 : vector<2x32xf32>
    %103 = vector.extract_strided_slice %100 {offsets = [0, 0], sizes = [2, 32], strides = [1, 1]} : vector<2x128xf32> to vector<2x32xf32>
    %104 = vector.extract_strided_slice %100 {offsets = [0, 32], sizes = [2, 32], strides = [1, 1]} : vector<2x128xf32> to vector<2x32xf32>
    %105 = vector.extract_strided_slice %100 {offsets = [0, 96], sizes = [2, 32], strides = [1, 1]} : vector<2x128xf32> to vector<2x32xf32>
    %106 = arith.mulf %104, %71 : vector<2x32xf32>
    %107 = arith.mulf %103, %102 : vector<2x32xf32>
    %108 = arith.addf %106, %107 : vector<2x32xf32>
    %109 = math.tanh %108 : vector<2x32xf32>
    %110 = arith.mulf %105, %109 : vector<2x32xf32>
    %111 = vector.extract_strided_slice %29 {offsets = [4, 0], sizes = [2, 128], strides = [1, 1]} : vector<16x128xf32> to vector<2x128xf32>
    %cst_52 = arith.constant dense<0.000000e+00> : vector<2x128xf32>
    %112 = tpu.matmul %91, %30, %cst_52 {dimension_numbers = #tpu.dot_dimension_numbers<[1], [0], [0], [1], [0, 0, 1, 1], [], []>, precision = #tpu.contract_precision<fp32>} : vector<2x32xf32>, vector<32x128xf32>, vector<2x128xf32> -> vector<2x128xf32>
    %113 = arith.addf %111, %112 : vector<2x128xf32>
    %114 = arith.negf %113 : vector<2x128xf32>
    %115 = math.exp %114 : vector<2x128xf32>
    %cst_53 = arith.constant 1.000000e+00 : f32
    %116 = vector.broadcast %cst_53 : f32 to vector<2x128xf32>
    %117 = arith.addf %116, %115 : vector<2x128xf32>
    %118 = arith.divf %116, %117 : vector<2x128xf32>
    %119 = vector.extract_strided_slice %113 {offsets = [0, 64], sizes = [2, 32], strides = [1, 1]} : vector<2x128xf32> to vector<2x32xf32>
    %120 = math.tanh %119 : vector<2x32xf32>
    %121 = vector.extract_strided_slice %118 {offsets = [0, 0], sizes = [2, 32], strides = [1, 1]} : vector<2x128xf32> to vector<2x32xf32>
    %122 = vector.extract_strided_slice %118 {offsets = [0, 32], sizes = [2, 32], strides = [1, 1]} : vector<2x128xf32> to vector<2x32xf32>
    %123 = vector.extract_strided_slice %118 {offsets = [0, 96], sizes = [2, 32], strides = [1, 1]} : vector<2x128xf32> to vector<2x32xf32>
    %124 = arith.mulf %122, %89 : vector<2x32xf32>
    %125 = arith.mulf %121, %120 : vector<2x32xf32>
    %126 = arith.addf %124, %125 : vector<2x32xf32>
    %127 = math.tanh %126 : vector<2x32xf32>
    %128 = arith.mulf %123, %127 : vector<2x32xf32>
    %129 = tpu.concatenate %128, %110 in 1 : vector<2x32xf32>, vector<2x32xf32> -> vector<2x64xf32>
    %cst_54 = arith.constant dense<0.000000e+00> : vector<2x128xf32>
    %130 = tpu.matmul %129, %31, %cst_54 {dimension_numbers = #tpu.dot_dimension_numbers<[1], [0], [0], [1], [0, 0, 1, 1], [], []>, precision = #tpu.contract_precision<fp32>} : vector<2x64xf32>, vector<64x128xf32>, vector<2x128xf32> -> vector<2x128xf32>
    %131 = vector.broadcast %32 : vector<1x128xf32> to vector<2x128xf32>
    %132 = arith.addf %130, %131 : vector<2x128xf32>
    %133 = arith.negf %132 : vector<2x128xf32>
    %134 = math.exp %133 : vector<2x128xf32>
    %cst_55 = arith.constant 1.000000e+00 : f32
    %135 = vector.broadcast %cst_55 : f32 to vector<2x128xf32>
    %136 = arith.addf %135, %134 : vector<2x128xf32>
    %137 = arith.divf %135, %136 : vector<2x128xf32>
    %138 = vector.extract_strided_slice %132 {offsets = [0, 64], sizes = [2, 32], strides = [1, 1]} : vector<2x128xf32> to vector<2x32xf32>
    %139 = math.tanh %138 : vector<2x32xf32>
    %140 = vector.extract_strided_slice %137 {offsets = [0, 0], sizes = [2, 32], strides = [1, 1]} : vector<2x128xf32> to vector<2x32xf32>
    %141 = vector.extract_strided_slice %137 {offsets = [0, 32], sizes = [2, 32], strides = [1, 1]} : vector<2x128xf32> to vector<2x32xf32>
    %142 = vector.extract_strided_slice %137 {offsets = [0, 96], sizes = [2, 32], strides = [1, 1]} : vector<2x128xf32> to vector<2x32xf32>
    %143 = arith.mulf %141, %108 : vector<2x32xf32>
    %144 = arith.mulf %140, %139 : vector<2x32xf32>
    %145 = arith.addf %143, %144 : vector<2x32xf32>
    %146 = math.tanh %145 : vector<2x32xf32>
    %147 = arith.mulf %142, %146 : vector<2x32xf32>
    %148 = vector.extract_strided_slice %29 {offsets = [6, 0], sizes = [2, 128], strides = [1, 1]} : vector<16x128xf32> to vector<2x128xf32>
    %cst_56 = arith.constant dense<0.000000e+00> : vector<2x128xf32>
    %149 = tpu.matmul %128, %30, %cst_56 {dimension_numbers = #tpu.dot_dimension_numbers<[1], [0], [0], [1], [0, 0, 1, 1], [], []>, precision = #tpu.contract_precision<fp32>} : vector<2x32xf32>, vector<32x128xf32>, vector<2x128xf32> -> vector<2x128xf32>
    %150 = arith.addf %148, %149 : vector<2x128xf32>
    %151 = arith.negf %150 : vector<2x128xf32>
    %152 = math.exp %151 : vector<2x128xf32>
    %cst_57 = arith.constant 1.000000e+00 : f32
    %153 = vector.broadcast %cst_57 : f32 to vector<2x128xf32>
    %154 = arith.addf %153, %152 : vector<2x128xf32>
    %155 = arith.divf %153, %154 : vector<2x128xf32>
    %156 = vector.extract_strided_slice %150 {offsets = [0, 64], sizes = [2, 32], strides = [1, 1]} : vector<2x128xf32> to vector<2x32xf32>
    %157 = math.tanh %156 : vector<2x32xf32>
    %158 = vector.extract_strided_slice %155 {offsets = [0, 0], sizes = [2, 32], strides = [1, 1]} : vector<2x128xf32> to vector<2x32xf32>
    %159 = vector.extract_strided_slice %155 {offsets = [0, 32], sizes = [2, 32], strides = [1, 1]} : vector<2x128xf32> to vector<2x32xf32>
    %160 = vector.extract_strided_slice %155 {offsets = [0, 96], sizes = [2, 32], strides = [1, 1]} : vector<2x128xf32> to vector<2x32xf32>
    %161 = arith.mulf %159, %126 : vector<2x32xf32>
    %162 = arith.mulf %158, %157 : vector<2x32xf32>
    %163 = arith.addf %161, %162 : vector<2x32xf32>
    %164 = math.tanh %163 : vector<2x32xf32>
    %165 = arith.mulf %160, %164 : vector<2x32xf32>
    %166 = tpu.concatenate %165, %147 in 1 : vector<2x32xf32>, vector<2x32xf32> -> vector<2x64xf32>
    %cst_58 = arith.constant dense<0.000000e+00> : vector<2x128xf32>
    %167 = tpu.matmul %166, %31, %cst_58 {dimension_numbers = #tpu.dot_dimension_numbers<[1], [0], [0], [1], [0, 0, 1, 1], [], []>, precision = #tpu.contract_precision<fp32>} : vector<2x64xf32>, vector<64x128xf32>, vector<2x128xf32> -> vector<2x128xf32>
    %168 = vector.broadcast %32 : vector<1x128xf32> to vector<2x128xf32>
    %169 = arith.addf %167, %168 : vector<2x128xf32>
    %170 = arith.negf %169 : vector<2x128xf32>
    %171 = math.exp %170 : vector<2x128xf32>
    %cst_59 = arith.constant 1.000000e+00 : f32
    %172 = vector.broadcast %cst_59 : f32 to vector<2x128xf32>
    %173 = arith.addf %172, %171 : vector<2x128xf32>
    %174 = arith.divf %172, %173 : vector<2x128xf32>
    %175 = vector.extract_strided_slice %169 {offsets = [0, 64], sizes = [2, 32], strides = [1, 1]} : vector<2x128xf32> to vector<2x32xf32>
    %176 = math.tanh %175 : vector<2x32xf32>
    %177 = vector.extract_strided_slice %174 {offsets = [0, 0], sizes = [2, 32], strides = [1, 1]} : vector<2x128xf32> to vector<2x32xf32>
    %178 = vector.extract_strided_slice %174 {offsets = [0, 32], sizes = [2, 32], strides = [1, 1]} : vector<2x128xf32> to vector<2x32xf32>
    %179 = vector.extract_strided_slice %174 {offsets = [0, 96], sizes = [2, 32], strides = [1, 1]} : vector<2x128xf32> to vector<2x32xf32>
    %180 = arith.mulf %178, %145 : vector<2x32xf32>
    %181 = arith.mulf %177, %176 : vector<2x32xf32>
    %182 = arith.addf %180, %181 : vector<2x32xf32>
    %183 = math.tanh %182 : vector<2x32xf32>
    %184 = arith.mulf %179, %183 : vector<2x32xf32>
    %185 = vector.extract_strided_slice %29 {offsets = [8, 0], sizes = [2, 128], strides = [1, 1]} : vector<16x128xf32> to vector<2x128xf32>
    %cst_60 = arith.constant dense<0.000000e+00> : vector<2x128xf32>
    %186 = tpu.matmul %165, %30, %cst_60 {dimension_numbers = #tpu.dot_dimension_numbers<[1], [0], [0], [1], [0, 0, 1, 1], [], []>, precision = #tpu.contract_precision<fp32>} : vector<2x32xf32>, vector<32x128xf32>, vector<2x128xf32> -> vector<2x128xf32>
    %187 = arith.addf %185, %186 : vector<2x128xf32>
    %188 = arith.negf %187 : vector<2x128xf32>
    %189 = math.exp %188 : vector<2x128xf32>
    %cst_61 = arith.constant 1.000000e+00 : f32
    %190 = vector.broadcast %cst_61 : f32 to vector<2x128xf32>
    %191 = arith.addf %190, %189 : vector<2x128xf32>
    %192 = arith.divf %190, %191 : vector<2x128xf32>
    %193 = vector.extract_strided_slice %187 {offsets = [0, 64], sizes = [2, 32], strides = [1, 1]} : vector<2x128xf32> to vector<2x32xf32>
    %194 = math.tanh %193 : vector<2x32xf32>
    %195 = vector.extract_strided_slice %192 {offsets = [0, 0], sizes = [2, 32], strides = [1, 1]} : vector<2x128xf32> to vector<2x32xf32>
    %196 = vector.extract_strided_slice %192 {offsets = [0, 32], sizes = [2, 32], strides = [1, 1]} : vector<2x128xf32> to vector<2x32xf32>
    %197 = vector.extract_strided_slice %192 {offsets = [0, 96], sizes = [2, 32], strides = [1, 1]} : vector<2x128xf32> to vector<2x32xf32>
    %198 = arith.mulf %196, %163 : vector<2x32xf32>
    %199 = arith.mulf %195, %194 : vector<2x32xf32>
    %200 = arith.addf %198, %199 : vector<2x32xf32>
    %201 = math.tanh %200 : vector<2x32xf32>
    %202 = arith.mulf %197, %201 : vector<2x32xf32>
    %203 = tpu.concatenate %202, %184 in 1 : vector<2x32xf32>, vector<2x32xf32> -> vector<2x64xf32>
    %cst_62 = arith.constant dense<0.000000e+00> : vector<2x128xf32>
    %204 = tpu.matmul %203, %31, %cst_62 {dimension_numbers = #tpu.dot_dimension_numbers<[1], [0], [0], [1], [0, 0, 1, 1], [], []>, precision = #tpu.contract_precision<fp32>} : vector<2x64xf32>, vector<64x128xf32>, vector<2x128xf32> -> vector<2x128xf32>
    %205 = vector.broadcast %32 : vector<1x128xf32> to vector<2x128xf32>
    %206 = arith.addf %204, %205 : vector<2x128xf32>
    %207 = arith.negf %206 : vector<2x128xf32>
    %208 = math.exp %207 : vector<2x128xf32>
    %cst_63 = arith.constant 1.000000e+00 : f32
    %209 = vector.broadcast %cst_63 : f32 to vector<2x128xf32>
    %210 = arith.addf %209, %208 : vector<2x128xf32>
    %211 = arith.divf %209, %210 : vector<2x128xf32>
    %212 = vector.extract_strided_slice %206 {offsets = [0, 64], sizes = [2, 32], strides = [1, 1]} : vector<2x128xf32> to vector<2x32xf32>
    %213 = math.tanh %212 : vector<2x32xf32>
    %214 = vector.extract_strided_slice %211 {offsets = [0, 0], sizes = [2, 32], strides = [1, 1]} : vector<2x128xf32> to vector<2x32xf32>
    %215 = vector.extract_strided_slice %211 {offsets = [0, 32], sizes = [2, 32], strides = [1, 1]} : vector<2x128xf32> to vector<2x32xf32>
    %216 = vector.extract_strided_slice %211 {offsets = [0, 96], sizes = [2, 32], strides = [1, 1]} : vector<2x128xf32> to vector<2x32xf32>
    %217 = arith.mulf %215, %182 : vector<2x32xf32>
    %218 = arith.mulf %214, %213 : vector<2x32xf32>
    %219 = arith.addf %217, %218 : vector<2x32xf32>
    %220 = math.tanh %219 : vector<2x32xf32>
    %221 = arith.mulf %216, %220 : vector<2x32xf32>
    %222 = vector.extract_strided_slice %29 {offsets = [10, 0], sizes = [2, 128], strides = [1, 1]} : vector<16x128xf32> to vector<2x128xf32>
    %cst_64 = arith.constant dense<0.000000e+00> : vector<2x128xf32>
    %223 = tpu.matmul %202, %30, %cst_64 {dimension_numbers = #tpu.dot_dimension_numbers<[1], [0], [0], [1], [0, 0, 1, 1], [], []>, precision = #tpu.contract_precision<fp32>} : vector<2x32xf32>, vector<32x128xf32>, vector<2x128xf32> -> vector<2x128xf32>
    %224 = arith.addf %222, %223 : vector<2x128xf32>
    %225 = arith.negf %224 : vector<2x128xf32>
    %226 = math.exp %225 : vector<2x128xf32>
    %cst_65 = arith.constant 1.000000e+00 : f32
    %227 = vector.broadcast %cst_65 : f32 to vector<2x128xf32>
    %228 = arith.addf %227, %226 : vector<2x128xf32>
    %229 = arith.divf %227, %228 : vector<2x128xf32>
    %230 = vector.extract_strided_slice %224 {offsets = [0, 64], sizes = [2, 32], strides = [1, 1]} : vector<2x128xf32> to vector<2x32xf32>
    %231 = math.tanh %230 : vector<2x32xf32>
    %232 = vector.extract_strided_slice %229 {offsets = [0, 0], sizes = [2, 32], strides = [1, 1]} : vector<2x128xf32> to vector<2x32xf32>
    %233 = vector.extract_strided_slice %229 {offsets = [0, 32], sizes = [2, 32], strides = [1, 1]} : vector<2x128xf32> to vector<2x32xf32>
    %234 = vector.extract_strided_slice %229 {offsets = [0, 96], sizes = [2, 32], strides = [1, 1]} : vector<2x128xf32> to vector<2x32xf32>
    %235 = arith.mulf %233, %200 : vector<2x32xf32>
    %236 = arith.mulf %232, %231 : vector<2x32xf32>
    %237 = arith.addf %235, %236 : vector<2x32xf32>
    %238 = math.tanh %237 : vector<2x32xf32>
    %239 = arith.mulf %234, %238 : vector<2x32xf32>
    %240 = tpu.concatenate %239, %221 in 1 : vector<2x32xf32>, vector<2x32xf32> -> vector<2x64xf32>
    %cst_66 = arith.constant dense<0.000000e+00> : vector<2x128xf32>
    %241 = tpu.matmul %240, %31, %cst_66 {dimension_numbers = #tpu.dot_dimension_numbers<[1], [0], [0], [1], [0, 0, 1, 1], [], []>, precision = #tpu.contract_precision<fp32>} : vector<2x64xf32>, vector<64x128xf32>, vector<2x128xf32> -> vector<2x128xf32>
    %242 = vector.broadcast %32 : vector<1x128xf32> to vector<2x128xf32>
    %243 = arith.addf %241, %242 : vector<2x128xf32>
    %244 = arith.negf %243 : vector<2x128xf32>
    %245 = math.exp %244 : vector<2x128xf32>
    %cst_67 = arith.constant 1.000000e+00 : f32
    %246 = vector.broadcast %cst_67 : f32 to vector<2x128xf32>
    %247 = arith.addf %246, %245 : vector<2x128xf32>
    %248 = arith.divf %246, %247 : vector<2x128xf32>
    %249 = vector.extract_strided_slice %243 {offsets = [0, 64], sizes = [2, 32], strides = [1, 1]} : vector<2x128xf32> to vector<2x32xf32>
    %250 = math.tanh %249 : vector<2x32xf32>
    %251 = vector.extract_strided_slice %248 {offsets = [0, 0], sizes = [2, 32], strides = [1, 1]} : vector<2x128xf32> to vector<2x32xf32>
    %252 = vector.extract_strided_slice %248 {offsets = [0, 32], sizes = [2, 32], strides = [1, 1]} : vector<2x128xf32> to vector<2x32xf32>
    %253 = vector.extract_strided_slice %248 {offsets = [0, 96], sizes = [2, 32], strides = [1, 1]} : vector<2x128xf32> to vector<2x32xf32>
    %254 = arith.mulf %252, %219 : vector<2x32xf32>
    %255 = arith.mulf %251, %250 : vector<2x32xf32>
    %256 = arith.addf %254, %255 : vector<2x32xf32>
    %257 = math.tanh %256 : vector<2x32xf32>
    %258 = arith.mulf %253, %257 : vector<2x32xf32>
    %259 = vector.extract_strided_slice %29 {offsets = [12, 0], sizes = [2, 128], strides = [1, 1]} : vector<16x128xf32> to vector<2x128xf32>
    %cst_68 = arith.constant dense<0.000000e+00> : vector<2x128xf32>
    %260 = tpu.matmul %239, %30, %cst_68 {dimension_numbers = #tpu.dot_dimension_numbers<[1], [0], [0], [1], [0, 0, 1, 1], [], []>, precision = #tpu.contract_precision<fp32>} : vector<2x32xf32>, vector<32x128xf32>, vector<2x128xf32> -> vector<2x128xf32>
    %261 = arith.addf %259, %260 : vector<2x128xf32>
    %262 = arith.negf %261 : vector<2x128xf32>
    %263 = math.exp %262 : vector<2x128xf32>
    %cst_69 = arith.constant 1.000000e+00 : f32
    %264 = vector.broadcast %cst_69 : f32 to vector<2x128xf32>
    %265 = arith.addf %264, %263 : vector<2x128xf32>
    %266 = arith.divf %264, %265 : vector<2x128xf32>
    %267 = vector.extract_strided_slice %261 {offsets = [0, 64], sizes = [2, 32], strides = [1, 1]} : vector<2x128xf32> to vector<2x32xf32>
    %268 = math.tanh %267 : vector<2x32xf32>
    %269 = vector.extract_strided_slice %266 {offsets = [0, 0], sizes = [2, 32], strides = [1, 1]} : vector<2x128xf32> to vector<2x32xf32>
    %270 = vector.extract_strided_slice %266 {offsets = [0, 32], sizes = [2, 32], strides = [1, 1]} : vector<2x128xf32> to vector<2x32xf32>
    %271 = vector.extract_strided_slice %266 {offsets = [0, 96], sizes = [2, 32], strides = [1, 1]} : vector<2x128xf32> to vector<2x32xf32>
    %272 = arith.mulf %270, %237 : vector<2x32xf32>
    %273 = arith.mulf %269, %268 : vector<2x32xf32>
    %274 = arith.addf %272, %273 : vector<2x32xf32>
    %275 = math.tanh %274 : vector<2x32xf32>
    %276 = arith.mulf %271, %275 : vector<2x32xf32>
    %277 = tpu.concatenate %276, %258 in 1 : vector<2x32xf32>, vector<2x32xf32> -> vector<2x64xf32>
    %cst_70 = arith.constant dense<0.000000e+00> : vector<2x128xf32>
    %278 = tpu.matmul %277, %31, %cst_70 {dimension_numbers = #tpu.dot_dimension_numbers<[1], [0], [0], [1], [0, 0, 1, 1], [], []>, precision = #tpu.contract_precision<fp32>} : vector<2x64xf32>, vector<64x128xf32>, vector<2x128xf32> -> vector<2x128xf32>
    %279 = vector.broadcast %32 : vector<1x128xf32> to vector<2x128xf32>
    %280 = arith.addf %278, %279 : vector<2x128xf32>
    %281 = arith.negf %280 : vector<2x128xf32>
    %282 = math.exp %281 : vector<2x128xf32>
    %cst_71 = arith.constant 1.000000e+00 : f32
    %283 = vector.broadcast %cst_71 : f32 to vector<2x128xf32>
    %284 = arith.addf %283, %282 : vector<2x128xf32>
    %285 = arith.divf %283, %284 : vector<2x128xf32>
    %286 = vector.extract_strided_slice %280 {offsets = [0, 64], sizes = [2, 32], strides = [1, 1]} : vector<2x128xf32> to vector<2x32xf32>
    %287 = math.tanh %286 : vector<2x32xf32>
    %288 = vector.extract_strided_slice %285 {offsets = [0, 0], sizes = [2, 32], strides = [1, 1]} : vector<2x128xf32> to vector<2x32xf32>
    %289 = vector.extract_strided_slice %285 {offsets = [0, 32], sizes = [2, 32], strides = [1, 1]} : vector<2x128xf32> to vector<2x32xf32>
    %290 = vector.extract_strided_slice %285 {offsets = [0, 96], sizes = [2, 32], strides = [1, 1]} : vector<2x128xf32> to vector<2x32xf32>
    %291 = arith.mulf %289, %256 : vector<2x32xf32>
    %292 = arith.mulf %288, %287 : vector<2x32xf32>
    %293 = arith.addf %291, %292 : vector<2x32xf32>
    %294 = math.tanh %293 : vector<2x32xf32>
    %295 = arith.mulf %290, %294 : vector<2x32xf32>
    %296 = vector.extract_strided_slice %29 {offsets = [14, 0], sizes = [2, 128], strides = [1, 1]} : vector<16x128xf32> to vector<2x128xf32>
    %cst_72 = arith.constant dense<0.000000e+00> : vector<2x128xf32>
    %297 = tpu.matmul %276, %30, %cst_72 {dimension_numbers = #tpu.dot_dimension_numbers<[1], [0], [0], [1], [0, 0, 1, 1], [], []>, precision = #tpu.contract_precision<fp32>} : vector<2x32xf32>, vector<32x128xf32>, vector<2x128xf32> -> vector<2x128xf32>
    %298 = arith.addf %296, %297 : vector<2x128xf32>
    %299 = arith.negf %298 : vector<2x128xf32>
    %300 = math.exp %299 : vector<2x128xf32>
    %cst_73 = arith.constant 1.000000e+00 : f32
    %301 = vector.broadcast %cst_73 : f32 to vector<2x128xf32>
    %302 = arith.addf %301, %300 : vector<2x128xf32>
    %303 = arith.divf %301, %302 : vector<2x128xf32>
    %304 = vector.extract_strided_slice %298 {offsets = [0, 64], sizes = [2, 32], strides = [1, 1]} : vector<2x128xf32> to vector<2x32xf32>
    %305 = math.tanh %304 : vector<2x32xf32>
    %306 = vector.extract_strided_slice %303 {offsets = [0, 0], sizes = [2, 32], strides = [1, 1]} : vector<2x128xf32> to vector<2x32xf32>
    %307 = vector.extract_strided_slice %303 {offsets = [0, 32], sizes = [2, 32], strides = [1, 1]} : vector<2x128xf32> to vector<2x32xf32>
    %308 = vector.extract_strided_slice %303 {offsets = [0, 96], sizes = [2, 32], strides = [1, 1]} : vector<2x128xf32> to vector<2x32xf32>
    %309 = arith.mulf %307, %274 : vector<2x32xf32>
    %310 = arith.mulf %306, %305 : vector<2x32xf32>
    %311 = arith.addf %309, %310 : vector<2x32xf32>
    %312 = math.tanh %311 : vector<2x32xf32>
    %313 = arith.mulf %308, %312 : vector<2x32xf32>
    %314 = tpu.concatenate %313, %295 in 1 : vector<2x32xf32>, vector<2x32xf32> -> vector<2x64xf32>
    %cst_74 = arith.constant dense<0.000000e+00> : vector<2x128xf32>
    %315 = tpu.matmul %314, %31, %cst_74 {dimension_numbers = #tpu.dot_dimension_numbers<[1], [0], [0], [1], [0, 0, 1, 1], [], []>, precision = #tpu.contract_precision<fp32>} : vector<2x64xf32>, vector<64x128xf32>, vector<2x128xf32> -> vector<2x128xf32>
    %316 = vector.broadcast %32 : vector<1x128xf32> to vector<2x128xf32>
    %317 = arith.addf %315, %316 : vector<2x128xf32>
    %318 = arith.negf %317 : vector<2x128xf32>
    %319 = math.exp %318 : vector<2x128xf32>
    %cst_75 = arith.constant 1.000000e+00 : f32
    %320 = vector.broadcast %cst_75 : f32 to vector<2x128xf32>
    %321 = arith.addf %320, %319 : vector<2x128xf32>
    %322 = arith.divf %320, %321 : vector<2x128xf32>
    %323 = vector.extract_strided_slice %317 {offsets = [0, 64], sizes = [2, 32], strides = [1, 1]} : vector<2x128xf32> to vector<2x32xf32>
    %324 = math.tanh %323 : vector<2x32xf32>
    %325 = vector.extract_strided_slice %322 {offsets = [0, 0], sizes = [2, 32], strides = [1, 1]} : vector<2x128xf32> to vector<2x32xf32>
    %326 = vector.extract_strided_slice %322 {offsets = [0, 32], sizes = [2, 32], strides = [1, 1]} : vector<2x128xf32> to vector<2x32xf32>
    %327 = vector.extract_strided_slice %322 {offsets = [0, 96], sizes = [2, 32], strides = [1, 1]} : vector<2x128xf32> to vector<2x32xf32>
    %328 = arith.mulf %326, %293 : vector<2x32xf32>
    %329 = arith.mulf %325, %324 : vector<2x32xf32>
    %330 = arith.addf %328, %329 : vector<2x32xf32>
    %331 = math.tanh %330 : vector<2x32xf32>
    %332 = arith.mulf %327, %331 : vector<2x32xf32>
    %c0_76 = arith.constant 0 : index
    %c0_77 = arith.constant 0 : index
    %333 = vector.load %arg7[%c0_76, %c0_77] : memref<32x128xf32, #tpu.memory_space<vmem>>, vector<32x128xf32>
    %cst_78 = arith.constant dense<0.000000e+00> : vector<2x128xf32>
    %334 = tpu.matmul %332, %333, %cst_78 {dimension_numbers = #tpu.dot_dimension_numbers<[1], [0], [0], [1], [0, 0, 1, 1], [], []>, precision = #tpu.contract_precision<fp32>} : vector<2x32xf32>, vector<32x128xf32>, vector<2x128xf32> -> vector<2x128xf32>
    %c0_79 = arith.constant 0 : index
    %c0_80 = arith.constant 0 : index
    %335 = vector.load %arg8[%c0_79, %c0_80] : memref<1x128xf32, #tpu.memory_space<vmem>>, vector<1x128xf32>
    %336 = vector.broadcast %335 : vector<1x128xf32> to vector<2x128xf32>
    %337 = arith.addf %334, %336 : vector<2x128xf32>
    %cst_81 = arith.constant 0.000000e+00 : f32
    %338 = vector.broadcast %cst_81 : f32 to vector<2x128xf32>
    %339 = arith.maximumf %337, %338 : vector<2x128xf32>
    %c0_82 = arith.constant 0 : index
    %c0_83 = arith.constant 0 : index
    %340 = vector.load %arg9[%c0_82, %c0_83] : memref<128x64xf32, #tpu.memory_space<vmem>>, vector<128x64xf32>
    %cst_84 = arith.constant dense<0.000000e+00> : vector<2x64xf32>
    %341 = tpu.matmul %339, %340, %cst_84 {dimension_numbers = #tpu.dot_dimension_numbers<[1], [0], [0], [1], [0, 0, 1, 1], [], []>, precision = #tpu.contract_precision<fp32>} : vector<2x128xf32>, vector<128x64xf32>, vector<2x64xf32> -> vector<2x64xf32>
    %c0_85 = arith.constant 0 : index
    %c0_86 = arith.constant 0 : index
    %342 = vector.load %arg10[%c0_85, %c0_86] : memref<1x64xf32, #tpu.memory_space<vmem>>, vector<1x64xf32>
    %343 = vector.broadcast %342 : vector<1x64xf32> to vector<2x64xf32>
    %344 = arith.addf %341, %343 : vector<2x64xf32>
    %cst_87 = arith.constant 0.000000e+00 : f32
    %345 = vector.broadcast %cst_87 : f32 to vector<2x64xf32>
    %346 = arith.maximumf %344, %345 : vector<2x64xf32>
    %c0_88 = arith.constant 0 : index
    %c0_89 = arith.constant 0 : index
    %347 = vector.load %arg11[%c0_88, %c0_89] : memref<64x32xf32, #tpu.memory_space<vmem>>, vector<64x32xf32>
    %cst_90 = arith.constant dense<0.000000e+00> : vector<2x32xf32>
    %348 = tpu.matmul %346, %347, %cst_90 {dimension_numbers = #tpu.dot_dimension_numbers<[1], [0], [0], [1], [0, 0, 1, 1], [], []>, precision = #tpu.contract_precision<fp32>} : vector<2x64xf32>, vector<64x32xf32>, vector<2x32xf32> -> vector<2x32xf32>
    %c0_91 = arith.constant 0 : index
    %c0_92 = arith.constant 0 : index
    %349 = vector.load %arg12[%c0_91, %c0_92] : memref<1x32xf32, #tpu.memory_space<vmem>>, vector<1x32xf32>
    %350 = vector.broadcast %349 : vector<1x32xf32> to vector<2x32xf32>
    %351 = arith.addf %348, %350 : vector<2x32xf32>
    %cst_93 = arith.constant 0.000000e+00 : f32
    %352 = vector.broadcast %cst_93 : f32 to vector<2x32xf32>
    %353 = arith.maximumf %351, %352 : vector<2x32xf32>
    %c0_94 = arith.constant 0 : index
    %c0_95 = arith.constant 0 : index
    %354 = vector.load %arg13[%c0_94, %c0_95] : memref<32x128xf32, #tpu.memory_space<vmem>>, vector<32x128xf32>
    %cst_96 = arith.constant dense<0.000000e+00> : vector<2x128xf32>
    %355 = tpu.matmul %353, %354, %cst_96 {dimension_numbers = #tpu.dot_dimension_numbers<[1], [0], [0], [1], [0, 0, 1, 1], [], []>, precision = #tpu.contract_precision<fp32>} : vector<2x32xf32>, vector<32x128xf32>, vector<2x128xf32> -> vector<2x128xf32>
    %c0_97 = arith.constant 0 : index
    %c0_98 = arith.constant 0 : index
    %356 = vector.load %arg14[%c0_97, %c0_98] : memref<1x128xf32, #tpu.memory_space<vmem>>, vector<1x128xf32>
    %357 = vector.broadcast %356 : vector<1x128xf32> to vector<2x128xf32>
    %358 = arith.addf %355, %357 : vector<2x128xf32>
    %c0_99 = arith.constant 0 : index
    %c0_100 = arith.constant 0 : index
    %359 = vector.load %arg15[%c0_99, %c0_100] : memref<2x128xf32, #tpu.memory_space<vmem>>, vector<2x128xf32>
    tpu.vector_store %arg15[%c0_99, %c0_100], %358 {strides = array<i32>} : memref<2x128xf32, #tpu.memory_space<vmem>>, vector<2x128xf32>,
    return
  }
  func.func @transform_0(%arg0: i32) -> (i32, i32, i32) {
    %c0_i32 = arith.constant 0 : i32
    %c0_i32_0 = arith.constant 0 : i32
    %c0_i32_1 = arith.constant 0 : i32
    return %c0_i32, %arg0, %c0_i32_0 : i32, i32, i32
  }
  func.func @transform_1(%arg0: i32) -> (i32, i32) {
    %c0_i32 = arith.constant 0 : i32
    %c0_i32_0 = arith.constant 0 : i32
    %c0_i32_1 = arith.constant 0 : i32
    return %c0_i32, %c0_i32_0 : i32, i32
  }
  func.func @transform_2(%arg0: i32) -> (i32, i32) {
    %c0_i32 = arith.constant 0 : i32
    %c0_i32_0 = arith.constant 0 : i32
    %c0_i32_1 = arith.constant 0 : i32
    return %c0_i32, %c0_i32_0 : i32, i32
  }
  func.func @transform_3(%arg0: i32) -> (i32, i32) {
    %c0_i32 = arith.constant 0 : i32
    %c0_i32_0 = arith.constant 0 : i32
    %c0_i32_1 = arith.constant 0 : i32
    return %c0_i32, %c0_i32_0 : i32, i32
  }
  func.func @transform_4(%arg0: i32) -> (i32, i32) {
    %c0_i32 = arith.constant 0 : i32
    %c0_i32_0 = arith.constant 0 : i32
    %c0_i32_1 = arith.constant 0 : i32
    return %c0_i32, %c0_i32_0 : i32, i32
  }
  func.func @transform_5(%arg0: i32) -> (i32, i32) {
    %c0_i32 = arith.constant 0 : i32
    %c0_i32_0 = arith.constant 0 : i32
    %c0_i32_1 = arith.constant 0 : i32
    return %c0_i32, %c0_i32_0 : i32, i32
  }
  func.func @transform_6(%arg0: i32) -> (i32, i32) {
    %c0_i32 = arith.constant 0 : i32
    %c0_i32_0 = arith.constant 0 : i32
    %c0_i32_1 = arith.constant 0 : i32
    return %c0_i32, %c0_i32_0 : i32, i32
  }
  func.func @transform_7(%arg0: i32) -> (i32, i32) {
    %c0_i32 = arith.constant 0 : i32
    %c0_i32_0 = arith.constant 0 : i32
    %c0_i32_1 = arith.constant 0 : i32
    return %c0_i32, %c0_i32_0 : i32, i32
  }
  func.func @transform_8(%arg0: i32) -> (i32, i32) {
    %c0_i32 = arith.constant 0 : i32
    %c0_i32_0 = arith.constant 0 : i32
    %c0_i32_1 = arith.constant 0 : i32
    return %c0_i32, %c0_i32_0 : i32, i32
  }
  func.func @transform_9(%arg0: i32) -> (i32, i32) {
    %c0_i32 = arith.constant 0 : i32
    %c0_i32_0 = arith.constant 0 : i32
    %c0_i32_1 = arith.constant 0 : i32
    return %c0_i32, %c0_i32_0 : i32, i32
  }
  func.func @transform_10(%arg0: i32) -> (i32, i32) {
    %c0_i32 = arith.constant 0 : i32
    %c0_i32_0 = arith.constant 0 : i32
    %c0_i32_1 = arith.constant 0 : i32
    return %c0_i32, %c0_i32_0 : i32, i32
  }
  func.func @transform_11(%arg0: i32) -> (i32, i32) {
    %c0_i32 = arith.constant 0 : i32
    %c0_i32_0 = arith.constant 0 : i32
    %c0_i32_1 = arith.constant 0 : i32
    return %c0_i32, %c0_i32_0 : i32, i32
  }
  func.func @transform_12(%arg0: i32) -> (i32, i32) {
    %c0_i32 = arith.constant 0 : i32
    %c0_i32_0 = arith.constant 0 : i32
    %c0_i32_1 = arith.constant 0 : i32
    return %c0_i32, %c0_i32_0 : i32, i32
  }
  func.func @transform_13(%arg0: i32) -> (i32, i32) {
    %c0_i32 = arith.constant 0 : i32
    %c0_i32_0 = arith.constant 0 : i32
    %c0_i32_1 = arith.constant 0 : i32
    return %c0_i32, %c0_i32_0 : i32, i32
  }
  func.func @transform_14(%arg0: i32) -> (i32, i32) {
    %c0_i32 = arith.constant 0 : i32
    %c0_i32_0 = arith.constant 0 : i32
    return %arg0, %c0_i32 : i32, i32
  }
}

</mosaic_0001>

<llo_original>
// kernel: driver_monitor_forward.1
$region0: #{driver_monitor_forward.1}
  #allocation0 [shape = 'u32[]', space=smem, size = 0x4, offset = 0x4, fixed_abs, tag = 'smem constant byte address 0x4 - core index']
  #allocation1 [shape = 'u32[144,128]{1,0:T(1,128)}', space=vmem, size = 0x12000, scoped, tag = 'internal scratch']
  #allocation2 [shape = 'f32[16,16]{1,0:T(8,128)}', space=vmem, size = 0x2000, scoped, tag = 'scratch operand']
  %s0 = inlined_call_operand.vmem [shape: f32[8,2,16], index: 0, kind: input, shape index: {}]
  %s1 = inlined_call_operand.vmem [shape: f32[16,128], index: 1, kind: input, shape index: {}]
  %s2 = inlined_call_operand.vmem [shape: f32[32,128], index: 2, kind: input, shape index: {}]
  %s3 = inlined_call_operand.vmem [shape: f32[1,128], index: 3, kind: input, shape index: {}]
  %s4 = inlined_call_operand.vmem [shape: f32[64,128], index: 4, kind: input, shape index: {}]
  %s5 = inlined_call_operand.vmem [shape: f32[1,128], index: 5, kind: input, shape index: {}]
  %s6 = inlined_call_operand.vmem [shape: f32[32,128], index: 6, kind: input, shape index: {}]
  %s7 = inlined_call_operand.vmem [shape: f32[1,128], index: 7, kind: input, shape index: {}]
  %s8 = inlined_call_operand.vmem [shape: f32[128,64], index: 8, kind: input, shape index: {}]
  %s9 = inlined_call_operand.vmem [shape: f32[1,64], index: 9, kind: input, shape index: {}]
  %s10 = inlined_call_operand.vmem [shape: f32[64,32], index: 10, kind: input, shape index: {}]
  %s11 = inlined_call_operand.vmem [shape: f32[1,32], index: 11, kind: input, shape index: {}]
  %s12 = inlined_call_operand.vmem [shape: f32[32,128], index: 12, kind: input, shape index: {}]
  %s13 = inlined_call_operand.vmem [shape: f32[1,128], index: 13, kind: input, shape index: {}]
  %s14 = inlined_call_operand.hbm [shape: f32[2,128], index: 14, kind: output, shape index: {}]
  %s15 = sld [smem:[#allocation0]]
  $region66: #{driver_monitor_forward.1} parent=0
    _
  %s17 = ssub.s32 1, %s15
  %s18 = scalar_select 0, %s17, %s15
  $region1: #{driver_monitor_forward.1} parent=0
    #allocation3 [shape = 'u8[1024]{0}', space=vmem, size = 0x400, scoped, tag = 'output window, operand 0, single buffered']
    #allocation4 [shape = 's32[1]{0}', space=sflag, size = 0x4, scoped, tag = 'scoped memory for driver_monitor_forward.1']
    %19 = vsyncpa [#allocation4], 0
    // Predicated region
    $region2: #{driver_monitor_forward.1} parent=1 // pred_check
      _
    $region3: #{driver_monitor_forward.1} parent=1 // pred_check_branch
      %21 = sbr.rel (0) target = $region5
    $region4: #{driver_monitor_forward.1} parent=1 // pred_region
      _
    $region5: #{driver_monitor_forward.1} parent=1 // pred_fallthru
      _
    // Predicated region
    $region6: #{driver_monitor_forward.1} parent=1 // pred_check
      _
    $region7: #{driver_monitor_forward.1} parent=1 // pred_check_branch
      %23 = sbr.rel (0) target = $region9
    $region8: #{driver_monitor_forward.1} parent=1 // pred_region
      _
    $region9: #{driver_monitor_forward.1} parent=1 // pred_fallthru
      _
    // Predicated region
    $region10: #{driver_monitor_forward.1} parent=1 // pred_check
      _
    $region11: #{driver_monitor_forward.1} parent=1 // pred_check_branch
      %25 = sbr.rel (0) target = $region13
    $region12: #{driver_monitor_forward.1} parent=1 // pred_region
      _
    $region13: #{driver_monitor_forward.1} parent=1 // pred_fallthru
      _
    // Predicated region
    $region14: #{driver_monitor_forward.1} parent=1 // pred_check
      _
    $region15: #{driver_monitor_forward.1} parent=1 // pred_check_branch
      %27 = sbr.rel (0) target = $region17
    $region16: #{driver_monitor_forward.1} parent=1 // pred_region
      _
    $region17: #{driver_monitor_forward.1} parent=1 // pred_fallthru
      _
    // Predicated region
    $region18: #{driver_monitor_forward.1} parent=1 // pred_check
      _
    $region19: #{driver_monitor_forward.1} parent=1 // pred_check_branch
      %29 = sbr.rel (0) target = $region21
    $region20: #{driver_monitor_forward.1} parent=1 // pred_region
      _
    $region21: #{driver_monitor_forward.1} parent=1 // pred_fallthru
      _
    // Predicated region
    $region22: #{driver_monitor_forward.1} parent=1 // pred_check
      _
    $region23: #{driver_monitor_forward.1} parent=1 // pred_check_branch
      %31 = sbr.rel (0) target = $region25
    $region24: #{driver_monitor_forward.1} parent=1 // pred_region
      _
    $region25: #{driver_monitor_forward.1} parent=1 // pred_fallthru
      _
    // Predicated region
    $region26: #{driver_monitor_forward.1} parent=1 // pred_check
      _
    $region27: #{driver_monitor_forward.1} parent=1 // pred_check_branch
      %33 = sbr.rel (0) target = $region29
    $region28: #{driver_monitor_forward.1} parent=1 // pred_region
      _
    $region29: #{driver_monitor_forward.1} parent=1 // pred_fallthru
      _
    // Predicated region
    $region30: #{driver_monitor_forward.1} parent=1 // pred_check
      _
    $region31: #{driver_monitor_forward.1} parent=1 // pred_check_branch
      %35 = sbr.rel (0) target = $region33
    $region32: #{driver_monitor_forward.1} parent=1 // pred_region
      _
    $region33: #{driver_monitor_forward.1} parent=1 // pred_fallthru
      _
    // Predicated region
    $region34: #{driver_monitor_forward.1} parent=1 // pred_check
      _
    $region35: #{driver_monitor_forward.1} parent=1 // pred_check_branch
      %37 = sbr.rel (0) target = $region37
    $region36: #{driver_monitor_forward.1} parent=1 // pred_region
      _
    $region37: #{driver_monitor_forward.1} parent=1 // pred_fallthru
      _
    // Predicated region
    $region38: #{driver_monitor_forward.1} parent=1 // pred_check
      _
    $region39: #{driver_monitor_forward.1} parent=1 // pred_check_branch
      %39 = sbr.rel (0) target = $region41
    $region40: #{driver_monitor_forward.1} parent=1 // pred_region
      _
    $region41: #{driver_monitor_forward.1} parent=1 // pred_fallthru
      _
    // Predicated region
    $region42: #{driver_monitor_forward.1} parent=1 // pred_check
      _
    $region43: #{driver_monitor_forward.1} parent=1 // pred_check_branch
      %41 = sbr.rel (0) target = $region45
    $region44: #{driver_monitor_forward.1} parent=1 // pred_region
      _
    $region45: #{driver_monitor_forward.1} parent=1 // pred_fallthru
      _
    // Predicated region
    $region46: #{driver_monitor_forward.1} parent=1 // pred_check
      _
    $region47: #{driver_monitor_forward.1} parent=1 // pred_check_branch
      %43 = sbr.rel (0) target = $region49
    $region48: #{driver_monitor_forward.1} parent=1 // pred_region
      _
    $region49: #{driver_monitor_forward.1} parent=1 // pred_fallthru
      _
    // Predicated region
    $region50: #{driver_monitor_forward.1} parent=1 // pred_check
      _
    $region51: #{driver_monitor_forward.1} parent=1 // pred_check_branch
      %45 = sbr.rel (0) target = $region53
    $region52: #{driver_monitor_forward.1} parent=1 // pred_region
      _
    $region53: #{driver_monitor_forward.1} parent=1 // pred_fallthru
      _
    // Predicated region
    $region54: #{driver_monitor_forward.1} parent=1 // pred_check
      _
    $region55: #{driver_monitor_forward.1} parent=1 // pred_check_branch
      %47 = sbr.rel (0) target = $region57
    $region56: #{driver_monitor_forward.1} parent=1 // pred_region
      _
    $region57: #{driver_monitor_forward.1} parent=1 // pred_fallthru
      _
    %v48 = vld [vmem:[%s0] sm:$0x3]
    %vm49 = vcmask 123904
    %50 = vst.msk [vmem:[#allocation2] sm:$0x3] %vm49, %v48
    %s51 = scalar_lea.vmem %s0, 2
    %v52 = vld [vmem:[%s51] sm:$0x3]
    %53 = vst.msk [vmem:[#allocation2 + $0x2] sm:$0x3] %vm49, %v52
    %s54 = scalar_lea.vmem %s0, 4
    %v55 = vld [vmem:[%s54] sm:$0x3]
    %56 = vst.msk [vmem:[#allocation2 + $0x4] sm:$0x3] %vm49, %v55
    %s57 = scalar_lea.vmem %s0, 6
    %v58 = vld [vmem:[%s57] sm:$0x3]
    %59 = vst.msk [vmem:[#allocation2 + $0x6] sm:$0x3] %vm49, %v58
    %s60 = scalar_lea.vmem %s0, 8
    %v61 = vld [vmem:[%s60] sm:$0x3]
    %62 = vst.msk [vmem:[#allocation2 + $0x8] sm:$0x3] %vm49, %v61
    %s63 = scalar_lea.vmem %s0, 10
    %v64 = vld [vmem:[%s63] sm:$0x3]
    %65 = vst.msk [vmem:[#allocation2 + $0xa] sm:$0x3] %vm49, %v64
    %s66 = scalar_lea.vmem %s0, 12
    %v67 = vld [vmem:[%s66] sm:$0x3]
    %68 = vst.msk [vmem:[#allocation2 + $0xc] sm:$0x3] %vm49, %v67
    %s69 = scalar_lea.vmem %s0, 14
    %v70 = vld [vmem:[%s69] sm:$0x3]
    %71 = vst.msk [vmem:[#allocation2 + $0xe] sm:$0x3] %vm49, %v70
    %v72 = vld [vmem:[#allocation2] sm:$0xff]
    %v73 = vld [vmem:[#allocation2 + $0x8] sm:$0xff]
    %v74 = vld [vmem:[%s1] sm:$0xff]
    %v75 = vld [vmem:[%s1 + $0x8] sm:$0xff]
    %v76 = vld [vmem:[%s3] sm:$0x1]
    %v78 = vlaneseq
    %v79 = vshrl.u32 %v78, 7
    %v80 = vsub.s32 0, %v79
    %v81 = vrot.slane %v76, %v80
    %vm83 = vcmask 130048
    %v85 = vsel %vm83, %v72, 0
    %v88 = vsel %vm83, %v73, 0
    %90 = vmatprep.subr.mxu0 0.0
    %91 = vmatpush1.msra.mxu0 0.0
    %92 = vmatprep.subr.mxu0 0.0
    %93 = vmatpush1.msra.mxu0 0.0
    %94 = vmatprep.subr.mxu0 0.0
    %95 = vmatpush1.msra.mxu0 0.0
    %96 = vmatprep.subr.mxu0 0.0
    %97 = vmatpush1.msra.mxu0 0.0
    %98 = vmatprep.subr.mxu0 0.0
    %99 = vmatpush1.msra.mxu0 0.0
    %100 = vmatprep.subr.mxu0 0.0
    %101 = vmatpush1.msra.mxu0 0.0
    %102 = vmatprep.subr.mxu0 0.0
    %103 = vmatpush1.msra.mxu0 0.0
    %104 = vmatprep.subr.mxu0 0.0
    %105 = vmatpush1.msra.mxu0 0.0
    %106 = vmatprep.subr.mxu0 0.0
    %107 = vmatpush1.msra.mxu0 0.0
    %108 = vmatprep.subr.mxu0 0.0
    %109 = vmatpush1.msra.mxu0 0.0
    %110 = vmatprep.subr.mxu0 0.0
    %111 = vmatpush1.msra.mxu0 0.0
    %112 = vmatprep.subr.mxu0 0.0
    %113 = vmatpush1.msra.mxu0 0.0
    %114 = vmatprep.subr.mxu0 0.0
    %115 = vmatpush1.msra.mxu0 0.0
    %116 = vmatprep.subr.mxu0 0.0
    %117 = vmatpush1.msra.mxu0 0.0
    %118 = vmatprep.subr.mxu0 0.0
    %v119 = vand.u32 %v75, 4294901760
    %120 = vmatpush1.msra.mxu0 %v119
    %121 = vmatprep.subr.mxu0 0.0
    %v122 = vand.u32 %v74, 4294901760
    %123 = vmatpush1.msra.mxu0 %v122
    %124 = vmatprep.subr.mxu0 0.0
    %125 = vmatpush2.msra.mxu0 0.0
    %126 = vmatprep.subr.mxu0 0.0
    %127 = vmatpush2.msra.mxu0 0.0
    %128 = vmatprep.subr.mxu0 0.0
    %129 = vmatpush2.msra.mxu0 0.0
    %130 = vmatprep.subr.mxu0 0.0
    %131 = vmatpush2.msra.mxu0 0.0
    %132 = vmatprep.subr.mxu0 0.0
    %133 = vmatpush2.msra.mxu0 0.0
    %134 = vmatprep.subr.mxu0 0.0
    %135 = vmatpush2.msra.mxu0 0.0
    %136 = vmatprep.subr.mxu0 0.0
    %137 = vmatpush2.msra.mxu0 0.0
    %138 = vmatprep.subr.mxu0 0.0
    %139 = vmatpush2.msra.mxu0 0.0
    %140 = vmatprep.subr.mxu0 0.0
    %141 = vmatpush2.msra.mxu0 0.0
    %142 = vmatprep.subr.mxu0 0.0
    %143 = vmatpush2.msra.mxu0 0.0
    %144 = vmatprep.subr.mxu0 0.0
    %145 = vmatpush2.msra.mxu0 0.0
    %146 = vmatprep.subr.mxu0 0.0
    %147 = vmatpush2.msra.mxu0 0.0
    %148 = vmatprep.subr.mxu0 0.0
    %149 = vmatpush2.msra.mxu0 0.0
    %150 = vmatprep.subr.mxu0 0.0
    %151 = vmatpush2.msra.mxu0 0.0
    %152 = vmatprep.subr.mxu0 0.0
    %153 = vmatpush2.msra.mxu0 0.0
    %154 = vmatprep.subr.mxu0 0.0
    %155 = vmatpush2.msra.mxu0 0.0
    %156 = vmatprep.mubr.f32.mxu0 0.0
    %v157 = vand.u32 %v85, 4294901760
    %v158 = vsub.f32 %v85, %v157
    %v159 = vand.u32 %v158, 4294901760
    %v160 = vsub.f32 %v158, %v159
    %v161 = vand.u32 %v160, 4294901760
    %162 = vmatmul.mubr.f32.gmra.mxu0 %v161
    %v163 = vpop.f32.mrf.mxu0
    %v164 = vadd.f32 %v81, %v163
    %v165 = vpop.f32.mrf.mxu0
    %166 = vmatprep.mubr.f32.mxu0 0.0
    %v167 = vand.u32 %v88, 4294901760
    %v168 = vsub.f32 %v88, %v167
    %v169 = vand.u32 %v168, 4294901760
    %v170 = vsub.f32 %v168, %v169
    %v171 = vand.u32 %v170, 4294901760
    %172 = vmatmul.mubr.f32.gmra.mxu0 %v171
    %v173 = vpop.f32.mrf.mxu0
    %v174 = vadd.f32 %v81, %v173
    %v175 = vpop.f32.mrf.mxu0
    %176 = vdwg.mxu0
    %177 = vmatprep.subr.mxu0 0.0
    %178 = vmatpush1.msra.mxu0 0.0
    %179 = vmatprep.subr.mxu0 0.0
    %180 = vmatpush1.msra.mxu0 0.0
    %181 = vmatprep.subr.mxu0 0.0
    %182 = vmatpush1.msra.mxu0 0.0
    %183 = vmatprep.subr.mxu0 0.0
    %184 = vmatpush1.msra.mxu0 0.0
    %185 = vmatprep.subr.mxu0 0.0
    %186 = vmatpush1.msra.mxu0 0.0
    %187 = vmatprep.subr.mxu0 0.0
    %188 = vmatpush1.msra.mxu0 0.0
    %189 = vmatprep.subr.mxu0 0.0
    %190 = vmatpush1.msra.mxu0 0.0
    %191 = vmatprep.subr.mxu0 0.0
    %192 = vmatpush1.msra.mxu0 0.0
    %193 = vmatprep.subr.mxu0 0.0
    %194 = vmatpush1.msra.mxu0 0.0
    %195 = vmatprep.subr.mxu0 0.0
    %196 = vmatpush1.msra.mxu0 0.0
    %197 = vmatprep.subr.mxu0 0.0
    %198 = vmatpush1.msra.mxu0 0.0
    %199 = vmatprep.subr.mxu0 0.0
    %200 = vmatpush1.msra.mxu0 0.0
    %201 = vmatprep.subr.mxu0 0.0
    %202 = vmatpush1.msra.mxu0 0.0
    %203 = vmatprep.subr.mxu0 0.0
    %204 = vmatpush1.msra.mxu0 0.0
    %205 = vmatprep.subr.mxu0 0.0
    %v206 = vand.u32 %v75, 4294901760
    %v207 = vsub.f32 %v75, %v206
    %v208 = vand.u32 %v207, 4294901760
    %v209 = vsub.f32 %v207, %v208
    %v210 = vand.u32 %v209, 4294901760
    %211 = vmatpush1.msra.mxu0 %v210
    %212 = vmatprep.subr.mxu0 0.0
    %v213 = vand.u32 %v74, 4294901760
    %v214 = vsub.f32 %v74, %v213
    %v215 = vand.u32 %v214, 4294901760
    %v216 = vsub.f32 %v214, %v215
    %v217 = vand.u32 %v216, 4294901760
    %218 = vmatpush1.msra.mxu0 %v217
    %219 = vmatprep.subr.mxu0 0.0
    %220 = vmatpush2.msra.mxu0 0.0
    %221 = vmatprep.subr.mxu0 0.0
    %222 = vmatpush2.msra.mxu0 0.0
    %223 = vmatprep.subr.mxu0 0.0
    %224 = vmatpush2.msra.mxu0 0.0
    %225 = vmatprep.subr.mxu0 0.0
    %226 = vmatpush2.msra.mxu0 0.0
    %227 = vmatprep.subr.mxu0 0.0
    %228 = vmatpush2.msra.mxu0 0.0
    %229 = vmatprep.subr.mxu0 0.0
    %230 = vmatpush2.msra.mxu0 0.0
    %231 = vmatprep.subr.mxu0 0.0
    %232 = vmatpush2.msra.mxu0 0.0
    %233 = vmatprep.subr.mxu0 0.0
    %234 = vmatpush2.msra.mxu0 0.0
    %235 = vmatprep.subr.mxu0 0.0
    %236 = vmatpush2.msra.mxu0 0.0
    %237 = vmatprep.subr.mxu0 0.0
    %238 = vmatpush2.msra.mxu0 0.0
    %239 = vmatprep.subr.mxu0 0.0
    %240 = vmatpush2.msra.mxu0 0.0
    %241 = vmatprep.subr.mxu0 0.0
    %242 = vmatpush2.msra.mxu0 0.0
    %243 = vmatprep.subr.mxu0 0.0
    %244 = vmatpush2.msra.mxu0 0.0
    %245 = vmatprep.subr.mxu0 0.0
    %246 = vmatpush2.msra.mxu0 0.0
    %247 = vmatprep.subr.mxu0 0.0
    %248 = vmatpush2.msra.mxu0 0.0
    %249 = vmatprep.subr.mxu0 0.0
    %250 = vmatpush2.msra.mxu0 0.0
    %251 = vmatprep.mubr.f32.mxu0 0.0
    %v252 = vand.u32 %v85, 4294901760
    %253 = vmatmul.mubr.f32.gmra.mxu0 %v252
    %v254 = vpop.f32.mrf.mxu0
    %v255 = vadd.f32 %v164, %v254
    %v256 = vpop.f32.mrf.mxu0
    %257 = vmatprep.mubr.f32.mxu0 0.0
    %v258 = vand.u32 %v88, 4294901760
    %259 = vmatmul.mubr.f32.gmra.mxu0 %v258
    %v260 = vpop.f32.mrf.mxu0
    %v261 = vadd.f32 %v174, %v260
    %v262 = vpop.f32.mrf.mxu0
    %263 = vdwg.mxu0
    %264 = vmatprep.subr.mxu0 0.0
    %265 = vmatpush1.msra.mxu0 0.0
    %266 = vmatprep.subr.mxu0 0.0
    %267 = vmatpush1.msra.mxu0 0.0
    %268 = vmatprep.subr.mxu0 0.0
    %269 = vmatpush1.msra.mxu0 0.0
    %270 = vmatprep.subr.mxu0 0.0
    %271 = vmatpush1.msra.mxu0 0.0
    %272 = vmatprep.subr.mxu0 0.0
    %273 = vmatpush1.msra.mxu0 0.0
    %274 = vmatprep.subr.mxu0 0.0
    %275 = vmatpush1.msra.mxu0 0.0
    %276 = vmatprep.subr.mxu0 0.0
    %277 = vmatpush1.msra.mxu0 0.0
    %278 = vmatprep.subr.mxu0 0.0
    %279 = vmatpush1.msra.mxu0 0.0
    %280 = vmatprep.subr.mxu0 0.0
    %281 = vmatpush1.msra.mxu0 0.0
    %282 = vmatprep.subr.mxu0 0.0
    %283 = vmatpush1.msra.mxu0 0.0
    %284 = vmatprep.subr.mxu0 0.0
    %285 = vmatpush1.msra.mxu0 0.0
    %286 = vmatprep.subr.mxu0 0.0
    %287 = vmatpush1.msra.mxu0 0.0
    %288 = vmatprep.subr.mxu0 0.0
    %289 = vmatpush1.msra.mxu0 0.0
    %290 = vmatprep.subr.mxu0 0.0
    %291 = vmatpush1.msra.mxu0 0.0
    %292 = vmatprep.subr.mxu0 0.0
    %v293 = vand.u32 %v75, 4294901760
    %v294 = vsub.f32 %v75, %v293
    %295 = vmatpush1.msra.mxu0 %v294
    %296 = vmatprep.subr.mxu0 0.0
    %v297 = vand.u32 %v74, 4294901760
    %v298 = vsub.f32 %v74, %v297
    %299 = vmatpush1.msra.mxu0 %v298
    %300 = vmatprep.subr.mxu0 0.0
    %301 = vmatpush2.msra.mxu0 0.0
    %302 = vmatprep.subr.mxu0 0.0
    %303 = vmatpush2.msra.mxu0 0.0
    %304 = vmatprep.subr.mxu0 0.0
    %305 = vmatpush2.msra.mxu0 0.0
    %306 = vmatprep.subr.mxu0 0.0
    %307 = vmatpush2.msra.mxu0 0.0
    %308 = vmatprep.subr.mxu0 0.0
    %309 = vmatpush2.msra.mxu0 0.0
    %310 = vmatprep.subr.mxu0 0.0
    %311 = vmatpush2.msra.mxu0 0.0
    %312 = vmatprep.subr.mxu0 0.0
    %313 = vmatpush2.msra.mxu0 0.0
    %314 = vmatprep.subr.mxu0 0.0
    %315 = vmatpush2.msra.mxu0 0.0
    %316 = vmatprep.subr.mxu0 0.0
    %317 = vmatpush2.msra.mxu0 0.0
    %318 = vmatprep.subr.mxu0 0.0
    %319 = vmatpush2.msra.mxu0 0.0
    %320 = vmatprep.subr.mxu0 0.0
    %321 = vmatpush2.msra.mxu0 0.0
    %322 = vmatprep.subr.mxu0 0.0
    %323 = vmatpush2.msra.mxu0 0.0
    %324 = vmatprep.subr.mxu0 0.0
    %325 = vmatpush2.msra.mxu0 0.0
    %326 = vmatprep.subr.mxu0 0.0
    %327 = vmatpush2.msra.mxu0 0.0
    %328 = vmatprep.subr.mxu0 0.0
    %329 = vmatpush2.msra.mxu0 0.0
    %330 = vmatprep.subr.mxu0 0.0
    %331 = vmatpush2.msra.mxu0 0.0
    %332 = vmatprep.mubr.f32.mxu0 0.0
    %v333 = vand.u32 %v85, 4294901760
    %v334 = vsub.f32 %v85, %v333
    %335 = vmatmul.mubr.f32.gmra.mxu0 %v334
    %v336 = vpop.f32.mrf.mxu0
    %v337 = vadd.f32 %v255, %v336
    %v338 = vpop.f32.mrf.mxu0
    %339 = vmatprep.mubr.f32.mxu0 0.0
    %v340 = vand.u32 %v88, 4294901760
    %v341 = vsub.f32 %v88, %v340
    %342 = vmatmul.mubr.f32.gmra.mxu0 %v341
    %v343 = vpop.f32.mrf.mxu0
    %v344 = vadd.f32 %v261, %v343
    %v345 = vpop.f32.mrf.mxu0
    %346 = vdwg.mxu0
    %347 = vmatprep.subr.mxu0 0.0
    %348 = vmatpush1.msra.mxu0 0.0
    %349 = vmatprep.subr.mxu0 0.0
    %350 = vmatpush1.msra.mxu0 0.0
    %351 = vmatprep.subr.mxu0 0.0
    %352 = vmatpush1.msra.mxu0 0.0
    %353 = vmatprep.subr.mxu0 0.0
    %354 = vmatpush1.msra.mxu0 0.0
    %355 = vmatprep.subr.mxu0 0.0
    %356 = vmatpush1.msra.mxu0 0.0
    %357 = vmatprep.subr.mxu0 0.0
    %358 = vmatpush1.msra.mxu0 0.0
    %359 = vmatprep.subr.mxu0 0.0
    %360 = vmatpush1.msra.mxu0 0.0
    %361 = vmatprep.subr.mxu0 0.0
    %362 = vmatpush1.msra.mxu0 0.0
    %363 = vmatprep.subr.mxu0 0.0
    %364 = vmatpush1.msra.mxu0 0.0
    %365 = vmatprep.subr.mxu0 0.0
    %366 = vmatpush1.msra.mxu0 0.0
    %367 = vmatprep.subr.mxu0 0.0
    %368 = vmatpush1.msra.mxu0 0.0
    %369 = vmatprep.subr.mxu0 0.0
    %370 = vmatpush1.msra.mxu0 0.0
    %371 = vmatprep.subr.mxu0 0.0
    %372 = vmatpush1.msra.mxu0 0.0
    %373 = vmatprep.subr.mxu0 0.0
    %374 = vmatpush1.msra.mxu0 0.0
    %375 = vmatprep.subr.mxu0 0.0
    %v376 = vand.u32 %v75, 4294901760
    %377 = vmatpush1.msra.mxu0 %v376
    %378 = vmatprep.subr.mxu0 0.0
    %v379 = vand.u32 %v74, 4294901760
    %380 = vmatpush1.msra.mxu0 %v379
    %381 = vmatprep.subr.mxu0 0.0
    %382 = vmatpush2.msra.mxu0 0.0
    %383 = vmatprep.subr.mxu0 0.0
    %384 = vmatpush2.msra.mxu0 0.0
    %385 = vmatprep.subr.mxu0 0.0
    %386 = vmatpush2.msra.mxu0 0.0
    %387 = vmatprep.subr.mxu0 0.0
    %388 = vmatpush2.msra.mxu0 0.0
    %389 = vmatprep.subr.mxu0 0.0
    %390 = vmatpush2.msra.mxu0 0.0
    %391 = vmatprep.subr.mxu0 0.0
    %392 = vmatpush2.msra.mxu0 0.0
    %393 = vmatprep.subr.mxu0 0.0
    %394 = vmatpush2.msra.mxu0 0.0
    %395 = vmatprep.subr.mxu0 0.0
    %396 = vmatpush2.msra.mxu0 0.0
    %397 = vmatprep.subr.mxu0 0.0
    %398 = vmatpush2.msra.mxu0 0.0
    %399 = vmatprep.subr.mxu0 0.0
    %400 = vmatpush2.msra.mxu0 0.0
    %401 = vmatprep.subr.mxu0 0.0
    %402 = vmatpush2.msra.mxu0 0.0
    %403 = vmatprep.subr.mxu0 0.0
    %404 = vmatpush2.msra.mxu0 0.0
    %405 = vmatprep.subr.mxu0 0.0
    %406 = vmatpush2.msra.mxu0 0.0
    %407 = vmatprep.subr.mxu0 0.0
    %408 = vmatpush2.msra.mxu0 0.0
    %409 = vmatprep.subr.mxu0 0.0
    %410 = vmatpush2.msra.mxu0 0.0
    %411 = vmatprep.subr.mxu0 0.0
    %412 = vmatpush2.msra.mxu0 0.0
    %413 = vmatprep.mubr.f32.mxu0 0.0
    %v414 = vand.u32 %v85, 4294901760
    %v415 = vsub.f32 %v85, %v414
    %v416 = vand.u32 %v415, 4294901760
    %417 = vmatmul.mubr.f32.gmra.mxu0 %v416
    %v418 = vpop.f32.mrf.mxu0
    %v419 = vadd.f32 %v337, %v418
    %v420 = vpop.f32.mrf.mxu0
    %421 = vmatprep.mubr.f32.mxu0 0.0
    %v422 = vand.u32 %v88, 4294901760
    %v423 = vsub.f32 %v88, %v422
    %v424 = vand.u32 %v423, 4294901760
    %425 = vmatmul.mubr.f32.gmra.mxu0 %v424
    %v426 = vpop.f32.mrf.mxu0
    %v427 = vadd.f32 %v344, %v426
    %v428 = vpop.f32.mrf.mxu0
    %429 = vdwg.mxu0
    %430 = vmatprep.subr.mxu0 0.0
    %431 = vmatpush1.msra.mxu0 0.0
    %432 = vmatprep.subr.mxu0 0.0
    %433 = vmatpush1.msra.mxu0 0.0
    %434 = vmatprep.subr.mxu0 0.0
    %435 = vmatpush1.msra.mxu0 0.0
    %436 = vmatprep.subr.mxu0 0.0
    %437 = vmatpush1.msra.mxu0 0.0
    %438 = vmatprep.subr.mxu0 0.0
    %439 = vmatpush1.msra.mxu0 0.0
    %440 = vmatprep.subr.mxu0 0.0
    %441 = vmatpush1.msra.mxu0 0.0
    %442 = vmatprep.subr.mxu0 0.0
    %443 = vmatpush1.msra.mxu0 0.0
    %444 = vmatprep.subr.mxu0 0.0
    %445 = vmatpush1.msra.mxu0 0.0
    %446 = vmatprep.subr.mxu0 0.0
    %447 = vmatpush1.msra.mxu0 0.0
    %448 = vmatprep.subr.mxu0 0.0
    %449 = vmatpush1.msra.mxu0 0.0
    %450 = vmatprep.subr.mxu0 0.0
    %451 = vmatpush1.msra.mxu0 0.0
    %452 = vmatprep.subr.mxu0 0.0
    %453 = vmatpush1.msra.mxu0 0.0
    %454 = vmatprep.subr.mxu0 0.0
    %455 = vmatpush1.msra.mxu0 0.0
    %456 = vmatprep.subr.mxu0 0.0
    %457 = vmatpush1.msra.mxu0 0.0
    %458 = vmatprep.subr.mxu0 0.0
    %v459 = vand.u32 %v75, 4294901760
    %v460 = vsub.f32 %v75, %v459
    %v461 = vand.u32 %v460, 4294901760
    %462 = vmatpush1.msra.mxu0 %v461
    %463 = vmatprep.subr.mxu0 0.0
    %v464 = vand.u32 %v74, 4294901760
    %v465 = vsub.f32 %v74, %v464
    %v466 = vand.u32 %v465, 4294901760
    %467 = vmatpush1.msra.mxu0 %v466
    %468 = vmatprep.subr.mxu0 0.0
    %469 = vmatpush2.msra.mxu0 0.0
    %470 = vmatprep.subr.mxu0 0.0
    %471 = vmatpush2.msra.mxu0 0.0
    %472 = vmatprep.subr.mxu0 0.0
    %473 = vmatpush2.msra.mxu0 0.0
    %474 = vmatprep.subr.mxu0 0.0
    %475 = vmatpush2.msra.mxu0 0.0
    %476 = vmatprep.subr.mxu0 0.0
    %477 = vmatpush2.msra.mxu0 0.0
    %478 = vmatprep.subr.mxu0 0.0
    %479 = vmatpush2.msra.mxu0 0.0
    %480 = vmatprep.subr.mxu0 0.0
    %481 = vmatpush2.msra.mxu0 0.0
    %482 = vmatprep.subr.mxu0 0.0
    %483 = vmatpush2.msra.mxu0 0.0
    %484 = vmatprep.subr.mxu0 0.0
    %485 = vmatpush2.msra.mxu0 0.0
    %486 = vmatprep.subr.mxu0 0.0
    %487 = vmatpush2.msra.mxu0 0.0
    %488 = vmatprep.subr.mxu0 0.0
    %489 = vmatpush2.msra.mxu0 0.0
    %490 = vmatprep.subr.mxu0 0.0
    %491 = vmatpush2.msra.mxu0 0.0
    %492 = vmatprep.subr.mxu0 0.0
    %493 = vmatpush2.msra.mxu0 0.0
    %494 = vmatprep.subr.mxu0 0.0
    %495 = vmatpush2.msra.mxu0 0.0
    %496 = vmatprep.subr.mxu0 0.0
    %497 = vmatpush2.msra.mxu0 0.0
    %498 = vmatprep.subr.mxu0 0.0
    %499 = vmatpush2.msra.mxu0 0.0
    %500 = vmatprep.mubr.f32.mxu0 0.0
    %v501 = vand.u32 %v85, 4294901760
    %502 = vmatmul.mubr.f32.gmra.mxu0 %v501
    %v503 = vpop.f32.mrf.mxu0
    %v504 = vadd.f32 %v419, %v503
    %v505 = vpop.f32.mrf.mxu0
    %506 = vmatprep.mubr.f32.mxu0 0.0
    %v507 = vand.u32 %v88, 4294901760
    %508 = vmatmul.mubr.f32.gmra.mxu0 %v507
    %v509 = vpop.f32.mrf.mxu0
    %v510 = vadd.f32 %v427, %v509
    %v511 = vpop.f32.mrf.mxu0
    %512 = vdwg.mxu0
    %513 = vmatprep.subr.mxu0 0.0
    %514 = vmatpush1.msra.mxu0 0.0
    %515 = vmatprep.subr.mxu0 0.0
    %516 = vmatpush1.msra.mxu0 0.0
    %517 = vmatprep.subr.mxu0 0.0
    %518 = vmatpush1.msra.mxu0 0.0
    %519 = vmatprep.subr.mxu0 0.0
    %520 = vmatpush1.msra.mxu0 0.0
    %521 = vmatprep.subr.mxu0 0.0
    %522 = vmatpush1.msra.mxu0 0.0
    %523 = vmatprep.subr.mxu0 0.0
    %524 = vmatpush1.msra.mxu0 0.0
    %525 = vmatprep.subr.mxu0 0.0
    %526 = vmatpush1.msra.mxu0 0.0
    %527 = vmatprep.subr.mxu0 0.0
    %528 = vmatpush1.msra.mxu0 0.0
    %529 = vmatprep.subr.mxu0 0.0
    %530 = vmatpush1.msra.mxu0 0.0
    %531 = vmatprep.subr.mxu0 0.0
    %532 = vmatpush1.msra.mxu0 0.0
    %533 = vmatprep.subr.mxu0 0.0
    %534 = vmatpush1.msra.mxu0 0.0
    %535 = vmatprep.subr.mxu0 0.0
    %536 = vmatpush1.msra.mxu0 0.0
    %537 = vmatprep.subr.mxu0 0.0
    %538 = vmatpush1.msra.mxu0 0.0
    %539 = vmatprep.subr.mxu0 0.0
    %540 = vmatpush1.msra.mxu0 0.0
    %541 = vmatprep.subr.mxu0 0.0
    %v542 = vand.u32 %v75, 4294901760
    %543 = vmatpush1.msra.mxu0 %v542
    %544 = vmatprep.subr.mxu0 0.0
    %v545 = vand.u32 %v74, 4294901760
    %546 = vmatpush1.msra.mxu0 %v545
    %547 = vmatprep.subr.mxu0 0.0
    %548 = vmatpush2.msra.mxu0 0.0
    %549 = vmatprep.subr.mxu0 0.0
    %550 = vmatpush2.msra.mxu0 0.0
    %551 = vmatprep.subr.mxu0 0.0
    %552 = vmatpush2.msra.mxu0 0.0
    %553 = vmatprep.subr.mxu0 0.0
    %554 = vmatpush2.msra.mxu0 0.0
    %555 = vmatprep.subr.mxu0 0.0
    %556 = vmatpush2.msra.mxu0 0.0
    %557 = vmatprep.subr.mxu0 0.0
    %558 = vmatpush2.msra.mxu0 0.0
    %559 = vmatprep.subr.mxu0 0.0
    %560 = vmatpush2.msra.mxu0 0.0
    %561 = vmatprep.subr.mxu0 0.0
    %562 = vmatpush2.msra.mxu0 0.0
    %563 = vmatprep.subr.mxu0 0.0
    %564 = vmatpush2.msra.mxu0 0.0
    %565 = vmatprep.subr.mxu0 0.0
    %566 = vmatpush2.msra.mxu0 0.0
    %567 = vmatprep.subr.mxu0 0.0
    %568 = vmatpush2.msra.mxu0 0.0
    %569 = vmatprep.subr.mxu0 0.0
    %570 = vmatpush2.msra.mxu0 0.0
    %571 = vmatprep.subr.mxu0 0.0
    %572 = vmatpush2.msra.mxu0 0.0
    %573 = vmatprep.subr.mxu0 0.0
    %574 = vmatpush2.msra.mxu0 0.0
    %575 = vmatprep.subr.mxu0 0.0
    %576 = vmatpush2.msra.mxu0 0.0
    %577 = vmatprep.subr.mxu0 0.0
    %578 = vmatpush2.msra.mxu0 0.0
    %579 = vmatprep.mubr.f32.mxu0 0.0
    %v580 = vand.u32 %v85, 4294901760
    %581 = vmatmul.mubr.f32.gmra.mxu0 %v580
    %v582 = vpop.f32.mrf.mxu0
    %v583 = vadd.f32 %v504, %v582
    %v584 = vpop.f32.mrf.mxu0
    %585 = vmatprep.mubr.f32.mxu0 0.0
    %v586 = vand.u32 %v88, 4294901760
    %587 = vmatmul.mubr.f32.gmra.mxu0 %v586
    %v588 = vpop.f32.mrf.mxu0
    %v589 = vadd.f32 %v510, %v588
    %v590 = vpop.f32.mrf.mxu0
    %591 = vdwg.mxu0
    %v592 = vld [vmem:[%s2] sm:$0xff]
    %v593 = vld [vmem:[%s2 + $0x8] sm:$0xff]
    %v594 = vld [vmem:[%s2 + $0x10] sm:$0xff]
    %v595 = vld [vmem:[%s2 + $0x18] sm:$0xff]
    %v596 = vld [vmem:[%s4] sm:$0xff]
    %v597 = vld [vmem:[%s4 + $0x8] sm:$0xff]
    %v598 = vld [vmem:[%s4 + $0x10] sm:$0xff]
    %v599 = vld [vmem:[%s4 + $0x18] sm:$0xff]
    %v600 = vld [vmem:[%s4 + $0x20] sm:$0xff]
    %v601 = vld [vmem:[%s4 + $0x28] sm:$0xff]
    %v602 = vld [vmem:[%s4 + $0x30] sm:$0xff]
    %v603 = vld [vmem:[%s4 + $0x38] sm:$0xff]
    %v604 = vld [vmem:[%s5] sm:$0x1]
    %vm605 = vcmask 261120
    %v607 = vsel %vm605, 0.0, 0
    %609 = vmatprep.subr.mxu0 0.0
    %610 = vmatpush1.msra.mxu0 0.0
    %611 = vmatprep.subr.mxu0 0.0
    %612 = vmatpush1.msra.mxu0 0.0
    %613 = vmatprep.subr.mxu0 0.0
    %614 = vmatpush1.msra.mxu0 0.0
    %615 = vmatprep.subr.mxu0 0.0
    %616 = vmatpush1.msra.mxu0 0.0
    %617 = vmatprep.subr.mxu0 0.0
    %618 = vmatpush1.msra.mxu0 0.0
    %619 = vmatprep.subr.mxu0 0.0
    %620 = vmatpush1.msra.mxu0 0.0
    %621 = vmatprep.subr.mxu0 0.0
    %622 = vmatpush1.msra.mxu0 0.0
    %623 = vmatprep.subr.mxu0 0.0
    %624 = vmatpush1.msra.mxu0 0.0
    %625 = vmatprep.subr.mxu0 0.0
    %626 = vmatpush1.msra.mxu0 0.0
    %627 = vmatprep.subr.mxu0 0.0
    %628 = vmatpush1.msra.mxu0 0.0
    %629 = vmatprep.subr.mxu0 0.0
    %630 = vmatpush1.msra.mxu0 0.0
    %631 = vmatprep.subr.mxu0 0.0
    %632 = vmatpush1.msra.mxu0 0.0
    %633 = vmatprep.subr.mxu0 0.0
    %v634 = vand.u32 %v595, 4294901760
    %635 = vmatpush1.msra.mxu0 %v634
    %636 = vmatprep.subr.mxu0 0.0
    %v637 = vand.u32 %v594, 4294901760
    %638 = vmatpush1.msra.mxu0 %v637
    %639 = vmatprep.subr.mxu0 0.0
    %v640 = vand.u32 %v593, 4294901760
    %641 = vmatpush1.msra.mxu0 %v640
    %642 = vmatprep.subr.mxu0 0.0
    %v643 = vand.u32 %v592, 4294901760
    %644 = vmatpush1.msra.mxu0 %v643
    %645 = vmatprep.subr.mxu0 0.0
    %646 = vmatpush2.msra.mxu0 0.0
    %647 = vmatprep.subr.mxu0 0.0
    %648 = vmatpush2.msra.mxu0 0.0
    %649 = vmatprep.subr.mxu0 0.0
    %650 = vmatpush2.msra.mxu0 0.0
    %651 = vmatprep.subr.mxu0 0.0
    %652 = vmatpush2.msra.mxu0 0.0
    %653 = vmatprep.subr.mxu0 0.0
    %654 = vmatpush2.msra.mxu0 0.0
    %655 = vmatprep.subr.mxu0 0.0
    %656 = vmatpush2.msra.mxu0 0.0
    %657 = vmatprep.subr.mxu0 0.0
    %658 = vmatpush2.msra.mxu0 0.0
    %659 = vmatprep.subr.mxu0 0.0
    %660 = vmatpush2.msra.mxu0 0.0
    %661 = vmatprep.subr.mxu0 0.0
    %662 = vmatpush2.msra.mxu0 0.0
    %663 = vmatprep.subr.mxu0 0.0
    %664 = vmatpush2.msra.mxu0 0.0
    %665 = vmatprep.subr.mxu0 0.0
    %666 = vmatpush2.msra.mxu0 0.0
    %667 = vmatprep.subr.mxu0 0.0
    %668 = vmatpush2.msra.mxu0 0.0
    %669 = vmatprep.subr.mxu0 0.0
    %670 = vmatpush2.msra.mxu0 0.0
    %671 = vmatprep.subr.mxu0 0.0
    %672 = vmatpush2.msra.mxu0 0.0
    %673 = vmatprep.subr.mxu0 0.0
    %674 = vmatpush2.msra.mxu0 0.0
    %675 = vmatprep.subr.mxu0 0.0
    %676 = vmatpush2.msra.mxu0 0.0
    %677 = vmatprep.mubr.f32.mxu0 0.0
    %v678 = vand.u32 %v607, 4294901760
    %v679 = vsub.f32 %v607, %v678
    %v680 = vand.u32 %v679, 4294901760
    %v681 = vsub.f32 %v679, %v680
    %v682 = vand.u32 %v681, 4294901760
    %683 = vmatmul.mubr.f32.gmra.mxu0 %v682
    %v684 = vpop.f32.mrf.mxu0
    %v685 = vadd.f32 0.0, %v684
    %v686 = vpop.f32.mrf.mxu0
    %687 = vdwg.mxu0
    %688 = vmatprep.subr.mxu0 0.0
    %689 = vmatpush1.msra.mxu0 0.0
    %690 = vmatprep.subr.mxu0 0.0
    %691 = vmatpush1.msra.mxu0 0.0
    %692 = vmatprep.subr.mxu0 0.0
    %693 = vmatpush1.msra.mxu0 0.0
    %694 = vmatprep.subr.mxu0 0.0
    %695 = vmatpush1.msra.mxu0 0.0
    %696 = vmatprep.subr.mxu0 0.0
    %697 = vmatpush1.msra.mxu0 0.0
    %698 = vmatprep.subr.mxu0 0.0
    %699 = vmatpush1.msra.mxu0 0.0
    %700 = vmatprep.subr.mxu0 0.0
    %701 = vmatpush1.msra.mxu0 0.0
    %702 = vmatprep.subr.mxu0 0.0
    %703 = vmatpush1.msra.mxu0 0.0
    %704 = vmatprep.subr.mxu0 0.0
    %705 = vmatpush1.msra.mxu0 0.0
    %706 = vmatprep.subr.mxu0 0.0
    %707 = vmatpush1.msra.mxu0 0.0
    %708 = vmatprep.subr.mxu0 0.0
    %709 = vmatpush1.msra.mxu0 0.0
    %710 = vmatprep.subr.mxu0 0.0
    %711 = vmatpush1.msra.mxu0 0.0
    %712 = vmatprep.subr.mxu0 0.0
    %v713 = vand.u32 %v595, 4294901760
    %v714 = vsub.f32 %v595, %v713
    %v715 = vand.u32 %v714, 4294901760
    %v716 = vsub.f32 %v714, %v715
    %v717 = vand.u32 %v716, 4294901760
    %718 = vmatpush1.msra.mxu0 %v717
    %719 = vmatprep.subr.mxu0 0.0
    %v720 = vand.u32 %v594, 4294901760
    %v721 = vsub.f32 %v594, %v720
    %v722 = vand.u32 %v721, 4294901760
    %v723 = vsub.f32 %v721, %v722
    %v724 = vand.u32 %v723, 4294901760
    %725 = vmatpush1.msra.mxu0 %v724
    %726 = vmatprep.subr.mxu0 0.0
    %v727 = vand.u32 %v593, 4294901760
    %v728 = vsub.f32 %v593, %v727
    %v729 = vand.u32 %v728, 4294901760
    %v730 = vsub.f32 %v728, %v729
    %v731 = vand.u32 %v730, 4294901760
    %732 = vmatpush1.msra.mxu0 %v731
    %733 = vmatprep.subr.mxu0 0.0
    %v734 = vand.u32 %v592, 4294901760
    %v735 = vsub.f32 %v592, %v734
    %v736 = vand.u32 %v735, 4294901760
    %v737 = vsub.f32 %v735, %v736
    %v738 = vand.u32 %v737, 4294901760
    %739 = vmatpush1.msra.mxu0 %v738
    %740 = vmatprep.subr.mxu0 0.0
    %741 = vmatpush2.msra.mxu0 0.0
    %742 = vmatprep.subr.mxu0 0.0
    %743 = vmatpush2.msra.mxu0 0.0
    %744 = vmatprep.subr.mxu0 0.0
    %745 = vmatpush2.msra.mxu0 0.0
    %746 = vmatprep.subr.mxu0 0.0
    %747 = vmatpush2.msra.mxu0 0.0
    %748 = vmatprep.subr.mxu0 0.0
    %749 = vmatpush2.msra.mxu0 0.0
    %750 = vmatprep.subr.mxu0 0.0
    %751 = vmatpush2.msra.mxu0 0.0
    %752 = vmatprep.subr.mxu0 0.0
    %753 = vmatpush2.msra.mxu0 0.0
    %754 = vmatprep.subr.mxu0 0.0
    %755 = vmatpush2.msra.mxu0 0.0
    %756 = vmatprep.subr.mxu0 0.0
    %757 = vmatpush2.msra.mxu0 0.0
    %758 = vmatprep.subr.mxu0 0.0
    %759 = vmatpush2.msra.mxu0 0.0
    %760 = vmatprep.subr.mxu0 0.0
    %761 = vmatpush2.msra.mxu0 0.0
    %762 = vmatprep.subr.mxu0 0.0
    %763 = vmatpush2.msra.mxu0 0.0
    %764 = vmatprep.subr.mxu0 0.0
    %765 = vmatpush2.msra.mxu0 0.0
    %766 = vmatprep.subr.mxu0 0.0
    %767 = vmatpush2.msra.mxu0 0.0
    %768 = vmatprep.subr.mxu0 0.0
    %769 = vmatpush2.msra.mxu0 0.0
    %770 = vmatprep.subr.mxu0 0.0
    %771 = vmatpush2.msra.mxu0 0.0
    %772 = vmatprep.mubr.f32.mxu0 0.0
    %v773 = vand.u32 %v607, 4294901760
    %774 = vmatmul.mubr.f32.gmra.mxu0 %v773
    %v775 = vpop.f32.mrf.mxu0
    %v776 = vadd.f32 %v685, %v775
    %v777 = vpop.f32.mrf.mxu0
    %778 = vdwg.mxu0
    %779 = vmatprep.subr.mxu0 0.0
    %780 = vmatpush1.msra.mxu0 0.0
    %781 = vmatprep.subr.mxu0 0.0
    %782 = vmatpush1.msra.mxu0 0.0
    %783 = vmatprep.subr.mxu0 0.0
    %784 = vmatpush1.msra.mxu0 0.0
    %785 = vmatprep.subr.mxu0 0.0
    %786 = vmatpush1.msra.mxu0 0.0
    %787 = vmatprep.subr.mxu0 0.0
    %788 = vmatpush1.msra.mxu0 0.0
    %789 = vmatprep.subr.mxu0 0.0
    %790 = vmatpush1.msra.mxu0 0.0
    %791 = vmatprep.subr.mxu0 0.0
    %792 = vmatpush1.msra.mxu0 0.0
    %793 = vmatprep.subr.mxu0 0.0
    %794 = vmatpush1.msra.mxu0 0.0
    %795 = vmatprep.subr.mxu0 0.0
    %796 = vmatpush1.msra.mxu0 0.0
    %797 = vmatprep.subr.mxu0 0.0
    %798 = vmatpush1.msra.mxu0 0.0
    %799 = vmatprep.subr.mxu0 0.0
    %800 = vmatpush1.msra.mxu0 0.0
    %801 = vmatprep.subr.mxu0 0.0
    %802 = vmatpush1.msra.mxu0 0.0
    %803 = vmatprep.subr.mxu0 0.0
    %v804 = vand.u32 %v595, 4294901760
    %v805 = vsub.f32 %v595, %v804
    %806 = vmatpush1.msra.mxu0 %v805
    %807 = vmatprep.subr.mxu0 0.0
    %v808 = vand.u32 %v594, 4294901760
    %v809 = vsub.f32 %v594, %v808
    %810 = vmatpush1.msra.mxu0 %v809
    %811 = vmatprep.subr.mxu0 0.0
    %v812 = vand.u32 %v593, 4294901760
    %v813 = vsub.f32 %v593, %v812
    %814 = vmatpush1.msra.mxu0 %v813
    %815 = vmatprep.subr.mxu0 0.0
    %v816 = vand.u32 %v592, 4294901760
    %v817 = vsub.f32 %v592, %v816
    %818 = vmatpush1.msra.mxu0 %v817
    %819 = vmatprep.subr.mxu0 0.0
    %820 = vmatpush2.msra.mxu0 0.0
    %821 = vmatprep.subr.mxu0 0.0
    %822 = vmatpush2.msra.mxu0 0.0
    %823 = vmatprep.subr.mxu0 0.0
    %824 = vmatpush2.msra.mxu0 0.0
    %825 = vmatprep.subr.mxu0 0.0
    %826 = vmatpush2.msra.mxu0 0.0
    %827 = vmatprep.subr.mxu0 0.0
    %828 = vmatpush2.msra.mxu0 0.0
    %829 = vmatprep.subr.mxu0 0.0
    %830 = vmatpush2.msra.mxu0 0.0
    %831 = vmatprep.subr.mxu0 0.0
    %832 = vmatpush2.msra.mxu0 0.0
    %833 = vmatprep.subr.mxu0 0.0
    %834 = vmatpush2.msra.mxu0 0.0
    %835 = vmatprep.subr.mxu0 0.0
    %836 = vmatpush2.msra.mxu0 0.0
    %837 = vmatprep.subr.mxu0 0.0
    %838 = vmatpush2.msra.mxu0 0.0
    %839 = vmatprep.subr.mxu0 0.0
    %840 = vmatpush2.msra.mxu0 0.0
    %841 = vmatprep.subr.mxu0 0.0
    %842 = vmatpush2.msra.mxu0 0.0
    %843 = vmatprep.subr.mxu0 0.0
    %844 = vmatpush2.msra.mxu0 0.0
    %845 = vmatprep.subr.mxu0 0.0
    %846 = vmatpush2.msra.mxu0 0.0
    %847 = vmatprep.subr.mxu0 0.0
    %848 = vmatpush2.msra.mxu0 0.0
    %849 = vmatprep.subr.mxu0 0.0
    %850 = vmatpush2.msra.mxu0 0.0
    %851 = vmatprep.mubr.f32.mxu0 0.0
    %v852 = vand.u32 %v607, 4294901760
    %v853 = vsub.f32 %v607, %v852
    %854 = vmatmul.mubr.f32.gmra.mxu0 %v853
    %v855 = vpop.f32.mrf.mxu0
    %v856 = vadd.f32 %v776, %v855
    %v857 = vpop.f32.mrf.mxu0
    %858 = vdwg.mxu0
    %859 = vmatprep.subr.mxu0 0.0
    %860 = vmatpush1.msra.mxu0 0.0
    %861 = vmatprep.subr.mxu0 0.0
    %862 = vmatpush1.msra.mxu0 0.0
    %863 = vmatprep.subr.mxu0 0.0
    %864 = vmatpush1.msra.mxu0 0.0
    %865 = vmatprep.subr.mxu0 0.0
    %866 = vmatpush1.msra.mxu0 0.0
    %867 = vmatprep.subr.mxu0 0.0
    %868 = vmatpush1.msra.mxu0 0.0
    %869 = vmatprep.subr.mxu0 0.0
    %870 = vmatpush1.msra.mxu0 0.0
    %871 = vmatprep.subr.mxu0 0.0
    %872 = vmatpush1.msra.mxu0 0.0
    %873 = vmatprep.subr.mxu0 0.0
    %874 = vmatpush1.msra.mxu0 0.0
    %875 = vmatprep.subr.mxu0 0.0
    %876 = vmatpush1.msra.mxu0 0.0
    %877 = vmatprep.subr.mxu0 0.0
    %878 = vmatpush1.msra.mxu0 0.0
    %879 = vmatprep.subr.mxu0 0.0
    %880 = vmatpush1.msra.mxu0 0.0
    %881 = vmatprep.subr.mxu0 0.0
    %882 = vmatpush1.msra.mxu0 0.0
    %883 = vmatprep.subr.mxu0 0.0
    %v884 = vand.u32 %v595, 4294901760
    %885 = vmatpush1.msra.mxu0 %v884
    %886 = vmatprep.subr.mxu0 0.0
    %v887 = vand.u32 %v594, 4294901760
    %888 = vmatpush1.msra.mxu0 %v887
    %889 = vmatprep.subr.mxu0 0.0
    %v890 = vand.u32 %v593, 4294901760
    %891 = vmatpush1.msra.mxu0 %v890
    %892 = vmatprep.subr.mxu0 0.0
    %v893 = vand.u32 %v592, 4294901760
    %894 = vmatpush1.msra.mxu0 %v893
    %895 = vmatprep.subr.mxu0 0.0
    %896 = vmatpush2.msra.mxu0 0.0
    %897 = vmatprep.subr.mxu0 0.0
    %898 = vmatpush2.msra.mxu0 0.0
    %899 = vmatprep.subr.mxu0 0.0
    %900 = vmatpush2.msra.mxu0 0.0
    %901 = vmatprep.subr.mxu0 0.0
    %902 = vmatpush2.msra.mxu0 0.0
    %903 = vmatprep.subr.mxu0 0.0
    %904 = vmatpush2.msra.mxu0 0.0
    %905 = vmatprep.subr.mxu0 0.0
    %906 = vmatpush2.msra.mxu0 0.0
    %907 = vmatprep.subr.mxu0 0.0
    %908 = vmatpush2.msra.mxu0 0.0
    %909 = vmatprep.subr.mxu0 0.0
    %910 = vmatpush2.msra.mxu0 0.0
    %911 = vmatprep.subr.mxu0 0.0
    %912 = vmatpush2.msra.mxu0 0.0
    %913 = vmatprep.subr.mxu0 0.0
    %914 = vmatpush2.msra.mxu0 0.0
    %915 = vmatprep.subr.mxu0 0.0
    %916 = vmatpush2.msra.mxu0 0.0
    %917 = vmatprep.subr.mxu0 0.0
    %918 = vmatpush2.msra.mxu0 0.0
    %919 = vmatprep.subr.mxu0 0.0
    %920 = vmatpush2.msra.mxu0 0.0
    %921 = vmatprep.subr.mxu0 0.0
    %922 = vmatpush2.msra.mxu0 0.0
    %923 = vmatprep.subr.mxu0 0.0
    %924 = vmatpush2.msra.mxu0 0.0
    %925 = vmatprep.subr.mxu0 0.0
    %926 = vmatpush2.msra.mxu0 0.0
    %927 = vmatprep.mubr.f32.mxu0 0.0
    %v928 = vand.u32 %v607, 4294901760
    %v929 = vsub.f32 %v607, %v928
    %v930 = vand.u32 %v929, 4294901760
    %931 = vmatmul.mubr.f32.gmra.mxu0 %v930
    %v932 = vpop.f32.mrf.mxu0
    %v933 = vadd.f32 %v856, %v932
    %v934 = vpop.f32.mrf.mxu0
    %935 = vdwg.mxu0
    %936 = vmatprep.subr.mxu0 0.0
    %937 = vmatpush1.msra.mxu0 0.0
    %938 = vmatprep.subr.mxu0 0.0
    %939 = vmatpush1.msra.mxu0 0.0
    %940 = vmatprep.subr.mxu0 0.0
    %941 = vmatpush1.msra.mxu0 0.0
    %942 = vmatprep.subr.mxu0 0.0
    %943 = vmatpush1.msra.mxu0 0.0
    %944 = vmatprep.subr.mxu0 0.0
    %945 = vmatpush1.msra.mxu0 0.0
    %946 = vmatprep.subr.mxu0 0.0
    %947 = vmatpush1.msra.mxu0 0.0
    %948 = vmatprep.subr.mxu0 0.0
    %949 = vmatpush1.msra.mxu0 0.0
    %950 = vmatprep.subr.mxu0 0.0
    %951 = vmatpush1.msra.mxu0 0.0
    %952 = vmatprep.subr.mxu0 0.0
    %953 = vmatpush1.msra.mxu0 0.0
    %954 = vmatprep.subr.mxu0 0.0
    %955 = vmatpush1.msra.mxu0 0.0
    %956 = vmatprep.subr.mxu0 0.0
    %957 = vmatpush1.msra.mxu0 0.0
    %958 = vmatprep.subr.mxu0 0.0
    %959 = vmatpush1.msra.mxu0 0.0
    %960 = vmatprep.subr.mxu0 0.0
    %v961 = vand.u32 %v595, 4294901760
    %v962 = vsub.f32 %v595, %v961
    %v963 = vand.u32 %v962, 4294901760
    %964 = vmatpush1.msra.mxu0 %v963
    %965 = vmatprep.subr.mxu0 0.0
    %v966 = vand.u32 %v594, 4294901760
    %v967 = vsub.f32 %v594, %v966
    %v968 = vand.u32 %v967, 4294901760
    %969 = vmatpush1.msra.mxu0 %v968
    %970 = vmatprep.subr.mxu0 0.0
    %v971 = vand.u32 %v593, 4294901760
    %v972 = vsub.f32 %v593, %v971
    %v973 = vand.u32 %v972, 4294901760
    %974 = vmatpush1.msra.mxu0 %v973
    %975 = vmatprep.subr.mxu0 0.0
    %v976 = vand.u32 %v592, 4294901760
    %v977 = vsub.f32 %v592, %v976
    %v978 = vand.u32 %v977, 4294901760
    %979 = vmatpush1.msra.mxu0 %v978
    %980 = vmatprep.subr.mxu0 0.0
    %981 = vmatpush2.msra.mxu0 0.0
    %982 = vmatprep.subr.mxu0 0.0
    %983 = vmatpush2.msra.mxu0 0.0
    %984 = vmatprep.subr.mxu0 0.0
    %985 = vmatpush2.msra.mxu0 0.0
    %986 = vmatprep.subr.mxu0 0.0
    %987 = vmatpush2.msra.mxu0 0.0
    %988 = vmatprep.subr.mxu0 0.0
    %989 = vmatpush2.msra.mxu0 0.0
    %990 = vmatprep.subr.mxu0 0.0
    %991 = vmatpush2.msra.mxu0 0.0
    %992 = vmatprep.subr.mxu0 0.0
    %993 = vmatpush2.msra.mxu0 0.0
    %994 = vmatprep.subr.mxu0 0.0
    %995 = vmatpush2.msra.mxu0 0.0
    %996 = vmatprep.subr.mxu0 0.0
    %997 = vmatpush2.msra.mxu0 0.0
    %998 = vmatprep.subr.mxu0 0.0
    %999 = vmatpush2.msra.mxu0 0.0
    %1000 = vmatprep.subr.mxu0 0.0
    %1001 = vmatpush2.msra.mxu0 0.0
    %1002 = vmatprep.subr.mxu0 0.0
    %1003 = vmatpush2.msra.mxu0 0.0
    %1004 = vmatprep.subr.mxu0 0.0
    %1005 = vmatpush2.msra.mxu0 0.0
    %1006 = vmatprep.subr.mxu0 0.0
    %1007 = vmatpush2.msra.mxu0 0.0
    %1008 = vmatprep.subr.mxu0 0.0
    %1009 = vmatpush2.msra.mxu0 0.0
    %1010 = vmatprep.subr.mxu0 0.0
    %1011 = vmatpush2.msra.mxu0 0.0
    %1012 = vmatprep.mubr.f32.mxu0 0.0
    %v1013 = vand.u32 %v607, 4294901760
    %1014 = vmatmul.mubr.f32.gmra.mxu0 %v1013
    %v1015 = vpop.f32.mrf.mxu0
    %v1016 = vadd.f32 %v933, %v1015
    %v1017 = vpop.f32.mrf.mxu0
    %1018 = vdwg.mxu0
    %1019 = vmatprep.subr.mxu0 0.0
    %1020 = vmatpush1.msra.mxu0 0.0
    %1021 = vmatprep.subr.mxu0 0.0
    %1022 = vmatpush1.msra.mxu0 0.0
    %1023 = vmatprep.subr.mxu0 0.0
    %1024 = vmatpush1.msra.mxu0 0.0
    %1025 = vmatprep.subr.mxu0 0.0
    %1026 = vmatpush1.msra.mxu0 0.0
    %1027 = vmatprep.subr.mxu0 0.0
    %1028 = vmatpush1.msra.mxu0 0.0
    %1029 = vmatprep.subr.mxu0 0.0
    %1030 = vmatpush1.msra.mxu0 0.0
    %1031 = vmatprep.subr.mxu0 0.0
    %1032 = vmatpush1.msra.mxu0 0.0
    %1033 = vmatprep.subr.mxu0 0.0
    %1034 = vmatpush1.msra.mxu0 0.0
    %1035 = vmatprep.subr.mxu0 0.0
    %1036 = vmatpush1.msra.mxu0 0.0
    %1037 = vmatprep.subr.mxu0 0.0
    %1038 = vmatpush1.msra.mxu0 0.0
    %1039 = vmatprep.subr.mxu0 0.0
    %1040 = vmatpush1.msra.mxu0 0.0
    %1041 = vmatprep.subr.mxu0 0.0
    %1042 = vmatpush1.msra.mxu0 0.0
    %1043 = vmatprep.subr.mxu0 0.0
    %v1044 = vand.u32 %v595, 4294901760
    %1045 = vmatpush1.msra.mxu0 %v1044
    %1046 = vmatprep.subr.mxu0 0.0
    %v1047 = vand.u32 %v594, 4294901760
    %1048 = vmatpush1.msra.mxu0 %v1047
    %1049 = vmatprep.subr.mxu0 0.0
    %v1050 = vand.u32 %v593, 4294901760
    %1051 = vmatpush1.msra.mxu0 %v1050
    %1052 = vmatprep.subr.mxu0 0.0
    %v1053 = vand.u32 %v592, 4294901760
    %1054 = vmatpush1.msra.mxu0 %v1053
    %1055 = vmatprep.subr.mxu0 0.0
    %1056 = vmatpush2.msra.mxu0 0.0
    %1057 = vmatprep.subr.mxu0 0.0
    %1058 = vmatpush2.msra.mxu0 0.0
    %1059 = vmatprep.subr.mxu0 0.0
    %1060 = vmatpush2.msra.mxu0 0.0
    %1061 = vmatprep.subr.mxu0 0.0
    %1062 = vmatpush2.msra.mxu0 0.0
    %1063 = vmatprep.subr.mxu0 0.0
    %1064 = vmatpush2.msra.mxu0 0.0
    %1065 = vmatprep.subr.mxu0 0.0
    %1066 = vmatpush2.msra.mxu0 0.0
    %1067 = vmatprep.subr.mxu0 0.0
    %1068 = vmatpush2.msra.mxu0 0.0
    %1069 = vmatprep.subr.mxu0 0.0
    %1070 = vmatpush2.msra.mxu0 0.0
    %1071 = vmatprep.subr.mxu0 0.0
    %1072 = vmatpush2.msra.mxu0 0.0
    %1073 = vmatprep.subr.mxu0 0.0
    %1074 = vmatpush2.msra.mxu0 0.0
    %1075 = vmatprep.subr.mxu0 0.0
    %1076 = vmatpush2.msra.mxu0 0.0
    %1077 = vmatprep.subr.mxu0 0.0
    %1078 = vmatpush2.msra.mxu0 0.0
    %1079 = vmatprep.subr.mxu0 0.0
    %1080 = vmatpush2.msra.mxu0 0.0
    %1081 = vmatprep.subr.mxu0 0.0
    %1082 = vmatpush2.msra.mxu0 0.0
    %1083 = vmatprep.subr.mxu0 0.0
    %1084 = vmatpush2.msra.mxu0 0.0
    %1085 = vmatprep.subr.mxu0 0.0
    %1086 = vmatpush2.msra.mxu0 0.0
    %1087 = vmatprep.mubr.f32.mxu0 0.0
    %v1088 = vand.u32 %v607, 4294901760
    %1089 = vmatmul.mubr.f32.gmra.mxu0 %v1088
    %v1090 = vpop.f32.mrf.mxu0
    %v1091 = vadd.f32 %v1016, %v1090
    %v1092 = vpop.f32.mrf.mxu0
    %1093 = vdwg.mxu0
    %v1094 = vadd.f32 %v583, %v1091
    %v1095 = vxor.u32 %v1094, 2147483648
    %v1096 = vmul.f32 %v1095, 1.442695
    %v1097 = vpow.pop %v1096
    %v1098 = vadd.f32 %v1097, 1.0
    %v1099 = vrcp.pop %v1098
    %v1100 = vmul.f32 1.0, %v1099
    %v1101 = vtanh.pop %v1094
    %v1102 = vmul.f32 %v1100, 0.0
    %1104 = vrot.lane.b32.xlu0 %v1101, 64
    %v1105 = vpop.permute.xlu0 %1104
    %v1107 = vmul.f32 %v1100, %v1105
    %1109 = vrot.lane.b32.xlu0 %v1107, 32
    %v1110 = vpop.permute.xlu0 %1109
    %v1112 = vadd.f32 %v1102, %v1110
    %v1113 = vtanh.pop %v1112
    %1115 = vrot.lane.b32.xlu0 %v1113, 64
    %v1116 = vpop.permute.xlu0 %1115
    %v1118 = vmul.f32 %v1100, %v1116
    %1120 = vrot.lane.b32.xlu0 %v1118, 32
    %v1121 = vpop.permute.xlu0 %1120
    %v1123 = vsel %vm605, %v1121, 0.0
    %v1125 = vlaneseq
    %v1126 = vshrl.u32 %v1125, 7
    %v1127 = vsub.s32 0, %v1126
    %v1128 = vrot.slane %v604, %v1127
    %vm1130 = vcmask 523264
    %v1132 = vsel %vm1130, %v1123, 0
    %1134 = vmatprep.subr.mxu0 0.0
    %1135 = vmatpush1.msra.mxu0 0.0
    %1136 = vmatprep.subr.mxu0 0.0
    %1137 = vmatpush1.msra.mxu0 0.0
    %1138 = vmatprep.subr.mxu0 0.0
    %1139 = vmatpush1.msra.mxu0 0.0
    %1140 = vmatprep.subr.mxu0 0.0
    %1141 = vmatpush1.msra.mxu0 0.0
    %1142 = vmatprep.subr.mxu0 0.0
    %1143 = vmatpush1.msra.mxu0 0.0
    %1144 = vmatprep.subr.mxu0 0.0
    %1145 = vmatpush1.msra.mxu0 0.0
    %1146 = vmatprep.subr.mxu0 0.0
    %1147 = vmatpush1.msra.mxu0 0.0
    %1148 = vmatprep.subr.mxu0 0.0
    %1149 = vmatpush1.msra.mxu0 0.0
    %1150 = vmatprep.subr.mxu0 0.0
    %v1151 = vand.u32 %v603, 4294901760
    %1152 = vmatpush1.msra.mxu0 %v1151
    %1153 = vmatprep.subr.mxu0 0.0
    %v1154 = vand.u32 %v602, 4294901760
    %1155 = vmatpush1.msra.mxu0 %v1154
    %1156 = vmatprep.subr.mxu0 0.0
    %v1157 = vand.u32 %v601, 4294901760
    %1158 = vmatpush1.msra.mxu0 %v1157
    %1159 = vmatprep.subr.mxu0 0.0
    %v1160 = vand.u32 %v600, 4294901760
    %1161 = vmatpush1.msra.mxu0 %v1160
    %1162 = vmatprep.subr.mxu0 0.0
    %v1163 = vand.u32 %v599, 4294901760
    %1164 = vmatpush1.msra.mxu0 %v1163
    %1165 = vmatprep.subr.mxu0 0.0
    %v1166 = vand.u32 %v598, 4294901760
    %1167 = vmatpush1.msra.mxu0 %v1166
    %1168 = vmatprep.subr.mxu0 0.0
    %v1169 = vand.u32 %v597, 4294901760
    %1170 = vmatpush1.msra.mxu0 %v1169
    %1171 = vmatprep.subr.mxu0 0.0
    %v1172 = vand.u32 %v596, 4294901760
    %1173 = vmatpush1.msra.mxu0 %v1172
    %1174 = vmatprep.subr.mxu0 0.0
    %1175 = vmatpush2.msra.mxu0 0.0
    %1176 = vmatprep.subr.mxu0 0.0
    %1177 = vmatpush2.msra.mxu0 0.0
    %1178 = vmatprep.subr.mxu0 0.0
    %1179 = vmatpush2.msra.mxu0 0.0
    %1180 = vmatprep.subr.mxu0 0.0
    %1181 = vmatpush2.msra.mxu0 0.0
    %1182 = vmatprep.subr.mxu0 0.0
    %1183 = vmatpush2.msra.mxu0 0.0
    %1184 = vmatprep.subr.mxu0 0.0
    %1185 = vmatpush2.msra.mxu0 0.0
    %1186 = vmatprep.subr.mxu0 0.0
    %1187 = vmatpush2.msra.mxu0 0.0
    %1188 = vmatprep.subr.mxu0 0.0
    %1189 = vmatpush2.msra.mxu0 0.0
    %1190 = vmatprep.subr.mxu0 0.0
    %1191 = vmatpush2.msra.mxu0 0.0
    %1192 = vmatprep.subr.mxu0 0.0
    %1193 = vmatpush2.msra.mxu0 0.0
    %1194 = vmatprep.subr.mxu0 0.0
    %1195 = vmatpush2.msra.mxu0 0.0
    %1196 = vmatprep.subr.mxu0 0.0
    %1197 = vmatpush2.msra.mxu0 0.0
    %1198 = vmatprep.subr.mxu0 0.0
    %1199 = vmatpush2.msra.mxu0 0.0
    %1200 = vmatprep.subr.mxu0 0.0
    %1201 = vmatpush2.msra.mxu0 0.0
    %1202 = vmatprep.subr.mxu0 0.0
    %1203 = vmatpush2.msra.mxu0 0.0
    %1204 = vmatprep.subr.mxu0 0.0
    %1205 = vmatpush2.msra.mxu0 0.0
    %1206 = vmatprep.mubr.f32.mxu0 0.0
    %v1207 = vand.u32 %v1132, 4294901760
    %v1208 = vsub.f32 %v1132, %v1207
    %v1209 = vand.u32 %v1208, 4294901760
    %v1210 = vsub.f32 %v1208, %v1209
    %v1211 = vand.u32 %v1210, 4294901760
    %1212 = vmatmul.mubr.f32.gmra.mxu0 %v1211
    %v1213 = vpop.f32.mrf.mxu0
    %v1214 = vadd.f32 %v1128, %v1213
    %v1215 = vpop.f32.mrf.mxu0
    %1216 = vdwg.mxu0
    %1217 = vmatprep.subr.mxu0 0.0
    %1218 = vmatpush1.msra.mxu0 0.0
    %1219 = vmatprep.subr.mxu0 0.0
    %1220 = vmatpush1.msra.mxu0 0.0
    %1221 = vmatprep.subr.mxu0 0.0
    %1222 = vmatpush1.msra.mxu0 0.0
    %1223 = vmatprep.subr.mxu0 0.0
    %1224 = vmatpush1.msra.mxu0 0.0
    %1225 = vmatprep.subr.mxu0 0.0
    %1226 = vmatpush1.msra.mxu0 0.0
    %1227 = vmatprep.subr.mxu0 0.0
    %1228 = vmatpush1.msra.mxu0 0.0
    %1229 = vmatprep.subr.mxu0 0.0
    %1230 = vmatpush1.msra.mxu0 0.0
    %1231 = vmatprep.subr.mxu0 0.0
    %1232 = vmatpush1.msra.mxu0 0.0
    %1233 = vmatprep.subr.mxu0 0.0
    %v1234 = vand.u32 %v603, 4294901760
    %v1235 = vsub.f32 %v603, %v1234
    %v1236 = vand.u32 %v1235, 4294901760
    %v1237 = vsub.f32 %v1235, %v1236
    %v1238 = vand.u32 %v1237, 4294901760
    %1239 = vmatpush1.msra.mxu0 %v1238
    %1240 = vmatprep.subr.mxu0 0.0
    %v1241 = vand.u32 %v602, 4294901760
    %v1242 = vsub.f32 %v602, %v1241
    %v1243 = vand.u32 %v1242, 4294901760
    %v1244 = vsub.f32 %v1242, %v1243
    %v1245 = vand.u32 %v1244, 4294901760
    %1246 = vmatpush1.msra.mxu0 %v1245
    %1247 = vmatprep.subr.mxu0 0.0
    %v1248 = vand.u32 %v601, 4294901760
    %v1249 = vsub.f32 %v601, %v1248
    %v1250 = vand.u32 %v1249, 4294901760
    %v1251 = vsub.f32 %v1249, %v1250
    %v1252 = vand.u32 %v1251, 4294901760
    %1253 = vmatpush1.msra.mxu0 %v1252
    %1254 = vmatprep.subr.mxu0 0.0
    %v1255 = vand.u32 %v600, 4294901760
    %v1256 = vsub.f32 %v600, %v1255
    %v1257 = vand.u32 %v1256, 4294901760
    %v1258 = vsub.f32 %v1256, %v1257
    %v1259 = vand.u32 %v1258, 4294901760
    %1260 = vmatpush1.msra.mxu0 %v1259
    %1261 = vmatprep.subr.mxu0 0.0
    %v1262 = vand.u32 %v599, 4294901760
    %v1263 = vsub.f32 %v599, %v1262
    %v1264 = vand.u32 %v1263, 4294901760
    %v1265 = vsub.f32 %v1263, %v1264
    %v1266 = vand.u32 %v1265, 4294901760
    %1267 = vmatpush1.msra.mxu0 %v1266
    %1268 = vmatprep.subr.mxu0 0.0
    %v1269 = vand.u32 %v598, 4294901760
    %v1270 = vsub.f32 %v598, %v1269
    %v1271 = vand.u32 %v1270, 4294901760
    %v1272 = vsub.f32 %v1270, %v1271
    %v1273 = vand.u32 %v1272, 4294901760
    %1274 = vmatpush1.msra.mxu0 %v1273
    %1275 = vmatprep.subr.mxu0 0.0
    %v1276 = vand.u32 %v597, 4294901760
    %v1277 = vsub.f32 %v597, %v1276
    %v1278 = vand.u32 %v1277, 4294901760
    %v1279 = vsub.f32 %v1277, %v1278
    %v1280 = vand.u32 %v1279, 4294901760
    %1281 = vmatpush1.msra.mxu0 %v1280
    %1282 = vmatprep.subr.mxu0 0.0
    %v1283 = vand.u32 %v596, 4294901760
    %v1284 = vsub.f32 %v596, %v1283
    %v1285 = vand.u32 %v1284, 4294901760
    %v1286 = vsub.f32 %v1284, %v1285
    %v1287 = vand.u32 %v1286, 4294901760
    %1288 = vmatpush1.msra.mxu0 %v1287
    %1289 = vmatprep.subr.mxu0 0.0
    %1290 = vmatpush2.msra.mxu0 0.0
    %1291 = vmatprep.subr.mxu0 0.0
    %1292 = vmatpush2.msra.mxu0 0.0
    %1293 = vmatprep.subr.mxu0 0.0
    %1294 = vmatpush2.msra.mxu0 0.0
    %1295 = vmatprep.subr.mxu0 0.0
    %1296 = vmatpush2.msra.mxu0 0.0
    %1297 = vmatprep.subr.mxu0 0.0
    %1298 = vmatpush2.msra.mxu0 0.0
    %1299 = vmatprep.subr.mxu0 0.0
    %1300 = vmatpush2.msra.mxu0 0.0
    %1301 = vmatprep.subr.mxu0 0.0
    %1302 = vmatpush2.msra.mxu0 0.0
    %1303 = vmatprep.subr.mxu0 0.0
    %1304 = vmatpush2.msra.mxu0 0.0
    %1305 = vmatprep.subr.mxu0 0.0
    %1306 = vmatpush2.msra.mxu0 0.0
    %1307 = vmatprep.subr.mxu0 0.0
    %1308 = vmatpush2.msra.mxu0 0.0
    %1309 = vmatprep.subr.mxu0 0.0
    %1310 = vmatpush2.msra.mxu0 0.0
    %1311 = vmatprep.subr.mxu0 0.0
    %1312 = vmatpush2.msra.mxu0 0.0
    %1313 = vmatprep.subr.mxu0 0.0
    %1314 = vmatpush2.msra.mxu0 0.0
    %1315 = vmatprep.subr.mxu0 0.0
    %1316 = vmatpush2.msra.mxu0 0.0
    %1317 = vmatprep.subr.mxu0 0.0
    %1318 = vmatpush2.msra.mxu0 0.0
    %1319 = vmatprep.subr.mxu0 0.0
    %1320 = vmatpush2.msra.mxu0 0.0
    %1321 = vmatprep.mubr.f32.mxu0 0.0
    %v1322 = vand.u32 %v1132, 4294901760
    %1323 = vmatmul.mubr.f32.gmra.mxu0 %v1322
    %v1324 = vpop.f32.mrf.mxu0
    %v1325 = vadd.f32 %v1214, %v1324
    %v1326 = vpop.f32.mrf.mxu0
    %1327 = vdwg.mxu0
    %1328 = vmatprep.subr.mxu0 0.0
    %1329 = vmatpush1.msra.mxu0 0.0
    %1330 = vmatprep.subr.mxu0 0.0
    %1331 = vmatpush1.msra.mxu0 0.0
    %1332 = vmatprep.subr.mxu0 0.0
    %1333 = vmatpush1.msra.mxu0 0.0
    %1334 = vmatprep.subr.mxu0 0.0
    %1335 = vmatpush1.msra.mxu0 0.0
    %1336 = vmatprep.subr.mxu0 0.0
    %1337 = vmatpush1.msra.mxu0 0.0
    %1338 = vmatprep.subr.mxu0 0.0
    %1339 = vmatpush1.msra.mxu0 0.0
    %1340 = vmatprep.subr.mxu0 0.0
    %1341 = vmatpush1.msra.mxu0 0.0
    %1342 = vmatprep.subr.mxu0 0.0
    %1343 = vmatpush1.msra.mxu0 0.0
    %1344 = vmatprep.subr.mxu0 0.0
    %v1345 = vand.u32 %v603, 4294901760
    %v1346 = vsub.f32 %v603, %v1345
    %1347 = vmatpush1.msra.mxu0 %v1346
    %1348 = vmatprep.subr.mxu0 0.0
    %v1349 = vand.u32 %v602, 4294901760
    %v1350 = vsub.f32 %v602, %v1349
    %1351 = vmatpush1.msra.mxu0 %v1350
    %1352 = vmatprep.subr.mxu0 0.0
    %v1353 = vand.u32 %v601, 4294901760
    %v1354 = vsub.f32 %v601, %v1353
    %1355 = vmatpush1.msra.mxu0 %v1354
    %1356 = vmatprep.subr.mxu0 0.0
    %v1357 = vand.u32 %v600, 4294901760
    %v1358 = vsub.f32 %v600, %v1357
    %1359 = vmatpush1.msra.mxu0 %v1358
    %1360 = vmatprep.subr.mxu0 0.0
    %v1361 = vand.u32 %v599, 4294901760
    %v1362 = vsub.f32 %v599, %v1361
    %1363 = vmatpush1.msra.mxu0 %v1362
    %1364 = vmatprep.subr.mxu0 0.0
    %v1365 = vand.u32 %v598, 4294901760
    %v1366 = vsub.f32 %v598, %v1365
    %1367 = vmatpush1.msra.mxu0 %v1366
    %1368 = vmatprep.subr.mxu0 0.0
    %v1369 = vand.u32 %v597, 4294901760
    %v1370 = vsub.f32 %v597, %v1369
    %1371 = vmatpush1.msra.mxu0 %v1370
    %1372 = vmatprep.subr.mxu0 0.0
    %v1373 = vand.u32 %v596, 4294901760
    %v1374 = vsub.f32 %v596, %v1373
    %1375 = vmatpush1.msra.mxu0 %v1374
    %1376 = vmatprep.subr.mxu0 0.0
    %1377 = vmatpush2.msra.mxu0 0.0
    %1378 = vmatprep.subr.mxu0 0.0
    %1379 = vmatpush2.msra.mxu0 0.0
    %1380 = vmatprep.subr.mxu0 0.0
    %1381 = vmatpush2.msra.mxu0 0.0
    %1382 = vmatprep.subr.mxu0 0.0
    %1383 = vmatpush2.msra.mxu0 0.0
    %1384 = vmatprep.subr.mxu0 0.0
    %1385 = vmatpush2.msra.mxu0 0.0
    %1386 = vmatprep.subr.mxu0 0.0
    %1387 = vmatpush2.msra.mxu0 0.0
    %1388 = vmatprep.subr.mxu0 0.0
    %1389 = vmatpush2.msra.mxu0 0.0
    %1390 = vmatprep.subr.mxu0 0.0
    %1391 = vmatpush2.msra.mxu0 0.0
    %1392 = vmatprep.subr.mxu0 0.0
    %1393 = vmatpush2.msra.mxu0 0.0
    %1394 = vmatprep.subr.mxu0 0.0
    %1395 = vmatpush2.msra.mxu0 0.0
    %1396 = vmatprep.subr.mxu0 0.0
    %1397 = vmatpush2.msra.mxu0 0.0
    %1398 = vmatprep.subr.mxu0 0.0
    %1399 = vmatpush2.msra.mxu0 0.0
    %1400 = vmatprep.subr.mxu0 0.0
    %1401 = vmatpush2.msra.mxu0 0.0
    %1402 = vmatprep.subr.mxu0 0.0
    %1403 = vmatpush2.msra.mxu0 0.0
    %1404 = vmatprep.subr.mxu0 0.0
    %1405 = vmatpush2.msra.mxu0 0.0
    %1406 = vmatprep.subr.mxu0 0.0
    %1407 = vmatpush2.msra.mxu0 0.0
    %1408 = vmatprep.mubr.f32.mxu0 0.0
    %v1409 = vand.u32 %v1132, 4294901760
    %v1410 = vsub.f32 %v1132, %v1409
    %1411 = vmatmul.mubr.f32.gmra.mxu0 %v1410
    %v1412 = vpop.f32.mrf.mxu0
    %v1413 = vadd.f32 %v1325, %v1412
    %v1414 = vpop.f32.mrf.mxu0
    %1415 = vdwg.mxu0
    %1416 = vmatprep.subr.mxu0 0.0
    %1417 = vmatpush1.msra.mxu0 0.0
    %1418 = vmatprep.subr.mxu0 0.0
    %1419 = vmatpush1.msra.mxu0 0.0
    %1420 = vmatprep.subr.mxu0 0.0
    %1421 = vmatpush1.msra.mxu0 0.0
    %1422 = vmatprep.subr.mxu0 0.0
    %1423 = vmatpush1.msra.mxu0 0.0
    %1424 = vmatprep.subr.mxu0 0.0
    %1425 = vmatpush1.msra.mxu0 0.0
    %1426 = vmatprep.subr.mxu0 0.0
    %1427 = vmatpush1.msra.mxu0 0.0
    %1428 = vmatprep.subr.mxu0 0.0
    %1429 = vmatpush1.msra.mxu0 0.0
    %1430 = vmatprep.subr.mxu0 0.0
    %1431 = vmatpush1.msra.mxu0 0.0
    %1432 = vmatprep.subr.mxu0 0.0
    %v1433 = vand.u32 %v603, 4294901760
    %1434 = vmatpush1.msra.mxu0 %v1433
    %1435 = vmatprep.subr.mxu0 0.0
    %v1436 = vand.u32 %v602, 4294901760
    %1437 = vmatpush1.msra.mxu0 %v1436
    %1438 = vmatprep.subr.mxu0 0.0
    %v1439 = vand.u32 %v601, 4294901760
    %1440 = vmatpush1.msra.mxu0 %v1439
    %1441 = vmatprep.subr.mxu0 0.0
    %v1442 = vand.u32 %v600, 4294901760
    %1443 = vmatpush1.msra.mxu0 %v1442
    %1444 = vmatprep.subr.mxu0 0.0
    %v1445 = vand.u32 %v599, 4294901760
    %1446 = vmatpush1.msra.mxu0 %v1445
    %1447 = vmatprep.subr.mxu0 0.0
    %v1448 = vand.u32 %v598, 4294901760
    %1449 = vmatpush1.msra.mxu0 %v1448
    %1450 = vmatprep.subr.mxu0 0.0
    %v1451 = vand.u32 %v597, 4294901760
    %1452 = vmatpush1.msra.mxu0 %v1451
    %1453 = vmatprep.subr.mxu0 0.0
    %v1454 = vand.u32 %v596, 4294901760
    %1455 = vmatpush1.msra.mxu0 %v1454
    %1456 = vmatprep.subr.mxu0 0.0
    %1457 = vmatpush2.msra.mxu0 0.0
    %1458 = vmatprep.subr.mxu0 0.0
    %1459 = vmatpush2.msra.mxu0 0.0
    %1460 = vmatprep.subr.mxu0 0.0
    %1461 = vmatpush2.msra.mxu0 0.0
    %1462 = vmatprep.subr.mxu0 0.0
    %1463 = vmatpush2.msra.mxu0 0.0
    %1464 = vmatprep.subr.mxu0 0.0
    %1465 = vmatpush2.msra.mxu0 0.0
    %1466 = vmatprep.subr.mxu0 0.0
    %1467 = vmatpush2.msra.mxu0 0.0
    %1468 = vmatprep.subr.mxu0 0.0
    %1469 = vmatpush2.msra.mxu0 0.0
    %1470 = vmatprep.subr.mxu0 0.0
    %1471 = vmatpush2.msra.mxu0 0.0
    %1472 = vmatprep.subr.mxu0 0.0
    %1473 = vmatpush2.msra.mxu0 0.0
    %1474 = vmatprep.subr.mxu0 0.0
    %1475 = vmatpush2.msra.mxu0 0.0
    %1476 = vmatprep.subr.mxu0 0.0
    %1477 = vmatpush2.msra.mxu0 0.0
    %1478 = vmatprep.subr.mxu0 0.0
    %1479 = vmatpush2.msra.mxu0 0.0
    %1480 = vmatprep.subr.mxu0 0.0
    %1481 = vmatpush2.msra.mxu0 0.0
    %1482 = vmatprep.subr.mxu0 0.0
    %1483 = vmatpush2.msra.mxu0 0.0
    %1484 = vmatprep.subr.mxu0 0.0
    %1485 = vmatpush2.msra.mxu0 0.0
    %1486 = vmatprep.subr.mxu0 0.0
    %1487 = vmatpush2.msra.mxu0 0.0
    %1488 = vmatprep.mubr.f32.mxu0 0.0
    %v1489 = vand.u32 %v1132, 4294901760
    %v1490 = vsub.f32 %v1132, %v1489
    %v1491 = vand.u32 %v1490, 4294901760
    %1492 = vmatmul.mubr.f32.gmra.mxu0 %v1491
    %v1493 = vpop.f32.mrf.mxu0
    %v1494 = vadd.f32 %v1413, %v1493
    %v1495 = vpop.f32.mrf.mxu0
    %1496 = vdwg.mxu0
    %1497 = vmatprep.subr.mxu0 0.0
    %1498 = vmatpush1.msra.mxu0 0.0
    %1499 = vmatprep.subr.mxu0 0.0
    %1500 = vmatpush1.msra.mxu0 0.0
    %1501 = vmatprep.subr.mxu0 0.0
    %1502 = vmatpush1.msra.mxu0 0.0
    %1503 = vmatprep.subr.mxu0 0.0
    %1504 = vmatpush1.msra.mxu0 0.0
    %1505 = vmatprep.subr.mxu0 0.0
    %1506 = vmatpush1.msra.mxu0 0.0
    %1507 = vmatprep.subr.mxu0 0.0
    %1508 = vmatpush1.msra.mxu0 0.0
    %1509 = vmatprep.subr.mxu0 0.0
    %1510 = vmatpush1.msra.mxu0 0.0
    %1511 = vmatprep.subr.mxu0 0.0
    %1512 = vmatpush1.msra.mxu0 0.0
    %1513 = vmatprep.subr.mxu0 0.0
    %v1514 = vand.u32 %v603, 4294901760
    %v1515 = vsub.f32 %v603, %v1514
    %v1516 = vand.u32 %v1515, 4294901760
    %1517 = vmatpush1.msra.mxu0 %v1516
    %1518 = vmatprep.subr.mxu0 0.0
    %v1519 = vand.u32 %v602, 4294901760
    %v1520 = vsub.f32 %v602, %v1519
    %v1521 = vand.u32 %v1520, 4294901760
    %1522 = vmatpush1.msra.mxu0 %v1521
    %1523 = vmatprep.subr.mxu0 0.0
    %v1524 = vand.u32 %v601, 4294901760
    %v1525 = vsub.f32 %v601, %v1524
    %v1526 = vand.u32 %v1525, 4294901760
    %1527 = vmatpush1.msra.mxu0 %v1526
    %1528 = vmatprep.subr.mxu0 0.0
    %v1529 = vand.u32 %v600, 4294901760
    %v1530 = vsub.f32 %v600, %v1529
    %v1531 = vand.u32 %v1530, 4294901760
    %1532 = vmatpush1.msra.mxu0 %v1531
    %1533 = vmatprep.subr.mxu0 0.0
    %v1534 = vand.u32 %v599, 4294901760
    %v1535 = vsub.f32 %v599, %v1534
    %v1536 = vand.u32 %v1535, 4294901760
    %1537 = vmatpush1.msra.mxu0 %v1536
    %1538 = vmatprep.subr.mxu0 0.0
    %v1539 = vand.u32 %v598, 4294901760
    %v1540 = vsub.f32 %v598, %v1539
    %v1541 = vand.u32 %v1540, 4294901760
    %1542 = vmatpush1.msra.mxu0 %v1541
    %1543 = vmatprep.subr.mxu0 0.0
    %v1544 = vand.u32 %v597, 4294901760
    %v1545 = vsub.f32 %v597, %v1544
    %v1546 = vand.u32 %v1545, 4294901760
    %1547 = vmatpush1.msra.mxu0 %v1546
    %1548 = vmatprep.subr.mxu0 0.0
    %v1549 = vand.u32 %v596, 4294901760
    %v1550 = vsub.f32 %v596, %v1549
    %v1551 = vand.u32 %v1550, 4294901760
    %1552 = vmatpush1.msra.mxu0 %v1551
    %1553 = vmatprep.subr.mxu0 0.0
    %1554 = vmatpush2.msra.mxu0 0.0
    %1555 = vmatprep.subr.mxu0 0.0
    %1556 = vmatpush2.msra.mxu0 0.0
    %1557 = vmatprep.subr.mxu0 0.0
    %1558 = vmatpush2.msra.mxu0 0.0
    %1559 = vmatprep.subr.mxu0 0.0
    %1560 = vmatpush2.msra.mxu0 0.0
    %1561 = vmatprep.subr.mxu0 0.0
    %1562 = vmatpush2.msra.mxu0 0.0
    %1563 = vmatprep.subr.mxu0 0.0
    %1564 = vmatpush2.msra.mxu0 0.0
    %1565 = vmatprep.subr.mxu0 0.0
    %1566 = vmatpush2.msra.mxu0 0.0
    %1567 = vmatprep.subr.mxu0 0.0
    %1568 = vmatpush2.msra.mxu0 0.0
    %1569 = vmatprep.subr.mxu0 0.0
    %1570 = vmatpush2.msra.mxu0 0.0
    %1571 = vmatprep.subr.mxu0 0.0
    %1572 = vmatpush2.msra.mxu0 0.0
    %1573 = vmatprep.subr.mxu0 0.0
    %1574 = vmatpush2.msra.mxu0 0.0
    %1575 = vmatprep.subr.mxu0 0.0
    %1576 = vmatpush2.msra.mxu0 0.0
    %1577 = vmatprep.subr.mxu0 0.0
    %1578 = vmatpush2.msra.mxu0 0.0
    %1579 = vmatprep.subr.mxu0 0.0
    %1580 = vmatpush2.msra.mxu0 0.0
    %1581 = vmatprep.subr.mxu0 0.0
    %1582 = vmatpush2.msra.mxu0 0.0
    %1583 = vmatprep.subr.mxu0 0.0
    %1584 = vmatpush2.msra.mxu0 0.0
    %1585 = vmatprep.mubr.f32.mxu0 0.0
    %v1586 = vand.u32 %v1132, 4294901760
    %1587 = vmatmul.mubr.f32.gmra.mxu0 %v1586
    %v1588 = vpop.f32.mrf.mxu0
    %v1589 = vadd.f32 %v1494, %v1588
    %v1590 = vpop.f32.mrf.mxu0
    %1591 = vdwg.mxu0
    %1592 = vmatprep.subr.mxu0 0.0
    %1593 = vmatpush1.msra.mxu0 0.0
    %1594 = vmatprep.subr.mxu0 0.0
    %1595 = vmatpush1.msra.mxu0 0.0
    %1596 = vmatprep.subr.mxu0 0.0
    %1597 = vmatpush1.msra.mxu0 0.0
    %1598 = vmatprep.subr.mxu0 0.0
    %1599 = vmatpush1.msra.mxu0 0.0
    %1600 = vmatprep.subr.mxu0 0.0
    %1601 = vmatpush1.msra.mxu0 0.0
    %1602 = vmatprep.subr.mxu0 0.0
    %1603 = vmatpush1.msra.mxu0 0.0
    %1604 = vmatprep.subr.mxu0 0.0
    %1605 = vmatpush1.msra.mxu0 0.0
    %1606 = vmatprep.subr.mxu0 0.0
    %1607 = vmatpush1.msra.mxu0 0.0
    %1608 = vmatprep.subr.mxu0 0.0
    %v1609 = vand.u32 %v603, 4294901760
    %1610 = vmatpush1.msra.mxu0 %v1609
    %1611 = vmatprep.subr.mxu0 0.0
    %v1612 = vand.u32 %v602, 4294901760
    %1613 = vmatpush1.msra.mxu0 %v1612
    %1614 = vmatprep.subr.mxu0 0.0
    %v1615 = vand.u32 %v601, 4294901760
    %1616 = vmatpush1.msra.mxu0 %v1615
    %1617 = vmatprep.subr.mxu0 0.0
    %v1618 = vand.u32 %v600, 4294901760
    %1619 = vmatpush1.msra.mxu0 %v1618
    %1620 = vmatprep.subr.mxu0 0.0
    %v1621 = vand.u32 %v599, 4294901760
    %1622 = vmatpush1.msra.mxu0 %v1621
    %1623 = vmatprep.subr.mxu0 0.0
    %v1624 = vand.u32 %v598, 4294901760
    %1625 = vmatpush1.msra.mxu0 %v1624
    %1626 = vmatprep.subr.mxu0 0.0
    %v1627 = vand.u32 %v597, 4294901760
    %1628 = vmatpush1.msra.mxu0 %v1627
    %1629 = vmatprep.subr.mxu0 0.0
    %v1630 = vand.u32 %v596, 4294901760
    %1631 = vmatpush1.msra.mxu0 %v1630
    %1632 = vmatprep.subr.mxu0 0.0
    %1633 = vmatpush2.msra.mxu0 0.0
    %1634 = vmatprep.subr.mxu0 0.0
    %1635 = vmatpush2.msra.mxu0 0.0
    %1636 = vmatprep.subr.mxu0 0.0
    %1637 = vmatpush2.msra.mxu0 0.0
    %1638 = vmatprep.subr.mxu0 0.0
    %1639 = vmatpush2.msra.mxu0 0.0
    %1640 = vmatprep.subr.mxu0 0.0
    %1641 = vmatpush2.msra.mxu0 0.0
    %1642 = vmatprep.subr.mxu0 0.0
    %1643 = vmatpush2.msra.mxu0 0.0
    %1644 = vmatprep.subr.mxu0 0.0
    %1645 = vmatpush2.msra.mxu0 0.0
    %1646 = vmatprep.subr.mxu0 0.0
    %1647 = vmatpush2.msra.mxu0 0.0
    %1648 = vmatprep.subr.mxu0 0.0
    %1649 = vmatpush2.msra.mxu0 0.0
    %1650 = vmatprep.subr.mxu0 0.0
    %1651 = vmatpush2.msra.mxu0 0.0
    %1652 = vmatprep.subr.mxu0 0.0
    %1653 = vmatpush2.msra.mxu0 0.0
    %1654 = vmatprep.subr.mxu0 0.0
    %1655 = vmatpush2.msra.mxu0 0.0
    %1656 = vmatprep.subr.mxu0 0.0
    %1657 = vmatpush2.msra.mxu0 0.0
    %1658 = vmatprep.subr.mxu0 0.0
    %1659 = vmatpush2.msra.mxu0 0.0
    %1660 = vmatprep.subr.mxu0 0.0
    %1661 = vmatpush2.msra.mxu0 0.0
    %1662 = vmatprep.subr.mxu0 0.0
    %1663 = vmatpush2.msra.mxu0 0.0
    %1664 = vmatprep.mubr.f32.mxu0 0.0
    %v1665 = vand.u32 %v1132, 4294901760
    %1666 = vmatmul.mubr.f32.gmra.mxu0 %v1665
    %v1667 = vpop.f32.mrf.mxu0
    %v1668 = vadd.f32 %v1589, %v1667
    %v1669 = vpop.f32.mrf.mxu0
    %1670 = vdwg.mxu0
    %v1671 = vxor.u32 %v1668, 2147483648
    %v1672 = vmul.f32 %v1671, 1.442695
    %v1673 = vpow.pop %v1672
    %v1674 = vadd.f32 %v1673, 1.0
    %v1675 = vrcp.pop %v1674
    %v1676 = vmul.f32 1.0, %v1675
    %v1677 = vtanh.pop %v1668
    %v1678 = vmul.f32 %v1676, 0.0
    %1680 = vrot.lane.b32.xlu0 %v1677, 64
    %v1681 = vpop.permute.xlu0 %1680
    %v1683 = vmul.f32 %v1676, %v1681
    %1685 = vrot.lane.b32.xlu0 %v1683, 32
    %v1686 = vpop.permute.xlu0 %1685
    %v1688 = vadd.f32 %v1678, %v1686
    %v1689 = vtanh.pop %v1688
    %1691 = vrot.lane.b32.xlu0 %v1689, 64
    %v1692 = vpop.permute.xlu0 %1691
    %v1694 = vmul.f32 %v1676, %v1692
    %v1695 = vsel %vm605, %v1121, 0
    %1697 = vmatprep.subr.mxu0 0.0
    %1698 = vmatpush1.msra.mxu0 0.0
    %1699 = vmatprep.subr.mxu0 0.0
    %1700 = vmatpush1.msra.mxu0 0.0
    %1701 = vmatprep.subr.mxu0 0.0
    %1702 = vmatpush1.msra.mxu0 0.0
    %1703 = vmatprep.subr.mxu0 0.0
    %1704 = vmatpush1.msra.mxu0 0.0
    %1705 = vmatprep.subr.mxu0 0.0
    %1706 = vmatpush1.msra.mxu0 0.0
    %1707 = vmatprep.subr.mxu0 0.0
    %1708 = vmatpush1.msra.mxu0 0.0
    %1709 = vmatprep.subr.mxu0 0.0
    %1710 = vmatpush1.msra.mxu0 0.0
    %1711 = vmatprep.subr.mxu0 0.0
    %1712 = vmatpush1.msra.mxu0 0.0
    %1713 = vmatprep.subr.mxu0 0.0
    %1714 = vmatpush1.msra.mxu0 0.0
    %1715 = vmatprep.subr.mxu0 0.0
    %1716 = vmatpush1.msra.mxu0 0.0
    %1717 = vmatprep.subr.mxu0 0.0
    %1718 = vmatpush1.msra.mxu0 0.0
    %1719 = vmatprep.subr.mxu0 0.0
    %1720 = vmatpush1.msra.mxu0 0.0
    %1721 = vmatprep.subr.mxu0 0.0
    %v1722 = vand.u32 %v595, 4294901760
    %1723 = vmatpush1.msra.mxu0 %v1722
    %1724 = vmatprep.subr.mxu0 0.0
    %v1725 = vand.u32 %v594, 4294901760
    %1726 = vmatpush1.msra.mxu0 %v1725
    %1727 = vmatprep.subr.mxu0 0.0
    %v1728 = vand.u32 %v593, 4294901760
    %1729 = vmatpush1.msra.mxu0 %v1728
    %1730 = vmatprep.subr.mxu0 0.0
    %v1731 = vand.u32 %v592, 4294901760
    %1732 = vmatpush1.msra.mxu0 %v1731
    %1733 = vmatprep.subr.mxu0 0.0
    %1734 = vmatpush2.msra.mxu0 0.0
    %1735 = vmatprep.subr.mxu0 0.0
    %1736 = vmatpush2.msra.mxu0 0.0
    %1737 = vmatprep.subr.mxu0 0.0
    %1738 = vmatpush2.msra.mxu0 0.0
    %1739 = vmatprep.subr.mxu0 0.0
    %1740 = vmatpush2.msra.mxu0 0.0
    %1741 = vmatprep.subr.mxu0 0.0
    %1742 = vmatpush2.msra.mxu0 0.0
    %1743 = vmatprep.subr.mxu0 0.0
    %1744 = vmatpush2.msra.mxu0 0.0
    %1745 = vmatprep.subr.mxu0 0.0
    %1746 = vmatpush2.msra.mxu0 0.0
    %1747 = vmatprep.subr.mxu0 0.0
    %1748 = vmatpush2.msra.mxu0 0.0
    %1749 = vmatprep.subr.mxu0 0.0
    %1750 = vmatpush2.msra.mxu0 0.0
    %1751 = vmatprep.subr.mxu0 0.0
    %1752 = vmatpush2.msra.mxu0 0.0
    %1753 = vmatprep.subr.mxu0 0.0
    %1754 = vmatpush2.msra.mxu0 0.0
    %1755 = vmatprep.subr.mxu0 0.0
    %1756 = vmatpush2.msra.mxu0 0.0
    %1757 = vmatprep.subr.mxu0 0.0
    %1758 = vmatpush2.msra.mxu0 0.0
    %1759 = vmatprep.subr.mxu0 0.0
    %1760 = vmatpush2.msra.mxu0 0.0
    %1761 = vmatprep.subr.mxu0 0.0
    %1762 = vmatpush2.msra.mxu0 0.0
    %1763 = vmatprep.subr.mxu0 0.0
    %1764 = vmatpush2.msra.mxu0 0.0
    %1765 = vmatprep.mubr.f32.mxu0 0.0
    %v1766 = vand.u32 %v1695, 4294901760
    %v1767 = vsub.f32 %v1695, %v1766
    %v1768 = vand.u32 %v1767, 4294901760
    %v1769 = vsub.f32 %v1767, %v1768
    %v1770 = vand.u32 %v1769, 4294901760
    %1771 = vmatmul.mubr.f32.gmra.mxu0 %v1770
    %v1772 = vpop.f32.mrf.mxu0
    %v1773 = vadd.f32 0.0, %v1772
    %v1774 = vpop.f32.mrf.mxu0
    %1775 = vdwg.mxu0
    %1776 = vmatprep.subr.mxu0 0.0
    %1777 = vmatpush1.msra.mxu0 0.0
    %1778 = vmatprep.subr.mxu0 0.0
    %1779 = vmatpush1.msra.mxu0 0.0
    %1780 = vmatprep.subr.mxu0 0.0
    %1781 = vmatpush1.msra.mxu0 0.0
    %1782 = vmatprep.subr.mxu0 0.0
    %1783 = vmatpush1.msra.mxu0 0.0
    %1784 = vmatprep.subr.mxu0 0.0
    %1785 = vmatpush1.msra.mxu0 0.0
    %1786 = vmatprep.subr.mxu0 0.0
    %1787 = vmatpush1.msra.mxu0 0.0
    %1788 = vmatprep.subr.mxu0 0.0
    %1789 = vmatpush1.msra.mxu0 0.0
    %1790 = vmatprep.subr.mxu0 0.0
    %1791 = vmatpush1.msra.mxu0 0.0
    %1792 = vmatprep.subr.mxu0 0.0
    %1793 = vmatpush1.msra.mxu0 0.0
    %1794 = vmatprep.subr.mxu0 0.0
    %1795 = vmatpush1.msra.mxu0 0.0
    %1796 = vmatprep.subr.mxu0 0.0
    %1797 = vmatpush1.msra.mxu0 0.0
    %1798 = vmatprep.subr.mxu0 0.0
    %1799 = vmatpush1.msra.mxu0 0.0
    %1800 = vmatprep.subr.mxu0 0.0
    %v1801 = vand.u32 %v595, 4294901760
    %v1802 = vsub.f32 %v595, %v1801
    %v1803 = vand.u32 %v1802, 4294901760
    %v1804 = vsub.f32 %v1802, %v1803
    %v1805 = vand.u32 %v1804, 4294901760
    %1806 = vmatpush1.msra.mxu0 %v1805
    %1807 = vmatprep.subr.mxu0 0.0
    %v1808 = vand.u32 %v594, 4294901760
    %v1809 = vsub.f32 %v594, %v1808
    %v1810 = vand.u32 %v1809, 4294901760
    %v1811 = vsub.f32 %v1809, %v1810
    %v1812 = vand.u32 %v1811, 4294901760
    %1813 = vmatpush1.msra.mxu0 %v1812
    %1814 = vmatprep.subr.mxu0 0.0
    %v1815 = vand.u32 %v593, 4294901760
    %v1816 = vsub.f32 %v593, %v1815
    %v1817 = vand.u32 %v1816, 4294901760
    %v1818 = vsub.f32 %v1816, %v1817
    %v1819 = vand.u32 %v1818, 4294901760
    %1820 = vmatpush1.msra.mxu0 %v1819
    %1821 = vmatprep.subr.mxu0 0.0
    %v1822 = vand.u32 %v592, 4294901760
    %v1823 = vsub.f32 %v592, %v1822
    %v1824 = vand.u32 %v1823, 4294901760
    %v1825 = vsub.f32 %v1823, %v1824
    %v1826 = vand.u32 %v1825, 4294901760
    %1827 = vmatpush1.msra.mxu0 %v1826
    %1828 = vmatprep.subr.mxu0 0.0
    %1829 = vmatpush2.msra.mxu0 0.0
    %1830 = vmatprep.subr.mxu0 0.0
    %1831 = vmatpush2.msra.mxu0 0.0
    %1832 = vmatprep.subr.mxu0 0.0
    %1833 = vmatpush2.msra.mxu0 0.0
    %1834 = vmatprep.subr.mxu0 0.0
    %1835 = vmatpush2.msra.mxu0 0.0
    %1836 = vmatprep.subr.mxu0 0.0
    %1837 = vmatpush2.msra.mxu0 0.0
    %1838 = vmatprep.subr.mxu0 0.0
    %1839 = vmatpush2.msra.mxu0 0.0
    %1840 = vmatprep.subr.mxu0 0.0
    %1841 = vmatpush2.msra.mxu0 0.0
    %1842 = vmatprep.subr.mxu0 0.0
    %1843 = vmatpush2.msra.mxu0 0.0
    %1844 = vmatprep.subr.mxu0 0.0
    %1845 = vmatpush2.msra.mxu0 0.0
    %1846 = vmatprep.subr.mxu0 0.0
    %1847 = vmatpush2.msra.mxu0 0.0
    %1848 = vmatprep.subr.mxu0 0.0
    %1849 = vmatpush2.msra.mxu0 0.0
    %1850 = vmatprep.subr.mxu0 0.0
    %1851 = vmatpush2.msra.mxu0 0.0
    %1852 = vmatprep.subr.mxu0 0.0
    %1853 = vmatpush2.msra.mxu0 0.0
    %1854 = vmatprep.subr.mxu0 0.0
    %1855 = vmatpush2.msra.mxu0 0.0
    %1856 = vmatprep.subr.mxu0 0.0
    %1857 = vmatpush2.msra.mxu0 0.0
    %1858 = vmatprep.subr.mxu0 0.0
    %1859 = vmatpush2.msra.mxu0 0.0
    %1860 = vmatprep.mubr.f32.mxu0 0.0
    %v1861 = vand.u32 %v1695, 4294901760
    %1862 = vmatmul.mubr.f32.gmra.mxu0 %v1861
    %v1863 = vpop.f32.mrf.mxu0
    %v1864 = vadd.f32 %v1773, %v1863
    %v1865 = vpop.f32.mrf.mxu0
    %1866 = vdwg.mxu0
    %1867 = vmatprep.subr.mxu0 0.0
    %1868 = vmatpush1.msra.mxu0 0.0
    %1869 = vmatprep.subr.mxu0 0.0
    %1870 = vmatpush1.msra.mxu0 0.0
    %1871 = vmatprep.subr.mxu0 0.0
    %1872 = vmatpush1.msra.mxu0 0.0
    %1873 = vmatprep.subr.mxu0 0.0
    %1874 = vmatpush1.msra.mxu0 0.0
    %1875 = vmatprep.subr.mxu0 0.0
    %1876 = vmatpush1.msra.mxu0 0.0
    %1877 = vmatprep.subr.mxu0 0.0
    %1878 = vmatpush1.msra.mxu0 0.0
    %1879 = vmatprep.subr.mxu0 0.0
    %1880 = vmatpush1.msra.mxu0 0.0
    %1881 = vmatprep.subr.mxu0 0.0
    %1882 = vmatpush1.msra.mxu0 0.0
    %1883 = vmatprep.subr.mxu0 0.0
    %1884 = vmatpush1.msra.mxu0 0.0
    %1885 = vmatprep.subr.mxu0 0.0
    %1886 = vmatpush1.msra.mxu0 0.0
    %1887 = vmatprep.subr.mxu0 0.0
    %1888 = vmatpush1.msra.mxu0 0.0
    %1889 = vmatprep.subr.mxu0 0.0
    %1890 = vmatpush1.msra.mxu0 0.0
    %1891 = vmatprep.subr.mxu0 0.0
    %v1892 = vand.u32 %v595, 4294901760
    %v1893 = vsub.f32 %v595, %v1892
    %1894 = vmatpush1.msra.mxu0 %v1893
    %1895 = vmatprep.subr.mxu0 0.0
    %v1896 = vand.u32 %v594, 4294901760
    %v1897 = vsub.f32 %v594, %v1896
    %1898 = vmatpush1.msra.mxu0 %v1897
    %1899 = vmatprep.subr.mxu0 0.0
    %v1900 = vand.u32 %v593, 4294901760
    %v1901 = vsub.f32 %v593, %v1900
    %1902 = vmatpush1.msra.mxu0 %v1901
    %1903 = vmatprep.subr.mxu0 0.0
    %v1904 = vand.u32 %v592, 4294901760
    %v1905 = vsub.f32 %v592, %v1904
    %1906 = vmatpush1.msra.mxu0 %v1905
    %1907 = vmatprep.subr.mxu0 0.0
    %1908 = vmatpush2.msra.mxu0 0.0
    %1909 = vmatprep.subr.mxu0 0.0
    %1910 = vmatpush2.msra.mxu0 0.0
    %1911 = vmatprep.subr.mxu0 0.0
    %1912 = vmatpush2.msra.mxu0 0.0
    %1913 = vmatprep.subr.mxu0 0.0
    %1914 = vmatpush2.msra.mxu0 0.0
    %1915 = vmatprep.subr.mxu0 0.0
    %1916 = vmatpush2.msra.mxu0 0.0
    %1917 = vmatprep.subr.mxu0 0.0
    %1918 = vmatpush2.msra.mxu0 0.0
    %1919 = vmatprep.subr.mxu0 0.0
    %1920 = vmatpush2.msra.mxu0 0.0
    %1921 = vmatprep.subr.mxu0 0.0
    %1922 = vmatpush2.msra.mxu0 0.0
    %1923 = vmatprep.subr.mxu0 0.0
    %1924 = vmatpush2.msra.mxu0 0.0
    %1925 = vmatprep.subr.mxu0 0.0
    %1926 = vmatpush2.msra.mxu0 0.0
    %1927 = vmatprep.subr.mxu0 0.0
    %1928 = vmatpush2.msra.mxu0 0.0
    %1929 = vmatprep.subr.mxu0 0.0
    %1930 = vmatpush2.msra.mxu0 0.0
    %1931 = vmatprep.subr.mxu0 0.0
    %1932 = vmatpush2.msra.mxu0 0.0
    %1933 = vmatprep.subr.mxu0 0.0
    %1934 = vmatpush2.msra.mxu0 0.0
    %1935 = vmatprep.subr.mxu0 0.0
    %1936 = vmatpush2.msra.mxu0 0.0
    %1937 = vmatprep.subr.mxu0 0.0
    %1938 = vmatpush2.msra.mxu0 0.0
    %1939 = vmatprep.mubr.f32.mxu0 0.0
    %v1940 = vand.u32 %v1695, 4294901760
    %v1941 = vsub.f32 %v1695, %v1940
    %1942 = vmatmul.mubr.f32.gmra.mxu0 %v1941
    %v1943 = vpop.f32.mrf.mxu0
    %v1944 = vadd.f32 %v1864, %v1943
    %v1945 = vpop.f32.mrf.mxu0
    %1946 = vdwg.mxu0
    %1947 = vmatprep.subr.mxu0 0.0
    %1948 = vmatpush1.msra.mxu0 0.0
    %1949 = vmatprep.subr.mxu0 0.0
    %1950 = vmatpush1.msra.mxu0 0.0
    %1951 = vmatprep.subr.mxu0 0.0
    %1952 = vmatpush1.msra.mxu0 0.0
    %1953 = vmatprep.subr.mxu0 0.0
    %1954 = vmatpush1.msra.mxu0 0.0
    %1955 = vmatprep.subr.mxu0 0.0
    %1956 = vmatpush1.msra.mxu0 0.0
    %1957 = vmatprep.subr.mxu0 0.0
    %1958 = vmatpush1.msra.mxu0 0.0
    %1959 = vmatprep.subr.mxu0 0.0
    %1960 = vmatpush1.msra.mxu0 0.0
    %1961 = vmatprep.subr.mxu0 0.0
    %1962 = vmatpush1.msra.mxu0 0.0
    %1963 = vmatprep.subr.mxu0 0.0
    %1964 = vmatpush1.msra.mxu0 0.0
    %1965 = vmatprep.subr.mxu0 0.0
    %1966 = vmatpush1.msra.mxu0 0.0
    %1967 = vmatprep.subr.mxu0 0.0
    %1968 = vmatpush1.msra.mxu0 0.0
    %1969 = vmatprep.subr.mxu0 0.0
    %1970 = vmatpush1.msra.mxu0 0.0
    %1971 = vmatprep.subr.mxu0 0.0
    %v1972 = vand.u32 %v595, 4294901760
    %1973 = vmatpush1.msra.mxu0 %v1972
    %1974 = vmatprep.subr.mxu0 0.0
    %v1975 = vand.u32 %v594, 4294901760
    %1976 = vmatpush1.msra.mxu0 %v1975
    %1977 = vmatprep.subr.mxu0 0.0
    %v1978 = vand.u32 %v593, 4294901760
    %1979 = vmatpush1.msra.mxu0 %v1978
    %1980 = vmatprep.subr.mxu0 0.0
    %v1981 = vand.u32 %v592, 4294901760
    %1982 = vmatpush1.msra.mxu0 %v1981
    %1983 = vmatprep.subr.mxu0 0.0
    %1984 = vmatpush2.msra.mxu0 0.0
    %1985 = vmatprep.subr.mxu0 0.0
    %1986 = vmatpush2.msra.mxu0 0.0
    %1987 = vmatprep.subr.mxu0 0.0
    %1988 = vmatpush2.msra.mxu0 0.0
    %1989 = vmatprep.subr.mxu0 0.0
    %1990 = vmatpush2.msra.mxu0 0.0
    %1991 = vmatprep.subr.mxu0 0.0
    %1992 = vmatpush2.msra.mxu0 0.0
    %1993 = vmatprep.subr.mxu0 0.0
    %1994 = vmatpush2.msra.mxu0 0.0
    %1995 = vmatprep.subr.mxu0 0.0
    %1996 = vmatpush2.msra.mxu0 0.0
    %1997 = vmatprep.subr.mxu0 0.0
    %1998 = vmatpush2.msra.mxu0 0.0
    %1999 = vmatprep.subr.mxu0 0.0
    %2000 = vmatpush2.msra.mxu0 0.0
    %2001 = vmatprep.subr.mxu0 0.0
    %2002 = vmatpush2.msra.mxu0 0.0
    %2003 = vmatprep.subr.mxu0 0.0
    %2004 = vmatpush2.msra.mxu0 0.0
    %2005 = vmatprep.subr.mxu0 0.0
    %2006 = vmatpush2.msra.mxu0 0.0
    %2007 = vmatprep.subr.mxu0 0.0
    %2008 = vmatpush2.msra.mxu0 0.0
    %2009 = vmatprep.subr.mxu0 0.0
    %2010 = vmatpush2.msra.mxu0 0.0
    %2011 = vmatprep.subr.mxu0 0.0
    %2012 = vmatpush2.msra.mxu0 0.0
    %2013 = vmatprep.subr.mxu0 0.0
    %2014 = vmatpush2.msra.mxu0 0.0
    %2015 = vmatprep.mubr.f32.mxu0 0.0
    %v2016 = vand.u32 %v1695, 4294901760
    %v2017 = vsub.f32 %v1695, %v2016
    %v2018 = vand.u32 %v2017, 4294901760
    %2019 = vmatmul.mubr.f32.gmra.mxu0 %v2018
    %v2020 = vpop.f32.mrf.mxu0
    %v2021 = vadd.f32 %v1944, %v2020
    %v2022 = vpop.f32.mrf.mxu0
    %2023 = vdwg.mxu0
    %2024 = vmatprep.subr.mxu0 0.0
    %2025 = vmatpush1.msra.mxu0 0.0
    %2026 = vmatprep.subr.mxu0 0.0
    %2027 = vmatpush1.msra.mxu0 0.0
    %2028 = vmatprep.subr.mxu0 0.0
    %2029 = vmatpush1.msra.mxu0 0.0
    %2030 = vmatprep.subr.mxu0 0.0
    %2031 = vmatpush1.msra.mxu0 0.0
    %2032 = vmatprep.subr.mxu0 0.0
    %2033 = vmatpush1.msra.mxu0 0.0
    %2034 = vmatprep.subr.mxu0 0.0
    %2035 = vmatpush1.msra.mxu0 0.0
    %2036 = vmatprep.subr.mxu0 0.0
    %2037 = vmatpush1.msra.mxu0 0.0
    %2038 = vmatprep.subr.mxu0 0.0
    %2039 = vmatpush1.msra.mxu0 0.0
    %2040 = vmatprep.subr.mxu0 0.0
    %2041 = vmatpush1.msra.mxu0 0.0
    %2042 = vmatprep.subr.mxu0 0.0
    %2043 = vmatpush1.msra.mxu0 0.0
    %2044 = vmatprep.subr.mxu0 0.0
    %2045 = vmatpush1.msra.mxu0 0.0
    %2046 = vmatprep.subr.mxu0 0.0
    %2047 = vmatpush1.msra.mxu0 0.0
    %2048 = vmatprep.subr.mxu0 0.0
    %v2049 = vand.u32 %v595, 4294901760
    %v2050 = vsub.f32 %v595, %v2049
    %v2051 = vand.u32 %v2050, 4294901760
    %2052 = vmatpush1.msra.mxu0 %v2051
    %2053 = vmatprep.subr.mxu0 0.0
    %v2054 = vand.u32 %v594, 4294901760
    %v2055 = vsub.f32 %v594, %v2054
    %v2056 = vand.u32 %v2055, 4294901760
    %2057 = vmatpush1.msra.mxu0 %v2056
    %2058 = vmatprep.subr.mxu0 0.0
    %v2059 = vand.u32 %v593, 4294901760
    %v2060 = vsub.f32 %v593, %v2059
    %v2061 = vand.u32 %v2060, 4294901760
    %2062 = vmatpush1.msra.mxu0 %v2061
    %2063 = vmatprep.subr.mxu0 0.0
    %v2064 = vand.u32 %v592, 4294901760
    %v2065 = vsub.f32 %v592, %v2064
    %v2066 = vand.u32 %v2065, 4294901760
    %2067 = vmatpush1.msra.mxu0 %v2066
    %2068 = vmatprep.subr.mxu0 0.0
    %2069 = vmatpush2.msra.mxu0 0.0
    %2070 = vmatprep.subr.mxu0 0.0
    %2071 = vmatpush2.msra.mxu0 0.0
    %2072 = vmatprep.subr.mxu0 0.0
    %2073 = vmatpush2.msra.mxu0 0.0
    %2074 = vmatprep.subr.mxu0 0.0
    %2075 = vmatpush2.msra.mxu0 0.0
    %2076 = vmatprep.subr.mxu0 0.0
    %2077 = vmatpush2.msra.mxu0 0.0
    %2078 = vmatprep.subr.mxu0 0.0
    %2079 = vmatpush2.msra.mxu0 0.0
    %2080 = vmatprep.subr.mxu0 0.0
    %2081 = vmatpush2.msra.mxu0 0.0
    %2082 = vmatprep.subr.mxu0 0.0
    %2083 = vmatpush2.msra.mxu0 0.0
    %2084 = vmatprep.subr.mxu0 0.0
    %2085 = vmatpush2.msra.mxu0 0.0
    %2086 = vmatprep.subr.mxu0 0.0
    %2087 = vmatpush2.msra.mxu0 0.0
    %2088 = vmatprep.subr.mxu0 0.0
    %2089 = vmatpush2.msra.mxu0 0.0
    %2090 = vmatprep.subr.mxu0 0.0
    %2091 = vmatpush2.msra.mxu0 0.0
    %2092 = vmatprep.subr.mxu0 0.0
    %2093 = vmatpush2.msra.mxu0 0.0
    %2094 = vmatprep.subr.mxu0 0.0
    %2095 = vmatpush2.msra.mxu0 0.0
    %2096 = vmatprep.subr.mxu0 0.0
    %2097 = vmatpush2.msra.mxu0 0.0
    %2098 = vmatprep.subr.mxu0 0.0
    %2099 = vmatpush2.msra.mxu0 0.0
    %2100 = vmatprep.mubr.f32.mxu0 0.0
    %v2101 = vand.u32 %v1695, 4294901760
    %2102 = vmatmul.mubr.f32.gmra.mxu0 %v2101
    %v2103 = vpop.f32.mrf.mxu0
    %v2104 = vadd.f32 %v2021, %v2103
    %v2105 = vpop.f32.mrf.mxu0
    %2106 = vdwg.mxu0
    %2107 = vmatprep.subr.mxu0 0.0
    %2108 = vmatpush1.msra.mxu0 0.0
    %2109 = vmatprep.subr.mxu0 0.0
    %2110 = vmatpush1.msra.mxu0 0.0
    %2111 = vmatprep.subr.mxu0 0.0
    %2112 = vmatpush1.msra.mxu0 0.0
    %2113 = vmatprep.subr.mxu0 0.0
    %2114 = vmatpush1.msra.mxu0 0.0
    %2115 = vmatprep.subr.mxu0 0.0
    %2116 = vmatpush1.msra.mxu0 0.0
    %2117 = vmatprep.subr.mxu0 0.0
    %2118 = vmatpush1.msra.mxu0 0.0
    %2119 = vmatprep.subr.mxu0 0.0
    %2120 = vmatpush1.msra.mxu0 0.0
    %2121 = vmatprep.subr.mxu0 0.0
    %2122 = vmatpush1.msra.mxu0 0.0
    %2123 = vmatprep.subr.mxu0 0.0
    %2124 = vmatpush1.msra.mxu0 0.0
    %2125 = vmatprep.subr.mxu0 0.0
    %2126 = vmatpush1.msra.mxu0 0.0
    %2127 = vmatprep.subr.mxu0 0.0
    %2128 = vmatpush1.msra.mxu0 0.0
    %2129 = vmatprep.subr.mxu0 0.0
    %2130 = vmatpush1.msra.mxu0 0.0
    %2131 = vmatprep.subr.mxu0 0.0
    %v2132 = vand.u32 %v595, 4294901760
    %2133 = vmatpush1.msra.mxu0 %v2132
    %2134 = vmatprep.subr.mxu0 0.0
    %v2135 = vand.u32 %v594, 4294901760
    %2136 = vmatpush1.msra.mxu0 %v2135
    %2137 = vmatprep.subr.mxu0 0.0
    %v2138 = vand.u32 %v593, 4294901760
    %2139 = vmatpush1.msra.mxu0 %v2138
    %2140 = vmatprep.subr.mxu0 0.0
    %v2141 = vand.u32 %v592, 4294901760
    %2142 = vmatpush1.msra.mxu0 %v2141
    %2143 = vmatprep.subr.mxu0 0.0
    %2144 = vmatpush2.msra.mxu0 0.0
    %2145 = vmatprep.subr.mxu0 0.0
    %2146 = vmatpush2.msra.mxu0 0.0
    %2147 = vmatprep.subr.mxu0 0.0
    %2148 = vmatpush2.msra.mxu0 0.0
    %2149 = vmatprep.subr.mxu0 0.0
    %2150 = vmatpush2.msra.mxu0 0.0
    %2151 = vmatprep.subr.mxu0 0.0
    %2152 = vmatpush2.msra.mxu0 0.0
    %2153 = vmatprep.subr.mxu0 0.0
    %2154 = vmatpush2.msra.mxu0 0.0
    %2155 = vmatprep.subr.mxu0 0.0
    %2156 = vmatpush2.msra.mxu0 0.0
    %2157 = vmatprep.subr.mxu0 0.0
    %2158 = vmatpush2.msra.mxu0 0.0
    %2159 = vmatprep.subr.mxu0 0.0
    %2160 = vmatpush2.msra.mxu0 0.0
    %2161 = vmatprep.subr.mxu0 0.0
    %2162 = vmatpush2.msra.mxu0 0.0
    %2163 = vmatprep.subr.mxu0 0.0
    %2164 = vmatpush2.msra.mxu0 0.0
    %2165 = vmatprep.subr.mxu0 0.0
    %2166 = vmatpush2.msra.mxu0 0.0
    %2167 = vmatprep.subr.mxu0 0.0
    %2168 = vmatpush2.msra.mxu0 0.0
    %2169 = vmatprep.subr.mxu0 0.0
    %2170 = vmatpush2.msra.mxu0 0.0
    %2171 = vmatprep.subr.mxu0 0.0
    %2172 = vmatpush2.msra.mxu0 0.0
    %2173 = vmatprep.subr.mxu0 0.0
    %2174 = vmatpush2.msra.mxu0 0.0
    %2175 = vmatprep.mubr.f32.mxu0 0.0
    %v2176 = vand.u32 %v1695, 4294901760
    %2177 = vmatmul.mubr.f32.gmra.mxu0 %v2176
    %v2178 = vpop.f32.mrf.mxu0
    %v2179 = vadd.f32 %v2104, %v2178
    %v2180 = vpop.f32.mrf.mxu0
    %2181 = vdwg.mxu0
    %v2183 = vrot.slane %v2179, 6
    %v2185 = vadd.f32 %v583, %v2183
    %v2186 = vxor.u32 %v2185, 2147483648
    %v2187 = vmul.f32 %v2186, 1.442695
    %v2188 = vpow.pop %v2187
    %v2189 = vadd.f32 %v2188, 1.0
    %v2190 = vrcp.pop %v2189
    %v2191 = vmul.f32 1.0, %v2190
    %v2192 = vtanh.pop %v2185
    %v2194 = vrot.slane %v1112, 6
    %v2196 = vmul.f32 %v2191, %v2194
    %2198 = vrot.lane.b32.xlu0 %v2192, 64
    %v2199 = vpop.permute.xlu0 %2198
    %v2201 = vmul.f32 %v2191, %v2199
    %2203 = vrot.lane.b32.xlu0 %v2201, 32
    %v2204 = vpop.permute.xlu0 %2203
    %v2206 = vadd.f32 %v2196, %v2204
    %v2207 = vtanh.pop %v2206
    %2209 = vrot.lane.b32.xlu0 %v2207, 64
    %v2210 = vpop.permute.xlu0 %2209
    %v2212 = vmul.f32 %v2191, %v2210
    %2214 = vrot.lane.b32.xlu0 %v2212, 32
    %v2215 = vpop.permute.xlu0 %2214
    %v2218 = vrot.slane %v1694, 6
    %2219 = vrot.lane.b32.xlu0 %v2218, 64
    %v2220 = vpop.permute.xlu0 %2219
    %v2222 = vsel %vm605, %v2215, %v2220
    %v2224 = vrot.slane %v2222, 2
    %v2225 = vsel %vm1130, %v2224, 0
    %2227 = vmatprep.subr.mxu0 0.0
    %2228 = vmatpush1.msra.mxu0 0.0
    %2229 = vmatprep.subr.mxu0 0.0
    %2230 = vmatpush1.msra.mxu0 0.0
    %2231 = vmatprep.subr.mxu0 0.0
    %2232 = vmatpush1.msra.mxu0 0.0
    %2233 = vmatprep.subr.mxu0 0.0
    %2234 = vmatpush1.msra.mxu0 0.0
    %2235 = vmatprep.subr.mxu0 0.0
    %2236 = vmatpush1.msra.mxu0 0.0
    %2237 = vmatprep.subr.mxu0 0.0
    %2238 = vmatpush1.msra.mxu0 0.0
    %2239 = vmatprep.subr.mxu0 0.0
    %2240 = vmatpush1.msra.mxu0 0.0
    %2241 = vmatprep.subr.mxu0 0.0
    %2242 = vmatpush1.msra.mxu0 0.0
    %2243 = vmatprep.subr.mxu0 0.0
    %v2244 = vand.u32 %v603, 4294901760
    %2245 = vmatpush1.msra.mxu0 %v2244
    %2246 = vmatprep.subr.mxu0 0.0
    %v2247 = vand.u32 %v602, 4294901760
    %2248 = vmatpush1.msra.mxu0 %v2247
    %2249 = vmatprep.subr.mxu0 0.0
    %v2250 = vand.u32 %v601, 4294901760
    %2251 = vmatpush1.msra.mxu0 %v2250
    %2252 = vmatprep.subr.mxu0 0.0
    %v2253 = vand.u32 %v600, 4294901760
    %2254 = vmatpush1.msra.mxu0 %v2253
    %2255 = vmatprep.subr.mxu0 0.0
    %v2256 = vand.u32 %v599, 4294901760
    %2257 = vmatpush1.msra.mxu0 %v2256
    %2258 = vmatprep.subr.mxu0 0.0
    %v2259 = vand.u32 %v598, 4294901760
    %2260 = vmatpush1.msra.mxu0 %v2259
    %2261 = vmatprep.subr.mxu0 0.0
    %v2262 = vand.u32 %v597, 4294901760
    %2263 = vmatpush1.msra.mxu0 %v2262
    %2264 = vmatprep.subr.mxu0 0.0
    %v2265 = vand.u32 %v596, 4294901760
    %2266 = vmatpush1.msra.mxu0 %v2265
    %2267 = vmatprep.subr.mxu0 0.0
    %2268 = vmatpush2.msra.mxu0 0.0
    %2269 = vmatprep.subr.mxu0 0.0
    %2270 = vmatpush2.msra.mxu0 0.0
    %2271 = vmatprep.subr.mxu0 0.0
    %2272 = vmatpush2.msra.mxu0 0.0
    %2273 = vmatprep.subr.mxu0 0.0
    %2274 = vmatpush2.msra.mxu0 0.0
    %2275 = vmatprep.subr.mxu0 0.0
    %2276 = vmatpush2.msra.mxu0 0.0
    %2277 = vmatprep.subr.mxu0 0.0
    %2278 = vmatpush2.msra.mxu0 0.0
    %2279 = vmatprep.subr.mxu0 0.0
    %2280 = vmatpush2.msra.mxu0 0.0
    %2281 = vmatprep.subr.mxu0 0.0
    %2282 = vmatpush2.msra.mxu0 0.0
    %2283 = vmatprep.subr.mxu0 0.0
    %2284 = vmatpush2.msra.mxu0 0.0
    %2285 = vmatprep.subr.mxu0 0.0
    %2286 = vmatpush2.msra.mxu0 0.0
    %2287 = vmatprep.subr.mxu0 0.0
    %2288 = vmatpush2.msra.mxu0 0.0
    %2289 = vmatprep.subr.mxu0 0.0
    %2290 = vmatpush2.msra.mxu0 0.0
    %2291 = vmatprep.subr.mxu0 0.0
    %2292 = vmatpush2.msra.mxu0 0.0
    %2293 = vmatprep.subr.mxu0 0.0
    %2294 = vmatpush2.msra.mxu0 0.0
    %2295 = vmatprep.subr.mxu0 0.0
    %2296 = vmatpush2.msra.mxu0 0.0
    %2297 = vmatprep.subr.mxu0 0.0
    %2298 = vmatpush2.msra.mxu0 0.0
    %2299 = vmatprep.mubr.f32.mxu0 0.0
    %v2300 = vand.u32 %v2225, 4294901760
    %v2301 = vsub.f32 %v2225, %v2300
    %v2302 = vand.u32 %v2301, 4294901760
    %v2303 = vsub.f32 %v2301, %v2302
    %v2304 = vand.u32 %v2303, 4294901760
    %2305 = vmatmul.mubr.f32.gmra.mxu0 %v2304
    %v2306 = vpop.f32.mrf.mxu0
    %v2307 = vadd.f32 %v1128, %v2306
    %v2308 = vpop.f32.mrf.mxu0
    %2309 = vdwg.mxu0
    %2310 = vmatprep.subr.mxu0 0.0
    %2311 = vmatpush1.msra.mxu0 0.0
    %2312 = vmatprep.subr.mxu0 0.0
    %2313 = vmatpush1.msra.mxu0 0.0
    %2314 = vmatprep.subr.mxu0 0.0
    %2315 = vmatpush1.msra.mxu0 0.0
    %2316 = vmatprep.subr.mxu0 0.0
    %2317 = vmatpush1.msra.mxu0 0.0
    %2318 = vmatprep.subr.mxu0 0.0
    %2319 = vmatpush1.msra.mxu0 0.0
    %2320 = vmatprep.subr.mxu0 0.0
    %2321 = vmatpush1.msra.mxu0 0.0
    %2322 = vmatprep.subr.mxu0 0.0
    %2323 = vmatpush1.msra.mxu0 0.0
    %2324 = vmatprep.subr.mxu0 0.0
    %2325 = vmatpush1.msra.mxu0 0.0
    %2326 = vmatprep.subr.mxu0 0.0
    %v2327 = vand.u32 %v603, 4294901760
    %v2328 = vsub.f32 %v603, %v2327
    %v2329 = vand.u32 %v2328, 4294901760
    %v2330 = vsub.f32 %v2328, %v2329
    %v2331 = vand.u32 %v2330, 4294901760
    %2332 = vmatpush1.msra.mxu0 %v2331
    %2333 = vmatprep.subr.mxu0 0.0
    %v2334 = vand.u32 %v602, 4294901760
    %v2335 = vsub.f32 %v602, %v2334
    %v2336 = vand.u32 %v2335, 4294901760
    %v2337 = vsub.f32 %v2335, %v2336
    %v2338 = vand.u32 %v2337, 4294901760
    %2339 = vmatpush1.msra.mxu0 %v2338
    %2340 = vmatprep.subr.mxu0 0.0
    %v2341 = vand.u32 %v601, 4294901760
    %v2342 = vsub.f32 %v601, %v2341
    %v2343 = vand.u32 %v2342, 4294901760
    %v2344 = vsub.f32 %v2342, %v2343
    %v2345 = vand.u32 %v2344, 4294901760
    %2346 = vmatpush1.msra.mxu0 %v2345
    %2347 = vmatprep.subr.mxu0 0.0
    %v2348 = vand.u32 %v600, 4294901760
    %v2349 = vsub.f32 %v600, %v2348
    %v2350 = vand.u32 %v2349, 4294901760
    %v2351 = vsub.f32 %v2349, %v2350
    %v2352 = vand.u32 %v2351, 4294901760
    %2353 = vmatpush1.msra.mxu0 %v2352
    %2354 = vmatprep.subr.mxu0 0.0
    %v2355 = vand.u32 %v599, 4294901760
    %v2356 = vsub.f32 %v599, %v2355
    %v2357 = vand.u32 %v2356, 4294901760
    %v2358 = vsub.f32 %v2356, %v2357
    %v2359 = vand.u32 %v2358, 4294901760
    %2360 = vmatpush1.msra.mxu0 %v2359
    %2361 = vmatprep.subr.mxu0 0.0
    %v2362 = vand.u32 %v598, 4294901760
    %v2363 = vsub.f32 %v598, %v2362
    %v2364 = vand.u32 %v2363, 4294901760
    %v2365 = vsub.f32 %v2363, %v2364
    %v2366 = vand.u32 %v2365, 4294901760
    %2367 = vmatpush1.msra.mxu0 %v2366
    %2368 = vmatprep.subr.mxu0 0.0
    %v2369 = vand.u32 %v597, 4294901760
    %v2370 = vsub.f32 %v597, %v2369
    %v2371 = vand.u32 %v2370, 4294901760
    %v2372 = vsub.f32 %v2370, %v2371
    %v2373 = vand.u32 %v2372, 4294901760
    %2374 = vmatpush1.msra.mxu0 %v2373
    %2375 = vmatprep.subr.mxu0 0.0
    %v2376 = vand.u32 %v596, 4294901760
    %v2377 = vsub.f32 %v596, %v2376
    %v2378 = vand.u32 %v2377, 4294901760
    %v2379 = vsub.f32 %v2377, %v2378
    %v2380 = vand.u32 %v2379, 4294901760
    %2381 = vmatpush1.msra.mxu0 %v2380
    %2382 = vmatprep.subr.mxu0 0.0
    %2383 = vmatpush2.msra.mxu0 0.0
    %2384 = vmatprep.subr.mxu0 0.0
    %2385 = vmatpush2.msra.mxu0 0.0
    %2386 = vmatprep.subr.mxu0 0.0
    %2387 = vmatpush2.msra.mxu0 0.0
    %2388 = vmatprep.subr.mxu0 0.0
    %2389 = vmatpush2.msra.mxu0 0.0
    %2390 = vmatprep.subr.mxu0 0.0
    %2391 = vmatpush2.msra.mxu0 0.0
    %2392 = vmatprep.subr.mxu0 0.0
    %2393 = vmatpush2.msra.mxu0 0.0
    %2394 = vmatprep.subr.mxu0 0.0
    %2395 = vmatpush2.msra.mxu0 0.0
    %2396 = vmatprep.subr.mxu0 0.0
    %2397 = vmatpush2.msra.mxu0 0.0
    %2398 = vmatprep.subr.mxu0 0.0
    %2399 = vmatpush2.msra.mxu0 0.0
    %2400 = vmatprep.subr.mxu0 0.0
    %2401 = vmatpush2.msra.mxu0 0.0
    %2402 = vmatprep.subr.mxu0 0.0
    %2403 = vmatpush2.msra.mxu0 0.0
    %2404 = vmatprep.subr.mxu0 0.0
    %2405 = vmatpush2.msra.mxu0 0.0
    %2406 = vmatprep.subr.mxu0 0.0
    %2407 = vmatpush2.msra.mxu0 0.0
    %2408 = vmatprep.subr.mxu0 0.0
    %2409 = vmatpush2.msra.mxu0 0.0
    %2410 = vmatprep.subr.mxu0 0.0
    %2411 = vmatpush2.msra.mxu0 0.0
    %2412 = vmatprep.subr.mxu0 0.0
    %2413 = vmatpush2.msra.mxu0 0.0
    %2414 = vmatprep.mubr.f32.mxu0 0.0
    %v2415 = vand.u32 %v2225, 4294901760
    %2416 = vmatmul.mubr.f32.gmra.mxu0 %v2415
    %v2417 = vpop.f32.mrf.mxu0
    %v2418 = vadd.f32 %v2307, %v2417
    %v2419 = vpop.f32.mrf.mxu0
    %2420 = vdwg.mxu0
    %2421 = vmatprep.subr.mxu0 0.0
    %2422 = vmatpush1.msra.mxu0 0.0
    %2423 = vmatprep.subr.mxu0 0.0
    %2424 = vmatpush1.msra.mxu0 0.0
    %2425 = vmatprep.subr.mxu0 0.0
    %2426 = vmatpush1.msra.mxu0 0.0
    %2427 = vmatprep.subr.mxu0 0.0
    %2428 = vmatpush1.msra.mxu0 0.0
    %2429 = vmatprep.subr.mxu0 0.0
    %2430 = vmatpush1.msra.mxu0 0.0
    %2431 = vmatprep.subr.mxu0 0.0
    %2432 = vmatpush1.msra.mxu0 0.0
    %2433 = vmatprep.subr.mxu0 0.0
    %2434 = vmatpush1.msra.mxu0 0.0
    %2435 = vmatprep.subr.mxu0 0.0
    %2436 = vmatpush1.msra.mxu0 0.0
    %2437 = vmatprep.subr.mxu0 0.0
    %v2438 = vand.u32 %v603, 4294901760
    %v2439 = vsub.f32 %v603, %v2438
    %2440 = vmatpush1.msra.mxu0 %v2439
    %2441 = vmatprep.subr.mxu0 0.0
    %v2442 = vand.u32 %v602, 4294901760
    %v2443 = vsub.f32 %v602, %v2442
    %2444 = vmatpush1.msra.mxu0 %v2443
    %2445 = vmatprep.subr.mxu0 0.0
    %v2446 = vand.u32 %v601, 4294901760
    %v2447 = vsub.f32 %v601, %v2446
    %2448 = vmatpush1.msra.mxu0 %v2447
    %2449 = vmatprep.subr.mxu0 0.0
    %v2450 = vand.u32 %v600, 4294901760
    %v2451 = vsub.f32 %v600, %v2450
    %2452 = vmatpush1.msra.mxu0 %v2451
    %2453 = vmatprep.subr.mxu0 0.0
    %v2454 = vand.u32 %v599, 4294901760
    %v2455 = vsub.f32 %v599, %v2454
    %2456 = vmatpush1.msra.mxu0 %v2455
    %2457 = vmatprep.subr.mxu0 0.0
    %v2458 = vand.u32 %v598, 4294901760
    %v2459 = vsub.f32 %v598, %v2458
    %2460 = vmatpush1.msra.mxu0 %v2459
    %2461 = vmatprep.subr.mxu0 0.0
    %v2462 = vand.u32 %v597, 4294901760
    %v2463 = vsub.f32 %v597, %v2462
    %2464 = vmatpush1.msra.mxu0 %v2463
    %2465 = vmatprep.subr.mxu0 0.0
    %v2466 = vand.u32 %v596, 4294901760
    %v2467 = vsub.f32 %v596, %v2466
    %2468 = vmatpush1.msra.mxu0 %v2467
    %2469 = vmatprep.subr.mxu0 0.0
    %2470 = vmatpush2.msra.mxu0 0.0
    %2471 = vmatprep.subr.mxu0 0.0
    %2472 = vmatpush2.msra.mxu0 0.0
    %2473 = vmatprep.subr.mxu0 0.0
    %2474 = vmatpush2.msra.mxu0 0.0
    %2475 = vmatprep.subr.mxu0 0.0
    %2476 = vmatpush2.msra.mxu0 0.0
    %2477 = vmatprep.subr.mxu0 0.0
    %2478 = vmatpush2.msra.mxu0 0.0
    %2479 = vmatprep.subr.mxu0 0.0
    %2480 = vmatpush2.msra.mxu0 0.0
    %2481 = vmatprep.subr.mxu0 0.0
    %2482 = vmatpush2.msra.mxu0 0.0
    %2483 = vmatprep.subr.mxu0 0.0
    %2484 = vmatpush2.msra.mxu0 0.0
    %2485 = vmatprep.subr.mxu0 0.0
    %2486 = vmatpush2.msra.mxu0 0.0
    %2487 = vmatprep.subr.mxu0 0.0
    %2488 = vmatpush2.msra.mxu0 0.0
    %2489 = vmatprep.subr.mxu0 0.0
    %2490 = vmatpush2.msra.mxu0 0.0
    %2491 = vmatprep.subr.mxu0 0.0
    %2492 = vmatpush2.msra.mxu0 0.0
    %2493 = vmatprep.subr.mxu0 0.0
    %2494 = vmatpush2.msra.mxu0 0.0
    %2495 = vmatprep.subr.mxu0 0.0
    %2496 = vmatpush2.msra.mxu0 0.0
    %2497 = vmatprep.subr.mxu0 0.0
    %2498 = vmatpush2.msra.mxu0 0.0
    %2499 = vmatprep.subr.mxu0 0.0
    %2500 = vmatpush2.msra.mxu0 0.0
    %2501 = vmatprep.mubr.f32.mxu0 0.0
    %v2502 = vand.u32 %v2225, 4294901760
    %v2503 = vsub.f32 %v2225, %v2502
    %2504 = vmatmul.mubr.f32.gmra.mxu0 %v2503
    %v2505 = vpop.f32.mrf.mxu0
    %v2506 = vadd.f32 %v2418, %v2505
    %v2507 = vpop.f32.mrf.mxu0
    %2508 = vdwg.mxu0
    %2509 = vmatprep.subr.mxu0 0.0
    %2510 = vmatpush1.msra.mxu0 0.0
    %2511 = vmatprep.subr.mxu0 0.0
    %2512 = vmatpush1.msra.mxu0 0.0
    %2513 = vmatprep.subr.mxu0 0.0
    %2514 = vmatpush1.msra.mxu0 0.0
    %2515 = vmatprep.subr.mxu0 0.0
    %2516 = vmatpush1.msra.mxu0 0.0
    %2517 = vmatprep.subr.mxu0 0.0
    %2518 = vmatpush1.msra.mxu0 0.0
    %2519 = vmatprep.subr.mxu0 0.0
    %2520 = vmatpush1.msra.mxu0 0.0
    %2521 = vmatprep.subr.mxu0 0.0
    %2522 = vmatpush1.msra.mxu0 0.0
    %2523 = vmatprep.subr.mxu0 0.0
    %2524 = vmatpush1.msra.mxu0 0.0
    %2525 = vmatprep.subr.mxu0 0.0
    %v2526 = vand.u32 %v603, 4294901760
    %2527 = vmatpush1.msra.mxu0 %v2526
    %2528 = vmatprep.subr.mxu0 0.0
    %v2529 = vand.u32 %v602, 4294901760
    %2530 = vmatpush1.msra.mxu0 %v2529
    %2531 = vmatprep.subr.mxu0 0.0
    %v2532 = vand.u32 %v601, 4294901760
    %2533 = vmatpush1.msra.mxu0 %v2532
    %2534 = vmatprep.subr.mxu0 0.0
    %v2535 = vand.u32 %v600, 4294901760
    %2536 = vmatpush1.msra.mxu0 %v2535
    %2537 = vmatprep.subr.mxu0 0.0
    %v2538 = vand.u32 %v599, 4294901760
    %2539 = vmatpush1.msra.mxu0 %v2538
    %2540 = vmatprep.subr.mxu0 0.0
    %v2541 = vand.u32 %v598, 4294901760
    %2542 = vmatpush1.msra.mxu0 %v2541
    %2543 = vmatprep.subr.mxu0 0.0
    %v2544 = vand.u32 %v597, 4294901760
    %2545 = vmatpush1.msra.mxu0 %v2544
    %2546 = vmatprep.subr.mxu0 0.0
    %v2547 = vand.u32 %v596, 4294901760
    %2548 = vmatpush1.msra.mxu0 %v2547
    %2549 = vmatprep.subr.mxu0 0.0
    %2550 = vmatpush2.msra.mxu0 0.0
    %2551 = vmatprep.subr.mxu0 0.0
    %2552 = vmatpush2.msra.mxu0 0.0
    %2553 = vmatprep.subr.mxu0 0.0
    %2554 = vmatpush2.msra.mxu0 0.0
    %2555 = vmatprep.subr.mxu0 0.0
    %2556 = vmatpush2.msra.mxu0 0.0
    %2557 = vmatprep.subr.mxu0 0.0
    %2558 = vmatpush2.msra.mxu0 0.0
    %2559 = vmatprep.subr.mxu0 0.0
    %2560 = vmatpush2.msra.mxu0 0.0
    %2561 = vmatprep.subr.mxu0 0.0
    %2562 = vmatpush2.msra.mxu0 0.0
    %2563 = vmatprep.subr.mxu0 0.0
    %2564 = vmatpush2.msra.mxu0 0.0
    %2565 = vmatprep.subr.mxu0 0.0
    %2566 = vmatpush2.msra.mxu0 0.0
    %2567 = vmatprep.subr.mxu0 0.0
    %2568 = vmatpush2.msra.mxu0 0.0
    %2569 = vmatprep.subr.mxu0 0.0
    %2570 = vmatpush2.msra.mxu0 0.0
    %2571 = vmatprep.subr.mxu0 0.0
    %2572 = vmatpush2.msra.mxu0 0.0
    %2573 = vmatprep.subr.mxu0 0.0
    %2574 = vmatpush2.msra.mxu0 0.0
    %2575 = vmatprep.subr.mxu0 0.0
    %2576 = vmatpush2.msra.mxu0 0.0
    %2577 = vmatprep.subr.mxu0 0.0
    %2578 = vmatpush2.msra.mxu0 0.0
    %2579 = vmatprep.subr.mxu0 0.0
    %2580 = vmatpush2.msra.mxu0 0.0
    %2581 = vmatprep.mubr.f32.mxu0 0.0
    %v2582 = vand.u32 %v2225, 4294901760
    %v2583 = vsub.f32 %v2225, %v2582
    %v2584 = vand.u32 %v2583, 4294901760
    %2585 = vmatmul.mubr.f32.gmra.mxu0 %v2584
    %v2586 = vpop.f32.mrf.mxu0
    %v2587 = vadd.f32 %v2506, %v2586
    %v2588 = vpop.f32.mrf.mxu0
    %2589 = vdwg.mxu0
    %2590 = vmatprep.subr.mxu0 0.0
    %2591 = vmatpush1.msra.mxu0 0.0
    %2592 = vmatprep.subr.mxu0 0.0
    %2593 = vmatpush1.msra.mxu0 0.0
    %2594 = vmatprep.subr.mxu0 0.0
    %2595 = vmatpush1.msra.mxu0 0.0
    %2596 = vmatprep.subr.mxu0 0.0
    %2597 = vmatpush1.msra.mxu0 0.0
    %2598 = vmatprep.subr.mxu0 0.0
    %2599 = vmatpush1.msra.mxu0 0.0
    %2600 = vmatprep.subr.mxu0 0.0
    %2601 = vmatpush1.msra.mxu0 0.0
    %2602 = vmatprep.subr.mxu0 0.0
    %2603 = vmatpush1.msra.mxu0 0.0
    %2604 = vmatprep.subr.mxu0 0.0
    %2605 = vmatpush1.msra.mxu0 0.0
    %2606 = vmatprep.subr.mxu0 0.0
    %v2607 = vand.u32 %v603, 4294901760
    %v2608 = vsub.f32 %v603, %v2607
    %v2609 = vand.u32 %v2608, 4294901760
    %2610 = vmatpush1.msra.mxu0 %v2609
    %2611 = vmatprep.subr.mxu0 0.0
    %v2612 = vand.u32 %v602, 4294901760
    %v2613 = vsub.f32 %v602, %v2612
    %v2614 = vand.u32 %v2613, 4294901760
    %2615 = vmatpush1.msra.mxu0 %v2614
    %2616 = vmatprep.subr.mxu0 0.0
    %v2617 = vand.u32 %v601, 4294901760
    %v2618 = vsub.f32 %v601, %v2617
    %v2619 = vand.u32 %v2618, 4294901760
    %2620 = vmatpush1.msra.mxu0 %v2619
    %2621 = vmatprep.subr.mxu0 0.0
    %v2622 = vand.u32 %v600, 4294901760
    %v2623 = vsub.f32 %v600, %v2622
    %v2624 = vand.u32 %v2623, 4294901760
    %2625 = vmatpush1.msra.mxu0 %v2624
    %2626 = vmatprep.subr.mxu0 0.0
    %v2627 = vand.u32 %v599, 4294901760
    %v2628 = vsub.f32 %v599, %v2627
    %v2629 = vand.u32 %v2628, 4294901760
    %2630 = vmatpush1.msra.mxu0 %v2629
    %2631 = vmatprep.subr.mxu0 0.0
    %v2632 = vand.u32 %v598, 4294901760
    %v2633 = vsub.f32 %v598, %v2632
    %v2634 = vand.u32 %v2633, 4294901760
    %2635 = vmatpush1.msra.mxu0 %v2634
    %2636 = vmatprep.subr.mxu0 0.0
    %v2637 = vand.u32 %v597, 4294901760
    %v2638 = vsub.f32 %v597, %v2637
    %v2639 = vand.u32 %v2638, 4294901760
    %2640 = vmatpush1.msra.mxu0 %v2639
    %2641 = vmatprep.subr.mxu0 0.0
    %v2642 = vand.u32 %v596, 4294901760
    %v2643 = vsub.f32 %v596, %v2642
    %v2644 = vand.u32 %v2643, 4294901760
    %2645 = vmatpush1.msra.mxu0 %v2644
    %2646 = vmatprep.subr.mxu0 0.0
    %2647 = vmatpush2.msra.mxu0 0.0
    %2648 = vmatprep.subr.mxu0 0.0
    %2649 = vmatpush2.msra.mxu0 0.0
    %2650 = vmatprep.subr.mxu0 0.0
    %2651 = vmatpush2.msra.mxu0 0.0
    %2652 = vmatprep.subr.mxu0 0.0
    %2653 = vmatpush2.msra.mxu0 0.0
    %2654 = vmatprep.subr.mxu0 0.0
    %2655 = vmatpush2.msra.mxu0 0.0
    %2656 = vmatprep.subr.mxu0 0.0
    %2657 = vmatpush2.msra.mxu0 0.0
    %2658 = vmatprep.subr.mxu0 0.0
    %2659 = vmatpush2.msra.mxu0 0.0
    %2660 = vmatprep.subr.mxu0 0.0
    %2661 = vmatpush2.msra.mxu0 0.0
    %2662 = vmatprep.subr.mxu0 0.0
    %2663 = vmatpush2.msra.mxu0 0.0
    %2664 = vmatprep.subr.mxu0 0.0
    %2665 = vmatpush2.msra.mxu0 0.0
    %2666 = vmatprep.subr.mxu0 0.0
    %2667 = vmatpush2.msra.mxu0 0.0
    %2668 = vmatprep.subr.mxu0 0.0
    %2669 = vmatpush2.msra.mxu0 0.0
    %2670 = vmatprep.subr.mxu0 0.0
    %2671 = vmatpush2.msra.mxu0 0.0
    %2672 = vmatprep.subr.mxu0 0.0
    %2673 = vmatpush2.msra.mxu0 0.0
    %2674 = vmatprep.subr.mxu0 0.0
    %2675 = vmatpush2.msra.mxu0 0.0
    %2676 = vmatprep.subr.mxu0 0.0
    %2677 = vmatpush2.msra.mxu0 0.0
    %2678 = vmatprep.mubr.f32.mxu0 0.0
    %v2679 = vand.u32 %v2225, 4294901760
    %2680 = vmatmul.mubr.f32.gmra.mxu0 %v2679
    %v2681 = vpop.f32.mrf.mxu0
    %v2682 = vadd.f32 %v2587, %v2681
    %v2683 = vpop.f32.mrf.mxu0
    %2684 = vdwg.mxu0
    %2685 = vmatprep.subr.mxu0 0.0
    %2686 = vmatpush1.msra.mxu0 0.0
    %2687 = vmatprep.subr.mxu0 0.0
    %2688 = vmatpush1.msra.mxu0 0.0
    %2689 = vmatprep.subr.mxu0 0.0
    %2690 = vmatpush1.msra.mxu0 0.0
    %2691 = vmatprep.subr.mxu0 0.0
    %2692 = vmatpush1.msra.mxu0 0.0
    %2693 = vmatprep.subr.mxu0 0.0
    %2694 = vmatpush1.msra.mxu0 0.0
    %2695 = vmatprep.subr.mxu0 0.0
    %2696 = vmatpush1.msra.mxu0 0.0
    %2697 = vmatprep.subr.mxu0 0.0
    %2698 = vmatpush1.msra.mxu0 0.0
    %2699 = vmatprep.subr.mxu0 0.0
    %2700 = vmatpush1.msra.mxu0 0.0
    %2701 = vmatprep.subr.mxu0 0.0
    %v2702 = vand.u32 %v603, 4294901760
    %2703 = vmatpush1.msra.mxu0 %v2702
    %2704 = vmatprep.subr.mxu0 0.0
    %v2705 = vand.u32 %v602, 4294901760
    %2706 = vmatpush1.msra.mxu0 %v2705
    %2707 = vmatprep.subr.mxu0 0.0
    %v2708 = vand.u32 %v601, 4294901760
    %2709 = vmatpush1.msra.mxu0 %v2708
    %2710 = vmatprep.subr.mxu0 0.0
    %v2711 = vand.u32 %v600, 4294901760
    %2712 = vmatpush1.msra.mxu0 %v2711
    %2713 = vmatprep.subr.mxu0 0.0
    %v2714 = vand.u32 %v599, 4294901760
    %2715 = vmatpush1.msra.mxu0 %v2714
    %2716 = vmatprep.subr.mxu0 0.0
    %v2717 = vand.u32 %v598, 4294901760
    %2718 = vmatpush1.msra.mxu0 %v2717
    %2719 = vmatprep.subr.mxu0 0.0
    %v2720 = vand.u32 %v597, 4294901760
    %2721 = vmatpush1.msra.mxu0 %v2720
    %2722 = vmatprep.subr.mxu0 0.0
    %v2723 = vand.u32 %v596, 4294901760
    %2724 = vmatpush1.msra.mxu0 %v2723
    %2725 = vmatprep.subr.mxu0 0.0
    %2726 = vmatpush2.msra.mxu0 0.0
    %2727 = vmatprep.subr.mxu0 0.0
    %2728 = vmatpush2.msra.mxu0 0.0
    %2729 = vmatprep.subr.mxu0 0.0
    %2730 = vmatpush2.msra.mxu0 0.0
    %2731 = vmatprep.subr.mxu0 0.0
    %2732 = vmatpush2.msra.mxu0 0.0
    %2733 = vmatprep.subr.mxu0 0.0
    %2734 = vmatpush2.msra.mxu0 0.0
    %2735 = vmatprep.subr.mxu0 0.0
    %2736 = vmatpush2.msra.mxu0 0.0
    %2737 = vmatprep.subr.mxu0 0.0
    %2738 = vmatpush2.msra.mxu0 0.0
    %2739 = vmatprep.subr.mxu0 0.0
    %2740 = vmatpush2.msra.mxu0 0.0
    %2741 = vmatprep.subr.mxu0 0.0
    %2742 = vmatpush2.msra.mxu0 0.0
    %2743 = vmatprep.subr.mxu0 0.0
    %2744 = vmatpush2.msra.mxu0 0.0
    %2745 = vmatprep.subr.mxu0 0.0
    %2746 = vmatpush2.msra.mxu0 0.0
    %2747 = vmatprep.subr.mxu0 0.0
    %2748 = vmatpush2.msra.mxu0 0.0
    %2749 = vmatprep.subr.mxu0 0.0
    %2750 = vmatpush2.msra.mxu0 0.0
    %2751 = vmatprep.subr.mxu0 0.0
    %2752 = vmatpush2.msra.mxu0 0.0
    %2753 = vmatprep.subr.mxu0 0.0
    %2754 = vmatpush2.msra.mxu0 0.0
    %2755 = vmatprep.subr.mxu0 0.0
    %2756 = vmatpush2.msra.mxu0 0.0
    %2757 = vmatprep.mubr.f32.mxu0 0.0
    %v2758 = vand.u32 %v2225, 4294901760
    %2759 = vmatmul.mubr.f32.gmra.mxu0 %v2758
    %v2760 = vpop.f32.mrf.mxu0
    %v2761 = vadd.f32 %v2682, %v2760
    %v2762 = vpop.f32.mrf.mxu0
    %2763 = vdwg.mxu0
    %v2764 = vxor.u32 %v2761, 2147483648
    %v2765 = vmul.f32 %v2764, 1.442695
    %v2766 = vpow.pop %v2765
    %v2767 = vadd.f32 %v2766, 1.0
    %v2768 = vrcp.pop %v2767
    %v2769 = vmul.f32 1.0, %v2768
    %v2770 = vtanh.pop %v2761
    %v2771 = vmul.f32 %v2769, %v1688
    %2773 = vrot.lane.b32.xlu0 %v2770, 64
    %v2774 = vpop.permute.xlu0 %2773
    %v2776 = vmul.f32 %v2769, %v2774
    %2778 = vrot.lane.b32.xlu0 %v2776, 32
    %v2779 = vpop.permute.xlu0 %2778
    %v2781 = vadd.f32 %v2771, %v2779
    %v2782 = vtanh.pop %v2781
    %2784 = vrot.lane.b32.xlu0 %v2782, 64
    %v2785 = vpop.permute.xlu0 %2784
    %v2787 = vmul.f32 %v2769, %v2785
    %v2788 = vrot.slane %v2212, 2
    %2789 = vrot.lane.b32.xlu0 %v2788, 32
    %v2790 = vpop.permute.xlu0 %2789
    %v2791 = vsel %vm605, %v2790, 0
    %2793 = vmatprep.subr.mxu0 0.0
    %2794 = vmatpush1.msra.mxu0 0.0
    %2795 = vmatprep.subr.mxu0 0.0
    %2796 = vmatpush1.msra.mxu0 0.0
    %2797 = vmatprep.subr.mxu0 0.0
    %2798 = vmatpush1.msra.mxu0 0.0
    %2799 = vmatprep.subr.mxu0 0.0
    %2800 = vmatpush1.msra.mxu0 0.0
    %2801 = vmatprep.subr.mxu0 0.0
    %2802 = vmatpush1.msra.mxu0 0.0
    %2803 = vmatprep.subr.mxu0 0.0
    %2804 = vmatpush1.msra.mxu0 0.0
    %2805 = vmatprep.subr.mxu0 0.0
    %2806 = vmatpush1.msra.mxu0 0.0
    %2807 = vmatprep.subr.mxu0 0.0
    %2808 = vmatpush1.msra.mxu0 0.0
    %2809 = vmatprep.subr.mxu0 0.0
    %2810 = vmatpush1.msra.mxu0 0.0
    %2811 = vmatprep.subr.mxu0 0.0
    %2812 = vmatpush1.msra.mxu0 0.0
    %2813 = vmatprep.subr.mxu0 0.0
    %2814 = vmatpush1.msra.mxu0 0.0
    %2815 = vmatprep.subr.mxu0 0.0
    %2816 = vmatpush1.msra.mxu0 0.0
    %2817 = vmatprep.subr.mxu0 0.0
    %v2818 = vand.u32 %v595, 4294901760
    %2819 = vmatpush1.msra.mxu0 %v2818
    %2820 = vmatprep.subr.mxu0 0.0
    %v2821 = vand.u32 %v594, 4294901760
    %2822 = vmatpush1.msra.mxu0 %v2821
    %2823 = vmatprep.subr.mxu0 0.0
    %v2824 = vand.u32 %v593, 4294901760
    %2825 = vmatpush1.msra.mxu0 %v2824
    %2826 = vmatprep.subr.mxu0 0.0
    %v2827 = vand.u32 %v592, 4294901760
    %2828 = vmatpush1.msra.mxu0 %v2827
    %2829 = vmatprep.subr.mxu0 0.0
    %2830 = vmatpush2.msra.mxu0 0.0
    %2831 = vmatprep.subr.mxu0 0.0
    %2832 = vmatpush2.msra.mxu0 0.0
    %2833 = vmatprep.subr.mxu0 0.0
    %2834 = vmatpush2.msra.mxu0 0.0
    %2835 = vmatprep.subr.mxu0 0.0
    %2836 = vmatpush2.msra.mxu0 0.0
    %2837 = vmatprep.subr.mxu0 0.0
    %2838 = vmatpush2.msra.mxu0 0.0
    %2839 = vmatprep.subr.mxu0 0.0
    %2840 = vmatpush2.msra.mxu0 0.0
    %2841 = vmatprep.subr.mxu0 0.0
    %2842 = vmatpush2.msra.mxu0 0.0
    %2843 = vmatprep.subr.mxu0 0.0
    %2844 = vmatpush2.msra.mxu0 0.0
    %2845 = vmatprep.subr.mxu0 0.0
    %2846 = vmatpush2.msra.mxu0 0.0
    %2847 = vmatprep.subr.mxu0 0.0
    %2848 = vmatpush2.msra.mxu0 0.0
    %2849 = vmatprep.subr.mxu0 0.0
    %2850 = vmatpush2.msra.mxu0 0.0
    %2851 = vmatprep.subr.mxu0 0.0
    %2852 = vmatpush2.msra.mxu0 0.0
    %2853 = vmatprep.subr.mxu0 0.0
    %2854 = vmatpush2.msra.mxu0 0.0
    %2855 = vmatprep.subr.mxu0 0.0
    %2856 = vmatpush2.msra.mxu0 0.0
    %2857 = vmatprep.subr.mxu0 0.0
    %2858 = vmatpush2.msra.mxu0 0.0
    %2859 = vmatprep.subr.mxu0 0.0
    %2860 = vmatpush2.msra.mxu0 0.0
    %2861 = vmatprep.mubr.f32.mxu0 0.0
    %v2862 = vand.u32 %v2791, 4294901760
    %v2863 = vsub.f32 %v2791, %v2862
    %v2864 = vand.u32 %v2863, 4294901760
    %v2865 = vsub.f32 %v2863, %v2864
    %v2866 = vand.u32 %v2865, 4294901760
    %2867 = vmatmul.mubr.f32.gmra.mxu0 %v2866
    %v2868 = vpop.f32.mrf.mxu0
    %v2869 = vadd.f32 0.0, %v2868
    %v2870 = vpop.f32.mrf.mxu0
    %2871 = vdwg.mxu0
    %2872 = vmatprep.subr.mxu0 0.0
    %2873 = vmatpush1.msra.mxu0 0.0
    %2874 = vmatprep.subr.mxu0 0.0
    %2875 = vmatpush1.msra.mxu0 0.0
    %2876 = vmatprep.subr.mxu0 0.0
    %2877 = vmatpush1.msra.mxu0 0.0
    %2878 = vmatprep.subr.mxu0 0.0
    %2879 = vmatpush1.msra.mxu0 0.0
    %2880 = vmatprep.subr.mxu0 0.0
    %2881 = vmatpush1.msra.mxu0 0.0
    %2882 = vmatprep.subr.mxu0 0.0
    %2883 = vmatpush1.msra.mxu0 0.0
    %2884 = vmatprep.subr.mxu0 0.0
    %2885 = vmatpush1.msra.mxu0 0.0
    %2886 = vmatprep.subr.mxu0 0.0
    %2887 = vmatpush1.msra.mxu0 0.0
    %2888 = vmatprep.subr.mxu0 0.0
    %2889 = vmatpush1.msra.mxu0 0.0
    %2890 = vmatprep.subr.mxu0 0.0
    %2891 = vmatpush1.msra.mxu0 0.0
    %2892 = vmatprep.subr.mxu0 0.0
    %2893 = vmatpush1.msra.mxu0 0.0
    %2894 = vmatprep.subr.mxu0 0.0
    %2895 = vmatpush1.msra.mxu0 0.0
    %2896 = vmatprep.subr.mxu0 0.0
    %v2897 = vand.u32 %v595, 4294901760
    %v2898 = vsub.f32 %v595, %v2897
    %v2899 = vand.u32 %v2898, 4294901760
    %v2900 = vsub.f32 %v2898, %v2899
    %v2901 = vand.u32 %v2900, 4294901760
    %2902 = vmatpush1.msra.mxu0 %v2901
    %2903 = vmatprep.subr.mxu0 0.0
    %v2904 = vand.u32 %v594, 4294901760
    %v2905 = vsub.f32 %v594, %v2904
    %v2906 = vand.u32 %v2905, 4294901760
    %v2907 = vsub.f32 %v2905, %v2906
    %v2908 = vand.u32 %v2907, 4294901760
    %2909 = vmatpush1.msra.mxu0 %v2908
    %2910 = vmatprep.subr.mxu0 0.0
    %v2911 = vand.u32 %v593, 4294901760
    %v2912 = vsub.f32 %v593, %v2911
    %v2913 = vand.u32 %v2912, 4294901760
    %v2914 = vsub.f32 %v2912, %v2913
    %v2915 = vand.u32 %v2914, 4294901760
    %2916 = vmatpush1.msra.mxu0 %v2915
    %2917 = vmatprep.subr.mxu0 0.0
    %v2918 = vand.u32 %v592, 4294901760
    %v2919 = vsub.f32 %v592, %v2918
    %v2920 = vand.u32 %v2919, 4294901760
    %v2921 = vsub.f32 %v2919, %v2920
    %v2922 = vand.u32 %v2921, 4294901760
    %2923 = vmatpush1.msra.mxu0 %v2922
    %2924 = vmatprep.subr.mxu0 0.0
    %2925 = vmatpush2.msra.mxu0 0.0
    %2926 = vmatprep.subr.mxu0 0.0
    %2927 = vmatpush2.msra.mxu0 0.0
    %2928 = vmatprep.subr.mxu0 0.0
    %2929 = vmatpush2.msra.mxu0 0.0
    %2930 = vmatprep.subr.mxu0 0.0
    %2931 = vmatpush2.msra.mxu0 0.0
    %2932 = vmatprep.subr.mxu0 0.0
    %2933 = vmatpush2.msra.mxu0 0.0
    %2934 = vmatprep.subr.mxu0 0.0
    %2935 = vmatpush2.msra.mxu0 0.0
    %2936 = vmatprep.subr.mxu0 0.0
    %2937 = vmatpush2.msra.mxu0 0.0
    %2938 = vmatprep.subr.mxu0 0.0
    %2939 = vmatpush2.msra.mxu0 0.0
    %2940 = vmatprep.subr.mxu0 0.0
    %2941 = vmatpush2.msra.mxu0 0.0
    %2942 = vmatprep.subr.mxu0 0.0
    %2943 = vmatpush2.msra.mxu0 0.0
    %2944 = vmatprep.subr.mxu0 0.0
    %2945 = vmatpush2.msra.mxu0 0.0
    %2946 = vmatprep.subr.mxu0 0.0
    %2947 = vmatpush2.msra.mxu0 0.0
    %2948 = vmatprep.subr.mxu0 0.0
    %2949 = vmatpush2.msra.mxu0 0.0
    %2950 = vmatprep.subr.mxu0 0.0
    %2951 = vmatpush2.msra.mxu0 0.0
    %2952 = vmatprep.subr.mxu0 0.0
    %2953 = vmatpush2.msra.mxu0 0.0
    %2954 = vmatprep.subr.mxu0 0.0
    %2955 = vmatpush2.msra.mxu0 0.0
    %2956 = vmatprep.mubr.f32.mxu0 0.0
    %v2957 = vand.u32 %v2791, 4294901760
    %2958 = vmatmul.mubr.f32.gmra.mxu0 %v2957
    %v2959 = vpop.f32.mrf.mxu0
    %v2960 = vadd.f32 %v2869, %v2959
    %v2961 = vpop.f32.mrf.mxu0
    %2962 = vdwg.mxu0
    %2963 = vmatprep.subr.mxu0 0.0
    %2964 = vmatpush1.msra.mxu0 0.0
    %2965 = vmatprep.subr.mxu0 0.0
    %2966 = vmatpush1.msra.mxu0 0.0
    %2967 = vmatprep.subr.mxu0 0.0
    %2968 = vmatpush1.msra.mxu0 0.0
    %2969 = vmatprep.subr.mxu0 0.0
    %2970 = vmatpush1.msra.mxu0 0.0
    %2971 = vmatprep.subr.mxu0 0.0
    %2972 = vmatpush1.msra.mxu0 0.0
    %2973 = vmatprep.subr.mxu0 0.0
    %2974 = vmatpush1.msra.mxu0 0.0
    %2975 = vmatprep.subr.mxu0 0.0
    %2976 = vmatpush1.msra.mxu0 0.0
    %2977 = vmatprep.subr.mxu0 0.0
    %2978 = vmatpush1.msra.mxu0 0.0
    %2979 = vmatprep.subr.mxu0 0.0
    %2980 = vmatpush1.msra.mxu0 0.0
    %2981 = vmatprep.subr.mxu0 0.0
    %2982 = vmatpush1.msra.mxu0 0.0
    %2983 = vmatprep.subr.mxu0 0.0
    %2984 = vmatpush1.msra.mxu0 0.0
    %2985 = vmatprep.subr.mxu0 0.0
    %2986 = vmatpush1.msra.mxu0 0.0
    %2987 = vmatprep.subr.mxu0 0.0
    %v2988 = vand.u32 %v595, 4294901760
    %v2989 = vsub.f32 %v595, %v2988
    %2990 = vmatpush1.msra.mxu0 %v2989
    %2991 = vmatprep.subr.mxu0 0.0
    %v2992 = vand.u32 %v594, 4294901760
    %v2993 = vsub.f32 %v594, %v2992
    %2994 = vmatpush1.msra.mxu0 %v2993
    %2995 = vmatprep.subr.mxu0 0.0
    %v2996 = vand.u32 %v593, 4294901760
    %v2997 = vsub.f32 %v593, %v2996
    %2998 = vmatpush1.msra.mxu0 %v2997
    %2999 = vmatprep.subr.mxu0 0.0
    %v3000 = vand.u32 %v592, 4294901760
    %v3001 = vsub.f32 %v592, %v3000
    %3002 = vmatpush1.msra.mxu0 %v3001
    %3003 = vmatprep.subr.mxu0 0.0
    %3004 = vmatpush2.msra.mxu0 0.0
    %3005 = vmatprep.subr.mxu0 0.0
    %3006 = vmatpush2.msra.mxu0 0.0
    %3007 = vmatprep.subr.mxu0 0.0
    %3008 = vmatpush2.msra.mxu0 0.0
    %3009 = vmatprep.subr.mxu0 0.0
    %3010 = vmatpush2.msra.mxu0 0.0
    %3011 = vmatprep.subr.mxu0 0.0
    %3012 = vmatpush2.msra.mxu0 0.0
    %3013 = vmatprep.subr.mxu0 0.0
    %3014 = vmatpush2.msra.mxu0 0.0
    %3015 = vmatprep.subr.mxu0 0.0
    %3016 = vmatpush2.msra.mxu0 0.0
    %3017 = vmatprep.subr.mxu0 0.0
    %3018 = vmatpush2.msra.mxu0 0.0
    %3019 = vmatprep.subr.mxu0 0.0
    %3020 = vmatpush2.msra.mxu0 0.0
    %3021 = vmatprep.subr.mxu0 0.0
    %3022 = vmatpush2.msra.mxu0 0.0
    %3023 = vmatprep.subr.mxu0 0.0
    %3024 = vmatpush2.msra.mxu0 0.0
    %3025 = vmatprep.subr.mxu0 0.0
    %3026 = vmatpush2.msra.mxu0 0.0
    %3027 = vmatprep.subr.mxu0 0.0
    %3028 = vmatpush2.msra.mxu0 0.0
    %3029 = vmatprep.subr.mxu0 0.0
    %3030 = vmatpush2.msra.mxu0 0.0
    %3031 = vmatprep.subr.mxu0 0.0
    %3032 = vmatpush2.msra.mxu0 0.0
    %3033 = vmatprep.subr.mxu0 0.0
    %3034 = vmatpush2.msra.mxu0 0.0
    %3035 = vmatprep.mubr.f32.mxu0 0.0
    %v3036 = vand.u32 %v2791, 4294901760
    %v3037 = vsub.f32 %v2791, %v3036
    %3038 = vmatmul.mubr.f32.gmra.mxu0 %v3037
    %v3039 = vpop.f32.mrf.mxu0
    %v3040 = vadd.f32 %v2960, %v3039
    %v3041 = vpop.f32.mrf.mxu0
    %3042 = vdwg.mxu0
    %3043 = vmatprep.subr.mxu0 0.0
    %3044 = vmatpush1.msra.mxu0 0.0
    %3045 = vmatprep.subr.mxu0 0.0
    %3046 = vmatpush1.msra.mxu0 0.0
    %3047 = vmatprep.subr.mxu0 0.0
    %3048 = vmatpush1.msra.mxu0 0.0
    %3049 = vmatprep.subr.mxu0 0.0
    %3050 = vmatpush1.msra.mxu0 0.0
    %3051 = vmatprep.subr.mxu0 0.0
    %3052 = vmatpush1.msra.mxu0 0.0
    %3053 = vmatprep.subr.mxu0 0.0
    %3054 = vmatpush1.msra.mxu0 0.0
    %3055 = vmatprep.subr.mxu0 0.0
    %3056 = vmatpush1.msra.mxu0 0.0
    %3057 = vmatprep.subr.mxu0 0.0
    %3058 = vmatpush1.msra.mxu0 0.0
    %3059 = vmatprep.subr.mxu0 0.0
    %3060 = vmatpush1.msra.mxu0 0.0
    %3061 = vmatprep.subr.mxu0 0.0
    %3062 = vmatpush1.msra.mxu0 0.0
    %3063 = vmatprep.subr.mxu0 0.0
    %3064 = vmatpush1.msra.mxu0 0.0
    %3065 = vmatprep.subr.mxu0 0.0
    %3066 = vmatpush1.msra.mxu0 0.0
    %3067 = vmatprep.subr.mxu0 0.0
    %v3068 = vand.u32 %v595, 4294901760
    %3069 = vmatpush1.msra.mxu0 %v3068
    %3070 = vmatprep.subr.mxu0 0.0
    %v3071 = vand.u32 %v594, 4294901760
    %3072 = vmatpush1.msra.mxu0 %v3071
    %3073 = vmatprep.subr.mxu0 0.0
    %v3074 = vand.u32 %v593, 4294901760
    %3075 = vmatpush1.msra.mxu0 %v3074
    %3076 = vmatprep.subr.mxu0 0.0
    %v3077 = vand.u32 %v592, 4294901760
    %3078 = vmatpush1.msra.mxu0 %v3077
    %3079 = vmatprep.subr.mxu0 0.0
    %3080 = vmatpush2.msra.mxu0 0.0
    %3081 = vmatprep.subr.mxu0 0.0
    %3082 = vmatpush2.msra.mxu0 0.0
    %3083 = vmatprep.subr.mxu0 0.0
    %3084 = vmatpush2.msra.mxu0 0.0
    %3085 = vmatprep.subr.mxu0 0.0
    %3086 = vmatpush2.msra.mxu0 0.0
    %3087 = vmatprep.subr.mxu0 0.0
    %3088 = vmatpush2.msra.mxu0 0.0
    %3089 = vmatprep.subr.mxu0 0.0
    %3090 = vmatpush2.msra.mxu0 0.0
    %3091 = vmatprep.subr.mxu0 0.0
    %3092 = vmatpush2.msra.mxu0 0.0
    %3093 = vmatprep.subr.mxu0 0.0
    %3094 = vmatpush2.msra.mxu0 0.0
    %3095 = vmatprep.subr.mxu0 0.0
    %3096 = vmatpush2.msra.mxu0 0.0
    %3097 = vmatprep.subr.mxu0 0.0
    %3098 = vmatpush2.msra.mxu0 0.0
    %3099 = vmatprep.subr.mxu0 0.0
    %3100 = vmatpush2.msra.mxu0 0.0
    %3101 = vmatprep.subr.mxu0 0.0
    %3102 = vmatpush2.msra.mxu0 0.0
    %3103 = vmatprep.subr.mxu0 0.0
    %3104 = vmatpush2.msra.mxu0 0.0
    %3105 = vmatprep.subr.mxu0 0.0
    %3106 = vmatpush2.msra.mxu0 0.0
    %3107 = vmatprep.subr.mxu0 0.0
    %3108 = vmatpush2.msra.mxu0 0.0
    %3109 = vmatprep.subr.mxu0 0.0
    %3110 = vmatpush2.msra.mxu0 0.0
    %3111 = vmatprep.mubr.f32.mxu0 0.0
    %v3112 = vand.u32 %v2791, 4294901760
    %v3113 = vsub.f32 %v2791, %v3112
    %v3114 = vand.u32 %v3113, 4294901760
    %3115 = vmatmul.mubr.f32.gmra.mxu0 %v3114
    %v3116 = vpop.f32.mrf.mxu0
    %v3117 = vadd.f32 %v3040, %v3116
    %v3118 = vpop.f32.mrf.mxu0
    %3119 = vdwg.mxu0
    %3120 = vmatprep.subr.mxu0 0.0
    %3121 = vmatpush1.msra.mxu0 0.0
    %3122 = vmatprep.subr.mxu0 0.0
    %3123 = vmatpush1.msra.mxu0 0.0
    %3124 = vmatprep.subr.mxu0 0.0
    %3125 = vmatpush1.msra.mxu0 0.0
    %3126 = vmatprep.subr.mxu0 0.0
    %3127 = vmatpush1.msra.mxu0 0.0
    %3128 = vmatprep.subr.mxu0 0.0
    %3129 = vmatpush1.msra.mxu0 0.0
    %3130 = vmatprep.subr.mxu0 0.0
    %3131 = vmatpush1.msra.mxu0 0.0
    %3132 = vmatprep.subr.mxu0 0.0
    %3133 = vmatpush1.msra.mxu0 0.0
    %3134 = vmatprep.subr.mxu0 0.0
    %3135 = vmatpush1.msra.mxu0 0.0
    %3136 = vmatprep.subr.mxu0 0.0
    %3137 = vmatpush1.msra.mxu0 0.0
    %3138 = vmatprep.subr.mxu0 0.0
    %3139 = vmatpush1.msra.mxu0 0.0
    %3140 = vmatprep.subr.mxu0 0.0
    %3141 = vmatpush1.msra.mxu0 0.0
    %3142 = vmatprep.subr.mxu0 0.0
    %3143 = vmatpush1.msra.mxu0 0.0
    %3144 = vmatprep.subr.mxu0 0.0
    %v3145 = vand.u32 %v595, 4294901760
    %v3146 = vsub.f32 %v595, %v3145
    %v3147 = vand.u32 %v3146, 4294901760
    %3148 = vmatpush1.msra.mxu0 %v3147
    %3149 = vmatprep.subr.mxu0 0.0
    %v3150 = vand.u32 %v594, 4294901760
    %v3151 = vsub.f32 %v594, %v3150
    %v3152 = vand.u32 %v3151, 4294901760
    %3153 = vmatpush1.msra.mxu0 %v3152
    %3154 = vmatprep.subr.mxu0 0.0
    %v3155 = vand.u32 %v593, 4294901760
    %v3156 = vsub.f32 %v593, %v3155
    %v3157 = vand.u32 %v3156, 4294901760
    %3158 = vmatpush1.msra.mxu0 %v3157
    %3159 = vmatprep.subr.mxu0 0.0
    %v3160 = vand.u32 %v592, 4294901760
    %v3161 = vsub.f32 %v592, %v3160
    %v3162 = vand.u32 %v3161, 4294901760
    %3163 = vmatpush1.msra.mxu0 %v3162
    %3164 = vmatprep.subr.mxu0 0.0
    %3165 = vmatpush2.msra.mxu0 0.0
    %3166 = vmatprep.subr.mxu0 0.0
    %3167 = vmatpush2.msra.mxu0 0.0
    %3168 = vmatprep.subr.mxu0 0.0
    %3169 = vmatpush2.msra.mxu0 0.0
    %3170 = vmatprep.subr.mxu0 0.0
    %3171 = vmatpush2.msra.mxu0 0.0
    %3172 = vmatprep.subr.mxu0 0.0
    %3173 = vmatpush2.msra.mxu0 0.0
    %3174 = vmatprep.subr.mxu0 0.0
    %3175 = vmatpush2.msra.mxu0 0.0
    %3176 = vmatprep.subr.mxu0 0.0
    %3177 = vmatpush2.msra.mxu0 0.0
    %3178 = vmatprep.subr.mxu0 0.0
    %3179 = vmatpush2.msra.mxu0 0.0
    %3180 = vmatprep.subr.mxu0 0.0
    %3181 = vmatpush2.msra.mxu0 0.0
    %3182 = vmatprep.subr.mxu0 0.0
    %3183 = vmatpush2.msra.mxu0 0.0
    %3184 = vmatprep.subr.mxu0 0.0
    %3185 = vmatpush2.msra.mxu0 0.0
    %3186 = vmatprep.subr.mxu0 0.0
    %3187 = vmatpush2.msra.mxu0 0.0
    %3188 = vmatprep.subr.mxu0 0.0
    %3189 = vmatpush2.msra.mxu0 0.0
    %3190 = vmatprep.subr.mxu0 0.0
    %3191 = vmatpush2.msra.mxu0 0.0
    %3192 = vmatprep.subr.mxu0 0.0
    %3193 = vmatpush2.msra.mxu0 0.0
    %3194 = vmatprep.subr.mxu0 0.0
    %3195 = vmatpush2.msra.mxu0 0.0
    %3196 = vmatprep.mubr.f32.mxu0 0.0
    %v3197 = vand.u32 %v2791, 4294901760
    %3198 = vmatmul.mubr.f32.gmra.mxu0 %v3197
    %v3199 = vpop.f32.mrf.mxu0
    %v3200 = vadd.f32 %v3117, %v3199
    %v3201 = vpop.f32.mrf.mxu0
    %3202 = vdwg.mxu0
    %3203 = vmatprep.subr.mxu0 0.0
    %3204 = vmatpush1.msra.mxu0 0.0
    %3205 = vmatprep.subr.mxu0 0.0
    %3206 = vmatpush1.msra.mxu0 0.0
    %3207 = vmatprep.subr.mxu0 0.0
    %3208 = vmatpush1.msra.mxu0 0.0
    %3209 = vmatprep.subr.mxu0 0.0
    %3210 = vmatpush1.msra.mxu0 0.0
    %3211 = vmatprep.subr.mxu0 0.0
    %3212 = vmatpush1.msra.mxu0 0.0
    %3213 = vmatprep.subr.mxu0 0.0
    %3214 = vmatpush1.msra.mxu0 0.0
    %3215 = vmatprep.subr.mxu0 0.0
    %3216 = vmatpush1.msra.mxu0 0.0
    %3217 = vmatprep.subr.mxu0 0.0
    %3218 = vmatpush1.msra.mxu0 0.0
    %3219 = vmatprep.subr.mxu0 0.0
    %3220 = vmatpush1.msra.mxu0 0.0
    %3221 = vmatprep.subr.mxu0 0.0
    %3222 = vmatpush1.msra.mxu0 0.0
    %3223 = vmatprep.subr.mxu0 0.0
    %3224 = vmatpush1.msra.mxu0 0.0
    %3225 = vmatprep.subr.mxu0 0.0
    %3226 = vmatpush1.msra.mxu0 0.0
    %3227 = vmatprep.subr.mxu0 0.0
    %v3228 = vand.u32 %v595, 4294901760
    %3229 = vmatpush1.msra.mxu0 %v3228
    %3230 = vmatprep.subr.mxu0 0.0
    %v3231 = vand.u32 %v594, 4294901760
    %3232 = vmatpush1.msra.mxu0 %v3231
    %3233 = vmatprep.subr.mxu0 0.0
    %v3234 = vand.u32 %v593, 4294901760
    %3235 = vmatpush1.msra.mxu0 %v3234
    %3236 = vmatprep.subr.mxu0 0.0
    %v3237 = vand.u32 %v592, 4294901760
    %3238 = vmatpush1.msra.mxu0 %v3237
    %3239 = vmatprep.subr.mxu0 0.0
    %3240 = vmatpush2.msra.mxu0 0.0
    %3241 = vmatprep.subr.mxu0 0.0
    %3242 = vmatpush2.msra.mxu0 0.0
    %3243 = vmatprep.subr.mxu0 0.0
    %3244 = vmatpush2.msra.mxu0 0.0
    %3245 = vmatprep.subr.mxu0 0.0
    %3246 = vmatpush2.msra.mxu0 0.0
    %3247 = vmatprep.subr.mxu0 0.0
    %3248 = vmatpush2.msra.mxu0 0.0
    %3249 = vmatprep.subr.mxu0 0.0
    %3250 = vmatpush2.msra.mxu0 0.0
    %3251 = vmatprep.subr.mxu0 0.0
    %3252 = vmatpush2.msra.mxu0 0.0
    %3253 = vmatprep.subr.mxu0 0.0
    %3254 = vmatpush2.msra.mxu0 0.0
    %3255 = vmatprep.subr.mxu0 0.0
    %3256 = vmatpush2.msra.mxu0 0.0
    %3257 = vmatprep.subr.mxu0 0.0
    %3258 = vmatpush2.msra.mxu0 0.0
    %3259 = vmatprep.subr.mxu0 0.0
    %3260 = vmatpush2.msra.mxu0 0.0
    %3261 = vmatprep.subr.mxu0 0.0
    %3262 = vmatpush2.msra.mxu0 0.0
    %3263 = vmatprep.subr.mxu0 0.0
    %3264 = vmatpush2.msra.mxu0 0.0
    %3265 = vmatprep.subr.mxu0 0.0
    %3266 = vmatpush2.msra.mxu0 0.0
    %3267 = vmatprep.subr.mxu0 0.0
    %3268 = vmatpush2.msra.mxu0 0.0
    %3269 = vmatprep.subr.mxu0 0.0
    %3270 = vmatpush2.msra.mxu0 0.0
    %3271 = vmatprep.mubr.f32.mxu0 0.0
    %v3272 = vand.u32 %v2791, 4294901760
    %3273 = vmatmul.mubr.f32.gmra.mxu0 %v3272
    %v3274 = vpop.f32.mrf.mxu0
    %v3275 = vadd.f32 %v3200, %v3274
    %v3276 = vpop.f32.mrf.mxu0
    %3277 = vdwg.mxu0
    %v3279 = vrot.slane %v3275, 4
    %v3281 = vadd.f32 %v583, %v3279
    %v3282 = vxor.u32 %v3281, 2147483648
    %v3283 = vmul.f32 %v3282, 1.442695
    %v3284 = vpow.pop %v3283
    %v3285 = vadd.f32 %v3284, 1.0
    %v3286 = vrcp.pop %v3285
    %v3287 = vmul.f32 1.0, %v3286
    %v3288 = vtanh.pop %v3281
    %v3290 = vrot.slane %v2206, 6
    %v3292 = vmul.f32 %v3287, %v3290
    %3294 = vrot.lane.b32.xlu0 %v3288, 64
    %v3295 = vpop.permute.xlu0 %3294
    %v3297 = vmul.f32 %v3287, %v3295
    %3299 = vrot.lane.b32.xlu0 %v3297, 32
    %v3300 = vpop.permute.xlu0 %3299
    %v3302 = vadd.f32 %v3292, %v3300
    %v3303 = vtanh.pop %v3302
    %3305 = vrot.lane.b32.xlu0 %v3303, 64
    %v3306 = vpop.permute.xlu0 %3305
    %v3308 = vmul.f32 %v3287, %v3306
    %3310 = vrot.lane.b32.xlu0 %v3308, 32
    %v3311 = vpop.permute.xlu0 %3310
    %v3314 = vrot.slane %v2787, 4
    %3315 = vrot.lane.b32.xlu0 %v3314, 64
    %v3316 = vpop.permute.xlu0 %3315
    %v3318 = vsel %vm605, %v3311, %v3316
    %v3320 = vrot.slane %v3318, 4
    %v3321 = vsel %vm1130, %v3320, 0
    %3323 = vmatprep.subr.mxu0 0.0
    %3324 = vmatpush1.msra.mxu0 0.0
    %3325 = vmatprep.subr.mxu0 0.0
    %3326 = vmatpush1.msra.mxu0 0.0
    %3327 = vmatprep.subr.mxu0 0.0
    %3328 = vmatpush1.msra.mxu0 0.0
    %3329 = vmatprep.subr.mxu0 0.0
    %3330 = vmatpush1.msra.mxu0 0.0
    %3331 = vmatprep.subr.mxu0 0.0
    %3332 = vmatpush1.msra.mxu0 0.0
    %3333 = vmatprep.subr.mxu0 0.0
    %3334 = vmatpush1.msra.mxu0 0.0
    %3335 = vmatprep.subr.mxu0 0.0
    %3336 = vmatpush1.msra.mxu0 0.0
    %3337 = vmatprep.subr.mxu0 0.0
    %3338 = vmatpush1.msra.mxu0 0.0
    %3339 = vmatprep.subr.mxu0 0.0
    %v3340 = vand.u32 %v603, 4294901760
    %3341 = vmatpush1.msra.mxu0 %v3340
    %3342 = vmatprep.subr.mxu0 0.0
    %v3343 = vand.u32 %v602, 4294901760
    %3344 = vmatpush1.msra.mxu0 %v3343
    %3345 = vmatprep.subr.mxu0 0.0
    %v3346 = vand.u32 %v601, 4294901760
    %3347 = vmatpush1.msra.mxu0 %v3346
    %3348 = vmatprep.subr.mxu0 0.0
    %v3349 = vand.u32 %v600, 4294901760
    %3350 = vmatpush1.msra.mxu0 %v3349
    %3351 = vmatprep.subr.mxu0 0.0
    %v3352 = vand.u32 %v599, 4294901760
    %3353 = vmatpush1.msra.mxu0 %v3352
    %3354 = vmatprep.subr.mxu0 0.0
    %v3355 = vand.u32 %v598, 4294901760
    %3356 = vmatpush1.msra.mxu0 %v3355
    %3357 = vmatprep.subr.mxu0 0.0
    %v3358 = vand.u32 %v597, 4294901760
    %3359 = vmatpush1.msra.mxu0 %v3358
    %3360 = vmatprep.subr.mxu0 0.0
    %v3361 = vand.u32 %v596, 4294901760
    %3362 = vmatpush1.msra.mxu0 %v3361
    %3363 = vmatprep.subr.mxu0 0.0
    %3364 = vmatpush2.msra.mxu0 0.0
    %3365 = vmatprep.subr.mxu0 0.0
    %3366 = vmatpush2.msra.mxu0 0.0
    %3367 = vmatprep.subr.mxu0 0.0
    %3368 = vmatpush2.msra.mxu0 0.0
    %3369 = vmatprep.subr.mxu0 0.0
    %3370 = vmatpush2.msra.mxu0 0.0
    %3371 = vmatprep.subr.mxu0 0.0
    %3372 = vmatpush2.msra.mxu0 0.0
    %3373 = vmatprep.subr.mxu0 0.0
    %3374 = vmatpush2.msra.mxu0 0.0
    %3375 = vmatprep.subr.mxu0 0.0
    %3376 = vmatpush2.msra.mxu0 0.0
    %3377 = vmatprep.subr.mxu0 0.0
    %3378 = vmatpush2.msra.mxu0 0.0
    %3379 = vmatprep.subr.mxu0 0.0
    %3380 = vmatpush2.msra.mxu0 0.0
    %3381 = vmatprep.subr.mxu0 0.0
    %3382 = vmatpush2.msra.mxu0 0.0
    %3383 = vmatprep.subr.mxu0 0.0
    %3384 = vmatpush2.msra.mxu0 0.0
    %3385 = vmatprep.subr.mxu0 0.0
    %3386 = vmatpush2.msra.mxu0 0.0
    %3387 = vmatprep.subr.mxu0 0.0
    %3388 = vmatpush2.msra.mxu0 0.0
    %3389 = vmatprep.subr.mxu0 0.0
    %3390 = vmatpush2.msra.mxu0 0.0
    %3391 = vmatprep.subr.mxu0 0.0
    %3392 = vmatpush2.msra.mxu0 0.0
    %3393 = vmatprep.subr.mxu0 0.0
    %3394 = vmatpush2.msra.mxu0 0.0
    %3395 = vmatprep.mubr.f32.mxu0 0.0
    %v3396 = vand.u32 %v3321, 4294901760
    %v3397 = vsub.f32 %v3321, %v3396
    %v3398 = vand.u32 %v3397, 4294901760
    %v3399 = vsub.f32 %v3397, %v3398
    %v3400 = vand.u32 %v3399, 4294901760
    %3401 = vmatmul.mubr.f32.gmra.mxu0 %v3400
    %v3402 = vpop.f32.mrf.mxu0
    %v3403 = vadd.f32 %v1128, %v3402
    %v3404 = vpop.f32.mrf.mxu0
    %3405 = vdwg.mxu0
    %3406 = vmatprep.subr.mxu0 0.0
    %3407 = vmatpush1.msra.mxu0 0.0
    %3408 = vmatprep.subr.mxu0 0.0
    %3409 = vmatpush1.msra.mxu0 0.0
    %3410 = vmatprep.subr.mxu0 0.0
    %3411 = vmatpush1.msra.mxu0 0.0
    %3412 = vmatprep.subr.mxu0 0.0
    %3413 = vmatpush1.msra.mxu0 0.0
    %3414 = vmatprep.subr.mxu0 0.0
    %3415 = vmatpush1.msra.mxu0 0.0
    %3416 = vmatprep.subr.mxu0 0.0
    %3417 = vmatpush1.msra.mxu0 0.0
    %3418 = vmatprep.subr.mxu0 0.0
    %3419 = vmatpush1.msra.mxu0 0.0
    %3420 = vmatprep.subr.mxu0 0.0
    %3421 = vmatpush1.msra.mxu0 0.0
    %3422 = vmatprep.subr.mxu0 0.0
    %v3423 = vand.u32 %v603, 4294901760
    %v3424 = vsub.f32 %v603, %v3423
    %v3425 = vand.u32 %v3424, 4294901760
    %v3426 = vsub.f32 %v3424, %v3425
    %v3427 = vand.u32 %v3426, 4294901760
    %3428 = vmatpush1.msra.mxu0 %v3427
    %3429 = vmatprep.subr.mxu0 0.0
    %v3430 = vand.u32 %v602, 4294901760
    %v3431 = vsub.f32 %v602, %v3430
    %v3432 = vand.u32 %v3431, 4294901760
    %v3433 = vsub.f32 %v3431, %v3432
    %v3434 = vand.u32 %v3433, 4294901760
    %3435 = vmatpush1.msra.mxu0 %v3434
    %3436 = vmatprep.subr.mxu0 0.0
    %v3437 = vand.u32 %v601, 4294901760
    %v3438 = vsub.f32 %v601, %v3437
    %v3439 = vand.u32 %v3438, 4294901760
    %v3440 = vsub.f32 %v3438, %v3439
    %v3441 = vand.u32 %v3440, 4294901760
    %3442 = vmatpush1.msra.mxu0 %v3441
    %3443 = vmatprep.subr.mxu0 0.0
    %v3444 = vand.u32 %v600, 4294901760
    %v3445 = vsub.f32 %v600, %v3444
    %v3446 = vand.u32 %v3445, 4294901760
    %v3447 = vsub.f32 %v3445, %v3446
    %v3448 = vand.u32 %v3447, 4294901760
    %3449 = vmatpush1.msra.mxu0 %v3448
    %3450 = vmatprep.subr.mxu0 0.0
    %v3451 = vand.u32 %v599, 4294901760
    %v3452 = vsub.f32 %v599, %v3451
    %v3453 = vand.u32 %v3452, 4294901760
    %v3454 = vsub.f32 %v3452, %v3453
    %v3455 = vand.u32 %v3454, 4294901760
    %3456 = vmatpush1.msra.mxu0 %v3455
    %3457 = vmatprep.subr.mxu0 0.0
    %v3458 = vand.u32 %v598, 4294901760
    %v3459 = vsub.f32 %v598, %v3458
    %v3460 = vand.u32 %v3459, 4294901760
    %v3461 = vsub.f32 %v3459, %v3460
    %v3462 = vand.u32 %v3461, 4294901760
    %3463 = vmatpush1.msra.mxu0 %v3462
    %3464 = vmatprep.subr.mxu0 0.0
    %v3465 = vand.u32 %v597, 4294901760
    %v3466 = vsub.f32 %v597, %v3465
    %v3467 = vand.u32 %v3466, 4294901760
    %v3468 = vsub.f32 %v3466, %v3467
    %v3469 = vand.u32 %v3468, 4294901760
    %3470 = vmatpush1.msra.mxu0 %v3469
    %3471 = vmatprep.subr.mxu0 0.0
    %v3472 = vand.u32 %v596, 4294901760
    %v3473 = vsub.f32 %v596, %v3472
    %v3474 = vand.u32 %v3473, 4294901760
    %v3475 = vsub.f32 %v3473, %v3474
    %v3476 = vand.u32 %v3475, 4294901760
    %3477 = vmatpush1.msra.mxu0 %v3476
    %3478 = vmatprep.subr.mxu0 0.0
    %3479 = vmatpush2.msra.mxu0 0.0
    %3480 = vmatprep.subr.mxu0 0.0
    %3481 = vmatpush2.msra.mxu0 0.0
    %3482 = vmatprep.subr.mxu0 0.0
    %3483 = vmatpush2.msra.mxu0 0.0
    %3484 = vmatprep.subr.mxu0 0.0
    %3485 = vmatpush2.msra.mxu0 0.0
    %3486 = vmatprep.subr.mxu0 0.0
    %3487 = vmatpush2.msra.mxu0 0.0
    %3488 = vmatprep.subr.mxu0 0.0
    %3489 = vmatpush2.msra.mxu0 0.0
    %3490 = vmatprep.subr.mxu0 0.0
    %3491 = vmatpush2.msra.mxu0 0.0
    %3492 = vmatprep.subr.mxu0 0.0
    %3493 = vmatpush2.msra.mxu0 0.0
    %3494 = vmatprep.subr.mxu0 0.0
    %3495 = vmatpush2.msra.mxu0 0.0
    %3496 = vmatprep.subr.mxu0 0.0
    %3497 = vmatpush2.msra.mxu0 0.0
    %3498 = vmatprep.subr.mxu0 0.0
    %3499 = vmatpush2.msra.mxu0 0.0
    %3500 = vmatprep.subr.mxu0 0.0
    %3501 = vmatpush2.msra.mxu0 0.0
    %3502 = vmatprep.subr.mxu0 0.0
    %3503 = vmatpush2.msra.mxu0 0.0
    %3504 = vmatprep.subr.mxu0 0.0
    %3505 = vmatpush2.msra.mxu0 0.0
    %3506 = vmatprep.subr.mxu0 0.0
    %3507 = vmatpush2.msra.mxu0 0.0
    %3508 = vmatprep.subr.mxu0 0.0
    %3509 = vmatpush2.msra.mxu0 0.0
    %3510 = vmatprep.mubr.f32.mxu0 0.0
    %v3511 = vand.u32 %v3321, 4294901760
    %3512 = vmatmul.mubr.f32.gmra.mxu0 %v3511
    %v3513 = vpop.f32.mrf.mxu0
    %v3514 = vadd.f32 %v3403, %v3513
    %v3515 = vpop.f32.mrf.mxu0
    %3516 = vdwg.mxu0
    %3517 = vmatprep.subr.mxu0 0.0
    %3518 = vmatpush1.msra.mxu0 0.0
    %3519 = vmatprep.subr.mxu0 0.0
    %3520 = vmatpush1.msra.mxu0 0.0
    %3521 = vmatprep.subr.mxu0 0.0
    %3522 = vmatpush1.msra.mxu0 0.0
    %3523 = vmatprep.subr.mxu0 0.0
    %3524 = vmatpush1.msra.mxu0 0.0
    %3525 = vmatprep.subr.mxu0 0.0
    %3526 = vmatpush1.msra.mxu0 0.0
    %3527 = vmatprep.subr.mxu0 0.0
    %3528 = vmatpush1.msra.mxu0 0.0
    %3529 = vmatprep.subr.mxu0 0.0
    %3530 = vmatpush1.msra.mxu0 0.0
    %3531 = vmatprep.subr.mxu0 0.0
    %3532 = vmatpush1.msra.mxu0 0.0
    %3533 = vmatprep.subr.mxu0 0.0
    %v3534 = vand.u32 %v603, 4294901760
    %v3535 = vsub.f32 %v603, %v3534
    %3536 = vmatpush1.msra.mxu0 %v3535
    %3537 = vmatprep.subr.mxu0 0.0
    %v3538 = vand.u32 %v602, 4294901760
    %v3539 = vsub.f32 %v602, %v3538
    %3540 = vmatpush1.msra.mxu0 %v3539
    %3541 = vmatprep.subr.mxu0 0.0
    %v3542 = vand.u32 %v601, 4294901760
    %v3543 = vsub.f32 %v601, %v3542
    %3544 = vmatpush1.msra.mxu0 %v3543
    %3545 = vmatprep.subr.mxu0 0.0
    %v3546 = vand.u32 %v600, 4294901760
    %v3547 = vsub.f32 %v600, %v3546
    %3548 = vmatpush1.msra.mxu0 %v3547
    %3549 = vmatprep.subr.mxu0 0.0
    %v3550 = vand.u32 %v599, 4294901760
    %v3551 = vsub.f32 %v599, %v3550
    %3552 = vmatpush1.msra.mxu0 %v3551
    %3553 = vmatprep.subr.mxu0 0.0
    %v3554 = vand.u32 %v598, 4294901760
    %v3555 = vsub.f32 %v598, %v3554
    %3556 = vmatpush1.msra.mxu0 %v3555
    %3557 = vmatprep.subr.mxu0 0.0
    %v3558 = vand.u32 %v597, 4294901760
    %v3559 = vsub.f32 %v597, %v3558
    %3560 = vmatpush1.msra.mxu0 %v3559
    %3561 = vmatprep.subr.mxu0 0.0
    %v3562 = vand.u32 %v596, 4294901760
    %v3563 = vsub.f32 %v596, %v3562
    %3564 = vmatpush1.msra.mxu0 %v3563
    %3565 = vmatprep.subr.mxu0 0.0
    %3566 = vmatpush2.msra.mxu0 0.0
    %3567 = vmatprep.subr.mxu0 0.0
    %3568 = vmatpush2.msra.mxu0 0.0
    %3569 = vmatprep.subr.mxu0 0.0
    %3570 = vmatpush2.msra.mxu0 0.0
    %3571 = vmatprep.subr.mxu0 0.0
    %3572 = vmatpush2.msra.mxu0 0.0
    %3573 = vmatprep.subr.mxu0 0.0
    %3574 = vmatpush2.msra.mxu0 0.0
    %3575 = vmatprep.subr.mxu0 0.0
    %3576 = vmatpush2.msra.mxu0 0.0
    %3577 = vmatprep.subr.mxu0 0.0
    %3578 = vmatpush2.msra.mxu0 0.0
    %3579 = vmatprep.subr.mxu0 0.0
    %3580 = vmatpush2.msra.mxu0 0.0
    %3581 = vmatprep.subr.mxu0 0.0
    %3582 = vmatpush2.msra.mxu0 0.0
    %3583 = vmatprep.subr.mxu0 0.0
    %3584 = vmatpush2.msra.mxu0 0.0
    %3585 = vmatprep.subr.mxu0 0.0
    %3586 = vmatpush2.msra.mxu0 0.0
    %3587 = vmatprep.subr.mxu0 0.0
    %3588 = vmatpush2.msra.mxu0 0.0
    %3589 = vmatprep.subr.mxu0 0.0
    %3590 = vmatpush2.msra.mxu0 0.0
    %3591 = vmatprep.subr.mxu0 0.0
    %3592 = vmatpush2.msra.mxu0 0.0
    %3593 = vmatprep.subr.mxu0 0.0
    %3594 = vmatpush2.msra.mxu0 0.0
    %3595 = vmatprep.subr.mxu0 0.0
    %3596 = vmatpush2.msra.mxu0 0.0
    %3597 = vmatprep.mubr.f32.mxu0 0.0
    %v3598 = vand.u32 %v3321, 4294901760
    %v3599 = vsub.f32 %v3321, %v3598
    %3600 = vmatmul.mubr.f32.gmra.mxu0 %v3599
    %v3601 = vpop.f32.mrf.mxu0
    %v3602 = vadd.f32 %v3514, %v3601
    %v3603 = vpop.f32.mrf.mxu0
    %3604 = vdwg.mxu0
    %3605 = vmatprep.subr.mxu0 0.0
    %3606 = vmatpush1.msra.mxu0 0.0
    %3607 = vmatprep.subr.mxu0 0.0
    %3608 = vmatpush1.msra.mxu0 0.0
    %3609 = vmatprep.subr.mxu0 0.0
    %3610 = vmatpush1.msra.mxu0 0.0
    %3611 = vmatprep.subr.mxu0 0.0
    %3612 = vmatpush1.msra.mxu0 0.0
    %3613 = vmatprep.subr.mxu0 0.0
    %3614 = vmatpush1.msra.mxu0 0.0
    %3615 = vmatprep.subr.mxu0 0.0
    %3616 = vmatpush1.msra.mxu0 0.0
    %3617 = vmatprep.subr.mxu0 0.0
    %3618 = vmatpush1.msra.mxu0 0.0
    %3619 = vmatprep.subr.mxu0 0.0
    %3620 = vmatpush1.msra.mxu0 0.0
    %3621 = vmatprep.subr.mxu0 0.0
    %v3622 = vand.u32 %v603, 4294901760
    %3623 = vmatpush1.msra.mxu0 %v3622
    %3624 = vmatprep.subr.mxu0 0.0
    %v3625 = vand.u32 %v602, 4294901760
    %3626 = vmatpush1.msra.mxu0 %v3625
    %3627 = vmatprep.subr.mxu0 0.0
    %v3628 = vand.u32 %v601, 4294901760
    %3629 = vmatpush1.msra.mxu0 %v3628
    %3630 = vmatprep.subr.mxu0 0.0
    %v3631 = vand.u32 %v600, 4294901760
    %3632 = vmatpush1.msra.mxu0 %v3631
    %3633 = vmatprep.subr.mxu0 0.0
    %v3634 = vand.u32 %v599, 4294901760
    %3635 = vmatpush1.msra.mxu0 %v3634
    %3636 = vmatprep.subr.mxu0 0.0
    %v3637 = vand.u32 %v598, 4294901760
    %3638 = vmatpush1.msra.mxu0 %v3637
    %3639 = vmatprep.subr.mxu0 0.0
    %v3640 = vand.u32 %v597, 4294901760
    %3641 = vmatpush1.msra.mxu0 %v3640
    %3642 = vmatprep.subr.mxu0 0.0
    %v3643 = vand.u32 %v596, 4294901760
    %3644 = vmatpush1.msra.mxu0 %v3643
    %3645 = vmatprep.subr.mxu0 0.0
    %3646 = vmatpush2.msra.mxu0 0.0
    %3647 = vmatprep.subr.mxu0 0.0
    %3648 = vmatpush2.msra.mxu0 0.0
    %3649 = vmatprep.subr.mxu0 0.0
    %3650 = vmatpush2.msra.mxu0 0.0
    %3651 = vmatprep.subr.mxu0 0.0
    %3652 = vmatpush2.msra.mxu0 0.0
    %3653 = vmatprep.subr.mxu0 0.0
    %3654 = vmatpush2.msra.mxu0 0.0
    %3655 = vmatprep.subr.mxu0 0.0
    %3656 = vmatpush2.msra.mxu0 0.0
    %3657 = vmatprep.subr.mxu0 0.0
    %3658 = vmatpush2.msra.mxu0 0.0
    %3659 = vmatprep.subr.mxu0 0.0
    %3660 = vmatpush2.msra.mxu0 0.0
    %3661 = vmatprep.subr.mxu0 0.0
    %3662 = vmatpush2.msra.mxu0 0.0
    %3663 = vmatprep.subr.mxu0 0.0
    %3664 = vmatpush2.msra.mxu0 0.0
    %3665 = vmatprep.subr.mxu0 0.0
    %3666 = vmatpush2.msra.mxu0 0.0
    %3667 = vmatprep.subr.mxu0 0.0
    %3668 = vmatpush2.msra.mxu0 0.0
    %3669 = vmatprep.subr.mxu0 0.0
    %3670 = vmatpush2.msra.mxu0 0.0
    %3671 = vmatprep.subr.mxu0 0.0
    %3672 = vmatpush2.msra.mxu0 0.0
    %3673 = vmatprep.subr.mxu0 0.0
    %3674 = vmatpush2.msra.mxu0 0.0
    %3675 = vmatprep.subr.mxu0 0.0
    %3676 = vmatpush2.msra.mxu0 0.0
    %3677 = vmatprep.mubr.f32.mxu0 0.0
    %v3678 = vand.u32 %v3321, 4294901760
    %v3679 = vsub.f32 %v3321, %v3678
    %v3680 = vand.u32 %v3679, 4294901760
    %3681 = vmatmul.mubr.f32.gmra.mxu0 %v3680
    %v3682 = vpop.f32.mrf.mxu0
    %v3683 = vadd.f32 %v3602, %v3682
    %v3684 = vpop.f32.mrf.mxu0
    %3685 = vdwg.mxu0
    %3686 = vmatprep.subr.mxu0 0.0
    %3687 = vmatpush1.msra.mxu0 0.0
    %3688 = vmatprep.subr.mxu0 0.0
    %3689 = vmatpush1.msra.mxu0 0.0
    %3690 = vmatprep.subr.mxu0 0.0
    %3691 = vmatpush1.msra.mxu0 0.0
    %3692 = vmatprep.subr.mxu0 0.0
    %3693 = vmatpush1.msra.mxu0 0.0
    %3694 = vmatprep.subr.mxu0 0.0
    %3695 = vmatpush1.msra.mxu0 0.0
    %3696 = vmatprep.subr.mxu0 0.0
    %3697 = vmatpush1.msra.mxu0 0.0
    %3698 = vmatprep.subr.mxu0 0.0
    %3699 = vmatpush1.msra.mxu0 0.0
    %3700 = vmatprep.subr.mxu0 0.0
    %3701 = vmatpush1.msra.mxu0 0.0
    %3702 = vmatprep.subr.mxu0 0.0
    %v3703 = vand.u32 %v603, 4294901760
    %v3704 = vsub.f32 %v603, %v3703
    %v3705 = vand.u32 %v3704, 4294901760
    %3706 = vmatpush1.msra.mxu0 %v3705
    %3707 = vmatprep.subr.mxu0 0.0
    %v3708 = vand.u32 %v602, 4294901760
    %v3709 = vsub.f32 %v602, %v3708
    %v3710 = vand.u32 %v3709, 4294901760
    %3711 = vmatpush1.msra.mxu0 %v3710
    %3712 = vmatprep.subr.mxu0 0.0
    %v3713 = vand.u32 %v601, 4294901760
    %v3714 = vsub.f32 %v601, %v3713
    %v3715 = vand.u32 %v3714, 4294901760
    %3716 = vmatpush1.msra.mxu0 %v3715
    %3717 = vmatprep.subr.mxu0 0.0
    %v3718 = vand.u32 %v600, 4294901760
    %v3719 = vsub.f32 %v600, %v3718
    %v3720 = vand.u32 %v3719, 4294901760
    %3721 = vmatpush1.msra.mxu0 %v3720
    %3722 = vmatprep.subr.mxu0 0.0
    %v3723 = vand.u32 %v599, 4294901760
    %v3724 = vsub.f32 %v599, %v3723
    %v3725 = vand.u32 %v3724, 4294901760
    %3726 = vmatpush1.msra.mxu0 %v3725
    %3727 = vmatprep.subr.mxu0 0.0
    %v3728 = vand.u32 %v598, 4294901760
    %v3729 = vsub.f32 %v598, %v3728
    %v3730 = vand.u32 %v3729, 4294901760
    %3731 = vmatpush1.msra.mxu0 %v3730
    %3732 = vmatprep.subr.mxu0 0.0
    %v3733 = vand.u32 %v597, 4294901760
    %v3734 = vsub.f32 %v597, %v3733
    %v3735 = vand.u32 %v3734, 4294901760
    %3736 = vmatpush1.msra.mxu0 %v3735
    %3737 = vmatprep.subr.mxu0 0.0
    %v3738 = vand.u32 %v596, 4294901760
    %v3739 = vsub.f32 %v596, %v3738
    %v3740 = vand.u32 %v3739, 4294901760
    %3741 = vmatpush1.msra.mxu0 %v3740
    %3742 = vmatprep.subr.mxu0 0.0
    %3743 = vmatpush2.msra.mxu0 0.0
    %3744 = vmatprep.subr.mxu0 0.0
    %3745 = vmatpush2.msra.mxu0 0.0
    %3746 = vmatprep.subr.mxu0 0.0
    %3747 = vmatpush2.msra.mxu0 0.0
    %3748 = vmatprep.subr.mxu0 0.0
    %3749 = vmatpush2.msra.mxu0 0.0
    %3750 = vmatprep.subr.mxu0 0.0
    %3751 = vmatpush2.msra.mxu0 0.0
    %3752 = vmatprep.subr.mxu0 0.0
    %3753 = vmatpush2.msra.mxu0 0.0
    %3754 = vmatprep.subr.mxu0 0.0
    %3755 = vmatpush2.msra.mxu0 0.0
    %3756 = vmatprep.subr.mxu0 0.0
    %3757 = vmatpush2.msra.mxu0 0.0
    %3758 = vmatprep.subr.mxu0 0.0
    %3759 = vmatpush2.msra.mxu0 0.0
    %3760 = vmatprep.subr.mxu0 0.0
    %3761 = vmatpush2.msra.mxu0 0.0
    %3762 = vmatprep.subr.mxu0 0.0
    %3763 = vmatpush2.msra.mxu0 0.0
    %3764 = vmatprep.subr.mxu0 0.0
    %3765 = vmatpush2.msra.mxu0 0.0
    %3766 = vmatprep.subr.mxu0 0.0
    %3767 = vmatpush2.msra.mxu0 0.0
    %3768 = vmatprep.subr.mxu0 0.0
    %3769 = vmatpush2.msra.mxu0 0.0
    %3770 = vmatprep.subr.mxu0 0.0
    %3771 = vmatpush2.msra.mxu0 0.0
    %3772 = vmatprep.subr.mxu0 0.0
    %3773 = vmatpush2.msra.mxu0 0.0
    %3774 = vmatprep.mubr.f32.mxu0 0.0
    %v3775 = vand.u32 %v3321, 4294901760
    %3776 = vmatmul.mubr.f32.gmra.mxu0 %v3775
    %v3777 = vpop.f32.mrf.mxu0
    %v3778 = vadd.f32 %v3683, %v3777
    %v3779 = vpop.f32.mrf.mxu0
    %3780 = vdwg.mxu0
    %3781 = vmatprep.subr.mxu0 0.0
    %3782 = vmatpush1.msra.mxu0 0.0
    %3783 = vmatprep.subr.mxu0 0.0
    %3784 = vmatpush1.msra.mxu0 0.0
    %3785 = vmatprep.subr.mxu0 0.0
    %3786 = vmatpush1.msra.mxu0 0.0
    %3787 = vmatprep.subr.mxu0 0.0
    %3788 = vmatpush1.msra.mxu0 0.0
    %3789 = vmatprep.subr.mxu0 0.0
    %3790 = vmatpush1.msra.mxu0 0.0
    %3791 = vmatprep.subr.mxu0 0.0
    %3792 = vmatpush1.msra.mxu0 0.0
    %3793 = vmatprep.subr.mxu0 0.0
    %3794 = vmatpush1.msra.mxu0 0.0
    %3795 = vmatprep.subr.mxu0 0.0
    %3796 = vmatpush1.msra.mxu0 0.0
    %3797 = vmatprep.subr.mxu0 0.0
    %v3798 = vand.u32 %v603, 4294901760
    %3799 = vmatpush1.msra.mxu0 %v3798
    %3800 = vmatprep.subr.mxu0 0.0
    %v3801 = vand.u32 %v602, 4294901760
    %3802 = vmatpush1.msra.mxu0 %v3801
    %3803 = vmatprep.subr.mxu0 0.0
    %v3804 = vand.u32 %v601, 4294901760
    %3805 = vmatpush1.msra.mxu0 %v3804
    %3806 = vmatprep.subr.mxu0 0.0
    %v3807 = vand.u32 %v600, 4294901760
    %3808 = vmatpush1.msra.mxu0 %v3807
    %3809 = vmatprep.subr.mxu0 0.0
    %v3810 = vand.u32 %v599, 4294901760
    %3811 = vmatpush1.msra.mxu0 %v3810
    %3812 = vmatprep.subr.mxu0 0.0
    %v3813 = vand.u32 %v598, 4294901760
    %3814 = vmatpush1.msra.mxu0 %v3813
    %3815 = vmatprep.subr.mxu0 0.0
    %v3816 = vand.u32 %v597, 4294901760
    %3817 = vmatpush1.msra.mxu0 %v3816
    %3818 = vmatprep.subr.mxu0 0.0
    %v3819 = vand.u32 %v596, 4294901760
    %3820 = vmatpush1.msra.mxu0 %v3819
    %3821 = vmatprep.subr.mxu0 0.0
    %3822 = vmatpush2.msra.mxu0 0.0
    %3823 = vmatprep.subr.mxu0 0.0
    %3824 = vmatpush2.msra.mxu0 0.0
    %3825 = vmatprep.subr.mxu0 0.0
    %3826 = vmatpush2.msra.mxu0 0.0
    %3827 = vmatprep.subr.mxu0 0.0
    %3828 = vmatpush2.msra.mxu0 0.0
    %3829 = vmatprep.subr.mxu0 0.0
    %3830 = vmatpush2.msra.mxu0 0.0
    %3831 = vmatprep.subr.mxu0 0.0
    %3832 = vmatpush2.msra.mxu0 0.0
    %3833 = vmatprep.subr.mxu0 0.0
    %3834 = vmatpush2.msra.mxu0 0.0
    %3835 = vmatprep.subr.mxu0 0.0
    %3836 = vmatpush2.msra.mxu0 0.0
    %3837 = vmatprep.subr.mxu0 0.0
    %3838 = vmatpush2.msra.mxu0 0.0
    %3839 = vmatprep.subr.mxu0 0.0
    %3840 = vmatpush2.msra.mxu0 0.0
    %3841 = vmatprep.subr.mxu0 0.0
    %3842 = vmatpush2.msra.mxu0 0.0
    %3843 = vmatprep.subr.mxu0 0.0
    %3844 = vmatpush2.msra.mxu0 0.0
    %3845 = vmatprep.subr.mxu0 0.0
    %3846 = vmatpush2.msra.mxu0 0.0
    %3847 = vmatprep.subr.mxu0 0.0
    %3848 = vmatpush2.msra.mxu0 0.0
    %3849 = vmatprep.subr.mxu0 0.0
    %3850 = vmatpush2.msra.mxu0 0.0
    %3851 = vmatprep.subr.mxu0 0.0
    %3852 = vmatpush2.msra.mxu0 0.0
    %3853 = vmatprep.mubr.f32.mxu0 0.0
    %v3854 = vand.u32 %v3321, 4294901760
    %3855 = vmatmul.mubr.f32.gmra.mxu0 %v3854
    %v3856 = vpop.f32.mrf.mxu0
    %v3857 = vadd.f32 %v3778, %v3856
    %v3858 = vpop.f32.mrf.mxu0
    %3859 = vdwg.mxu0
    %v3860 = vxor.u32 %v3857, 2147483648
    %v3861 = vmul.f32 %v3860, 1.442695
    %v3862 = vpow.pop %v3861
    %v3863 = vadd.f32 %v3862, 1.0
    %v3864 = vrcp.pop %v3863
    %v3865 = vmul.f32 1.0, %v3864
    %v3866 = vtanh.pop %v3857
    %v3867 = vmul.f32 %v3865, %v2781
    %3869 = vrot.lane.b32.xlu0 %v3866, 64
    %v3870 = vpop.permute.xlu0 %3869
    %v3872 = vmul.f32 %v3865, %v3870
    %3874 = vrot.lane.b32.xlu0 %v3872, 32
    %v3875 = vpop.permute.xlu0 %3874
    %v3877 = vadd.f32 %v3867, %v3875
    %v3878 = vtanh.pop %v3877
    %3880 = vrot.lane.b32.xlu0 %v3878, 64
    %v3881 = vpop.permute.xlu0 %3880
    %v3883 = vmul.f32 %v3865, %v3881
    %v3884 = vrot.slane %v3308, 4
    %3885 = vrot.lane.b32.xlu0 %v3884, 32
    %v3886 = vpop.permute.xlu0 %3885
    %v3887 = vsel %vm605, %v3886, 0
    %3889 = vmatprep.subr.mxu0 0.0
    %3890 = vmatpush1.msra.mxu0 0.0
    %3891 = vmatprep.subr.mxu0 0.0
    %3892 = vmatpush1.msra.mxu0 0.0
    %3893 = vmatprep.subr.mxu0 0.0
    %3894 = vmatpush1.msra.mxu0 0.0
    %3895 = vmatprep.subr.mxu0 0.0
    %3896 = vmatpush1.msra.mxu0 0.0
    %3897 = vmatprep.subr.mxu0 0.0
    %3898 = vmatpush1.msra.mxu0 0.0
    %3899 = vmatprep.subr.mxu0 0.0
    %3900 = vmatpush1.msra.mxu0 0.0
    %3901 = vmatprep.subr.mxu0 0.0
    %3902 = vmatpush1.msra.mxu0 0.0
    %3903 = vmatprep.subr.mxu0 0.0
    %3904 = vmatpush1.msra.mxu0 0.0
    %3905 = vmatprep.subr.mxu0 0.0
    %3906 = vmatpush1.msra.mxu0 0.0
    %3907 = vmatprep.subr.mxu0 0.0
    %3908 = vmatpush1.msra.mxu0 0.0
    %3909 = vmatprep.subr.mxu0 0.0
    %3910 = vmatpush1.msra.mxu0 0.0
    %3911 = vmatprep.subr.mxu0 0.0
    %3912 = vmatpush1.msra.mxu0 0.0
    %3913 = vmatprep.subr.mxu0 0.0
    %v3914 = vand.u32 %v595, 4294901760
    %3915 = vmatpush1.msra.mxu0 %v3914
    %3916 = vmatprep.subr.mxu0 0.0
    %v3917 = vand.u32 %v594, 4294901760
    %3918 = vmatpush1.msra.mxu0 %v3917
    %3919 = vmatprep.subr.mxu0 0.0
    %v3920 = vand.u32 %v593, 4294901760
    %3921 = vmatpush1.msra.mxu0 %v3920
    %3922 = vmatprep.subr.mxu0 0.0
    %v3923 = vand.u32 %v592, 4294901760
    %3924 = vmatpush1.msra.mxu0 %v3923
    %3925 = vmatprep.subr.mxu0 0.0
    %3926 = vmatpush2.msra.mxu0 0.0
    %3927 = vmatprep.subr.mxu0 0.0
    %3928 = vmatpush2.msra.mxu0 0.0
    %3929 = vmatprep.subr.mxu0 0.0
    %3930 = vmatpush2.msra.mxu0 0.0
    %3931 = vmatprep.subr.mxu0 0.0
    %3932 = vmatpush2.msra.mxu0 0.0
    %3933 = vmatprep.subr.mxu0 0.0
    %3934 = vmatpush2.msra.mxu0 0.0
    %3935 = vmatprep.subr.mxu0 0.0
    %3936 = vmatpush2.msra.mxu0 0.0
    %3937 = vmatprep.subr.mxu0 0.0
    %3938 = vmatpush2.msra.mxu0 0.0
    %3939 = vmatprep.subr.mxu0 0.0
    %3940 = vmatpush2.msra.mxu0 0.0
    %3941 = vmatprep.subr.mxu0 0.0
    %3942 = vmatpush2.msra.mxu0 0.0
    %3943 = vmatprep.subr.mxu0 0.0
    %3944 = vmatpush2.msra.mxu0 0.0
    %3945 = vmatprep.subr.mxu0 0.0
    %3946 = vmatpush2.msra.mxu0 0.0
    %3947 = vmatprep.subr.mxu0 0.0
    %3948 = vmatpush2.msra.mxu0 0.0
    %3949 = vmatprep.subr.mxu0 0.0
    %3950 = vmatpush2.msra.mxu0 0.0
    %3951 = vmatprep.subr.mxu0 0.0
    %3952 = vmatpush2.msra.mxu0 0.0
    %3953 = vmatprep.subr.mxu0 0.0
    %3954 = vmatpush2.msra.mxu0 0.0
    %3955 = vmatprep.subr.mxu0 0.0
    %3956 = vmatpush2.msra.mxu0 0.0
    %3957 = vmatprep.mubr.f32.mxu0 0.0
    %v3958 = vand.u32 %v3887, 4294901760
    %v3959 = vsub.f32 %v3887, %v3958
    %v3960 = vand.u32 %v3959, 4294901760
    %v3961 = vsub.f32 %v3959, %v3960
    %v3962 = vand.u32 %v3961, 4294901760
    %3963 = vmatmul.mubr.f32.gmra.mxu0 %v3962
    %v3964 = vpop.f32.mrf.mxu0
    %v3965 = vadd.f32 0.0, %v3964
    %v3966 = vpop.f32.mrf.mxu0
    %3967 = vdwg.mxu0
    %3968 = vmatprep.subr.mxu0 0.0
    %3969 = vmatpush1.msra.mxu0 0.0
    %3970 = vmatprep.subr.mxu0 0.0
    %3971 = vmatpush1.msra.mxu0 0.0
    %3972 = vmatprep.subr.mxu0 0.0
    %3973 = vmatpush1.msra.mxu0 0.0
    %3974 = vmatprep.subr.mxu0 0.0
    %3975 = vmatpush1.msra.mxu0 0.0
    %3976 = vmatprep.subr.mxu0 0.0
    %3977 = vmatpush1.msra.mxu0 0.0
    %3978 = vmatprep.subr.mxu0 0.0
    %3979 = vmatpush1.msra.mxu0 0.0
    %3980 = vmatprep.subr.mxu0 0.0
    %3981 = vmatpush1.msra.mxu0 0.0
    %3982 = vmatprep.subr.mxu0 0.0
    %3983 = vmatpush1.msra.mxu0 0.0
    %3984 = vmatprep.subr.mxu0 0.0
    %3985 = vmatpush1.msra.mxu0 0.0
    %3986 = vmatprep.subr.mxu0 0.0
    %3987 = vmatpush1.msra.mxu0 0.0
    %3988 = vmatprep.subr.mxu0 0.0
    %3989 = vmatpush1.msra.mxu0 0.0
    %3990 = vmatprep.subr.mxu0 0.0
    %3991 = vmatpush1.msra.mxu0 0.0
    %3992 = vmatprep.subr.mxu0 0.0
    %v3993 = vand.u32 %v595, 4294901760
    %v3994 = vsub.f32 %v595, %v3993
    %v3995 = vand.u32 %v3994, 4294901760
    %v3996 = vsub.f32 %v3994, %v3995
    %v3997 = vand.u32 %v3996, 4294901760
    %3998 = vmatpush1.msra.mxu0 %v3997
    %3999 = vmatprep.subr.mxu0 0.0
    %v4000 = vand.u32 %v594, 4294901760
    %v4001 = vsub.f32 %v594, %v4000
    %v4002 = vand.u32 %v4001, 4294901760
    %v4003 = vsub.f32 %v4001, %v4002
    %v4004 = vand.u32 %v4003, 4294901760
    %4005 = vmatpush1.msra.mxu0 %v4004
    %4006 = vmatprep.subr.mxu0 0.0
    %v4007 = vand.u32 %v593, 4294901760
    %v4008 = vsub.f32 %v593, %v4007
    %v4009 = vand.u32 %v4008, 4294901760
    %v4010 = vsub.f32 %v4008, %v4009
    %v4011 = vand.u32 %v4010, 4294901760
    %4012 = vmatpush1.msra.mxu0 %v4011
    %4013 = vmatprep.subr.mxu0 0.0
    %v4014 = vand.u32 %v592, 4294901760
    %v4015 = vsub.f32 %v592, %v4014
    %v4016 = vand.u32 %v4015, 4294901760
    %v4017 = vsub.f32 %v4015, %v4016
    %v4018 = vand.u32 %v4017, 4294901760
    %4019 = vmatpush1.msra.mxu0 %v4018
    %4020 = vmatprep.subr.mxu0 0.0
    %4021 = vmatpush2.msra.mxu0 0.0
    %4022 = vmatprep.subr.mxu0 0.0
    %4023 = vmatpush2.msra.mxu0 0.0
    %4024 = vmatprep.subr.mxu0 0.0
    %4025 = vmatpush2.msra.mxu0 0.0
    %4026 = vmatprep.subr.mxu0 0.0
    %4027 = vmatpush2.msra.mxu0 0.0
    %4028 = vmatprep.subr.mxu0 0.0
    %4029 = vmatpush2.msra.mxu0 0.0
    %4030 = vmatprep.subr.mxu0 0.0
    %4031 = vmatpush2.msra.mxu0 0.0
    %4032 = vmatprep.subr.mxu0 0.0
    %4033 = vmatpush2.msra.mxu0 0.0
    %4034 = vmatprep.subr.mxu0 0.0
    %4035 = vmatpush2.msra.mxu0 0.0
    %4036 = vmatprep.subr.mxu0 0.0
    %4037 = vmatpush2.msra.mxu0 0.0
    %4038 = vmatprep.subr.mxu0 0.0
    %4039 = vmatpush2.msra.mxu0 0.0
    %4040 = vmatprep.subr.mxu0 0.0
    %4041 = vmatpush2.msra.mxu0 0.0
    %4042 = vmatprep.subr.mxu0 0.0
    %4043 = vmatpush2.msra.mxu0 0.0
    %4044 = vmatprep.subr.mxu0 0.0
    %4045 = vmatpush2.msra.mxu0 0.0
    %4046 = vmatprep.subr.mxu0 0.0
    %4047 = vmatpush2.msra.mxu0 0.0
    %4048 = vmatprep.subr.mxu0 0.0
    %4049 = vmatpush2.msra.mxu0 0.0
    %4050 = vmatprep.subr.mxu0 0.0
    %4051 = vmatpush2.msra.mxu0 0.0
    %4052 = vmatprep.mubr.f32.mxu0 0.0
    %v4053 = vand.u32 %v3887, 4294901760
    %4054 = vmatmul.mubr.f32.gmra.mxu0 %v4053
    %v4055 = vpop.f32.mrf.mxu0
    %v4056 = vadd.f32 %v3965, %v4055
    %v4057 = vpop.f32.mrf.mxu0
    %4058 = vdwg.mxu0
    %4059 = vmatprep.subr.mxu0 0.0
    %4060 = vmatpush1.msra.mxu0 0.0
    %4061 = vmatprep.subr.mxu0 0.0
    %4062 = vmatpush1.msra.mxu0 0.0
    %4063 = vmatprep.subr.mxu0 0.0
    %4064 = vmatpush1.msra.mxu0 0.0
    %4065 = vmatprep.subr.mxu0 0.0
    %4066 = vmatpush1.msra.mxu0 0.0
    %4067 = vmatprep.subr.mxu0 0.0
    %4068 = vmatpush1.msra.mxu0 0.0
    %4069 = vmatprep.subr.mxu0 0.0
    %4070 = vmatpush1.msra.mxu0 0.0
    %4071 = vmatprep.subr.mxu0 0.0
    %4072 = vmatpush1.msra.mxu0 0.0
    %4073 = vmatprep.subr.mxu0 0.0
    %4074 = vmatpush1.msra.mxu0 0.0
    %4075 = vmatprep.subr.mxu0 0.0
    %4076 = vmatpush1.msra.mxu0 0.0
    %4077 = vmatprep.subr.mxu0 0.0
    %4078 = vmatpush1.msra.mxu0 0.0
    %4079 = vmatprep.subr.mxu0 0.0
    %4080 = vmatpush1.msra.mxu0 0.0
    %4081 = vmatprep.subr.mxu0 0.0
    %4082 = vmatpush1.msra.mxu0 0.0
    %4083 = vmatprep.subr.mxu0 0.0
    %v4084 = vand.u32 %v595, 4294901760
    %v4085 = vsub.f32 %v595, %v4084
    %4086 = vmatpush1.msra.mxu0 %v4085
    %4087 = vmatprep.subr.mxu0 0.0
    %v4088 = vand.u32 %v594, 4294901760
    %v4089 = vsub.f32 %v594, %v4088
    %4090 = vmatpush1.msra.mxu0 %v4089
    %4091 = vmatprep.subr.mxu0 0.0
    %v4092 = vand.u32 %v593, 4294901760
    %v4093 = vsub.f32 %v593, %v4092
    %4094 = vmatpush1.msra.mxu0 %v4093
    %4095 = vmatprep.subr.mxu0 0.0
    %v4096 = vand.u32 %v592, 4294901760
    %v4097 = vsub.f32 %v592, %v4096
    %4098 = vmatpush1.msra.mxu0 %v4097
    %4099 = vmatprep.subr.mxu0 0.0
    %4100 = vmatpush2.msra.mxu0 0.0
    %4101 = vmatprep.subr.mxu0 0.0
    %4102 = vmatpush2.msra.mxu0 0.0
    %4103 = vmatprep.subr.mxu0 0.0
    %4104 = vmatpush2.msra.mxu0 0.0
    %4105 = vmatprep.subr.mxu0 0.0
    %4106 = vmatpush2.msra.mxu0 0.0
    %4107 = vmatprep.subr.mxu0 0.0
    %4108 = vmatpush2.msra.mxu0 0.0
    %4109 = vmatprep.subr.mxu0 0.0
    %4110 = vmatpush2.msra.mxu0 0.0
    %4111 = vmatprep.subr.mxu0 0.0
    %4112 = vmatpush2.msra.mxu0 0.0
    %4113 = vmatprep.subr.mxu0 0.0
    %4114 = vmatpush2.msra.mxu0 0.0
    %4115 = vmatprep.subr.mxu0 0.0
    %4116 = vmatpush2.msra.mxu0 0.0
    %4117 = vmatprep.subr.mxu0 0.0
    %4118 = vmatpush2.msra.mxu0 0.0
    %4119 = vmatprep.subr.mxu0 0.0
    %4120 = vmatpush2.msra.mxu0 0.0
    %4121 = vmatprep.subr.mxu0 0.0
    %4122 = vmatpush2.msra.mxu0 0.0
    %4123 = vmatprep.subr.mxu0 0.0
    %4124 = vmatpush2.msra.mxu0 0.0
    %4125 = vmatprep.subr.mxu0 0.0
    %4126 = vmatpush2.msra.mxu0 0.0
    %4127 = vmatprep.subr.mxu0 0.0
    %4128 = vmatpush2.msra.mxu0 0.0
    %4129 = vmatprep.subr.mxu0 0.0
    %4130 = vmatpush2.msra.mxu0 0.0
    %4131 = vmatprep.mubr.f32.mxu0 0.0
    %v4132 = vand.u32 %v3887, 4294901760
    %v4133 = vsub.f32 %v3887, %v4132
    %4134 = vmatmul.mubr.f32.gmra.mxu0 %v4133
    %v4135 = vpop.f32.mrf.mxu0
    %v4136 = vadd.f32 %v4056, %v4135
    %v4137 = vpop.f32.mrf.mxu0
    %4138 = vdwg.mxu0
    %4139 = vmatprep.subr.mxu0 0.0
    %4140 = vmatpush1.msra.mxu0 0.0
    %4141 = vmatprep.subr.mxu0 0.0
    %4142 = vmatpush1.msra.mxu0 0.0
    %4143 = vmatprep.subr.mxu0 0.0
    %4144 = vmatpush1.msra.mxu0 0.0
    %4145 = vmatprep.subr.mxu0 0.0
    %4146 = vmatpush1.msra.mxu0 0.0
    %4147 = vmatprep.subr.mxu0 0.0
    %4148 = vmatpush1.msra.mxu0 0.0
    %4149 = vmatprep.subr.mxu0 0.0
    %4150 = vmatpush1.msra.mxu0 0.0
    %4151 = vmatprep.subr.mxu0 0.0
    %4152 = vmatpush1.msra.mxu0 0.0
    %4153 = vmatprep.subr.mxu0 0.0
    %4154 = vmatpush1.msra.mxu0 0.0
    %4155 = vmatprep.subr.mxu0 0.0
    %4156 = vmatpush1.msra.mxu0 0.0
    %4157 = vmatprep.subr.mxu0 0.0
    %4158 = vmatpush1.msra.mxu0 0.0
    %4159 = vmatprep.subr.mxu0 0.0
    %4160 = vmatpush1.msra.mxu0 0.0
    %4161 = vmatprep.subr.mxu0 0.0
    %4162 = vmatpush1.msra.mxu0 0.0
    %4163 = vmatprep.subr.mxu0 0.0
    %v4164 = vand.u32 %v595, 4294901760
    %4165 = vmatpush1.msra.mxu0 %v4164
    %4166 = vmatprep.subr.mxu0 0.0
    %v4167 = vand.u32 %v594, 4294901760
    %4168 = vmatpush1.msra.mxu0 %v4167
    %4169 = vmatprep.subr.mxu0 0.0
    %v4170 = vand.u32 %v593, 4294901760
    %4171 = vmatpush1.msra.mxu0 %v4170
    %4172 = vmatprep.subr.mxu0 0.0
    %v4173 = vand.u32 %v592, 4294901760
    %4174 = vmatpush1.msra.mxu0 %v4173
    %4175 = vmatprep.subr.mxu0 0.0
    %4176 = vmatpush2.msra.mxu0 0.0
    %4177 = vmatprep.subr.mxu0 0.0
    %4178 = vmatpush2.msra.mxu0 0.0
    %4179 = vmatprep.subr.mxu0 0.0
    %4180 = vmatpush2.msra.mxu0 0.0
    %4181 = vmatprep.subr.mxu0 0.0
    %4182 = vmatpush2.msra.mxu0 0.0
    %4183 = vmatprep.subr.mxu0 0.0
    %4184 = vmatpush2.msra.mxu0 0.0
    %4185 = vmatprep.subr.mxu0 0.0
    %4186 = vmatpush2.msra.mxu0 0.0
    %4187 = vmatprep.subr.mxu0 0.0
    %4188 = vmatpush2.msra.mxu0 0.0
    %4189 = vmatprep.subr.mxu0 0.0
    %4190 = vmatpush2.msra.mxu0 0.0
    %4191 = vmatprep.subr.mxu0 0.0
    %4192 = vmatpush2.msra.mxu0 0.0
    %4193 = vmatprep.subr.mxu0 0.0
    %4194 = vmatpush2.msra.mxu0 0.0
    %4195 = vmatprep.subr.mxu0 0.0
    %4196 = vmatpush2.msra.mxu0 0.0
    %4197 = vmatprep.subr.mxu0 0.0
    %4198 = vmatpush2.msra.mxu0 0.0
    %4199 = vmatprep.subr.mxu0 0.0
    %4200 = vmatpush2.msra.mxu0 0.0
    %4201 = vmatprep.subr.mxu0 0.0
    %4202 = vmatpush2.msra.mxu0 0.0
    %4203 = vmatprep.subr.mxu0 0.0
    %4204 = vmatpush2.msra.mxu0 0.0
    %4205 = vmatprep.subr.mxu0 0.0
    %4206 = vmatpush2.msra.mxu0 0.0
    %4207 = vmatprep.mubr.f32.mxu0 0.0
    %v4208 = vand.u32 %v3887, 4294901760
    %v4209 = vsub.f32 %v3887, %v4208
    %v4210 = vand.u32 %v4209, 4294901760
    %4211 = vmatmul.mubr.f32.gmra.mxu0 %v4210
    %v4212 = vpop.f32.mrf.mxu0
    %v4213 = vadd.f32 %v4136, %v4212
    %v4214 = vpop.f32.mrf.mxu0
    %4215 = vdwg.mxu0
    %4216 = vmatprep.subr.mxu0 0.0
    %4217 = vmatpush1.msra.mxu0 0.0
    %4218 = vmatprep.subr.mxu0 0.0
    %4219 = vmatpush1.msra.mxu0 0.0
    %4220 = vmatprep.subr.mxu0 0.0
    %4221 = vmatpush1.msra.mxu0 0.0
    %4222 = vmatprep.subr.mxu0 0.0
    %4223 = vmatpush1.msra.mxu0 0.0
    %4224 = vmatprep.subr.mxu0 0.0
    %4225 = vmatpush1.msra.mxu0 0.0
    %4226 = vmatprep.subr.mxu0 0.0
    %4227 = vmatpush1.msra.mxu0 0.0
    %4228 = vmatprep.subr.mxu0 0.0
    %4229 = vmatpush1.msra.mxu0 0.0
    %4230 = vmatprep.subr.mxu0 0.0
    %4231 = vmatpush1.msra.mxu0 0.0
    %4232 = vmatprep.subr.mxu0 0.0
    %4233 = vmatpush1.msra.mxu0 0.0
    %4234 = vmatprep.subr.mxu0 0.0
    %4235 = vmatpush1.msra.mxu0 0.0
    %4236 = vmatprep.subr.mxu0 0.0
    %4237 = vmatpush1.msra.mxu0 0.0
    %4238 = vmatprep.subr.mxu0 0.0
    %4239 = vmatpush1.msra.mxu0 0.0
    %4240 = vmatprep.subr.mxu0 0.0
    %v4241 = vand.u32 %v595, 4294901760
    %v4242 = vsub.f32 %v595, %v4241
    %v4243 = vand.u32 %v4242, 4294901760
    %4244 = vmatpush1.msra.mxu0 %v4243
    %4245 = vmatprep.subr.mxu0 0.0
    %v4246 = vand.u32 %v594, 4294901760
    %v4247 = vsub.f32 %v594, %v4246
    %v4248 = vand.u32 %v4247, 4294901760
    %4249 = vmatpush1.msra.mxu0 %v4248
    %4250 = vmatprep.subr.mxu0 0.0
    %v4251 = vand.u32 %v593, 4294901760
    %v4252 = vsub.f32 %v593, %v4251
    %v4253 = vand.u32 %v4252, 4294901760
    %4254 = vmatpush1.msra.mxu0 %v4253
    %4255 = vmatprep.subr.mxu0 0.0
    %v4256 = vand.u32 %v592, 4294901760
    %v4257 = vsub.f32 %v592, %v4256
    %v4258 = vand.u32 %v4257, 4294901760
    %4259 = vmatpush1.msra.mxu0 %v4258
    %4260 = vmatprep.subr.mxu0 0.0
    %4261 = vmatpush2.msra.mxu0 0.0
    %4262 = vmatprep.subr.mxu0 0.0
    %4263 = vmatpush2.msra.mxu0 0.0
    %4264 = vmatprep.subr.mxu0 0.0
    %4265 = vmatpush2.msra.mxu0 0.0
    %4266 = vmatprep.subr.mxu0 0.0
    %4267 = vmatpush2.msra.mxu0 0.0
    %4268 = vmatprep.subr.mxu0 0.0
    %4269 = vmatpush2.msra.mxu0 0.0
    %4270 = vmatprep.subr.mxu0 0.0
    %4271 = vmatpush2.msra.mxu0 0.0
    %4272 = vmatprep.subr.mxu0 0.0
    %4273 = vmatpush2.msra.mxu0 0.0
    %4274 = vmatprep.subr.mxu0 0.0
    %4275 = vmatpush2.msra.mxu0 0.0
    %4276 = vmatprep.subr.mxu0 0.0
    %4277 = vmatpush2.msra.mxu0 0.0
    %4278 = vmatprep.subr.mxu0 0.0
    %4279 = vmatpush2.msra.mxu0 0.0
    %4280 = vmatprep.subr.mxu0 0.0
    %4281 = vmatpush2.msra.mxu0 0.0
    %4282 = vmatprep.subr.mxu0 0.0
    %4283 = vmatpush2.msra.mxu0 0.0
    %4284 = vmatprep.subr.mxu0 0.0
    %4285 = vmatpush2.msra.mxu0 0.0
    %4286 = vmatprep.subr.mxu0 0.0
    %4287 = vmatpush2.msra.mxu0 0.0
    %4288 = vmatprep.subr.mxu0 0.0
    %4289 = vmatpush2.msra.mxu0 0.0
    %4290 = vmatprep.subr.mxu0 0.0
    %4291 = vmatpush2.msra.mxu0 0.0
    %4292 = vmatprep.mubr.f32.mxu0 0.0
    %v4293 = vand.u32 %v3887, 4294901760
    %4294 = vmatmul.mubr.f32.gmra.mxu0 %v4293
    %v4295 = vpop.f32.mrf.mxu0
    %v4296 = vadd.f32 %v4213, %v4295
    %v4297 = vpop.f32.mrf.mxu0
    %4298 = vdwg.mxu0
    %4299 = vmatprep.subr.mxu0 0.0
    %4300 = vmatpush1.msra.mxu0 0.0
    %4301 = vmatprep.subr.mxu0 0.0
    %4302 = vmatpush1.msra.mxu0 0.0
    %4303 = vmatprep.subr.mxu0 0.0
    %4304 = vmatpush1.msra.mxu0 0.0
    %4305 = vmatprep.subr.mxu0 0.0
    %4306 = vmatpush1.msra.mxu0 0.0
    %4307 = vmatprep.subr.mxu0 0.0
    %4308 = vmatpush1.msra.mxu0 0.0
    %4309 = vmatprep.subr.mxu0 0.0
    %4310 = vmatpush1.msra.mxu0 0.0
    %4311 = vmatprep.subr.mxu0 0.0
    %4312 = vmatpush1.msra.mxu0 0.0
    %4313 = vmatprep.subr.mxu0 0.0
    %4314 = vmatpush1.msra.mxu0 0.0
    %4315 = vmatprep.subr.mxu0 0.0
    %4316 = vmatpush1.msra.mxu0 0.0
    %4317 = vmatprep.subr.mxu0 0.0
    %4318 = vmatpush1.msra.mxu0 0.0
    %4319 = vmatprep.subr.mxu0 0.0
    %4320 = vmatpush1.msra.mxu0 0.0
    %4321 = vmatprep.subr.mxu0 0.0
    %4322 = vmatpush1.msra.mxu0 0.0
    %4323 = vmatprep.subr.mxu0 0.0
    %v4324 = vand.u32 %v595, 4294901760
    %4325 = vmatpush1.msra.mxu0 %v4324
    %4326 = vmatprep.subr.mxu0 0.0
    %v4327 = vand.u32 %v594, 4294901760
    %4328 = vmatpush1.msra.mxu0 %v4327
    %4329 = vmatprep.subr.mxu0 0.0
    %v4330 = vand.u32 %v593, 4294901760
    %4331 = vmatpush1.msra.mxu0 %v4330
    %4332 = vmatprep.subr.mxu0 0.0
    %v4333 = vand.u32 %v592, 4294901760
    %4334 = vmatpush1.msra.mxu0 %v4333
    %4335 = vmatprep.subr.mxu0 0.0
    %4336 = vmatpush2.msra.mxu0 0.0
    %4337 = vmatprep.subr.mxu0 0.0
    %4338 = vmatpush2.msra.mxu0 0.0
    %4339 = vmatprep.subr.mxu0 0.0
    %4340 = vmatpush2.msra.mxu0 0.0
    %4341 = vmatprep.subr.mxu0 0.0
    %4342 = vmatpush2.msra.mxu0 0.0
    %4343 = vmatprep.subr.mxu0 0.0
    %4344 = vmatpush2.msra.mxu0 0.0
    %4345 = vmatprep.subr.mxu0 0.0
    %4346 = vmatpush2.msra.mxu0 0.0
    %4347 = vmatprep.subr.mxu0 0.0
    %4348 = vmatpush2.msra.mxu0 0.0
    %4349 = vmatprep.subr.mxu0 0.0
    %4350 = vmatpush2.msra.mxu0 0.0
    %4351 = vmatprep.subr.mxu0 0.0
    %4352 = vmatpush2.msra.mxu0 0.0
    %4353 = vmatprep.subr.mxu0 0.0
    %4354 = vmatpush2.msra.mxu0 0.0
    %4355 = vmatprep.subr.mxu0 0.0
    %4356 = vmatpush2.msra.mxu0 0.0
    %4357 = vmatprep.subr.mxu0 0.0
    %4358 = vmatpush2.msra.mxu0 0.0
    %4359 = vmatprep.subr.mxu0 0.0
    %4360 = vmatpush2.msra.mxu0 0.0
    %4361 = vmatprep.subr.mxu0 0.0
    %4362 = vmatpush2.msra.mxu0 0.0
    %4363 = vmatprep.subr.mxu0 0.0
    %4364 = vmatpush2.msra.mxu0 0.0
    %4365 = vmatprep.subr.mxu0 0.0
    %4366 = vmatpush2.msra.mxu0 0.0
    %4367 = vmatprep.mubr.f32.mxu0 0.0
    %v4368 = vand.u32 %v3887, 4294901760
    %4369 = vmatmul.mubr.f32.gmra.mxu0 %v4368
    %v4370 = vpop.f32.mrf.mxu0
    %v4371 = vadd.f32 %v4296, %v4370
    %v4372 = vpop.f32.mrf.mxu0
    %4373 = vdwg.mxu0
    %v4375 = vrot.slane %v4371, 2
    %v4377 = vadd.f32 %v583, %v4375
    %v4378 = vxor.u32 %v4377, 2147483648
    %v4379 = vmul.f32 %v4378, 1.442695
    %v4380 = vpow.pop %v4379
    %v4381 = vadd.f32 %v4380, 1.0
    %v4382 = vrcp.pop %v4381
    %v4383 = vmul.f32 1.0, %v4382
    %v4384 = vtanh.pop %v4377
    %v4386 = vrot.slane %v3302, 6
    %v4388 = vmul.f32 %v4383, %v4386
    %4390 = vrot.lane.b32.xlu0 %v4384, 64
    %v4391 = vpop.permute.xlu0 %4390
    %v4393 = vmul.f32 %v4383, %v4391
    %4395 = vrot.lane.b32.xlu0 %v4393, 32
    %v4396 = vpop.permute.xlu0 %4395
    %v4398 = vadd.f32 %v4388, %v4396
    %v4399 = vtanh.pop %v4398
    %4401 = vrot.lane.b32.xlu0 %v4399, 64
    %v4402 = vpop.permute.xlu0 %4401
    %v4404 = vmul.f32 %v4383, %v4402
    %4406 = vrot.lane.b32.xlu0 %v4404, 32
    %v4407 = vpop.permute.xlu0 %4406
    %v4410 = vrot.slane %v3883, 2
    %4411 = vrot.lane.b32.xlu0 %v4410, 64
    %v4412 = vpop.permute.xlu0 %4411
    %v4414 = vsel %vm605, %v4407, %v4412
    %v4416 = vrot.slane %v4414, 6
    %v4417 = vsel %vm1130, %v4416, 0
    %4419 = vmatprep.subr.mxu0 0.0
    %4420 = vmatpush1.msra.mxu0 0.0
    %4421 = vmatprep.subr.mxu0 0.0
    %4422 = vmatpush1.msra.mxu0 0.0
    %4423 = vmatprep.subr.mxu0 0.0
    %4424 = vmatpush1.msra.mxu0 0.0
    %4425 = vmatprep.subr.mxu0 0.0
    %4426 = vmatpush1.msra.mxu0 0.0
    %4427 = vmatprep.subr.mxu0 0.0
    %4428 = vmatpush1.msra.mxu0 0.0
    %4429 = vmatprep.subr.mxu0 0.0
    %4430 = vmatpush1.msra.mxu0 0.0
    %4431 = vmatprep.subr.mxu0 0.0
    %4432 = vmatpush1.msra.mxu0 0.0
    %4433 = vmatprep.subr.mxu0 0.0
    %4434 = vmatpush1.msra.mxu0 0.0
    %4435 = vmatprep.subr.mxu0 0.0
    %v4436 = vand.u32 %v603, 4294901760
    %4437 = vmatpush1.msra.mxu0 %v4436
    %4438 = vmatprep.subr.mxu0 0.0
    %v4439 = vand.u32 %v602, 4294901760
    %4440 = vmatpush1.msra.mxu0 %v4439
    %4441 = vmatprep.subr.mxu0 0.0
    %v4442 = vand.u32 %v601, 4294901760
    %4443 = vmatpush1.msra.mxu0 %v4442
    %4444 = vmatprep.subr.mxu0 0.0
    %v4445 = vand.u32 %v600, 4294901760
    %4446 = vmatpush1.msra.mxu0 %v4445
    %4447 = vmatprep.subr.mxu0 0.0
    %v4448 = vand.u32 %v599, 4294901760
    %4449 = vmatpush1.msra.mxu0 %v4448
    %4450 = vmatprep.subr.mxu0 0.0
    %v4451 = vand.u32 %v598, 4294901760
    %4452 = vmatpush1.msra.mxu0 %v4451
    %4453 = vmatprep.subr.mxu0 0.0
    %v4454 = vand.u32 %v597, 4294901760
    %4455 = vmatpush1.msra.mxu0 %v4454
    %4456 = vmatprep.subr.mxu0 0.0
    %v4457 = vand.u32 %v596, 4294901760
    %4458 = vmatpush1.msra.mxu0 %v4457
    %4459 = vmatprep.subr.mxu0 0.0
    %4460 = vmatpush2.msra.mxu0 0.0
    %4461 = vmatprep.subr.mxu0 0.0
    %4462 = vmatpush2.msra.mxu0 0.0
    %4463 = vmatprep.subr.mxu0 0.0
    %4464 = vmatpush2.msra.mxu0 0.0
    %4465 = vmatprep.subr.mxu0 0.0
    %4466 = vmatpush2.msra.mxu0 0.0
    %4467 = vmatprep.subr.mxu0 0.0
    %4468 = vmatpush2.msra.mxu0 0.0
    %4469 = vmatprep.subr.mxu0 0.0
    %4470 = vmatpush2.msra.mxu0 0.0
    %4471 = vmatprep.subr.mxu0 0.0
    %4472 = vmatpush2.msra.mxu0 0.0
    %4473 = vmatprep.subr.mxu0 0.0
    %4474 = vmatpush2.msra.mxu0 0.0
    %4475 = vmatprep.subr.mxu0 0.0
    %4476 = vmatpush2.msra.mxu0 0.0
    %4477 = vmatprep.subr.mxu0 0.0
    %4478 = vmatpush2.msra.mxu0 0.0
    %4479 = vmatprep.subr.mxu0 0.0
    %4480 = vmatpush2.msra.mxu0 0.0
    %4481 = vmatprep.subr.mxu0 0.0
    %4482 = vmatpush2.msra.mxu0 0.0
    %4483 = vmatprep.subr.mxu0 0.0
    %4484 = vmatpush2.msra.mxu0 0.0
    %4485 = vmatprep.subr.mxu0 0.0
    %4486 = vmatpush2.msra.mxu0 0.0
    %4487 = vmatprep.subr.mxu0 0.0
    %4488 = vmatpush2.msra.mxu0 0.0
    %4489 = vmatprep.subr.mxu0 0.0
    %4490 = vmatpush2.msra.mxu0 0.0
    %4491 = vmatprep.mubr.f32.mxu0 0.0
    %v4492 = vand.u32 %v4417, 4294901760
    %v4493 = vsub.f32 %v4417, %v4492
    %v4494 = vand.u32 %v4493, 4294901760
    %v4495 = vsub.f32 %v4493, %v4494
    %v4496 = vand.u32 %v4495, 4294901760
    %4497 = vmatmul.mubr.f32.gmra.mxu0 %v4496
    %v4498 = vpop.f32.mrf.mxu0
    %v4499 = vadd.f32 %v1128, %v4498
    %v4500 = vpop.f32.mrf.mxu0
    %4501 = vdwg.mxu0
    %4502 = vmatprep.subr.mxu0 0.0
    %4503 = vmatpush1.msra.mxu0 0.0
    %4504 = vmatprep.subr.mxu0 0.0
    %4505 = vmatpush1.msra.mxu0 0.0
    %4506 = vmatprep.subr.mxu0 0.0
    %4507 = vmatpush1.msra.mxu0 0.0
    %4508 = vmatprep.subr.mxu0 0.0
    %4509 = vmatpush1.msra.mxu0 0.0
    %4510 = vmatprep.subr.mxu0 0.0
    %4511 = vmatpush1.msra.mxu0 0.0
    %4512 = vmatprep.subr.mxu0 0.0
    %4513 = vmatpush1.msra.mxu0 0.0
    %4514 = vmatprep.subr.mxu0 0.0
    %4515 = vmatpush1.msra.mxu0 0.0
    %4516 = vmatprep.subr.mxu0 0.0
    %4517 = vmatpush1.msra.mxu0 0.0
    %4518 = vmatprep.subr.mxu0 0.0
    %v4519 = vand.u32 %v603, 4294901760
    %v4520 = vsub.f32 %v603, %v4519
    %v4521 = vand.u32 %v4520, 4294901760
    %v4522 = vsub.f32 %v4520, %v4521
    %v4523 = vand.u32 %v4522, 4294901760
    %4524 = vmatpush1.msra.mxu0 %v4523
    %4525 = vmatprep.subr.mxu0 0.0
    %v4526 = vand.u32 %v602, 4294901760
    %v4527 = vsub.f32 %v602, %v4526
    %v4528 = vand.u32 %v4527, 4294901760
    %v4529 = vsub.f32 %v4527, %v4528
    %v4530 = vand.u32 %v4529, 4294901760
    %4531 = vmatpush1.msra.mxu0 %v4530
    %4532 = vmatprep.subr.mxu0 0.0
    %v4533 = vand.u32 %v601, 4294901760
    %v4534 = vsub.f32 %v601, %v4533
    %v4535 = vand.u32 %v4534, 4294901760
    %v4536 = vsub.f32 %v4534, %v4535
    %v4537 = vand.u32 %v4536, 4294901760
    %4538 = vmatpush1.msra.mxu0 %v4537
    %4539 = vmatprep.subr.mxu0 0.0
    %v4540 = vand.u32 %v600, 4294901760
    %v4541 = vsub.f32 %v600, %v4540
    %v4542 = vand.u32 %v4541, 4294901760
    %v4543 = vsub.f32 %v4541, %v4542
    %v4544 = vand.u32 %v4543, 4294901760
    %4545 = vmatpush1.msra.mxu0 %v4544
    %4546 = vmatprep.subr.mxu0 0.0
    %v4547 = vand.u32 %v599, 4294901760
    %v4548 = vsub.f32 %v599, %v4547
    %v4549 = vand.u32 %v4548, 4294901760
    %v4550 = vsub.f32 %v4548, %v4549
    %v4551 = vand.u32 %v4550, 4294901760
    %4552 = vmatpush1.msra.mxu0 %v4551
    %4553 = vmatprep.subr.mxu0 0.0
    %v4554 = vand.u32 %v598, 4294901760
    %v4555 = vsub.f32 %v598, %v4554
    %v4556 = vand.u32 %v4555, 4294901760
    %v4557 = vsub.f32 %v4555, %v4556
    %v4558 = vand.u32 %v4557, 4294901760
    %4559 = vmatpush1.msra.mxu0 %v4558
    %4560 = vmatprep.subr.mxu0 0.0
    %v4561 = vand.u32 %v597, 4294901760
    %v4562 = vsub.f32 %v597, %v4561
    %v4563 = vand.u32 %v4562, 4294901760
    %v4564 = vsub.f32 %v4562, %v4563
    %v4565 = vand.u32 %v4564, 4294901760
    %4566 = vmatpush1.msra.mxu0 %v4565
    %4567 = vmatprep.subr.mxu0 0.0
    %v4568 = vand.u32 %v596, 4294901760
    %v4569 = vsub.f32 %v596, %v4568
    %v4570 = vand.u32 %v4569, 4294901760
    %v4571 = vsub.f32 %v4569, %v4570
    %v4572 = vand.u32 %v4571, 4294901760
    %4573 = vmatpush1.msra.mxu0 %v4572
    %4574 = vmatprep.subr.mxu0 0.0
    %4575 = vmatpush2.msra.mxu0 0.0
    %4576 = vmatprep.subr.mxu0 0.0
    %4577 = vmatpush2.msra.mxu0 0.0
    %4578 = vmatprep.subr.mxu0 0.0
    %4579 = vmatpush2.msra.mxu0 0.0
    %4580 = vmatprep.subr.mxu0 0.0
    %4581 = vmatpush2.msra.mxu0 0.0
    %4582 = vmatprep.subr.mxu0 0.0
    %4583 = vmatpush2.msra.mxu0 0.0
    %4584 = vmatprep.subr.mxu0 0.0
    %4585 = vmatpush2.msra.mxu0 0.0
    %4586 = vmatprep.subr.mxu0 0.0
    %4587 = vmatpush2.msra.mxu0 0.0
    %4588 = vmatprep.subr.mxu0 0.0
    %4589 = vmatpush2.msra.mxu0 0.0
    %4590 = vmatprep.subr.mxu0 0.0
    %4591 = vmatpush2.msra.mxu0 0.0
    %4592 = vmatprep.subr.mxu0 0.0
    %4593 = vmatpush2.msra.mxu0 0.0
    %4594 = vmatprep.subr.mxu0 0.0
    %4595 = vmatpush2.msra.mxu0 0.0
    %4596 = vmatprep.subr.mxu0 0.0
    %4597 = vmatpush2.msra.mxu0 0.0
    %4598 = vmatprep.subr.mxu0 0.0
    %4599 = vmatpush2.msra.mxu0 0.0
    %4600 = vmatprep.subr.mxu0 0.0
    %4601 = vmatpush2.msra.mxu0 0.0
    %4602 = vmatprep.subr.mxu0 0.0
    %4603 = vmatpush2.msra.mxu0 0.0
    %4604 = vmatprep.subr.mxu0 0.0
    %4605 = vmatpush2.msra.mxu0 0.0
    %4606 = vmatprep.mubr.f32.mxu0 0.0
    %v4607 = vand.u32 %v4417, 4294901760
    %4608 = vmatmul.mubr.f32.gmra.mxu0 %v4607
    %v4609 = vpop.f32.mrf.mxu0
    %v4610 = vadd.f32 %v4499, %v4609
    %v4611 = vpop.f32.mrf.mxu0
    %4612 = vdwg.mxu0
    %4613 = vmatprep.subr.mxu0 0.0
    %4614 = vmatpush1.msra.mxu0 0.0
    %4615 = vmatprep.subr.mxu0 0.0
    %4616 = vmatpush1.msra.mxu0 0.0
    %4617 = vmatprep.subr.mxu0 0.0
    %4618 = vmatpush1.msra.mxu0 0.0
    %4619 = vmatprep.subr.mxu0 0.0
    %4620 = vmatpush1.msra.mxu0 0.0
    %4621 = vmatprep.subr.mxu0 0.0
    %4622 = vmatpush1.msra.mxu0 0.0
    %4623 = vmatprep.subr.mxu0 0.0
    %4624 = vmatpush1.msra.mxu0 0.0
    %4625 = vmatprep.subr.mxu0 0.0
    %4626 = vmatpush1.msra.mxu0 0.0
    %4627 = vmatprep.subr.mxu0 0.0
    %4628 = vmatpush1.msra.mxu0 0.0
    %4629 = vmatprep.subr.mxu0 0.0
    %v4630 = vand.u32 %v603, 4294901760
    %v4631 = vsub.f32 %v603, %v4630
    %4632 = vmatpush1.msra.mxu0 %v4631
    %4633 = vmatprep.subr.mxu0 0.0
    %v4634 = vand.u32 %v602, 4294901760
    %v4635 = vsub.f32 %v602, %v4634
    %4636 = vmatpush1.msra.mxu0 %v4635
    %4637 = vmatprep.subr.mxu0 0.0
    %v4638 = vand.u32 %v601, 4294901760
    %v4639 = vsub.f32 %v601, %v4638
    %4640 = vmatpush1.msra.mxu0 %v4639
    %4641 = vmatprep.subr.mxu0 0.0
    %v4642 = vand.u32 %v600, 4294901760
    %v4643 = vsub.f32 %v600, %v4642
    %4644 = vmatpush1.msra.mxu0 %v4643
    %4645 = vmatprep.subr.mxu0 0.0
    %v4646 = vand.u32 %v599, 4294901760
    %v4647 = vsub.f32 %v599, %v4646
    %4648 = vmatpush1.msra.mxu0 %v4647
    %4649 = vmatprep.subr.mxu0 0.0
    %v4650 = vand.u32 %v598, 4294901760
    %v4651 = vsub.f32 %v598, %v4650
    %4652 = vmatpush1.msra.mxu0 %v4651
    %4653 = vmatprep.subr.mxu0 0.0
    %v4654 = vand.u32 %v597, 4294901760
    %v4655 = vsub.f32 %v597, %v4654
    %4656 = vmatpush1.msra.mxu0 %v4655
    %4657 = vmatprep.subr.mxu0 0.0
    %v4658 = vand.u32 %v596, 4294901760
    %v4659 = vsub.f32 %v596, %v4658
    %4660 = vmatpush1.msra.mxu0 %v4659
    %4661 = vmatprep.subr.mxu0 0.0
    %4662 = vmatpush2.msra.mxu0 0.0
    %4663 = vmatprep.subr.mxu0 0.0
    %4664 = vmatpush2.msra.mxu0 0.0
    %4665 = vmatprep.subr.mxu0 0.0
    %4666 = vmatpush2.msra.mxu0 0.0
    %4667 = vmatprep.subr.mxu0 0.0
    %4668 = vmatpush2.msra.mxu0 0.0
    %4669 = vmatprep.subr.mxu0 0.0
    %4670 = vmatpush2.msra.mxu0 0.0
    %4671 = vmatprep.subr.mxu0 0.0
    %4672 = vmatpush2.msra.mxu0 0.0
    %4673 = vmatprep.subr.mxu0 0.0
    %4674 = vmatpush2.msra.mxu0 0.0
    %4675 = vmatprep.subr.mxu0 0.0
    %4676 = vmatpush2.msra.mxu0 0.0
    %4677 = vmatprep.subr.mxu0 0.0
    %4678 = vmatpush2.msra.mxu0 0.0
    %4679 = vmatprep.subr.mxu0 0.0
    %4680 = vmatpush2.msra.mxu0 0.0
    %4681 = vmatprep.subr.mxu0 0.0
    %4682 = vmatpush2.msra.mxu0 0.0
    %4683 = vmatprep.subr.mxu0 0.0
    %4684 = vmatpush2.msra.mxu0 0.0
    %4685 = vmatprep.subr.mxu0 0.0
    %4686 = vmatpush2.msra.mxu0 0.0
    %4687 = vmatprep.subr.mxu0 0.0
    %4688 = vmatpush2.msra.mxu0 0.0
    %4689 = vmatprep.subr.mxu0 0.0
    %4690 = vmatpush2.msra.mxu0 0.0
    %4691 = vmatprep.subr.mxu0 0.0
    %4692 = vmatpush2.msra.mxu0 0.0
    %4693 = vmatprep.mubr.f32.mxu0 0.0
    %v4694 = vand.u32 %v4417, 4294901760
    %v4695 = vsub.f32 %v4417, %v4694
    %4696 = vmatmul.mubr.f32.gmra.mxu0 %v4695
    %v4697 = vpop.f32.mrf.mxu0
    %v4698 = vadd.f32 %v4610, %v4697
    %v4699 = vpop.f32.mrf.mxu0
    %4700 = vdwg.mxu0
    %4701 = vmatprep.subr.mxu0 0.0
    %4702 = vmatpush1.msra.mxu0 0.0
    %4703 = vmatprep.subr.mxu0 0.0
    %4704 = vmatpush1.msra.mxu0 0.0
    %4705 = vmatprep.subr.mxu0 0.0
    %4706 = vmatpush1.msra.mxu0 0.0
    %4707 = vmatprep.subr.mxu0 0.0
    %4708 = vmatpush1.msra.mxu0 0.0
    %4709 = vmatprep.subr.mxu0 0.0
    %4710 = vmatpush1.msra.mxu0 0.0
    %4711 = vmatprep.subr.mxu0 0.0
    %4712 = vmatpush1.msra.mxu0 0.0
    %4713 = vmatprep.subr.mxu0 0.0
    %4714 = vmatpush1.msra.mxu0 0.0
    %4715 = vmatprep.subr.mxu0 0.0
    %4716 = vmatpush1.msra.mxu0 0.0
    %4717 = vmatprep.subr.mxu0 0.0
    %v4718 = vand.u32 %v603, 4294901760
    %4719 = vmatpush1.msra.mxu0 %v4718
    %4720 = vmatprep.subr.mxu0 0.0
    %v4721 = vand.u32 %v602, 4294901760
    %4722 = vmatpush1.msra.mxu0 %v4721
    %4723 = vmatprep.subr.mxu0 0.0
    %v4724 = vand.u32 %v601, 4294901760
    %4725 = vmatpush1.msra.mxu0 %v4724
    %4726 = vmatprep.subr.mxu0 0.0
    %v4727 = vand.u32 %v600, 4294901760
    %4728 = vmatpush1.msra.mxu0 %v4727
    %4729 = vmatprep.subr.mxu0 0.0
    %v4730 = vand.u32 %v599, 4294901760
    %4731 = vmatpush1.msra.mxu0 %v4730
    %4732 = vmatprep.subr.mxu0 0.0
    %v4733 = vand.u32 %v598, 4294901760
    %4734 = vmatpush1.msra.mxu0 %v4733
    %4735 = vmatprep.subr.mxu0 0.0
    %v4736 = vand.u32 %v597, 4294901760
    %4737 = vmatpush1.msra.mxu0 %v4736
    %4738 = vmatprep.subr.mxu0 0.0
    %v4739 = vand.u32 %v596, 4294901760
    %4740 = vmatpush1.msra.mxu0 %v4739
    %4741 = vmatprep.subr.mxu0 0.0
    %4742 = vmatpush2.msra.mxu0 0.0
    %4743 = vmatprep.subr.mxu0 0.0
    %4744 = vmatpush2.msra.mxu0 0.0
    %4745 = vmatprep.subr.mxu0 0.0
    %4746 = vmatpush2.msra.mxu0 0.0
    %4747 = vmatprep.subr.mxu0 0.0
    %4748 = vmatpush2.msra.mxu0 0.0
    %4749 = vmatprep.subr.mxu0 0.0
    %4750 = vmatpush2.msra.mxu0 0.0
    %4751 = vmatprep.subr.mxu0 0.0
    %4752 = vmatpush2.msra.mxu0 0.0
    %4753 = vmatprep.subr.mxu0 0.0
    %4754 = vmatpush2.msra.mxu0 0.0
    %4755 = vmatprep.subr.mxu0 0.0
    %4756 = vmatpush2.msra.mxu0 0.0
    %4757 = vmatprep.subr.mxu0 0.0
    %4758 = vmatpush2.msra.mxu0 0.0
    %4759 = vmatprep.subr.mxu0 0.0
    %4760 = vmatpush2.msra.mxu0 0.0
    %4761 = vmatprep.subr.mxu0 0.0
    %4762 = vmatpush2.msra.mxu0 0.0
    %4763 = vmatprep.subr.mxu0 0.0
    %4764 = vmatpush2.msra.mxu0 0.0
    %4765 = vmatprep.subr.mxu0 0.0
    %4766 = vmatpush2.msra.mxu0 0.0
    %4767 = vmatprep.subr.mxu0 0.0
    %4768 = vmatpush2.msra.mxu0 0.0
    %4769 = vmatprep.subr.mxu0 0.0
    %4770 = vmatpush2.msra.mxu0 0.0
    %4771 = vmatprep.subr.mxu0 0.0
    %4772 = vmatpush2.msra.mxu0 0.0
    %4773 = vmatprep.mubr.f32.mxu0 0.0
    %v4774 = vand.u32 %v4417, 4294901760
    %v4775 = vsub.f32 %v4417, %v4774
    %v4776 = vand.u32 %v4775, 4294901760
    %4777 = vmatmul.mubr.f32.gmra.mxu0 %v4776
    %v4778 = vpop.f32.mrf.mxu0
    %v4779 = vadd.f32 %v4698, %v4778
    %v4780 = vpop.f32.mrf.mxu0
    %4781 = vdwg.mxu0
    %4782 = vmatprep.subr.mxu0 0.0
    %4783 = vmatpush1.msra.mxu0 0.0
    %4784 = vmatprep.subr.mxu0 0.0
    %4785 = vmatpush1.msra.mxu0 0.0
    %4786 = vmatprep.subr.mxu0 0.0
    %4787 = vmatpush1.msra.mxu0 0.0
    %4788 = vmatprep.subr.mxu0 0.0
    %4789 = vmatpush1.msra.mxu0 0.0
    %4790 = vmatprep.subr.mxu0 0.0
    %4791 = vmatpush1.msra.mxu0 0.0
    %4792 = vmatprep.subr.mxu0 0.0
    %4793 = vmatpush1.msra.mxu0 0.0
    %4794 = vmatprep.subr.mxu0 0.0
    %4795 = vmatpush1.msra.mxu0 0.0
    %4796 = vmatprep.subr.mxu0 0.0
    %4797 = vmatpush1.msra.mxu0 0.0
    %4798 = vmatprep.subr.mxu0 0.0
    %v4799 = vand.u32 %v603, 4294901760
    %v4800 = vsub.f32 %v603, %v4799
    %v4801 = vand.u32 %v4800, 4294901760
    %4802 = vmatpush1.msra.mxu0 %v4801
    %4803 = vmatprep.subr.mxu0 0.0
    %v4804 = vand.u32 %v602, 4294901760
    %v4805 = vsub.f32 %v602, %v4804
    %v4806 = vand.u32 %v4805, 4294901760
    %4807 = vmatpush1.msra.mxu0 %v4806
    %4808 = vmatprep.subr.mxu0 0.0
    %v4809 = vand.u32 %v601, 4294901760
    %v4810 = vsub.f32 %v601, %v4809
    %v4811 = vand.u32 %v4810, 4294901760
    %4812 = vmatpush1.msra.mxu0 %v4811
    %4813 = vmatprep.subr.mxu0 0.0
    %v4814 = vand.u32 %v600, 4294901760
    %v4815 = vsub.f32 %v600, %v4814
    %v4816 = vand.u32 %v4815, 4294901760
    %4817 = vmatpush1.msra.mxu0 %v4816
    %4818 = vmatprep.subr.mxu0 0.0
    %v4819 = vand.u32 %v599, 4294901760
    %v4820 = vsub.f32 %v599, %v4819
    %v4821 = vand.u32 %v4820, 4294901760
    %4822 = vmatpush1.msra.mxu0 %v4821
    %4823 = vmatprep.subr.mxu0 0.0
    %v4824 = vand.u32 %v598, 4294901760
    %v4825 = vsub.f32 %v598, %v4824
    %v4826 = vand.u32 %v4825, 4294901760
    %4827 = vmatpush1.msra.mxu0 %v4826
    %4828 = vmatprep.subr.mxu0 0.0
    %v4829 = vand.u32 %v597, 4294901760
    %v4830 = vsub.f32 %v597, %v4829
    %v4831 = vand.u32 %v4830, 4294901760
    %4832 = vmatpush1.msra.mxu0 %v4831
    %4833 = vmatprep.subr.mxu0 0.0
    %v4834 = vand.u32 %v596, 4294901760
    %v4835 = vsub.f32 %v596, %v4834
    %v4836 = vand.u32 %v4835, 4294901760
    %4837 = vmatpush1.msra.mxu0 %v4836
    %4838 = vmatprep.subr.mxu0 0.0
    %4839 = vmatpush2.msra.mxu0 0.0
    %4840 = vmatprep.subr.mxu0 0.0
    %4841 = vmatpush2.msra.mxu0 0.0
    %4842 = vmatprep.subr.mxu0 0.0
    %4843 = vmatpush2.msra.mxu0 0.0
    %4844 = vmatprep.subr.mxu0 0.0
    %4845 = vmatpush2.msra.mxu0 0.0
    %4846 = vmatprep.subr.mxu0 0.0
    %4847 = vmatpush2.msra.mxu0 0.0
    %4848 = vmatprep.subr.mxu0 0.0
    %4849 = vmatpush2.msra.mxu0 0.0
    %4850 = vmatprep.subr.mxu0 0.0
    %4851 = vmatpush2.msra.mxu0 0.0
    %4852 = vmatprep.subr.mxu0 0.0
    %4853 = vmatpush2.msra.mxu0 0.0
    %4854 = vmatprep.subr.mxu0 0.0
    %4855 = vmatpush2.msra.mxu0 0.0
    %4856 = vmatprep.subr.mxu0 0.0
    %4857 = vmatpush2.msra.mxu0 0.0
    %4858 = vmatprep.subr.mxu0 0.0
    %4859 = vmatpush2.msra.mxu0 0.0
    %4860 = vmatprep.subr.mxu0 0.0
    %4861 = vmatpush2.msra.mxu0 0.0
    %4862 = vmatprep.subr.mxu0 0.0
    %4863 = vmatpush2.msra.mxu0 0.0
    %4864 = vmatprep.subr.mxu0 0.0
    %4865 = vmatpush2.msra.mxu0 0.0
    %4866 = vmatprep.subr.mxu0 0.0
    %4867 = vmatpush2.msra.mxu0 0.0
    %4868 = vmatprep.subr.mxu0 0.0
    %4869 = vmatpush2.msra.mxu0 0.0
    %4870 = vmatprep.mubr.f32.mxu0 0.0
    %v4871 = vand.u32 %v4417, 4294901760
    %4872 = vmatmul.mubr.f32.gmra.mxu0 %v4871
    %v4873 = vpop.f32.mrf.mxu0
    %v4874 = vadd.f32 %v4779, %v4873
    %v4875 = vpop.f32.mrf.mxu0
    %4876 = vdwg.mxu0
    %4877 = vmatprep.subr.mxu0 0.0
    %4878 = vmatpush1.msra.mxu0 0.0
    %4879 = vmatprep.subr.mxu0 0.0
    %4880 = vmatpush1.msra.mxu0 0.0
    %4881 = vmatprep.subr.mxu0 0.0
    %4882 = vmatpush1.msra.mxu0 0.0
    %4883 = vmatprep.subr.mxu0 0.0
    %4884 = vmatpush1.msra.mxu0 0.0
    %4885 = vmatprep.subr.mxu0 0.0
    %4886 = vmatpush1.msra.mxu0 0.0
    %4887 = vmatprep.subr.mxu0 0.0
    %4888 = vmatpush1.msra.mxu0 0.0
    %4889 = vmatprep.subr.mxu0 0.0
    %4890 = vmatpush1.msra.mxu0 0.0
    %4891 = vmatprep.subr.mxu0 0.0
    %4892 = vmatpush1.msra.mxu0 0.0
    %4893 = vmatprep.subr.mxu0 0.0
    %v4894 = vand.u32 %v603, 4294901760
    %4895 = vmatpush1.msra.mxu0 %v4894
    %4896 = vmatprep.subr.mxu0 0.0
    %v4897 = vand.u32 %v602, 4294901760
    %4898 = vmatpush1.msra.mxu0 %v4897
    %4899 = vmatprep.subr.mxu0 0.0
    %v4900 = vand.u32 %v601, 4294901760
    %4901 = vmatpush1.msra.mxu0 %v4900
    %4902 = vmatprep.subr.mxu0 0.0
    %v4903 = vand.u32 %v600, 4294901760
    %4904 = vmatpush1.msra.mxu0 %v4903
    %4905 = vmatprep.subr.mxu0 0.0
    %v4906 = vand.u32 %v599, 4294901760
    %4907 = vmatpush1.msra.mxu0 %v4906
    %4908 = vmatprep.subr.mxu0 0.0
    %v4909 = vand.u32 %v598, 4294901760
    %4910 = vmatpush1.msra.mxu0 %v4909
    %4911 = vmatprep.subr.mxu0 0.0
    %v4912 = vand.u32 %v597, 4294901760
    %4913 = vmatpush1.msra.mxu0 %v4912
    %4914 = vmatprep.subr.mxu0 0.0
    %v4915 = vand.u32 %v596, 4294901760
    %4916 = vmatpush1.msra.mxu0 %v4915
    %4917 = vmatprep.subr.mxu0 0.0
    %4918 = vmatpush2.msra.mxu0 0.0
    %4919 = vmatprep.subr.mxu0 0.0
    %4920 = vmatpush2.msra.mxu0 0.0
    %4921 = vmatprep.subr.mxu0 0.0
    %4922 = vmatpush2.msra.mxu0 0.0
    %4923 = vmatprep.subr.mxu0 0.0
    %4924 = vmatpush2.msra.mxu0 0.0
    %4925 = vmatprep.subr.mxu0 0.0
    %4926 = vmatpush2.msra.mxu0 0.0
    %4927 = vmatprep.subr.mxu0 0.0
    %4928 = vmatpush2.msra.mxu0 0.0
    %4929 = vmatprep.subr.mxu0 0.0
    %4930 = vmatpush2.msra.mxu0 0.0
    %4931 = vmatprep.subr.mxu0 0.0
    %4932 = vmatpush2.msra.mxu0 0.0
    %4933 = vmatprep.subr.mxu0 0.0
    %4934 = vmatpush2.msra.mxu0 0.0
    %4935 = vmatprep.subr.mxu0 0.0
    %4936 = vmatpush2.msra.mxu0 0.0
    %4937 = vmatprep.subr.mxu0 0.0
    %4938 = vmatpush2.msra.mxu0 0.0
    %4939 = vmatprep.subr.mxu0 0.0
    %4940 = vmatpush2.msra.mxu0 0.0
    %4941 = vmatprep.subr.mxu0 0.0
    %4942 = vmatpush2.msra.mxu0 0.0
    %4943 = vmatprep.subr.mxu0 0.0
    %4944 = vmatpush2.msra.mxu0 0.0
    %4945 = vmatprep.subr.mxu0 0.0
    %4946 = vmatpush2.msra.mxu0 0.0
    %4947 = vmatprep.subr.mxu0 0.0
    %4948 = vmatpush2.msra.mxu0 0.0
    %4949 = vmatprep.mubr.f32.mxu0 0.0
    %v4950 = vand.u32 %v4417, 4294901760
    %4951 = vmatmul.mubr.f32.gmra.mxu0 %v4950
    %v4952 = vpop.f32.mrf.mxu0
    %v4953 = vadd.f32 %v4874, %v4952
    %v4954 = vpop.f32.mrf.mxu0
    %4955 = vdwg.mxu0
    %v4956 = vxor.u32 %v4953, 2147483648
    %v4957 = vmul.f32 %v4956, 1.442695
    %v4958 = vpow.pop %v4957
    %v4959 = vadd.f32 %v4958, 1.0
    %v4960 = vrcp.pop %v4959
    %v4961 = vmul.f32 1.0, %v4960
    %v4962 = vtanh.pop %v4953
    %v4963 = vmul.f32 %v4961, %v3877
    %4965 = vrot.lane.b32.xlu0 %v4962, 64
    %v4966 = vpop.permute.xlu0 %4965
    %v4968 = vmul.f32 %v4961, %v4966
    %4970 = vrot.lane.b32.xlu0 %v4968, 32
    %v4971 = vpop.permute.xlu0 %4970
    %v4973 = vadd.f32 %v4963, %v4971
    %v4974 = vtanh.pop %v4973
    %4976 = vrot.lane.b32.xlu0 %v4974, 64
    %v4977 = vpop.permute.xlu0 %4976
    %v4979 = vmul.f32 %v4961, %v4977
    %v4980 = vrot.slane %v4404, 6
    %4981 = vrot.lane.b32.xlu0 %v4980, 32
    %v4982 = vpop.permute.xlu0 %4981
    %v4983 = vsel %vm605, %v4982, 0
    %4985 = vmatprep.subr.mxu0 0.0
    %4986 = vmatpush1.msra.mxu0 0.0
    %4987 = vmatprep.subr.mxu0 0.0
    %4988 = vmatpush1.msra.mxu0 0.0
    %4989 = vmatprep.subr.mxu0 0.0
    %4990 = vmatpush1.msra.mxu0 0.0
    %4991 = vmatprep.subr.mxu0 0.0
    %4992 = vmatpush1.msra.mxu0 0.0
    %4993 = vmatprep.subr.mxu0 0.0
    %4994 = vmatpush1.msra.mxu0 0.0
    %4995 = vmatprep.subr.mxu0 0.0
    %4996 = vmatpush1.msra.mxu0 0.0
    %4997 = vmatprep.subr.mxu0 0.0
    %4998 = vmatpush1.msra.mxu0 0.0
    %4999 = vmatprep.subr.mxu0 0.0
    %5000 = vmatpush1.msra.mxu0 0.0
    %5001 = vmatprep.subr.mxu0 0.0
    %5002 = vmatpush1.msra.mxu0 0.0
    %5003 = vmatprep.subr.mxu0 0.0
    %5004 = vmatpush1.msra.mxu0 0.0
    %5005 = vmatprep.subr.mxu0 0.0
    %5006 = vmatpush1.msra.mxu0 0.0
    %5007 = vmatprep.subr.mxu0 0.0
    %5008 = vmatpush1.msra.mxu0 0.0
    %5009 = vmatprep.subr.mxu0 0.0
    %v5010 = vand.u32 %v595, 4294901760
    %5011 = vmatpush1.msra.mxu0 %v5010
    %5012 = vmatprep.subr.mxu0 0.0
    %v5013 = vand.u32 %v594, 4294901760
    %5014 = vmatpush1.msra.mxu0 %v5013
    %5015 = vmatprep.subr.mxu0 0.0
    %v5016 = vand.u32 %v593, 4294901760
    %5017 = vmatpush1.msra.mxu0 %v5016
    %5018 = vmatprep.subr.mxu0 0.0
    %v5019 = vand.u32 %v592, 4294901760
    %5020 = vmatpush1.msra.mxu0 %v5019
    %5021 = vmatprep.subr.mxu0 0.0
    %5022 = vmatpush2.msra.mxu0 0.0
    %5023 = vmatprep.subr.mxu0 0.0
    %5024 = vmatpush2.msra.mxu0 0.0
    %5025 = vmatprep.subr.mxu0 0.0
    %5026 = vmatpush2.msra.mxu0 0.0
    %5027 = vmatprep.subr.mxu0 0.0
    %5028 = vmatpush2.msra.mxu0 0.0
    %5029 = vmatprep.subr.mxu0 0.0
    %5030 = vmatpush2.msra.mxu0 0.0
    %5031 = vmatprep.subr.mxu0 0.0
    %5032 = vmatpush2.msra.mxu0 0.0
    %5033 = vmatprep.subr.mxu0 0.0
    %5034 = vmatpush2.msra.mxu0 0.0
    %5035 = vmatprep.subr.mxu0 0.0
    %5036 = vmatpush2.msra.mxu0 0.0
    %5037 = vmatprep.subr.mxu0 0.0
    %5038 = vmatpush2.msra.mxu0 0.0
    %5039 = vmatprep.subr.mxu0 0.0
    %5040 = vmatpush2.msra.mxu0 0.0
    %5041 = vmatprep.subr.mxu0 0.0
    %5042 = vmatpush2.msra.mxu0 0.0
    %5043 = vmatprep.subr.mxu0 0.0
    %5044 = vmatpush2.msra.mxu0 0.0
    %5045 = vmatprep.subr.mxu0 0.0
    %5046 = vmatpush2.msra.mxu0 0.0
    %5047 = vmatprep.subr.mxu0 0.0
    %5048 = vmatpush2.msra.mxu0 0.0
    %5049 = vmatprep.subr.mxu0 0.0
    %5050 = vmatpush2.msra.mxu0 0.0
    %5051 = vmatprep.subr.mxu0 0.0
    %5052 = vmatpush2.msra.mxu0 0.0
    %5053 = vmatprep.mubr.f32.mxu0 0.0
    %v5054 = vand.u32 %v4983, 4294901760
    %v5055 = vsub.f32 %v4983, %v5054
    %v5056 = vand.u32 %v5055, 4294901760
    %v5057 = vsub.f32 %v5055, %v5056
    %v5058 = vand.u32 %v5057, 4294901760
    %5059 = vmatmul.mubr.f32.gmra.mxu0 %v5058
    %v5060 = vpop.f32.mrf.mxu0
    %v5061 = vadd.f32 0.0, %v5060
    %v5062 = vpop.f32.mrf.mxu0
    %5063 = vdwg.mxu0
    %5064 = vmatprep.subr.mxu0 0.0
    %5065 = vmatpush1.msra.mxu0 0.0
    %5066 = vmatprep.subr.mxu0 0.0
    %5067 = vmatpush1.msra.mxu0 0.0
    %5068 = vmatprep.subr.mxu0 0.0
    %5069 = vmatpush1.msra.mxu0 0.0
    %5070 = vmatprep.subr.mxu0 0.0
    %5071 = vmatpush1.msra.mxu0 0.0
    %5072 = vmatprep.subr.mxu0 0.0
    %5073 = vmatpush1.msra.mxu0 0.0
    %5074 = vmatprep.subr.mxu0 0.0
    %5075 = vmatpush1.msra.mxu0 0.0
    %5076 = vmatprep.subr.mxu0 0.0
    %5077 = vmatpush1.msra.mxu0 0.0
    %5078 = vmatprep.subr.mxu0 0.0
    %5079 = vmatpush1.msra.mxu0 0.0
    %5080 = vmatprep.subr.mxu0 0.0
    %5081 = vmatpush1.msra.mxu0 0.0
    %5082 = vmatprep.subr.mxu0 0.0
    %5083 = vmatpush1.msra.mxu0 0.0
    %5084 = vmatprep.subr.mxu0 0.0
    %5085 = vmatpush1.msra.mxu0 0.0
    %5086 = vmatprep.subr.mxu0 0.0
    %5087 = vmatpush1.msra.mxu0 0.0
    %5088 = vmatprep.subr.mxu0 0.0
    %v5089 = vand.u32 %v595, 4294901760
    %v5090 = vsub.f32 %v595, %v5089
    %v5091 = vand.u32 %v5090, 4294901760
    %v5092 = vsub.f32 %v5090, %v5091
    %v5093 = vand.u32 %v5092, 4294901760
    %5094 = vmatpush1.msra.mxu0 %v5093
    %5095 = vmatprep.subr.mxu0 0.0
    %v5096 = vand.u32 %v594, 4294901760
    %v5097 = vsub.f32 %v594, %v5096
    %v5098 = vand.u32 %v5097, 4294901760
    %v5099 = vsub.f32 %v5097, %v5098
    %v5100 = vand.u32 %v5099, 4294901760
    %5101 = vmatpush1.msra.mxu0 %v5100
    %5102 = vmatprep.subr.mxu0 0.0
    %v5103 = vand.u32 %v593, 4294901760
    %v5104 = vsub.f32 %v593, %v5103
    %v5105 = vand.u32 %v5104, 4294901760
    %v5106 = vsub.f32 %v5104, %v5105
    %v5107 = vand.u32 %v5106, 4294901760
    %5108 = vmatpush1.msra.mxu0 %v5107
    %5109 = vmatprep.subr.mxu0 0.0
    %v5110 = vand.u32 %v592, 4294901760
    %v5111 = vsub.f32 %v592, %v5110
    %v5112 = vand.u32 %v5111, 4294901760
    %v5113 = vsub.f32 %v5111, %v5112
    %v5114 = vand.u32 %v5113, 4294901760
    %5115 = vmatpush1.msra.mxu0 %v5114
    %5116 = vmatprep.subr.mxu0 0.0
    %5117 = vmatpush2.msra.mxu0 0.0
    %5118 = vmatprep.subr.mxu0 0.0
    %5119 = vmatpush2.msra.mxu0 0.0
    %5120 = vmatprep.subr.mxu0 0.0
    %5121 = vmatpush2.msra.mxu0 0.0
    %5122 = vmatprep.subr.mxu0 0.0
    %5123 = vmatpush2.msra.mxu0 0.0
    %5124 = vmatprep.subr.mxu0 0.0
    %5125 = vmatpush2.msra.mxu0 0.0
    %5126 = vmatprep.subr.mxu0 0.0
    %5127 = vmatpush2.msra.mxu0 0.0
    %5128 = vmatprep.subr.mxu0 0.0
    %5129 = vmatpush2.msra.mxu0 0.0
    %5130 = vmatprep.subr.mxu0 0.0
    %5131 = vmatpush2.msra.mxu0 0.0
    %5132 = vmatprep.subr.mxu0 0.0
    %5133 = vmatpush2.msra.mxu0 0.0
    %5134 = vmatprep.subr.mxu0 0.0
    %5135 = vmatpush2.msra.mxu0 0.0
    %5136 = vmatprep.subr.mxu0 0.0
    %5137 = vmatpush2.msra.mxu0 0.0
    %5138 = vmatprep.subr.mxu0 0.0
    %5139 = vmatpush2.msra.mxu0 0.0
    %5140 = vmatprep.subr.mxu0 0.0
    %5141 = vmatpush2.msra.mxu0 0.0
    %5142 = vmatprep.subr.mxu0 0.0
    %5143 = vmatpush2.msra.mxu0 0.0
    %5144 = vmatprep.subr.mxu0 0.0
    %5145 = vmatpush2.msra.mxu0 0.0
    %5146 = vmatprep.subr.mxu0 0.0
    %5147 = vmatpush2.msra.mxu0 0.0
    %5148 = vmatprep.mubr.f32.mxu0 0.0
    %v5149 = vand.u32 %v4983, 4294901760
    %5150 = vmatmul.mubr.f32.gmra.mxu0 %v5149
    %v5151 = vpop.f32.mrf.mxu0
    %v5152 = vadd.f32 %v5061, %v5151
    %v5153 = vpop.f32.mrf.mxu0
    %5154 = vdwg.mxu0
    %5155 = vmatprep.subr.mxu0 0.0
    %5156 = vmatpush1.msra.mxu0 0.0
    %5157 = vmatprep.subr.mxu0 0.0
    %5158 = vmatpush1.msra.mxu0 0.0
    %5159 = vmatprep.subr.mxu0 0.0
    %5160 = vmatpush1.msra.mxu0 0.0
    %5161 = vmatprep.subr.mxu0 0.0
    %5162 = vmatpush1.msra.mxu0 0.0
    %5163 = vmatprep.subr.mxu0 0.0
    %5164 = vmatpush1.msra.mxu0 0.0
    %5165 = vmatprep.subr.mxu0 0.0
    %5166 = vmatpush1.msra.mxu0 0.0
    %5167 = vmatprep.subr.mxu0 0.0
    %5168 = vmatpush1.msra.mxu0 0.0
    %5169 = vmatprep.subr.mxu0 0.0
    %5170 = vmatpush1.msra.mxu0 0.0
    %5171 = vmatprep.subr.mxu0 0.0
    %5172 = vmatpush1.msra.mxu0 0.0
    %5173 = vmatprep.subr.mxu0 0.0
    %5174 = vmatpush1.msra.mxu0 0.0
    %5175 = vmatprep.subr.mxu0 0.0
    %5176 = vmatpush1.msra.mxu0 0.0
    %5177 = vmatprep.subr.mxu0 0.0
    %5178 = vmatpush1.msra.mxu0 0.0
    %5179 = vmatprep.subr.mxu0 0.0
    %v5180 = vand.u32 %v595, 4294901760
    %v5181 = vsub.f32 %v595, %v5180
    %5182 = vmatpush1.msra.mxu0 %v5181
    %5183 = vmatprep.subr.mxu0 0.0
    %v5184 = vand.u32 %v594, 4294901760
    %v5185 = vsub.f32 %v594, %v5184
    %5186 = vmatpush1.msra.mxu0 %v5185
    %5187 = vmatprep.subr.mxu0 0.0
    %v5188 = vand.u32 %v593, 4294901760
    %v5189 = vsub.f32 %v593, %v5188
    %5190 = vmatpush1.msra.mxu0 %v5189
    %5191 = vmatprep.subr.mxu0 0.0
    %v5192 = vand.u32 %v592, 4294901760
    %v5193 = vsub.f32 %v592, %v5192
    %5194 = vmatpush1.msra.mxu0 %v5193
    %5195 = vmatprep.subr.mxu0 0.0
    %5196 = vmatpush2.msra.mxu0 0.0
    %5197 = vmatprep.subr.mxu0 0.0
    %5198 = vmatpush2.msra.mxu0 0.0
    %5199 = vmatprep.subr.mxu0 0.0
    %5200 = vmatpush2.msra.mxu0 0.0
    %5201 = vmatprep.subr.mxu0 0.0
    %5202 = vmatpush2.msra.mxu0 0.0
    %5203 = vmatprep.subr.mxu0 0.0
    %5204 = vmatpush2.msra.mxu0 0.0
    %5205 = vmatprep.subr.mxu0 0.0
    %5206 = vmatpush2.msra.mxu0 0.0
    %5207 = vmatprep.subr.mxu0 0.0
    %5208 = vmatpush2.msra.mxu0 0.0
    %5209 = vmatprep.subr.mxu0 0.0
    %5210 = vmatpush2.msra.mxu0 0.0
    %5211 = vmatprep.subr.mxu0 0.0
    %5212 = vmatpush2.msra.mxu0 0.0
    %5213 = vmatprep.subr.mxu0 0.0
    %5214 = vmatpush2.msra.mxu0 0.0
    %5215 = vmatprep.subr.mxu0 0.0
    %5216 = vmatpush2.msra.mxu0 0.0
    %5217 = vmatprep.subr.mxu0 0.0
    %5218 = vmatpush2.msra.mxu0 0.0
    %5219 = vmatprep.subr.mxu0 0.0
    %5220 = vmatpush2.msra.mxu0 0.0
    %5221 = vmatprep.subr.mxu0 0.0
    %5222 = vmatpush2.msra.mxu0 0.0
    %5223 = vmatprep.subr.mxu0 0.0
    %5224 = vmatpush2.msra.mxu0 0.0
    %5225 = vmatprep.subr.mxu0 0.0
    %5226 = vmatpush2.msra.mxu0 0.0
    %5227 = vmatprep.mubr.f32.mxu0 0.0
    %v5228 = vand.u32 %v4983, 4294901760
    %v5229 = vsub.f32 %v4983, %v5228
    %5230 = vmatmul.mubr.f32.gmra.mxu0 %v5229
    %v5231 = vpop.f32.mrf.mxu0
    %v5232 = vadd.f32 %v5152, %v5231
    %v5233 = vpop.f32.mrf.mxu0
    %5234 = vdwg.mxu0
    %5235 = vmatprep.subr.mxu0 0.0
    %5236 = vmatpush1.msra.mxu0 0.0
    %5237 = vmatprep.subr.mxu0 0.0
    %5238 = vmatpush1.msra.mxu0 0.0
    %5239 = vmatprep.subr.mxu0 0.0
    %5240 = vmatpush1.msra.mxu0 0.0
    %5241 = vmatprep.subr.mxu0 0.0
    %5242 = vmatpush1.msra.mxu0 0.0
    %5243 = vmatprep.subr.mxu0 0.0
    %5244 = vmatpush1.msra.mxu0 0.0
    %5245 = vmatprep.subr.mxu0 0.0
    %5246 = vmatpush1.msra.mxu0 0.0
    %5247 = vmatprep.subr.mxu0 0.0
    %5248 = vmatpush1.msra.mxu0 0.0
    %5249 = vmatprep.subr.mxu0 0.0
    %5250 = vmatpush1.msra.mxu0 0.0
    %5251 = vmatprep.subr.mxu0 0.0
    %5252 = vmatpush1.msra.mxu0 0.0
    %5253 = vmatprep.subr.mxu0 0.0
    %5254 = vmatpush1.msra.mxu0 0.0
    %5255 = vmatprep.subr.mxu0 0.0
    %5256 = vmatpush1.msra.mxu0 0.0
    %5257 = vmatprep.subr.mxu0 0.0
    %5258 = vmatpush1.msra.mxu0 0.0
    %5259 = vmatprep.subr.mxu0 0.0
    %v5260 = vand.u32 %v595, 4294901760
    %5261 = vmatpush1.msra.mxu0 %v5260
    %5262 = vmatprep.subr.mxu0 0.0
    %v5263 = vand.u32 %v594, 4294901760
    %5264 = vmatpush1.msra.mxu0 %v5263
    %5265 = vmatprep.subr.mxu0 0.0
    %v5266 = vand.u32 %v593, 4294901760
    %5267 = vmatpush1.msra.mxu0 %v5266
    %5268 = vmatprep.subr.mxu0 0.0
    %v5269 = vand.u32 %v592, 4294901760
    %5270 = vmatpush1.msra.mxu0 %v5269
    %5271 = vmatprep.subr.mxu0 0.0
    %5272 = vmatpush2.msra.mxu0 0.0
    %5273 = vmatprep.subr.mxu0 0.0
    %5274 = vmatpush2.msra.mxu0 0.0
    %5275 = vmatprep.subr.mxu0 0.0
    %5276 = vmatpush2.msra.mxu0 0.0
    %5277 = vmatprep.subr.mxu0 0.0
    %5278 = vmatpush2.msra.mxu0 0.0
    %5279 = vmatprep.subr.mxu0 0.0
    %5280 = vmatpush2.msra.mxu0 0.0
    %5281 = vmatprep.subr.mxu0 0.0
    %5282 = vmatpush2.msra.mxu0 0.0
    %5283 = vmatprep.subr.mxu0 0.0
    %5284 = vmatpush2.msra.mxu0 0.0
    %5285 = vmatprep.subr.mxu0 0.0
    %5286 = vmatpush2.msra.mxu0 0.0
    %5287 = vmatprep.subr.mxu0 0.0
    %5288 = vmatpush2.msra.mxu0 0.0
    %5289 = vmatprep.subr.mxu0 0.0
    %5290 = vmatpush2.msra.mxu0 0.0
    %5291 = vmatprep.subr.mxu0 0.0
    %5292 = vmatpush2.msra.mxu0 0.0
    %5293 = vmatprep.subr.mxu0 0.0
    %5294 = vmatpush2.msra.mxu0 0.0
    %5295 = vmatprep.subr.mxu0 0.0
    %5296 = vmatpush2.msra.mxu0 0.0
    %5297 = vmatprep.subr.mxu0 0.0
    %5298 = vmatpush2.msra.mxu0 0.0
    %5299 = vmatprep.subr.mxu0 0.0
    %5300 = vmatpush2.msra.mxu0 0.0
    %5301 = vmatprep.subr.mxu0 0.0
    %5302 = vmatpush2.msra.mxu0 0.0
    %5303 = vmatprep.mubr.f32.mxu0 0.0
    %v5304 = vand.u32 %v4983, 4294901760
    %v5305 = vsub.f32 %v4983, %v5304
    %v5306 = vand.u32 %v5305, 4294901760
    %5307 = vmatmul.mubr.f32.gmra.mxu0 %v5306
    %v5308 = vpop.f32.mrf.mxu0
    %v5309 = vadd.f32 %v5232, %v5308
    %v5310 = vpop.f32.mrf.mxu0
    %5311 = vdwg.mxu0
    %5312 = vmatprep.subr.mxu0 0.0
    %5313 = vmatpush1.msra.mxu0 0.0
    %5314 = vmatprep.subr.mxu0 0.0
    %5315 = vmatpush1.msra.mxu0 0.0
    %5316 = vmatprep.subr.mxu0 0.0
    %5317 = vmatpush1.msra.mxu0 0.0
    %5318 = vmatprep.subr.mxu0 0.0
    %5319 = vmatpush1.msra.mxu0 0.0
    %5320 = vmatprep.subr.mxu0 0.0
    %5321 = vmatpush1.msra.mxu0 0.0
    %5322 = vmatprep.subr.mxu0 0.0
    %5323 = vmatpush1.msra.mxu0 0.0
    %5324 = vmatprep.subr.mxu0 0.0
    %5325 = vmatpush1.msra.mxu0 0.0
    %5326 = vmatprep.subr.mxu0 0.0
    %5327 = vmatpush1.msra.mxu0 0.0
    %5328 = vmatprep.subr.mxu0 0.0
    %5329 = vmatpush1.msra.mxu0 0.0
    %5330 = vmatprep.subr.mxu0 0.0
    %5331 = vmatpush1.msra.mxu0 0.0
    %5332 = vmatprep.subr.mxu0 0.0
    %5333 = vmatpush1.msra.mxu0 0.0
    %5334 = vmatprep.subr.mxu0 0.0
    %5335 = vmatpush1.msra.mxu0 0.0
    %5336 = vmatprep.subr.mxu0 0.0
    %v5337 = vand.u32 %v595, 4294901760
    %v5338 = vsub.f32 %v595, %v5337
    %v5339 = vand.u32 %v5338, 4294901760
    %5340 = vmatpush1.msra.mxu0 %v5339
    %5341 = vmatprep.subr.mxu0 0.0
    %v5342 = vand.u32 %v594, 4294901760
    %v5343 = vsub.f32 %v594, %v5342
    %v5344 = vand.u32 %v5343, 4294901760
    %5345 = vmatpush1.msra.mxu0 %v5344
    %5346 = vmatprep.subr.mxu0 0.0
    %v5347 = vand.u32 %v593, 4294901760
    %v5348 = vsub.f32 %v593, %v5347
    %v5349 = vand.u32 %v5348, 4294901760
    %5350 = vmatpush1.msra.mxu0 %v5349
    %5351 = vmatprep.subr.mxu0 0.0
    %v5352 = vand.u32 %v592, 4294901760
    %v5353 = vsub.f32 %v592, %v5352
    %v5354 = vand.u32 %v5353, 4294901760
    %5355 = vmatpush1.msra.mxu0 %v5354
    %5356 = vmatprep.subr.mxu0 0.0
    %5357 = vmatpush2.msra.mxu0 0.0
    %5358 = vmatprep.subr.mxu0 0.0
    %5359 = vmatpush2.msra.mxu0 0.0
    %5360 = vmatprep.subr.mxu0 0.0
    %5361 = vmatpush2.msra.mxu0 0.0
    %5362 = vmatprep.subr.mxu0 0.0
    %5363 = vmatpush2.msra.mxu0 0.0
    %5364 = vmatprep.subr.mxu0 0.0
    %5365 = vmatpush2.msra.mxu0 0.0
    %5366 = vmatprep.subr.mxu0 0.0
    %5367 = vmatpush2.msra.mxu0 0.0
    %5368 = vmatprep.subr.mxu0 0.0
    %5369 = vmatpush2.msra.mxu0 0.0
    %5370 = vmatprep.subr.mxu0 0.0
    %5371 = vmatpush2.msra.mxu0 0.0
    %5372 = vmatprep.subr.mxu0 0.0
    %5373 = vmatpush2.msra.mxu0 0.0
    %5374 = vmatprep.subr.mxu0 0.0
    %5375 = vmatpush2.msra.mxu0 0.0
    %5376 = vmatprep.subr.mxu0 0.0
    %5377 = vmatpush2.msra.mxu0 0.0
    %5378 = vmatprep.subr.mxu0 0.0
    %5379 = vmatpush2.msra.mxu0 0.0
    %5380 = vmatprep.subr.mxu0 0.0
    %5381 = vmatpush2.msra.mxu0 0.0
    %5382 = vmatprep.subr.mxu0 0.0
    %5383 = vmatpush2.msra.mxu0 0.0
    %5384 = vmatprep.subr.mxu0 0.0
    %5385 = vmatpush2.msra.mxu0 0.0
    %5386 = vmatprep.subr.mxu0 0.0
    %5387 = vmatpush2.msra.mxu0 0.0
    %5388 = vmatprep.mubr.f32.mxu0 0.0
    %v5389 = vand.u32 %v4983, 4294901760
    %5390 = vmatmul.mubr.f32.gmra.mxu0 %v5389
    %v5391 = vpop.f32.mrf.mxu0
    %v5392 = vadd.f32 %v5309, %v5391
    %v5393 = vpop.f32.mrf.mxu0
    %5394 = vdwg.mxu0
    %5395 = vmatprep.subr.mxu0 0.0
    %5396 = vmatpush1.msra.mxu0 0.0
    %5397 = vmatprep.subr.mxu0 0.0
    %5398 = vmatpush1.msra.mxu0 0.0
    %5399 = vmatprep.subr.mxu0 0.0
    %5400 = vmatpush1.msra.mxu0 0.0
    %5401 = vmatprep.subr.mxu0 0.0
    %5402 = vmatpush1.msra.mxu0 0.0
    %5403 = vmatprep.subr.mxu0 0.0
    %5404 = vmatpush1.msra.mxu0 0.0
    %5405 = vmatprep.subr.mxu0 0.0
    %5406 = vmatpush1.msra.mxu0 0.0
    %5407 = vmatprep.subr.mxu0 0.0
    %5408 = vmatpush1.msra.mxu0 0.0
    %5409 = vmatprep.subr.mxu0 0.0
    %5410 = vmatpush1.msra.mxu0 0.0
    %5411 = vmatprep.subr.mxu0 0.0
    %5412 = vmatpush1.msra.mxu0 0.0
    %5413 = vmatprep.subr.mxu0 0.0
    %5414 = vmatpush1.msra.mxu0 0.0
    %5415 = vmatprep.subr.mxu0 0.0
    %5416 = vmatpush1.msra.mxu0 0.0
    %5417 = vmatprep.subr.mxu0 0.0
    %5418 = vmatpush1.msra.mxu0 0.0
    %5419 = vmatprep.subr.mxu0 0.0
    %v5420 = vand.u32 %v595, 4294901760
    %5421 = vmatpush1.msra.mxu0 %v5420
    %5422 = vmatprep.subr.mxu0 0.0
    %v5423 = vand.u32 %v594, 4294901760
    %5424 = vmatpush1.msra.mxu0 %v5423
    %5425 = vmatprep.subr.mxu0 0.0
    %v5426 = vand.u32 %v593, 4294901760
    %5427 = vmatpush1.msra.mxu0 %v5426
    %5428 = vmatprep.subr.mxu0 0.0
    %v5429 = vand.u32 %v592, 4294901760
    %5430 = vmatpush1.msra.mxu0 %v5429
    %5431 = vmatprep.subr.mxu0 0.0
    %5432 = vmatpush2.msra.mxu0 0.0
    %5433 = vmatprep.subr.mxu0 0.0
    %5434 = vmatpush2.msra.mxu0 0.0
    %5435 = vmatprep.subr.mxu0 0.0
    %5436 = vmatpush2.msra.mxu0 0.0
    %5437 = vmatprep.subr.mxu0 0.0
    %5438 = vmatpush2.msra.mxu0 0.0
    %5439 = vmatprep.subr.mxu0 0.0
    %5440 = vmatpush2.msra.mxu0 0.0
    %5441 = vmatprep.subr.mxu0 0.0
    %5442 = vmatpush2.msra.mxu0 0.0
    %5443 = vmatprep.subr.mxu0 0.0
    %5444 = vmatpush2.msra.mxu0 0.0
    %5445 = vmatprep.subr.mxu0 0.0
    %5446 = vmatpush2.msra.mxu0 0.0
    %5447 = vmatprep.subr.mxu0 0.0
    %5448 = vmatpush2.msra.mxu0 0.0
    %5449 = vmatprep.subr.mxu0 0.0
    %5450 = vmatpush2.msra.mxu0 0.0
    %5451 = vmatprep.subr.mxu0 0.0
    %5452 = vmatpush2.msra.mxu0 0.0
    %5453 = vmatprep.subr.mxu0 0.0
    %5454 = vmatpush2.msra.mxu0 0.0
    %5455 = vmatprep.subr.mxu0 0.0
    %5456 = vmatpush2.msra.mxu0 0.0
    %5457 = vmatprep.subr.mxu0 0.0
    %5458 = vmatpush2.msra.mxu0 0.0
    %5459 = vmatprep.subr.mxu0 0.0
    %5460 = vmatpush2.msra.mxu0 0.0
    %5461 = vmatprep.subr.mxu0 0.0
    %5462 = vmatpush2.msra.mxu0 0.0
    %5463 = vmatprep.mubr.f32.mxu0 0.0
    %v5464 = vand.u32 %v4983, 4294901760
    %5465 = vmatmul.mubr.f32.gmra.mxu0 %v5464
    %v5466 = vpop.f32.mrf.mxu0
    %v5467 = vadd.f32 %v5392, %v5466
    %v5468 = vpop.f32.mrf.mxu0
    %5469 = vdwg.mxu0
    %v5470 = vadd.f32 %v589, %v5467
    %v5471 = vxor.u32 %v5470, 2147483648
    %v5472 = vmul.f32 %v5471, 1.442695
    %v5473 = vpow.pop %v5472
    %v5474 = vadd.f32 %v5473, 1.0
    %v5475 = vrcp.pop %v5474
    %v5476 = vmul.f32 1.0, %v5475
    %v5477 = vtanh.pop %v5470
    %v5479 = vrot.slane %v4398, 6
    %v5481 = vmul.f32 %v5476, %v5479
    %5483 = vrot.lane.b32.xlu0 %v5477, 64
    %v5484 = vpop.permute.xlu0 %5483
    %v5486 = vmul.f32 %v5476, %v5484
    %5488 = vrot.lane.b32.xlu0 %v5486, 32
    %v5489 = vpop.permute.xlu0 %5488
    %v5491 = vadd.f32 %v5481, %v5489
    %v5492 = vtanh.pop %v5491
    %5494 = vrot.lane.b32.xlu0 %v5492, 64
    %v5495 = vpop.permute.xlu0 %5494
    %v5497 = vmul.f32 %v5476, %v5495
    %5499 = vrot.lane.b32.xlu0 %v5497, 32
    %v5500 = vpop.permute.xlu0 %5499
    %5503 = vrot.lane.b32.xlu0 %v4979, 64
    %v5504 = vpop.permute.xlu0 %5503
    %v5506 = vsel %vm605, %v5500, %v5504
    %v5508 = vsel %vm1130, %v5506, 0
    %5510 = vmatprep.subr.mxu0 0.0
    %5511 = vmatpush1.msra.mxu0 0.0
    %5512 = vmatprep.subr.mxu0 0.0
    %5513 = vmatpush1.msra.mxu0 0.0
    %5514 = vmatprep.subr.mxu0 0.0
    %5515 = vmatpush1.msra.mxu0 0.0
    %5516 = vmatprep.subr.mxu0 0.0
    %5517 = vmatpush1.msra.mxu0 0.0
    %5518 = vmatprep.subr.mxu0 0.0
    %5519 = vmatpush1.msra.mxu0 0.0
    %5520 = vmatprep.subr.mxu0 0.0
    %5521 = vmatpush1.msra.mxu0 0.0
    %5522 = vmatprep.subr.mxu0 0.0
    %5523 = vmatpush1.msra.mxu0 0.0
    %5524 = vmatprep.subr.mxu0 0.0
    %5525 = vmatpush1.msra.mxu0 0.0
    %5526 = vmatprep.subr.mxu0 0.0
    %v5527 = vand.u32 %v603, 4294901760
    %5528 = vmatpush1.msra.mxu0 %v5527
    %5529 = vmatprep.subr.mxu0 0.0
    %v5530 = vand.u32 %v602, 4294901760
    %5531 = vmatpush1.msra.mxu0 %v5530
    %5532 = vmatprep.subr.mxu0 0.0
    %v5533 = vand.u32 %v601, 4294901760
    %5534 = vmatpush1.msra.mxu0 %v5533
    %5535 = vmatprep.subr.mxu0 0.0
    %v5536 = vand.u32 %v600, 4294901760
    %5537 = vmatpush1.msra.mxu0 %v5536
    %5538 = vmatprep.subr.mxu0 0.0
    %v5539 = vand.u32 %v599, 4294901760
    %5540 = vmatpush1.msra.mxu0 %v5539
    %5541 = vmatprep.subr.mxu0 0.0
    %v5542 = vand.u32 %v598, 4294901760
    %5543 = vmatpush1.msra.mxu0 %v5542
    %5544 = vmatprep.subr.mxu0 0.0
    %v5545 = vand.u32 %v597, 4294901760
    %5546 = vmatpush1.msra.mxu0 %v5545
    %5547 = vmatprep.subr.mxu0 0.0
    %v5548 = vand.u32 %v596, 4294901760
    %5549 = vmatpush1.msra.mxu0 %v5548
    %5550 = vmatprep.subr.mxu0 0.0
    %5551 = vmatpush2.msra.mxu0 0.0
    %5552 = vmatprep.subr.mxu0 0.0
    %5553 = vmatpush2.msra.mxu0 0.0
    %5554 = vmatprep.subr.mxu0 0.0
    %5555 = vmatpush2.msra.mxu0 0.0
    %5556 = vmatprep.subr.mxu0 0.0
    %5557 = vmatpush2.msra.mxu0 0.0
    %5558 = vmatprep.subr.mxu0 0.0
    %5559 = vmatpush2.msra.mxu0 0.0
    %5560 = vmatprep.subr.mxu0 0.0
    %5561 = vmatpush2.msra.mxu0 0.0
    %5562 = vmatprep.subr.mxu0 0.0
    %5563 = vmatpush2.msra.mxu0 0.0
    %5564 = vmatprep.subr.mxu0 0.0
    %5565 = vmatpush2.msra.mxu0 0.0
    %5566 = vmatprep.subr.mxu0 0.0
    %5567 = vmatpush2.msra.mxu0 0.0
    %5568 = vmatprep.subr.mxu0 0.0
    %5569 = vmatpush2.msra.mxu0 0.0
    %5570 = vmatprep.subr.mxu0 0.0
    %5571 = vmatpush2.msra.mxu0 0.0
    %5572 = vmatprep.subr.mxu0 0.0
    %5573 = vmatpush2.msra.mxu0 0.0
    %5574 = vmatprep.subr.mxu0 0.0
    %5575 = vmatpush2.msra.mxu0 0.0
    %5576 = vmatprep.subr.mxu0 0.0
    %5577 = vmatpush2.msra.mxu0 0.0
    %5578 = vmatprep.subr.mxu0 0.0
    %5579 = vmatpush2.msra.mxu0 0.0
    %5580 = vmatprep.subr.mxu0 0.0
    %5581 = vmatpush2.msra.mxu0 0.0
    %5582 = vmatprep.mubr.f32.mxu0 0.0
    %v5583 = vand.u32 %v5508, 4294901760
    %v5584 = vsub.f32 %v5508, %v5583
    %v5585 = vand.u32 %v5584, 4294901760
    %v5586 = vsub.f32 %v5584, %v5585
    %v5587 = vand.u32 %v5586, 4294901760
    %5588 = vmatmul.mubr.f32.gmra.mxu0 %v5587
    %v5589 = vpop.f32.mrf.mxu0
    %v5590 = vadd.f32 %v1128, %v5589
    %v5591 = vpop.f32.mrf.mxu0
    %5592 = vdwg.mxu0
    %5593 = vmatprep.subr.mxu0 0.0
    %5594 = vmatpush1.msra.mxu0 0.0
    %5595 = vmatprep.subr.mxu0 0.0
    %5596 = vmatpush1.msra.mxu0 0.0
    %5597 = vmatprep.subr.mxu0 0.0
    %5598 = vmatpush1.msra.mxu0 0.0
    %5599 = vmatprep.subr.mxu0 0.0
    %5600 = vmatpush1.msra.mxu0 0.0
    %5601 = vmatprep.subr.mxu0 0.0
    %5602 = vmatpush1.msra.mxu0 0.0
    %5603 = vmatprep.subr.mxu0 0.0
    %5604 = vmatpush1.msra.mxu0 0.0
    %5605 = vmatprep.subr.mxu0 0.0
    %5606 = vmatpush1.msra.mxu0 0.0
    %5607 = vmatprep.subr.mxu0 0.0
    %5608 = vmatpush1.msra.mxu0 0.0
    %5609 = vmatprep.subr.mxu0 0.0
    %v5610 = vand.u32 %v603, 4294901760
    %v5611 = vsub.f32 %v603, %v5610
    %v5612 = vand.u32 %v5611, 4294901760
    %v5613 = vsub.f32 %v5611, %v5612
    %v5614 = vand.u32 %v5613, 4294901760
    %5615 = vmatpush1.msra.mxu0 %v5614
    %5616 = vmatprep.subr.mxu0 0.0
    %v5617 = vand.u32 %v602, 4294901760
    %v5618 = vsub.f32 %v602, %v5617
    %v5619 = vand.u32 %v5618, 4294901760
    %v5620 = vsub.f32 %v5618, %v5619
    %v5621 = vand.u32 %v5620, 4294901760
    %5622 = vmatpush1.msra.mxu0 %v5621
    %5623 = vmatprep.subr.mxu0 0.0
    %v5624 = vand.u32 %v601, 4294901760
    %v5625 = vsub.f32 %v601, %v5624
    %v5626 = vand.u32 %v5625, 4294901760
    %v5627 = vsub.f32 %v5625, %v5626
    %v5628 = vand.u32 %v5627, 4294901760
    %5629 = vmatpush1.msra.mxu0 %v5628
    %5630 = vmatprep.subr.mxu0 0.0
    %v5631 = vand.u32 %v600, 4294901760
    %v5632 = vsub.f32 %v600, %v5631
    %v5633 = vand.u32 %v5632, 4294901760
    %v5634 = vsub.f32 %v5632, %v5633
    %v5635 = vand.u32 %v5634, 4294901760
    %5636 = vmatpush1.msra.mxu0 %v5635
    %5637 = vmatprep.subr.mxu0 0.0
    %v5638 = vand.u32 %v599, 4294901760
    %v5639 = vsub.f32 %v599, %v5638
    %v5640 = vand.u32 %v5639, 4294901760
    %v5641 = vsub.f32 %v5639, %v5640
    %v5642 = vand.u32 %v5641, 4294901760
    %5643 = vmatpush1.msra.mxu0 %v5642
    %5644 = vmatprep.subr.mxu0 0.0
    %v5645 = vand.u32 %v598, 4294901760
    %v5646 = vsub.f32 %v598, %v5645
    %v5647 = vand.u32 %v5646, 4294901760
    %v5648 = vsub.f32 %v5646, %v5647
    %v5649 = vand.u32 %v5648, 4294901760
    %5650 = vmatpush1.msra.mxu0 %v5649
    %5651 = vmatprep.subr.mxu0 0.0
    %v5652 = vand.u32 %v597, 4294901760
    %v5653 = vsub.f32 %v597, %v5652
    %v5654 = vand.u32 %v5653, 4294901760
    %v5655 = vsub.f32 %v5653, %v5654
    %v5656 = vand.u32 %v5655, 4294901760
    %5657 = vmatpush1.msra.mxu0 %v5656
    %5658 = vmatprep.subr.mxu0 0.0
    %v5659 = vand.u32 %v596, 4294901760
    %v5660 = vsub.f32 %v596, %v5659
    %v5661 = vand.u32 %v5660, 4294901760
    %v5662 = vsub.f32 %v5660, %v5661
    %v5663 = vand.u32 %v5662, 4294901760
    %5664 = vmatpush1.msra.mxu0 %v5663
    %5665 = vmatprep.subr.mxu0 0.0
    %5666 = vmatpush2.msra.mxu0 0.0
    %5667 = vmatprep.subr.mxu0 0.0
    %5668 = vmatpush2.msra.mxu0 0.0
    %5669 = vmatprep.subr.mxu0 0.0
    %5670 = vmatpush2.msra.mxu0 0.0
    %5671 = vmatprep.subr.mxu0 0.0
    %5672 = vmatpush2.msra.mxu0 0.0
    %5673 = vmatprep.subr.mxu0 0.0
    %5674 = vmatpush2.msra.mxu0 0.0
    %5675 = vmatprep.subr.mxu0 0.0
    %5676 = vmatpush2.msra.mxu0 0.0
    %5677 = vmatprep.subr.mxu0 0.0
    %5678 = vmatpush2.msra.mxu0 0.0
    %5679 = vmatprep.subr.mxu0 0.0
    %5680 = vmatpush2.msra.mxu0 0.0
    %5681 = vmatprep.subr.mxu0 0.0
    %5682 = vmatpush2.msra.mxu0 0.0
    %5683 = vmatprep.subr.mxu0 0.0
    %5684 = vmatpush2.msra.mxu0 0.0
    %5685 = vmatprep.subr.mxu0 0.0
    %5686 = vmatpush2.msra.mxu0 0.0
    %5687 = vmatprep.subr.mxu0 0.0
    %5688 = vmatpush2.msra.mxu0 0.0
    %5689 = vmatprep.subr.mxu0 0.0
    %5690 = vmatpush2.msra.mxu0 0.0
    %5691 = vmatprep.subr.mxu0 0.0
    %5692 = vmatpush2.msra.mxu0 0.0
    %5693 = vmatprep.subr.mxu0 0.0
    %5694 = vmatpush2.msra.mxu0 0.0
    %5695 = vmatprep.subr.mxu0 0.0
    %5696 = vmatpush2.msra.mxu0 0.0
    %5697 = vmatprep.mubr.f32.mxu0 0.0
    %v5698 = vand.u32 %v5508, 4294901760
    %5699 = vmatmul.mubr.f32.gmra.mxu0 %v5698
    %v5700 = vpop.f32.mrf.mxu0
    %v5701 = vadd.f32 %v5590, %v5700
    %v5702 = vpop.f32.mrf.mxu0
    %5703 = vdwg.mxu0
    %5704 = vmatprep.subr.mxu0 0.0
    %5705 = vmatpush1.msra.mxu0 0.0
    %5706 = vmatprep.subr.mxu0 0.0
    %5707 = vmatpush1.msra.mxu0 0.0
    %5708 = vmatprep.subr.mxu0 0.0
    %5709 = vmatpush1.msra.mxu0 0.0
    %5710 = vmatprep.subr.mxu0 0.0
    %5711 = vmatpush1.msra.mxu0 0.0
    %5712 = vmatprep.subr.mxu0 0.0
    %5713 = vmatpush1.msra.mxu0 0.0
    %5714 = vmatprep.subr.mxu0 0.0
    %5715 = vmatpush1.msra.mxu0 0.0
    %5716 = vmatprep.subr.mxu0 0.0
    %5717 = vmatpush1.msra.mxu0 0.0
    %5718 = vmatprep.subr.mxu0 0.0
    %5719 = vmatpush1.msra.mxu0 0.0
    %5720 = vmatprep.subr.mxu0 0.0
    %v5721 = vand.u32 %v603, 4294901760
    %v5722 = vsub.f32 %v603, %v5721
    %5723 = vmatpush1.msra.mxu0 %v5722
    %5724 = vmatprep.subr.mxu0 0.0
    %v5725 = vand.u32 %v602, 4294901760
    %v5726 = vsub.f32 %v602, %v5725
    %5727 = vmatpush1.msra.mxu0 %v5726
    %5728 = vmatprep.subr.mxu0 0.0
    %v5729 = vand.u32 %v601, 4294901760
    %v5730 = vsub.f32 %v601, %v5729
    %5731 = vmatpush1.msra.mxu0 %v5730
    %5732 = vmatprep.subr.mxu0 0.0
    %v5733 = vand.u32 %v600, 4294901760
    %v5734 = vsub.f32 %v600, %v5733
    %5735 = vmatpush1.msra.mxu0 %v5734
    %5736 = vmatprep.subr.mxu0 0.0
    %v5737 = vand.u32 %v599, 4294901760
    %v5738 = vsub.f32 %v599, %v5737
    %5739 = vmatpush1.msra.mxu0 %v5738
    %5740 = vmatprep.subr.mxu0 0.0
    %v5741 = vand.u32 %v598, 4294901760
    %v5742 = vsub.f32 %v598, %v5741
    %5743 = vmatpush1.msra.mxu0 %v5742
    %5744 = vmatprep.subr.mxu0 0.0
    %v5745 = vand.u32 %v597, 4294901760
    %v5746 = vsub.f32 %v597, %v5745
    %5747 = vmatpush1.msra.mxu0 %v5746
    %5748 = vmatprep.subr.mxu0 0.0
    %v5749 = vand.u32 %v596, 4294901760
    %v5750 = vsub.f32 %v596, %v5749
    %5751 = vmatpush1.msra.mxu0 %v5750
    %5752 = vmatprep.subr.mxu0 0.0
    %5753 = vmatpush2.msra.mxu0 0.0
    %5754 = vmatprep.subr.mxu0 0.0
    %5755 = vmatpush2.msra.mxu0 0.0
    %5756 = vmatprep.subr.mxu0 0.0
    %5757 = vmatpush2.msra.mxu0 0.0
    %5758 = vmatprep.subr.mxu0 0.0
    %5759 = vmatpush2.msra.mxu0 0.0
    %5760 = vmatprep.subr.mxu0 0.0
    %5761 = vmatpush2.msra.mxu0 0.0
    %5762 = vmatprep.subr.mxu0 0.0
    %5763 = vmatpush2.msra.mxu0 0.0
    %5764 = vmatprep.subr.mxu0 0.0
    %5765 = vmatpush2.msra.mxu0 0.0
    %5766 = vmatprep.subr.mxu0 0.0
    %5767 = vmatpush2.msra.mxu0 0.0
    %5768 = vmatprep.subr.mxu0 0.0
    %5769 = vmatpush2.msra.mxu0 0.0
    %5770 = vmatprep.subr.mxu0 0.0
    %5771 = vmatpush2.msra.mxu0 0.0
    %5772 = vmatprep.subr.mxu0 0.0
    %5773 = vmatpush2.msra.mxu0 0.0
    %5774 = vmatprep.subr.mxu0 0.0
    %5775 = vmatpush2.msra.mxu0 0.0
    %5776 = vmatprep.subr.mxu0 0.0
    %5777 = vmatpush2.msra.mxu0 0.0
    %5778 = vmatprep.subr.mxu0 0.0
    %5779 = vmatpush2.msra.mxu0 0.0
    %5780 = vmatprep.subr.mxu0 0.0
    %5781 = vmatpush2.msra.mxu0 0.0
    %5782 = vmatprep.subr.mxu0 0.0
    %5783 = vmatpush2.msra.mxu0 0.0
    %5784 = vmatprep.mubr.f32.mxu0 0.0
    %v5785 = vand.u32 %v5508, 4294901760
    %v5786 = vsub.f32 %v5508, %v5785
    %5787 = vmatmul.mubr.f32.gmra.mxu0 %v5786
    %v5788 = vpop.f32.mrf.mxu0
    %v5789 = vadd.f32 %v5701, %v5788
    %v5790 = vpop.f32.mrf.mxu0
    %5791 = vdwg.mxu0
    %5792 = vmatprep.subr.mxu0 0.0
    %5793 = vmatpush1.msra.mxu0 0.0
    %5794 = vmatprep.subr.mxu0 0.0
    %5795 = vmatpush1.msra.mxu0 0.0
    %5796 = vmatprep.subr.mxu0 0.0
    %5797 = vmatpush1.msra.mxu0 0.0
    %5798 = vmatprep.subr.mxu0 0.0
    %5799 = vmatpush1.msra.mxu0 0.0
    %5800 = vmatprep.subr.mxu0 0.0
    %5801 = vmatpush1.msra.mxu0 0.0
    %5802 = vmatprep.subr.mxu0 0.0
    %5803 = vmatpush1.msra.mxu0 0.0
    %5804 = vmatprep.subr.mxu0 0.0
    %5805 = vmatpush1.msra.mxu0 0.0
    %5806 = vmatprep.subr.mxu0 0.0
    %5807 = vmatpush1.msra.mxu0 0.0
    %5808 = vmatprep.subr.mxu0 0.0
    %v5809 = vand.u32 %v603, 4294901760
    %5810 = vmatpush1.msra.mxu0 %v5809
    %5811 = vmatprep.subr.mxu0 0.0
    %v5812 = vand.u32 %v602, 4294901760
    %5813 = vmatpush1.msra.mxu0 %v5812
    %5814 = vmatprep.subr.mxu0 0.0
    %v5815 = vand.u32 %v601, 4294901760
    %5816 = vmatpush1.msra.mxu0 %v5815
    %5817 = vmatprep.subr.mxu0 0.0
    %v5818 = vand.u32 %v600, 4294901760
    %5819 = vmatpush1.msra.mxu0 %v5818
    %5820 = vmatprep.subr.mxu0 0.0
    %v5821 = vand.u32 %v599, 4294901760
    %5822 = vmatpush1.msra.mxu0 %v5821
    %5823 = vmatprep.subr.mxu0 0.0
    %v5824 = vand.u32 %v598, 4294901760
    %5825 = vmatpush1.msra.mxu0 %v5824
    %5826 = vmatprep.subr.mxu0 0.0
    %v5827 = vand.u32 %v597, 4294901760
    %5828 = vmatpush1.msra.mxu0 %v5827
    %5829 = vmatprep.subr.mxu0 0.0
    %v5830 = vand.u32 %v596, 4294901760
    %5831 = vmatpush1.msra.mxu0 %v5830
    %5832 = vmatprep.subr.mxu0 0.0
    %5833 = vmatpush2.msra.mxu0 0.0
    %5834 = vmatprep.subr.mxu0 0.0
    %5835 = vmatpush2.msra.mxu0 0.0
    %5836 = vmatprep.subr.mxu0 0.0
    %5837 = vmatpush2.msra.mxu0 0.0
    %5838 = vmatprep.subr.mxu0 0.0
    %5839 = vmatpush2.msra.mxu0 0.0
    %5840 = vmatprep.subr.mxu0 0.0
    %5841 = vmatpush2.msra.mxu0 0.0
    %5842 = vmatprep.subr.mxu0 0.0
    %5843 = vmatpush2.msra.mxu0 0.0
    %5844 = vmatprep.subr.mxu0 0.0
    %5845 = vmatpush2.msra.mxu0 0.0
    %5846 = vmatprep.subr.mxu0 0.0
    %5847 = vmatpush2.msra.mxu0 0.0
    %5848 = vmatprep.subr.mxu0 0.0
    %5849 = vmatpush2.msra.mxu0 0.0
    %5850 = vmatprep.subr.mxu0 0.0
    %5851 = vmatpush2.msra.mxu0 0.0
    %5852 = vmatprep.subr.mxu0 0.0
    %5853 = vmatpush2.msra.mxu0 0.0
    %5854 = vmatprep.subr.mxu0 0.0
    %5855 = vmatpush2.msra.mxu0 0.0
    %5856 = vmatprep.subr.mxu0 0.0
    %5857 = vmatpush2.msra.mxu0 0.0
    %5858 = vmatprep.subr.mxu0 0.0
    %5859 = vmatpush2.msra.mxu0 0.0
    %5860 = vmatprep.subr.mxu0 0.0
    %5861 = vmatpush2.msra.mxu0 0.0
    %5862 = vmatprep.subr.mxu0 0.0
    %5863 = vmatpush2.msra.mxu0 0.0
    %5864 = vmatprep.mubr.f32.mxu0 0.0
    %v5865 = vand.u32 %v5508, 4294901760
    %v5866 = vsub.f32 %v5508, %v5865
    %v5867 = vand.u32 %v5866, 4294901760
    %5868 = vmatmul.mubr.f32.gmra.mxu0 %v5867
    %v5869 = vpop.f32.mrf.mxu0
    %v5870 = vadd.f32 %v5789, %v5869
    %v5871 = vpop.f32.mrf.mxu0
    %5872 = vdwg.mxu0
    %5873 = vmatprep.subr.mxu0 0.0
    %5874 = vmatpush1.msra.mxu0 0.0
    %5875 = vmatprep.subr.mxu0 0.0
    %5876 = vmatpush1.msra.mxu0 0.0
    %5877 = vmatprep.subr.mxu0 0.0
    %5878 = vmatpush1.msra.mxu0 0.0
    %5879 = vmatprep.subr.mxu0 0.0
    %5880 = vmatpush1.msra.mxu0 0.0
    %5881 = vmatprep.subr.mxu0 0.0
    %5882 = vmatpush1.msra.mxu0 0.0
    %5883 = vmatprep.subr.mxu0 0.0
    %5884 = vmatpush1.msra.mxu0 0.0
    %5885 = vmatprep.subr.mxu0 0.0
    %5886 = vmatpush1.msra.mxu0 0.0
    %5887 = vmatprep.subr.mxu0 0.0
    %5888 = vmatpush1.msra.mxu0 0.0
    %5889 = vmatprep.subr.mxu0 0.0
    %v5890 = vand.u32 %v603, 4294901760
    %v5891 = vsub.f32 %v603, %v5890
    %v5892 = vand.u32 %v5891, 4294901760
    %5893 = vmatpush1.msra.mxu0 %v5892
    %5894 = vmatprep.subr.mxu0 0.0
    %v5895 = vand.u32 %v602, 4294901760
    %v5896 = vsub.f32 %v602, %v5895
    %v5897 = vand.u32 %v5896, 4294901760
    %5898 = vmatpush1.msra.mxu0 %v5897
    %5899 = vmatprep.subr.mxu0 0.0
    %v5900 = vand.u32 %v601, 4294901760
    %v5901 = vsub.f32 %v601, %v5900
    %v5902 = vand.u32 %v5901, 4294901760
    %5903 = vmatpush1.msra.mxu0 %v5902
    %5904 = vmatprep.subr.mxu0 0.0
    %v5905 = vand.u32 %v600, 4294901760
    %v5906 = vsub.f32 %v600, %v5905
    %v5907 = vand.u32 %v5906, 4294901760
    %5908 = vmatpush1.msra.mxu0 %v5907
    %5909 = vmatprep.subr.mxu0 0.0
    %v5910 = vand.u32 %v599, 4294901760
    %v5911 = vsub.f32 %v599, %v5910
    %v5912 = vand.u32 %v5911, 4294901760
    %5913 = vmatpush1.msra.mxu0 %v5912
    %5914 = vmatprep.subr.mxu0 0.0
    %v5915 = vand.u32 %v598, 4294901760
    %v5916 = vsub.f32 %v598, %v5915
    %v5917 = vand.u32 %v5916, 4294901760
    %5918 = vmatpush1.msra.mxu0 %v5917
    %5919 = vmatprep.subr.mxu0 0.0
    %v5920 = vand.u32 %v597, 4294901760
    %v5921 = vsub.f32 %v597, %v5920
    %v5922 = vand.u32 %v5921, 4294901760
    %5923 = vmatpush1.msra.mxu0 %v5922
    %5924 = vmatprep.subr.mxu0 0.0
    %v5925 = vand.u32 %v596, 4294901760
    %v5926 = vsub.f32 %v596, %v5925
    %v5927 = vand.u32 %v5926, 4294901760
    %5928 = vmatpush1.msra.mxu0 %v5927
    %5929 = vmatprep.subr.mxu0 0.0
    %5930 = vmatpush2.msra.mxu0 0.0
    %5931 = vmatprep.subr.mxu0 0.0
    %5932 = vmatpush2.msra.mxu0 0.0
    %5933 = vmatprep.subr.mxu0 0.0
    %5934 = vmatpush2.msra.mxu0 0.0
    %5935 = vmatprep.subr.mxu0 0.0
    %5936 = vmatpush2.msra.mxu0 0.0
    %5937 = vmatprep.subr.mxu0 0.0
    %5938 = vmatpush2.msra.mxu0 0.0
    %5939 = vmatprep.subr.mxu0 0.0
    %5940 = vmatpush2.msra.mxu0 0.0
    %5941 = vmatprep.subr.mxu0 0.0
    %5942 = vmatpush2.msra.mxu0 0.0
    %5943 = vmatprep.subr.mxu0 0.0
    %5944 = vmatpush2.msra.mxu0 0.0
    %5945 = vmatprep.subr.mxu0 0.0
    %5946 = vmatpush2.msra.mxu0 0.0
    %5947 = vmatprep.subr.mxu0 0.0
    %5948 = vmatpush2.msra.mxu0 0.0
    %5949 = vmatprep.subr.mxu0 0.0
    %5950 = vmatpush2.msra.mxu0 0.0
    %5951 = vmatprep.subr.mxu0 0.0
    %5952 = vmatpush2.msra.mxu0 0.0
    %5953 = vmatprep.subr.mxu0 0.0
    %5954 = vmatpush2.msra.mxu0 0.0
    %5955 = vmatprep.subr.mxu0 0.0
    %5956 = vmatpush2.msra.mxu0 0.0
    %5957 = vmatprep.subr.mxu0 0.0
    %5958 = vmatpush2.msra.mxu0 0.0
    %5959 = vmatprep.subr.mxu0 0.0
    %5960 = vmatpush2.msra.mxu0 0.0
    %5961 = vmatprep.mubr.f32.mxu0 0.0
    %v5962 = vand.u32 %v5508, 4294901760
    %5963 = vmatmul.mubr.f32.gmra.mxu0 %v5962
    %v5964 = vpop.f32.mrf.mxu0
    %v5965 = vadd.f32 %v5870, %v5964
    %v5966 = vpop.f32.mrf.mxu0
    %5967 = vdwg.mxu0
    %5968 = vmatprep.subr.mxu0 0.0
    %5969 = vmatpush1.msra.mxu0 0.0
    %5970 = vmatprep.subr.mxu0 0.0
    %5971 = vmatpush1.msra.mxu0 0.0
    %5972 = vmatprep.subr.mxu0 0.0
    %5973 = vmatpush1.msra.mxu0 0.0
    %5974 = vmatprep.subr.mxu0 0.0
    %5975 = vmatpush1.msra.mxu0 0.0
    %5976 = vmatprep.subr.mxu0 0.0
    %5977 = vmatpush1.msra.mxu0 0.0
    %5978 = vmatprep.subr.mxu0 0.0
    %5979 = vmatpush1.msra.mxu0 0.0
    %5980 = vmatprep.subr.mxu0 0.0
    %5981 = vmatpush1.msra.mxu0 0.0
    %5982 = vmatprep.subr.mxu0 0.0
    %5983 = vmatpush1.msra.mxu0 0.0
    %5984 = vmatprep.subr.mxu0 0.0
    %v5985 = vand.u32 %v603, 4294901760
    %5986 = vmatpush1.msra.mxu0 %v5985
    %5987 = vmatprep.subr.mxu0 0.0
    %v5988 = vand.u32 %v602, 4294901760
    %5989 = vmatpush1.msra.mxu0 %v5988
    %5990 = vmatprep.subr.mxu0 0.0
    %v5991 = vand.u32 %v601, 4294901760
    %5992 = vmatpush1.msra.mxu0 %v5991
    %5993 = vmatprep.subr.mxu0 0.0
    %v5994 = vand.u32 %v600, 4294901760
    %5995 = vmatpush1.msra.mxu0 %v5994
    %5996 = vmatprep.subr.mxu0 0.0
    %v5997 = vand.u32 %v599, 4294901760
    %5998 = vmatpush1.msra.mxu0 %v5997
    %5999 = vmatprep.subr.mxu0 0.0
    %v6000 = vand.u32 %v598, 4294901760
    %6001 = vmatpush1.msra.mxu0 %v6000
    %6002 = vmatprep.subr.mxu0 0.0
    %v6003 = vand.u32 %v597, 4294901760
    %6004 = vmatpush1.msra.mxu0 %v6003
    %6005 = vmatprep.subr.mxu0 0.0
    %v6006 = vand.u32 %v596, 4294901760
    %6007 = vmatpush1.msra.mxu0 %v6006
    %6008 = vmatprep.subr.mxu0 0.0
    %6009 = vmatpush2.msra.mxu0 0.0
    %6010 = vmatprep.subr.mxu0 0.0
    %6011 = vmatpush2.msra.mxu0 0.0
    %6012 = vmatprep.subr.mxu0 0.0
    %6013 = vmatpush2.msra.mxu0 0.0
    %6014 = vmatprep.subr.mxu0 0.0
    %6015 = vmatpush2.msra.mxu0 0.0
    %6016 = vmatprep.subr.mxu0 0.0
    %6017 = vmatpush2.msra.mxu0 0.0
    %6018 = vmatprep.subr.mxu0 0.0
    %6019 = vmatpush2.msra.mxu0 0.0
    %6020 = vmatprep.subr.mxu0 0.0
    %6021 = vmatpush2.msra.mxu0 0.0
    %6022 = vmatprep.subr.mxu0 0.0
    %6023 = vmatpush2.msra.mxu0 0.0
    %6024 = vmatprep.subr.mxu0 0.0
    %6025 = vmatpush2.msra.mxu0 0.0
    %6026 = vmatprep.subr.mxu0 0.0
    %6027 = vmatpush2.msra.mxu0 0.0
    %6028 = vmatprep.subr.mxu0 0.0
    %6029 = vmatpush2.msra.mxu0 0.0
    %6030 = vmatprep.subr.mxu0 0.0
    %6031 = vmatpush2.msra.mxu0 0.0
    %6032 = vmatprep.subr.mxu0 0.0
    %6033 = vmatpush2.msra.mxu0 0.0
    %6034 = vmatprep.subr.mxu0 0.0
    %6035 = vmatpush2.msra.mxu0 0.0
    %6036 = vmatprep.subr.mxu0 0.0
    %6037 = vmatpush2.msra.mxu0 0.0
    %6038 = vmatprep.subr.mxu0 0.0
    %6039 = vmatpush2.msra.mxu0 0.0
    %6040 = vmatprep.mubr.f32.mxu0 0.0
    %v6041 = vand.u32 %v5508, 4294901760
    %6042 = vmatmul.mubr.f32.gmra.mxu0 %v6041
    %v6043 = vpop.f32.mrf.mxu0
    %v6044 = vadd.f32 %v5965, %v6043
    %v6045 = vpop.f32.mrf.mxu0
    %6046 = vdwg.mxu0
    %v6047 = vxor.u32 %v6044, 2147483648
    %v6048 = vmul.f32 %v6047, 1.442695
    %v6049 = vpow.pop %v6048
    %v6050 = vadd.f32 %v6049, 1.0
    %v6051 = vrcp.pop %v6050
    %v6052 = vmul.f32 1.0, %v6051
    %v6053 = vtanh.pop %v6044
    %v6054 = vmul.f32 %v6052, %v4973
    %6056 = vrot.lane.b32.xlu0 %v6053, 64
    %v6057 = vpop.permute.xlu0 %6056
    %v6059 = vmul.f32 %v6052, %v6057
    %6061 = vrot.lane.b32.xlu0 %v6059, 32
    %v6062 = vpop.permute.xlu0 %6061
    %v6064 = vadd.f32 %v6054, %v6062
    %v6065 = vtanh.pop %v6064
    %6067 = vrot.lane.b32.xlu0 %v6065, 64
    %v6068 = vpop.permute.xlu0 %6067
    %v6070 = vmul.f32 %v6052, %v6068
    %v6071 = vsel %vm605, %v5500, 0
    %6073 = vmatprep.subr.mxu0 0.0
    %6074 = vmatpush1.msra.mxu0 0.0
    %6075 = vmatprep.subr.mxu0 0.0
    %6076 = vmatpush1.msra.mxu0 0.0
    %6077 = vmatprep.subr.mxu0 0.0
    %6078 = vmatpush1.msra.mxu0 0.0
    %6079 = vmatprep.subr.mxu0 0.0
    %6080 = vmatpush1.msra.mxu0 0.0
    %6081 = vmatprep.subr.mxu0 0.0
    %6082 = vmatpush1.msra.mxu0 0.0
    %6083 = vmatprep.subr.mxu0 0.0
    %6084 = vmatpush1.msra.mxu0 0.0
    %6085 = vmatprep.subr.mxu0 0.0
    %6086 = vmatpush1.msra.mxu0 0.0
    %6087 = vmatprep.subr.mxu0 0.0
    %6088 = vmatpush1.msra.mxu0 0.0
    %6089 = vmatprep.subr.mxu0 0.0
    %6090 = vmatpush1.msra.mxu0 0.0
    %6091 = vmatprep.subr.mxu0 0.0
    %6092 = vmatpush1.msra.mxu0 0.0
    %6093 = vmatprep.subr.mxu0 0.0
    %6094 = vmatpush1.msra.mxu0 0.0
    %6095 = vmatprep.subr.mxu0 0.0
    %6096 = vmatpush1.msra.mxu0 0.0
    %6097 = vmatprep.subr.mxu0 0.0
    %v6098 = vand.u32 %v595, 4294901760
    %6099 = vmatpush1.msra.mxu0 %v6098
    %6100 = vmatprep.subr.mxu0 0.0
    %v6101 = vand.u32 %v594, 4294901760
    %6102 = vmatpush1.msra.mxu0 %v6101
    %6103 = vmatprep.subr.mxu0 0.0
    %v6104 = vand.u32 %v593, 4294901760
    %6105 = vmatpush1.msra.mxu0 %v6104
    %6106 = vmatprep.subr.mxu0 0.0
    %v6107 = vand.u32 %v592, 4294901760
    %6108 = vmatpush1.msra.mxu0 %v6107
    %6109 = vmatprep.subr.mxu0 0.0
    %6110 = vmatpush2.msra.mxu0 0.0
    %6111 = vmatprep.subr.mxu0 0.0
    %6112 = vmatpush2.msra.mxu0 0.0
    %6113 = vmatprep.subr.mxu0 0.0
    %6114 = vmatpush2.msra.mxu0 0.0
    %6115 = vmatprep.subr.mxu0 0.0
    %6116 = vmatpush2.msra.mxu0 0.0
    %6117 = vmatprep.subr.mxu0 0.0
    %6118 = vmatpush2.msra.mxu0 0.0
    %6119 = vmatprep.subr.mxu0 0.0
    %6120 = vmatpush2.msra.mxu0 0.0
    %6121 = vmatprep.subr.mxu0 0.0
    %6122 = vmatpush2.msra.mxu0 0.0
    %6123 = vmatprep.subr.mxu0 0.0
    %6124 = vmatpush2.msra.mxu0 0.0
    %6125 = vmatprep.subr.mxu0 0.0
    %6126 = vmatpush2.msra.mxu0 0.0
    %6127 = vmatprep.subr.mxu0 0.0
    %6128 = vmatpush2.msra.mxu0 0.0
    %6129 = vmatprep.subr.mxu0 0.0
    %6130 = vmatpush2.msra.mxu0 0.0
    %6131 = vmatprep.subr.mxu0 0.0
    %6132 = vmatpush2.msra.mxu0 0.0
    %6133 = vmatprep.subr.mxu0 0.0
    %6134 = vmatpush2.msra.mxu0 0.0
    %6135 = vmatprep.subr.mxu0 0.0
    %6136 = vmatpush2.msra.mxu0 0.0
    %6137 = vmatprep.subr.mxu0 0.0
    %6138 = vmatpush2.msra.mxu0 0.0
    %6139 = vmatprep.subr.mxu0 0.0
    %6140 = vmatpush2.msra.mxu0 0.0
    %6141 = vmatprep.mubr.f32.mxu0 0.0
    %v6142 = vand.u32 %v6071, 4294901760
    %v6143 = vsub.f32 %v6071, %v6142
    %v6144 = vand.u32 %v6143, 4294901760
    %v6145 = vsub.f32 %v6143, %v6144
    %v6146 = vand.u32 %v6145, 4294901760
    %6147 = vmatmul.mubr.f32.gmra.mxu0 %v6146
    %v6148 = vpop.f32.mrf.mxu0
    %v6149 = vadd.f32 0.0, %v6148
    %v6150 = vpop.f32.mrf.mxu0
    %6151 = vdwg.mxu0
    %6152 = vmatprep.subr.mxu0 0.0
    %6153 = vmatpush1.msra.mxu0 0.0
    %6154 = vmatprep.subr.mxu0 0.0
    %6155 = vmatpush1.msra.mxu0 0.0
    %6156 = vmatprep.subr.mxu0 0.0
    %6157 = vmatpush1.msra.mxu0 0.0
    %6158 = vmatprep.subr.mxu0 0.0
    %6159 = vmatpush1.msra.mxu0 0.0
    %6160 = vmatprep.subr.mxu0 0.0
    %6161 = vmatpush1.msra.mxu0 0.0
    %6162 = vmatprep.subr.mxu0 0.0
    %6163 = vmatpush1.msra.mxu0 0.0
    %6164 = vmatprep.subr.mxu0 0.0
    %6165 = vmatpush1.msra.mxu0 0.0
    %6166 = vmatprep.subr.mxu0 0.0
    %6167 = vmatpush1.msra.mxu0 0.0
    %6168 = vmatprep.subr.mxu0 0.0
    %6169 = vmatpush1.msra.mxu0 0.0
    %6170 = vmatprep.subr.mxu0 0.0
    %6171 = vmatpush1.msra.mxu0 0.0
    %6172 = vmatprep.subr.mxu0 0.0
    %6173 = vmatpush1.msra.mxu0 0.0
    %6174 = vmatprep.subr.mxu0 0.0
    %6175 = vmatpush1.msra.mxu0 0.0
    %6176 = vmatprep.subr.mxu0 0.0
    %v6177 = vand.u32 %v595, 4294901760
    %v6178 = vsub.f32 %v595, %v6177
    %v6179 = vand.u32 %v6178, 4294901760
    %v6180 = vsub.f32 %v6178, %v6179
    %v6181 = vand.u32 %v6180, 4294901760
    %6182 = vmatpush1.msra.mxu0 %v6181
    %6183 = vmatprep.subr.mxu0 0.0
    %v6184 = vand.u32 %v594, 4294901760
    %v6185 = vsub.f32 %v594, %v6184
    %v6186 = vand.u32 %v6185, 4294901760
    %v6187 = vsub.f32 %v6185, %v6186
    %v6188 = vand.u32 %v6187, 4294901760
    %6189 = vmatpush1.msra.mxu0 %v6188
    %6190 = vmatprep.subr.mxu0 0.0
    %v6191 = vand.u32 %v593, 4294901760
    %v6192 = vsub.f32 %v593, %v6191
    %v6193 = vand.u32 %v6192, 4294901760
    %v6194 = vsub.f32 %v6192, %v6193
    %v6195 = vand.u32 %v6194, 4294901760
    %6196 = vmatpush1.msra.mxu0 %v6195
    %6197 = vmatprep.subr.mxu0 0.0
    %v6198 = vand.u32 %v592, 4294901760
    %v6199 = vsub.f32 %v592, %v6198
    %v6200 = vand.u32 %v6199, 4294901760
    %v6201 = vsub.f32 %v6199, %v6200
    %v6202 = vand.u32 %v6201, 4294901760
    %6203 = vmatpush1.msra.mxu0 %v6202
    %6204 = vmatprep.subr.mxu0 0.0
    %6205 = vmatpush2.msra.mxu0 0.0
    %6206 = vmatprep.subr.mxu0 0.0
    %6207 = vmatpush2.msra.mxu0 0.0
    %6208 = vmatprep.subr.mxu0 0.0
    %6209 = vmatpush2.msra.mxu0 0.0
    %6210 = vmatprep.subr.mxu0 0.0
    %6211 = vmatpush2.msra.mxu0 0.0
    %6212 = vmatprep.subr.mxu0 0.0
    %6213 = vmatpush2.msra.mxu0 0.0
    %6214 = vmatprep.subr.mxu0 0.0
    %6215 = vmatpush2.msra.mxu0 0.0
    %6216 = vmatprep.subr.mxu0 0.0
    %6217 = vmatpush2.msra.mxu0 0.0
    %6218 = vmatprep.subr.mxu0 0.0
    %6219 = vmatpush2.msra.mxu0 0.0
    %6220 = vmatprep.subr.mxu0 0.0
    %6221 = vmatpush2.msra.mxu0 0.0
    %6222 = vmatprep.subr.mxu0 0.0
    %6223 = vmatpush2.msra.mxu0 0.0
    %6224 = vmatprep.subr.mxu0 0.0
    %6225 = vmatpush2.msra.mxu0 0.0
    %6226 = vmatprep.subr.mxu0 0.0
    %6227 = vmatpush2.msra.mxu0 0.0
    %6228 = vmatprep.subr.mxu0 0.0
    %6229 = vmatpush2.msra.mxu0 0.0
    %6230 = vmatprep.subr.mxu0 0.0
    %6231 = vmatpush2.msra.mxu0 0.0
    %6232 = vmatprep.subr.mxu0 0.0
    %6233 = vmatpush2.msra.mxu0 0.0
    %6234 = vmatprep.subr.mxu0 0.0
    %6235 = vmatpush2.msra.mxu0 0.0
    %6236 = vmatprep.mubr.f32.mxu0 0.0
    %v6237 = vand.u32 %v6071, 4294901760
    %6238 = vmatmul.mubr.f32.gmra.mxu0 %v6237
    %v6239 = vpop.f32.mrf.mxu0
    %v6240 = vadd.f32 %v6149, %v6239
    %v6241 = vpop.f32.mrf.mxu0
    %6242 = vdwg.mxu0
    %6243 = vmatprep.subr.mxu0 0.0
    %6244 = vmatpush1.msra.mxu0 0.0
    %6245 = vmatprep.subr.mxu0 0.0
    %6246 = vmatpush1.msra.mxu0 0.0
    %6247 = vmatprep.subr.mxu0 0.0
    %6248 = vmatpush1.msra.mxu0 0.0
    %6249 = vmatprep.subr.mxu0 0.0
    %6250 = vmatpush1.msra.mxu0 0.0
    %6251 = vmatprep.subr.mxu0 0.0
    %6252 = vmatpush1.msra.mxu0 0.0
    %6253 = vmatprep.subr.mxu0 0.0
    %6254 = vmatpush1.msra.mxu0 0.0
    %6255 = vmatprep.subr.mxu0 0.0
    %6256 = vmatpush1.msra.mxu0 0.0
    %6257 = vmatprep.subr.mxu0 0.0
    %6258 = vmatpush1.msra.mxu0 0.0
    %6259 = vmatprep.subr.mxu0 0.0
    %6260 = vmatpush1.msra.mxu0 0.0
    %6261 = vmatprep.subr.mxu0 0.0
    %6262 = vmatpush1.msra.mxu0 0.0
    %6263 = vmatprep.subr.mxu0 0.0
    %6264 = vmatpush1.msra.mxu0 0.0
    %6265 = vmatprep.subr.mxu0 0.0
    %6266 = vmatpush1.msra.mxu0 0.0
    %6267 = vmatprep.subr.mxu0 0.0
    %v6268 = vand.u32 %v595, 4294901760
    %v6269 = vsub.f32 %v595, %v6268
    %6270 = vmatpush1.msra.mxu0 %v6269
    %6271 = vmatprep.subr.mxu0 0.0
    %v6272 = vand.u32 %v594, 4294901760
    %v6273 = vsub.f32 %v594, %v6272
    %6274 = vmatpush1.msra.mxu0 %v6273
    %6275 = vmatprep.subr.mxu0 0.0
    %v6276 = vand.u32 %v593, 4294901760
    %v6277 = vsub.f32 %v593, %v6276
    %6278 = vmatpush1.msra.mxu0 %v6277
    %6279 = vmatprep.subr.mxu0 0.0
    %v6280 = vand.u32 %v592, 4294901760
    %v6281 = vsub.f32 %v592, %v6280
    %6282 = vmatpush1.msra.mxu0 %v6281
    %6283 = vmatprep.subr.mxu0 0.0
    %6284 = vmatpush2.msra.mxu0 0.0
    %6285 = vmatprep.subr.mxu0 0.0
    %6286 = vmatpush2.msra.mxu0 0.0
    %6287 = vmatprep.subr.mxu0 0.0
    %6288 = vmatpush2.msra.mxu0 0.0
    %6289 = vmatprep.subr.mxu0 0.0
    %6290 = vmatpush2.msra.mxu0 0.0
    %6291 = vmatprep.subr.mxu0 0.0
    %6292 = vmatpush2.msra.mxu0 0.0
    %6293 = vmatprep.subr.mxu0 0.0
    %6294 = vmatpush2.msra.mxu0 0.0
    %6295 = vmatprep.subr.mxu0 0.0
    %6296 = vmatpush2.msra.mxu0 0.0
    %6297 = vmatprep.subr.mxu0 0.0
    %6298 = vmatpush2.msra.mxu0 0.0
    %6299 = vmatprep.subr.mxu0 0.0
    %6300 = vmatpush2.msra.mxu0 0.0
    %6301 = vmatprep.subr.mxu0 0.0
    %6302 = vmatpush2.msra.mxu0 0.0
    %6303 = vmatprep.subr.mxu0 0.0
    %6304 = vmatpush2.msra.mxu0 0.0
    %6305 = vmatprep.subr.mxu0 0.0
    %6306 = vmatpush2.msra.mxu0 0.0
    %6307 = vmatprep.subr.mxu0 0.0
    %6308 = vmatpush2.msra.mxu0 0.0
    %6309 = vmatprep.subr.mxu0 0.0
    %6310 = vmatpush2.msra.mxu0 0.0
    %6311 = vmatprep.subr.mxu0 0.0
    %6312 = vmatpush2.msra.mxu0 0.0
    %6313 = vmatprep.subr.mxu0 0.0
    %6314 = vmatpush2.msra.mxu0 0.0
    %6315 = vmatprep.mubr.f32.mxu0 0.0
    %v6316 = vand.u32 %v6071, 4294901760
    %v6317 = vsub.f32 %v6071, %v6316
    %6318 = vmatmul.mubr.f32.gmra.mxu0 %v6317
    %v6319 = vpop.f32.mrf.mxu0
    %v6320 = vadd.f32 %v6240, %v6319
    %v6321 = vpop.f32.mrf.mxu0
    %6322 = vdwg.mxu0
    %6323 = vmatprep.subr.mxu0 0.0
    %6324 = vmatpush1.msra.mxu0 0.0
    %6325 = vmatprep.subr.mxu0 0.0
    %6326 = vmatpush1.msra.mxu0 0.0
    %6327 = vmatprep.subr.mxu0 0.0
    %6328 = vmatpush1.msra.mxu0 0.0
    %6329 = vmatprep.subr.mxu0 0.0
    %6330 = vmatpush1.msra.mxu0 0.0
    %6331 = vmatprep.subr.mxu0 0.0
    %6332 = vmatpush1.msra.mxu0 0.0
    %6333 = vmatprep.subr.mxu0 0.0
    %6334 = vmatpush1.msra.mxu0 0.0
    %6335 = vmatprep.subr.mxu0 0.0
    %6336 = vmatpush1.msra.mxu0 0.0
    %6337 = vmatprep.subr.mxu0 0.0
    %6338 = vmatpush1.msra.mxu0 0.0
    %6339 = vmatprep.subr.mxu0 0.0
    %6340 = vmatpush1.msra.mxu0 0.0
    %6341 = vmatprep.subr.mxu0 0.0
    %6342 = vmatpush1.msra.mxu0 0.0
    %6343 = vmatprep.subr.mxu0 0.0
    %6344 = vmatpush1.msra.mxu0 0.0
    %6345 = vmatprep.subr.mxu0 0.0
    %6346 = vmatpush1.msra.mxu0 0.0
    %6347 = vmatprep.subr.mxu0 0.0
    %v6348 = vand.u32 %v595, 4294901760
    %6349 = vmatpush1.msra.mxu0 %v6348
    %6350 = vmatprep.subr.mxu0 0.0
    %v6351 = vand.u32 %v594, 4294901760
    %6352 = vmatpush1.msra.mxu0 %v6351
    %6353 = vmatprep.subr.mxu0 0.0
    %v6354 = vand.u32 %v593, 4294901760
    %6355 = vmatpush1.msra.mxu0 %v6354
    %6356 = vmatprep.subr.mxu0 0.0
    %v6357 = vand.u32 %v592, 4294901760
    %6358 = vmatpush1.msra.mxu0 %v6357
    %6359 = vmatprep.subr.mxu0 0.0
    %6360 = vmatpush2.msra.mxu0 0.0
    %6361 = vmatprep.subr.mxu0 0.0
    %6362 = vmatpush2.msra.mxu0 0.0
    %6363 = vmatprep.subr.mxu0 0.0
    %6364 = vmatpush2.msra.mxu0 0.0
    %6365 = vmatprep.subr.mxu0 0.0
    %6366 = vmatpush2.msra.mxu0 0.0
    %6367 = vmatprep.subr.mxu0 0.0
    %6368 = vmatpush2.msra.mxu0 0.0
    %6369 = vmatprep.subr.mxu0 0.0
    %6370 = vmatpush2.msra.mxu0 0.0
    %6371 = vmatprep.subr.mxu0 0.0
    %6372 = vmatpush2.msra.mxu0 0.0
    %6373 = vmatprep.subr.mxu0 0.0
    %6374 = vmatpush2.msra.mxu0 0.0
    %6375 = vmatprep.subr.mxu0 0.0
    %6376 = vmatpush2.msra.mxu0 0.0
    %6377 = vmatprep.subr.mxu0 0.0
    %6378 = vmatpush2.msra.mxu0 0.0
    %6379 = vmatprep.subr.mxu0 0.0
    %6380 = vmatpush2.msra.mxu0 0.0
    %6381 = vmatprep.subr.mxu0 0.0
    %6382 = vmatpush2.msra.mxu0 0.0
    %6383 = vmatprep.subr.mxu0 0.0
    %6384 = vmatpush2.msra.mxu0 0.0
    %6385 = vmatprep.subr.mxu0 0.0
    %6386 = vmatpush2.msra.mxu0 0.0
    %6387 = vmatprep.subr.mxu0 0.0
    %6388 = vmatpush2.msra.mxu0 0.0
    %6389 = vmatprep.subr.mxu0 0.0
    %6390 = vmatpush2.msra.mxu0 0.0
    %6391 = vmatprep.mubr.f32.mxu0 0.0
    %v6392 = vand.u32 %v6071, 4294901760
    %v6393 = vsub.f32 %v6071, %v6392
    %v6394 = vand.u32 %v6393, 4294901760
    %6395 = vmatmul.mubr.f32.gmra.mxu0 %v6394
    %v6396 = vpop.f32.mrf.mxu0
    %v6397 = vadd.f32 %v6320, %v6396
    %v6398 = vpop.f32.mrf.mxu0
    %6399 = vdwg.mxu0
    %6400 = vmatprep.subr.mxu0 0.0
    %6401 = vmatpush1.msra.mxu0 0.0
    %6402 = vmatprep.subr.mxu0 0.0
    %6403 = vmatpush1.msra.mxu0 0.0
    %6404 = vmatprep.subr.mxu0 0.0
    %6405 = vmatpush1.msra.mxu0 0.0
    %6406 = vmatprep.subr.mxu0 0.0
    %6407 = vmatpush1.msra.mxu0 0.0
    %6408 = vmatprep.subr.mxu0 0.0
    %6409 = vmatpush1.msra.mxu0 0.0
    %6410 = vmatprep.subr.mxu0 0.0
    %6411 = vmatpush1.msra.mxu0 0.0
    %6412 = vmatprep.subr.mxu0 0.0
    %6413 = vmatpush1.msra.mxu0 0.0
    %6414 = vmatprep.subr.mxu0 0.0
    %6415 = vmatpush1.msra.mxu0 0.0
    %6416 = vmatprep.subr.mxu0 0.0
    %6417 = vmatpush1.msra.mxu0 0.0
    %6418 = vmatprep.subr.mxu0 0.0
    %6419 = vmatpush1.msra.mxu0 0.0
    %6420 = vmatprep.subr.mxu0 0.0
    %6421 = vmatpush1.msra.mxu0 0.0
    %6422 = vmatprep.subr.mxu0 0.0
    %6423 = vmatpush1.msra.mxu0 0.0
    %6424 = vmatprep.subr.mxu0 0.0
    %v6425 = vand.u32 %v595, 4294901760
    %v6426 = vsub.f32 %v595, %v6425
    %v6427 = vand.u32 %v6426, 4294901760
    %6428 = vmatpush1.msra.mxu0 %v6427
    %6429 = vmatprep.subr.mxu0 0.0
    %v6430 = vand.u32 %v594, 4294901760
    %v6431 = vsub.f32 %v594, %v6430
    %v6432 = vand.u32 %v6431, 4294901760
    %6433 = vmatpush1.msra.mxu0 %v6432
    %6434 = vmatprep.subr.mxu0 0.0
    %v6435 = vand.u32 %v593, 4294901760
    %v6436 = vsub.f32 %v593, %v6435
    %v6437 = vand.u32 %v6436, 4294901760
    %6438 = vmatpush1.msra.mxu0 %v6437
    %6439 = vmatprep.subr.mxu0 0.0
    %v6440 = vand.u32 %v592, 4294901760
    %v6441 = vsub.f32 %v592, %v6440
    %v6442 = vand.u32 %v6441, 4294901760
    %6443 = vmatpush1.msra.mxu0 %v6442
    %6444 = vmatprep.subr.mxu0 0.0
    %6445 = vmatpush2.msra.mxu0 0.0
    %6446 = vmatprep.subr.mxu0 0.0
    %6447 = vmatpush2.msra.mxu0 0.0
    %6448 = vmatprep.subr.mxu0 0.0
    %6449 = vmatpush2.msra.mxu0 0.0
    %6450 = vmatprep.subr.mxu0 0.0
    %6451 = vmatpush2.msra.mxu0 0.0
    %6452 = vmatprep.subr.mxu0 0.0
    %6453 = vmatpush2.msra.mxu0 0.0
    %6454 = vmatprep.subr.mxu0 0.0
    %6455 = vmatpush2.msra.mxu0 0.0
    %6456 = vmatprep.subr.mxu0 0.0
    %6457 = vmatpush2.msra.mxu0 0.0
    %6458 = vmatprep.subr.mxu0 0.0
    %6459 = vmatpush2.msra.mxu0 0.0
    %6460 = vmatprep.subr.mxu0 0.0
    %6461 = vmatpush2.msra.mxu0 0.0
    %6462 = vmatprep.subr.mxu0 0.0
    %6463 = vmatpush2.msra.mxu0 0.0
    %6464 = vmatprep.subr.mxu0 0.0
    %6465 = vmatpush2.msra.mxu0 0.0
    %6466 = vmatprep.subr.mxu0 0.0
    %6467 = vmatpush2.msra.mxu0 0.0
    %6468 = vmatprep.subr.mxu0 0.0
    %6469 = vmatpush2.msra.mxu0 0.0
    %6470 = vmatprep.subr.mxu0 0.0
    %6471 = vmatpush2.msra.mxu0 0.0
    %6472 = vmatprep.subr.mxu0 0.0
    %6473 = vmatpush2.msra.mxu0 0.0
    %6474 = vmatprep.subr.mxu0 0.0
    %6475 = vmatpush2.msra.mxu0 0.0
    %6476 = vmatprep.mubr.f32.mxu0 0.0
    %v6477 = vand.u32 %v6071, 4294901760
    %6478 = vmatmul.mubr.f32.gmra.mxu0 %v6477
    %v6479 = vpop.f32.mrf.mxu0
    %v6480 = vadd.f32 %v6397, %v6479
    %v6481 = vpop.f32.mrf.mxu0
    %6482 = vdwg.mxu0
    %6483 = vmatprep.subr.mxu0 0.0
    %6484 = vmatpush1.msra.mxu0 0.0
    %6485 = vmatprep.subr.mxu0 0.0
    %6486 = vmatpush1.msra.mxu0 0.0
    %6487 = vmatprep.subr.mxu0 0.0
    %6488 = vmatpush1.msra.mxu0 0.0
    %6489 = vmatprep.subr.mxu0 0.0
    %6490 = vmatpush1.msra.mxu0 0.0
    %6491 = vmatprep.subr.mxu0 0.0
    %6492 = vmatpush1.msra.mxu0 0.0
    %6493 = vmatprep.subr.mxu0 0.0
    %6494 = vmatpush1.msra.mxu0 0.0
    %6495 = vmatprep.subr.mxu0 0.0
    %6496 = vmatpush1.msra.mxu0 0.0
    %6497 = vmatprep.subr.mxu0 0.0
    %6498 = vmatpush1.msra.mxu0 0.0
    %6499 = vmatprep.subr.mxu0 0.0
    %6500 = vmatpush1.msra.mxu0 0.0
    %6501 = vmatprep.subr.mxu0 0.0
    %6502 = vmatpush1.msra.mxu0 0.0
    %6503 = vmatprep.subr.mxu0 0.0
    %6504 = vmatpush1.msra.mxu0 0.0
    %6505 = vmatprep.subr.mxu0 0.0
    %6506 = vmatpush1.msra.mxu0 0.0
    %6507 = vmatprep.subr.mxu0 0.0
    %v6508 = vand.u32 %v595, 4294901760
    %6509 = vmatpush1.msra.mxu0 %v6508
    %6510 = vmatprep.subr.mxu0 0.0
    %v6511 = vand.u32 %v594, 4294901760
    %6512 = vmatpush1.msra.mxu0 %v6511
    %6513 = vmatprep.subr.mxu0 0.0
    %v6514 = vand.u32 %v593, 4294901760
    %6515 = vmatpush1.msra.mxu0 %v6514
    %6516 = vmatprep.subr.mxu0 0.0
    %v6517 = vand.u32 %v592, 4294901760
    %6518 = vmatpush1.msra.mxu0 %v6517
    %6519 = vmatprep.subr.mxu0 0.0
    %6520 = vmatpush2.msra.mxu0 0.0
    %6521 = vmatprep.subr.mxu0 0.0
    %6522 = vmatpush2.msra.mxu0 0.0
    %6523 = vmatprep.subr.mxu0 0.0
    %6524 = vmatpush2.msra.mxu0 0.0
    %6525 = vmatprep.subr.mxu0 0.0
    %6526 = vmatpush2.msra.mxu0 0.0
    %6527 = vmatprep.subr.mxu0 0.0
    %6528 = vmatpush2.msra.mxu0 0.0
    %6529 = vmatprep.subr.mxu0 0.0
    %6530 = vmatpush2.msra.mxu0 0.0
    %6531 = vmatprep.subr.mxu0 0.0
    %6532 = vmatpush2.msra.mxu0 0.0
    %6533 = vmatprep.subr.mxu0 0.0
    %6534 = vmatpush2.msra.mxu0 0.0
    %6535 = vmatprep.subr.mxu0 0.0
    %6536 = vmatpush2.msra.mxu0 0.0
    %6537 = vmatprep.subr.mxu0 0.0
    %6538 = vmatpush2.msra.mxu0 0.0
    %6539 = vmatprep.subr.mxu0 0.0
    %6540 = vmatpush2.msra.mxu0 0.0
    %6541 = vmatprep.subr.mxu0 0.0
    %6542 = vmatpush2.msra.mxu0 0.0
    %6543 = vmatprep.subr.mxu0 0.0
    %6544 = vmatpush2.msra.mxu0 0.0
    %6545 = vmatprep.subr.mxu0 0.0
    %6546 = vmatpush2.msra.mxu0 0.0
    %6547 = vmatprep.subr.mxu0 0.0
    %6548 = vmatpush2.msra.mxu0 0.0
    %6549 = vmatprep.subr.mxu0 0.0
    %6550 = vmatpush2.msra.mxu0 0.0
    %6551 = vmatprep.mubr.f32.mxu0 0.0
    %v6552 = vand.u32 %v6071, 4294901760
    %6553 = vmatmul.mubr.f32.gmra.mxu0 %v6552
    %v6554 = vpop.f32.mrf.mxu0
    %v6555 = vadd.f32 %v6480, %v6554
    %v6556 = vpop.f32.mrf.mxu0
    %6557 = vdwg.mxu0
    %v6559 = vrot.slane %v6555, 6
    %v6561 = vadd.f32 %v589, %v6559
    %v6562 = vxor.u32 %v6561, 2147483648
    %v6563 = vmul.f32 %v6562, 1.442695
    %v6564 = vpow.pop %v6563
    %v6565 = vadd.f32 %v6564, 1.0
    %v6566 = vrcp.pop %v6565
    %v6567 = vmul.f32 1.0, %v6566
    %v6568 = vtanh.pop %v6561
    %v6570 = vrot.slane %v5491, 6
    %v6572 = vmul.f32 %v6567, %v6570
    %6574 = vrot.lane.b32.xlu0 %v6568, 64
    %v6575 = vpop.permute.xlu0 %6574
    %v6577 = vmul.f32 %v6567, %v6575
    %6579 = vrot.lane.b32.xlu0 %v6577, 32
    %v6580 = vpop.permute.xlu0 %6579
    %v6582 = vadd.f32 %v6572, %v6580
    %v6583 = vtanh.pop %v6582
    %6585 = vrot.lane.b32.xlu0 %v6583, 64
    %v6586 = vpop.permute.xlu0 %6585
    %v6588 = vmul.f32 %v6567, %v6586
    %6590 = vrot.lane.b32.xlu0 %v6588, 32
    %v6591 = vpop.permute.xlu0 %6590
    %v6594 = vrot.slane %v6070, 6
    %6595 = vrot.lane.b32.xlu0 %v6594, 64
    %v6596 = vpop.permute.xlu0 %6595
    %v6598 = vsel %vm605, %v6591, %v6596
    %v6600 = vrot.slane %v6598, 2
    %v6601 = vsel %vm1130, %v6600, 0
    %6603 = vmatprep.subr.mxu0 0.0
    %6604 = vmatpush1.msra.mxu0 0.0
    %6605 = vmatprep.subr.mxu0 0.0
    %6606 = vmatpush1.msra.mxu0 0.0
    %6607 = vmatprep.subr.mxu0 0.0
    %6608 = vmatpush1.msra.mxu0 0.0
    %6609 = vmatprep.subr.mxu0 0.0
    %6610 = vmatpush1.msra.mxu0 0.0
    %6611 = vmatprep.subr.mxu0 0.0
    %6612 = vmatpush1.msra.mxu0 0.0
    %6613 = vmatprep.subr.mxu0 0.0
    %6614 = vmatpush1.msra.mxu0 0.0
    %6615 = vmatprep.subr.mxu0 0.0
    %6616 = vmatpush1.msra.mxu0 0.0
    %6617 = vmatprep.subr.mxu0 0.0
    %6618 = vmatpush1.msra.mxu0 0.0
    %6619 = vmatprep.subr.mxu0 0.0
    %v6620 = vand.u32 %v603, 4294901760
    %6621 = vmatpush1.msra.mxu0 %v6620
    %6622 = vmatprep.subr.mxu0 0.0
    %v6623 = vand.u32 %v602, 4294901760
    %6624 = vmatpush1.msra.mxu0 %v6623
    %6625 = vmatprep.subr.mxu0 0.0
    %v6626 = vand.u32 %v601, 4294901760
    %6627 = vmatpush1.msra.mxu0 %v6626
    %6628 = vmatprep.subr.mxu0 0.0
    %v6629 = vand.u32 %v600, 4294901760
    %6630 = vmatpush1.msra.mxu0 %v6629
    %6631 = vmatprep.subr.mxu0 0.0
    %v6632 = vand.u32 %v599, 4294901760
    %6633 = vmatpush1.msra.mxu0 %v6632
    %6634 = vmatprep.subr.mxu0 0.0
    %v6635 = vand.u32 %v598, 4294901760
    %6636 = vmatpush1.msra.mxu0 %v6635
    %6637 = vmatprep.subr.mxu0 0.0
    %v6638 = vand.u32 %v597, 4294901760
    %6639 = vmatpush1.msra.mxu0 %v6638
    %6640 = vmatprep.subr.mxu0 0.0
    %v6641 = vand.u32 %v596, 4294901760
    %6642 = vmatpush1.msra.mxu0 %v6641
    %6643 = vmatprep.subr.mxu0 0.0
    %6644 = vmatpush2.msra.mxu0 0.0
    %6645 = vmatprep.subr.mxu0 0.0
    %6646 = vmatpush2.msra.mxu0 0.0
    %6647 = vmatprep.subr.mxu0 0.0
    %6648 = vmatpush2.msra.mxu0 0.0
    %6649 = vmatprep.subr.mxu0 0.0
    %6650 = vmatpush2.msra.mxu0 0.0
    %6651 = vmatprep.subr.mxu0 0.0
    %6652 = vmatpush2.msra.mxu0 0.0
    %6653 = vmatprep.subr.mxu0 0.0
    %6654 = vmatpush2.msra.mxu0 0.0
    %6655 = vmatprep.subr.mxu0 0.0
    %6656 = vmatpush2.msra.mxu0 0.0
    %6657 = vmatprep.subr.mxu0 0.0
    %6658 = vmatpush2.msra.mxu0 0.0
    %6659 = vmatprep.subr.mxu0 0.0
    %6660 = vmatpush2.msra.mxu0 0.0
    %6661 = vmatprep.subr.mxu0 0.0
    %6662 = vmatpush2.msra.mxu0 0.0
    %6663 = vmatprep.subr.mxu0 0.0
    %6664 = vmatpush2.msra.mxu0 0.0
    %6665 = vmatprep.subr.mxu0 0.0
    %6666 = vmatpush2.msra.mxu0 0.0
    %6667 = vmatprep.subr.mxu0 0.0
    %6668 = vmatpush2.msra.mxu0 0.0
    %6669 = vmatprep.subr.mxu0 0.0
    %6670 = vmatpush2.msra.mxu0 0.0
    %6671 = vmatprep.subr.mxu0 0.0
    %6672 = vmatpush2.msra.mxu0 0.0
    %6673 = vmatprep.subr.mxu0 0.0
    %6674 = vmatpush2.msra.mxu0 0.0
    %6675 = vmatprep.mubr.f32.mxu0 0.0
    %v6676 = vand.u32 %v6601, 4294901760
    %v6677 = vsub.f32 %v6601, %v6676
    %v6678 = vand.u32 %v6677, 4294901760
    %v6679 = vsub.f32 %v6677, %v6678
    %v6680 = vand.u32 %v6679, 4294901760
    %6681 = vmatmul.mubr.f32.gmra.mxu0 %v6680
    %v6682 = vpop.f32.mrf.mxu0
    %v6683 = vadd.f32 %v1128, %v6682
    %v6684 = vpop.f32.mrf.mxu0
    %6685 = vdwg.mxu0
    %6686 = vmatprep.subr.mxu0 0.0
    %6687 = vmatpush1.msra.mxu0 0.0
    %6688 = vmatprep.subr.mxu0 0.0
    %6689 = vmatpush1.msra.mxu0 0.0
    %6690 = vmatprep.subr.mxu0 0.0
    %6691 = vmatpush1.msra.mxu0 0.0
    %6692 = vmatprep.subr.mxu0 0.0
    %6693 = vmatpush1.msra.mxu0 0.0
    %6694 = vmatprep.subr.mxu0 0.0
    %6695 = vmatpush1.msra.mxu0 0.0
    %6696 = vmatprep.subr.mxu0 0.0
    %6697 = vmatpush1.msra.mxu0 0.0
    %6698 = vmatprep.subr.mxu0 0.0
    %6699 = vmatpush1.msra.mxu0 0.0
    %6700 = vmatprep.subr.mxu0 0.0
    %6701 = vmatpush1.msra.mxu0 0.0
    %6702 = vmatprep.subr.mxu0 0.0
    %v6703 = vand.u32 %v603, 4294901760
    %v6704 = vsub.f32 %v603, %v6703
    %v6705 = vand.u32 %v6704, 4294901760
    %v6706 = vsub.f32 %v6704, %v6705
    %v6707 = vand.u32 %v6706, 4294901760
    %6708 = vmatpush1.msra.mxu0 %v6707
    %6709 = vmatprep.subr.mxu0 0.0
    %v6710 = vand.u32 %v602, 4294901760
    %v6711 = vsub.f32 %v602, %v6710
    %v6712 = vand.u32 %v6711, 4294901760
    %v6713 = vsub.f32 %v6711, %v6712
    %v6714 = vand.u32 %v6713, 4294901760
    %6715 = vmatpush1.msra.mxu0 %v6714
    %6716 = vmatprep.subr.mxu0 0.0
    %v6717 = vand.u32 %v601, 4294901760
    %v6718 = vsub.f32 %v601, %v6717
    %v6719 = vand.u32 %v6718, 4294901760
    %v6720 = vsub.f32 %v6718, %v6719
    %v6721 = vand.u32 %v6720, 4294901760
    %6722 = vmatpush1.msra.mxu0 %v6721
    %6723 = vmatprep.subr.mxu0 0.0
    %v6724 = vand.u32 %v600, 4294901760
    %v6725 = vsub.f32 %v600, %v6724
    %v6726 = vand.u32 %v6725, 4294901760
    %v6727 = vsub.f32 %v6725, %v6726
    %v6728 = vand.u32 %v6727, 4294901760
    %6729 = vmatpush1.msra.mxu0 %v6728
    %6730 = vmatprep.subr.mxu0 0.0
    %v6731 = vand.u32 %v599, 4294901760
    %v6732 = vsub.f32 %v599, %v6731
    %v6733 = vand.u32 %v6732, 4294901760
    %v6734 = vsub.f32 %v6732, %v6733
    %v6735 = vand.u32 %v6734, 4294901760
    %6736 = vmatpush1.msra.mxu0 %v6735
    %6737 = vmatprep.subr.mxu0 0.0
    %v6738 = vand.u32 %v598, 4294901760
    %v6739 = vsub.f32 %v598, %v6738
    %v6740 = vand.u32 %v6739, 4294901760
    %v6741 = vsub.f32 %v6739, %v6740
    %v6742 = vand.u32 %v6741, 4294901760
    %6743 = vmatpush1.msra.mxu0 %v6742
    %6744 = vmatprep.subr.mxu0 0.0
    %v6745 = vand.u32 %v597, 4294901760
    %v6746 = vsub.f32 %v597, %v6745
    %v6747 = vand.u32 %v6746, 4294901760
    %v6748 = vsub.f32 %v6746, %v6747
    %v6749 = vand.u32 %v6748, 4294901760
    %6750 = vmatpush1.msra.mxu0 %v6749
    %6751 = vmatprep.subr.mxu0 0.0
    %v6752 = vand.u32 %v596, 4294901760
    %v6753 = vsub.f32 %v596, %v6752
    %v6754 = vand.u32 %v6753, 4294901760
    %v6755 = vsub.f32 %v6753, %v6754
    %v6756 = vand.u32 %v6755, 4294901760
    %6757 = vmatpush1.msra.mxu0 %v6756
    %6758 = vmatprep.subr.mxu0 0.0
    %6759 = vmatpush2.msra.mxu0 0.0
    %6760 = vmatprep.subr.mxu0 0.0
    %6761 = vmatpush2.msra.mxu0 0.0
    %6762 = vmatprep.subr.mxu0 0.0
    %6763 = vmatpush2.msra.mxu0 0.0
    %6764 = vmatprep.subr.mxu0 0.0
    %6765 = vmatpush2.msra.mxu0 0.0
    %6766 = vmatprep.subr.mxu0 0.0
    %6767 = vmatpush2.msra.mxu0 0.0
    %6768 = vmatprep.subr.mxu0 0.0
    %6769 = vmatpush2.msra.mxu0 0.0
    %6770 = vmatprep.subr.mxu0 0.0
    %6771 = vmatpush2.msra.mxu0 0.0
    %6772 = vmatprep.subr.mxu0 0.0
    %6773 = vmatpush2.msra.mxu0 0.0
    %6774 = vmatprep.subr.mxu0 0.0
    %6775 = vmatpush2.msra.mxu0 0.0
    %6776 = vmatprep.subr.mxu0 0.0
    %6777 = vmatpush2.msra.mxu0 0.0
    %6778 = vmatprep.subr.mxu0 0.0
    %6779 = vmatpush2.msra.mxu0 0.0
    %6780 = vmatprep.subr.mxu0 0.0
    %6781 = vmatpush2.msra.mxu0 0.0
    %6782 = vmatprep.subr.mxu0 0.0
    %6783 = vmatpush2.msra.mxu0 0.0
    %6784 = vmatprep.subr.mxu0 0.0
    %6785 = vmatpush2.msra.mxu0 0.0
    %6786 = vmatprep.subr.mxu0 0.0
    %6787 = vmatpush2.msra.mxu0 0.0
    %6788 = vmatprep.subr.mxu0 0.0
    %6789 = vmatpush2.msra.mxu0 0.0
    %6790 = vmatprep.mubr.f32.mxu0 0.0
    %v6791 = vand.u32 %v6601, 4294901760
    %6792 = vmatmul.mubr.f32.gmra.mxu0 %v6791
    %v6793 = vpop.f32.mrf.mxu0
    %v6794 = vadd.f32 %v6683, %v6793
    %v6795 = vpop.f32.mrf.mxu0
    %6796 = vdwg.mxu0
    %6797 = vmatprep.subr.mxu0 0.0
    %6798 = vmatpush1.msra.mxu0 0.0
    %6799 = vmatprep.subr.mxu0 0.0
    %6800 = vmatpush1.msra.mxu0 0.0
    %6801 = vmatprep.subr.mxu0 0.0
    %6802 = vmatpush1.msra.mxu0 0.0
    %6803 = vmatprep.subr.mxu0 0.0
    %6804 = vmatpush1.msra.mxu0 0.0
    %6805 = vmatprep.subr.mxu0 0.0
    %6806 = vmatpush1.msra.mxu0 0.0
    %6807 = vmatprep.subr.mxu0 0.0
    %6808 = vmatpush1.msra.mxu0 0.0
    %6809 = vmatprep.subr.mxu0 0.0
    %6810 = vmatpush1.msra.mxu0 0.0
    %6811 = vmatprep.subr.mxu0 0.0
    %6812 = vmatpush1.msra.mxu0 0.0
    %6813 = vmatprep.subr.mxu0 0.0
    %v6814 = vand.u32 %v603, 4294901760
    %v6815 = vsub.f32 %v603, %v6814
    %6816 = vmatpush1.msra.mxu0 %v6815
    %6817 = vmatprep.subr.mxu0 0.0
    %v6818 = vand.u32 %v602, 4294901760
    %v6819 = vsub.f32 %v602, %v6818
    %6820 = vmatpush1.msra.mxu0 %v6819
    %6821 = vmatprep.subr.mxu0 0.0
    %v6822 = vand.u32 %v601, 4294901760
    %v6823 = vsub.f32 %v601, %v6822
    %6824 = vmatpush1.msra.mxu0 %v6823
    %6825 = vmatprep.subr.mxu0 0.0
    %v6826 = vand.u32 %v600, 4294901760
    %v6827 = vsub.f32 %v600, %v6826
    %6828 = vmatpush1.msra.mxu0 %v6827
    %6829 = vmatprep.subr.mxu0 0.0
    %v6830 = vand.u32 %v599, 4294901760
    %v6831 = vsub.f32 %v599, %v6830
    %6832 = vmatpush1.msra.mxu0 %v6831
    %6833 = vmatprep.subr.mxu0 0.0
    %v6834 = vand.u32 %v598, 4294901760
    %v6835 = vsub.f32 %v598, %v6834
    %6836 = vmatpush1.msra.mxu0 %v6835
    %6837 = vmatprep.subr.mxu0 0.0
    %v6838 = vand.u32 %v597, 4294901760
    %v6839 = vsub.f32 %v597, %v6838
    %6840 = vmatpush1.msra.mxu0 %v6839
    %6841 = vmatprep.subr.mxu0 0.0
    %v6842 = vand.u32 %v596, 4294901760
    %v6843 = vsub.f32 %v596, %v6842
    %6844 = vmatpush1.msra.mxu0 %v6843
    %6845 = vmatprep.subr.mxu0 0.0
    %6846 = vmatpush2.msra.mxu0 0.0
    %6847 = vmatprep.subr.mxu0 0.0
    %6848 = vmatpush2.msra.mxu0 0.0
    %6849 = vmatprep.subr.mxu0 0.0
    %6850 = vmatpush2.msra.mxu0 0.0
    %6851 = vmatprep.subr.mxu0 0.0
    %6852 = vmatpush2.msra.mxu0 0.0
    %6853 = vmatprep.subr.mxu0 0.0
    %6854 = vmatpush2.msra.mxu0 0.0
    %6855 = vmatprep.subr.mxu0 0.0
    %6856 = vmatpush2.msra.mxu0 0.0
    %6857 = vmatprep.subr.mxu0 0.0
    %6858 = vmatpush2.msra.mxu0 0.0
    %6859 = vmatprep.subr.mxu0 0.0
    %6860 = vmatpush2.msra.mxu0 0.0
    %6861 = vmatprep.subr.mxu0 0.0
    %6862 = vmatpush2.msra.mxu0 0.0
    %6863 = vmatprep.subr.mxu0 0.0
    %6864 = vmatpush2.msra.mxu0 0.0
    %6865 = vmatprep.subr.mxu0 0.0
    %6866 = vmatpush2.msra.mxu0 0.0
    %6867 = vmatprep.subr.mxu0 0.0
    %6868 = vmatpush2.msra.mxu0 0.0
    %6869 = vmatprep.subr.mxu0 0.0
    %6870 = vmatpush2.msra.mxu0 0.0
    %6871 = vmatprep.subr.mxu0 0.0
    %6872 = vmatpush2.msra.mxu0 0.0
    %6873 = vmatprep.subr.mxu0 0.0
    %6874 = vmatpush2.msra.mxu0 0.0
    %6875 = vmatprep.subr.mxu0 0.0
    %6876 = vmatpush2.msra.mxu0 0.0
    %6877 = vmatprep.mubr.f32.mxu0 0.0
    %v6878 = vand.u32 %v6601, 4294901760
    %v6879 = vsub.f32 %v6601, %v6878
    %6880 = vmatmul.mubr.f32.gmra.mxu0 %v6879
    %v6881 = vpop.f32.mrf.mxu0
    %v6882 = vadd.f32 %v6794, %v6881
    %v6883 = vpop.f32.mrf.mxu0
    %6884 = vdwg.mxu0
    %6885 = vmatprep.subr.mxu0 0.0
    %6886 = vmatpush1.msra.mxu0 0.0
    %6887 = vmatprep.subr.mxu0 0.0
    %6888 = vmatpush1.msra.mxu0 0.0
    %6889 = vmatprep.subr.mxu0 0.0
    %6890 = vmatpush1.msra.mxu0 0.0
    %6891 = vmatprep.subr.mxu0 0.0
    %6892 = vmatpush1.msra.mxu0 0.0
    %6893 = vmatprep.subr.mxu0 0.0
    %6894 = vmatpush1.msra.mxu0 0.0
    %6895 = vmatprep.subr.mxu0 0.0
    %6896 = vmatpush1.msra.mxu0 0.0
    %6897 = vmatprep.subr.mxu0 0.0
    %6898 = vmatpush1.msra.mxu0 0.0
    %6899 = vmatprep.subr.mxu0 0.0
    %6900 = vmatpush1.msra.mxu0 0.0
    %6901 = vmatprep.subr.mxu0 0.0
    %v6902 = vand.u32 %v603, 4294901760
    %6903 = vmatpush1.msra.mxu0 %v6902
    %6904 = vmatprep.subr.mxu0 0.0
    %v6905 = vand.u32 %v602, 4294901760
    %6906 = vmatpush1.msra.mxu0 %v6905
    %6907 = vmatprep.subr.mxu0 0.0
    %v6908 = vand.u32 %v601, 4294901760
    %6909 = vmatpush1.msra.mxu0 %v6908
    %6910 = vmatprep.subr.mxu0 0.0
    %v6911 = vand.u32 %v600, 4294901760
    %6912 = vmatpush1.msra.mxu0 %v6911
    %6913 = vmatprep.subr.mxu0 0.0
    %v6914 = vand.u32 %v599, 4294901760
    %6915 = vmatpush1.msra.mxu0 %v6914
    %6916 = vmatprep.subr.mxu0 0.0
    %v6917 = vand.u32 %v598, 4294901760
    %6918 = vmatpush1.msra.mxu0 %v6917
    %6919 = vmatprep.subr.mxu0 0.0
    %v6920 = vand.u32 %v597, 4294901760
    %6921 = vmatpush1.msra.mxu0 %v6920
    %6922 = vmatprep.subr.mxu0 0.0
    %v6923 = vand.u32 %v596, 4294901760
    %6924 = vmatpush1.msra.mxu0 %v6923
    %6925 = vmatprep.subr.mxu0 0.0
    %6926 = vmatpush2.msra.mxu0 0.0
    %6927 = vmatprep.subr.mxu0 0.0
    %6928 = vmatpush2.msra.mxu0 0.0
    %6929 = vmatprep.subr.mxu0 0.0
    %6930 = vmatpush2.msra.mxu0 0.0
    %6931 = vmatprep.subr.mxu0 0.0
    %6932 = vmatpush2.msra.mxu0 0.0
    %6933 = vmatprep.subr.mxu0 0.0
    %6934 = vmatpush2.msra.mxu0 0.0
    %6935 = vmatprep.subr.mxu0 0.0
    %6936 = vmatpush2.msra.mxu0 0.0
    %6937 = vmatprep.subr.mxu0 0.0
    %6938 = vmatpush2.msra.mxu0 0.0
    %6939 = vmatprep.subr.mxu0 0.0
    %6940 = vmatpush2.msra.mxu0 0.0
    %6941 = vmatprep.subr.mxu0 0.0
    %6942 = vmatpush2.msra.mxu0 0.0
    %6943 = vmatprep.subr.mxu0 0.0
    %6944 = vmatpush2.msra.mxu0 0.0
    %6945 = vmatprep.subr.mxu0 0.0
    %6946 = vmatpush2.msra.mxu0 0.0
    %6947 = vmatprep.subr.mxu0 0.0
    %6948 = vmatpush2.msra.mxu0 0.0
    %6949 = vmatprep.subr.mxu0 0.0
    %6950 = vmatpush2.msra.mxu0 0.0
    %6951 = vmatprep.subr.mxu0 0.0
    %6952 = vmatpush2.msra.mxu0 0.0
    %6953 = vmatprep.subr.mxu0 0.0
    %6954 = vmatpush2.msra.mxu0 0.0
    %6955 = vmatprep.subr.mxu0 0.0
    %6956 = vmatpush2.msra.mxu0 0.0
    %6957 = vmatprep.mubr.f32.mxu0 0.0
    %v6958 = vand.u32 %v6601, 4294901760
    %v6959 = vsub.f32 %v6601, %v6958
    %v6960 = vand.u32 %v6959, 4294901760
    %6961 = vmatmul.mubr.f32.gmra.mxu0 %v6960
    %v6962 = vpop.f32.mrf.mxu0
    %v6963 = vadd.f32 %v6882, %v6962
    %v6964 = vpop.f32.mrf.mxu0
    %6965 = vdwg.mxu0
    %6966 = vmatprep.subr.mxu0 0.0
    %6967 = vmatpush1.msra.mxu0 0.0
    %6968 = vmatprep.subr.mxu0 0.0
    %6969 = vmatpush1.msra.mxu0 0.0
    %6970 = vmatprep.subr.mxu0 0.0
    %6971 = vmatpush1.msra.mxu0 0.0
    %6972 = vmatprep.subr.mxu0 0.0
    %6973 = vmatpush1.msra.mxu0 0.0
    %6974 = vmatprep.subr.mxu0 0.0
    %6975 = vmatpush1.msra.mxu0 0.0
    %6976 = vmatprep.subr.mxu0 0.0
    %6977 = vmatpush1.msra.mxu0 0.0
    %6978 = vmatprep.subr.mxu0 0.0
    %6979 = vmatpush1.msra.mxu0 0.0
    %6980 = vmatprep.subr.mxu0 0.0
    %6981 = vmatpush1.msra.mxu0 0.0
    %6982 = vmatprep.subr.mxu0 0.0
    %v6983 = vand.u32 %v603, 4294901760
    %v6984 = vsub.f32 %v603, %v6983
    %v6985 = vand.u32 %v6984, 4294901760
    %6986 = vmatpush1.msra.mxu0 %v6985
    %6987 = vmatprep.subr.mxu0 0.0
    %v6988 = vand.u32 %v602, 4294901760
    %v6989 = vsub.f32 %v602, %v6988
    %v6990 = vand.u32 %v6989, 4294901760
    %6991 = vmatpush1.msra.mxu0 %v6990
    %6992 = vmatprep.subr.mxu0 0.0
    %v6993 = vand.u32 %v601, 4294901760
    %v6994 = vsub.f32 %v601, %v6993
    %v6995 = vand.u32 %v6994, 4294901760
    %6996 = vmatpush1.msra.mxu0 %v6995
    %6997 = vmatprep.subr.mxu0 0.0
    %v6998 = vand.u32 %v600, 4294901760
    %v6999 = vsub.f32 %v600, %v6998
    %v7000 = vand.u32 %v6999, 4294901760
    %7001 = vmatpush1.msra.mxu0 %v7000
    %7002 = vmatprep.subr.mxu0 0.0
    %v7003 = vand.u32 %v599, 4294901760
    %v7004 = vsub.f32 %v599, %v7003
    %v7005 = vand.u32 %v7004, 4294901760
    %7006 = vmatpush1.msra.mxu0 %v7005
    %7007 = vmatprep.subr.mxu0 0.0
    %v7008 = vand.u32 %v598, 4294901760
    %v7009 = vsub.f32 %v598, %v7008
    %v7010 = vand.u32 %v7009, 4294901760
    %7011 = vmatpush1.msra.mxu0 %v7010
    %7012 = vmatprep.subr.mxu0 0.0
    %v7013 = vand.u32 %v597, 4294901760
    %v7014 = vsub.f32 %v597, %v7013
    %v7015 = vand.u32 %v7014, 4294901760
    %7016 = vmatpush1.msra.mxu0 %v7015
    %7017 = vmatprep.subr.mxu0 0.0
    %v7018 = vand.u32 %v596, 4294901760
    %v7019 = vsub.f32 %v596, %v7018
    %v7020 = vand.u32 %v7019, 4294901760
    %7021 = vmatpush1.msra.mxu0 %v7020
    %7022 = vmatprep.subr.mxu0 0.0
    %7023 = vmatpush2.msra.mxu0 0.0
    %7024 = vmatprep.subr.mxu0 0.0
    %7025 = vmatpush2.msra.mxu0 0.0
    %7026 = vmatprep.subr.mxu0 0.0
    %7027 = vmatpush2.msra.mxu0 0.0
    %7028 = vmatprep.subr.mxu0 0.0
    %7029 = vmatpush2.msra.mxu0 0.0
    %7030 = vmatprep.subr.mxu0 0.0
    %7031 = vmatpush2.msra.mxu0 0.0
    %7032 = vmatprep.subr.mxu0 0.0
    %7033 = vmatpush2.msra.mxu0 0.0
    %7034 = vmatprep.subr.mxu0 0.0
    %7035 = vmatpush2.msra.mxu0 0.0
    %7036 = vmatprep.subr.mxu0 0.0
    %7037 = vmatpush2.msra.mxu0 0.0
    %7038 = vmatprep.subr.mxu0 0.0
    %7039 = vmatpush2.msra.mxu0 0.0
    %7040 = vmatprep.subr.mxu0 0.0
    %7041 = vmatpush2.msra.mxu0 0.0
    %7042 = vmatprep.subr.mxu0 0.0
    %7043 = vmatpush2.msra.mxu0 0.0
    %7044 = vmatprep.subr.mxu0 0.0
    %7045 = vmatpush2.msra.mxu0 0.0
    %7046 = vmatprep.subr.mxu0 0.0
    %7047 = vmatpush2.msra.mxu0 0.0
    %7048 = vmatprep.subr.mxu0 0.0
    %7049 = vmatpush2.msra.mxu0 0.0
    %7050 = vmatprep.subr.mxu0 0.0
    %7051 = vmatpush2.msra.mxu0 0.0
    %7052 = vmatprep.subr.mxu0 0.0
    %7053 = vmatpush2.msra.mxu0 0.0
    %7054 = vmatprep.mubr.f32.mxu0 0.0
    %v7055 = vand.u32 %v6601, 4294901760
    %7056 = vmatmul.mubr.f32.gmra.mxu0 %v7055
    %v7057 = vpop.f32.mrf.mxu0
    %v7058 = vadd.f32 %v6963, %v7057
    %v7059 = vpop.f32.mrf.mxu0
    %7060 = vdwg.mxu0
    %7061 = vmatprep.subr.mxu0 0.0
    %7062 = vmatpush1.msra.mxu0 0.0
    %7063 = vmatprep.subr.mxu0 0.0
    %7064 = vmatpush1.msra.mxu0 0.0
    %7065 = vmatprep.subr.mxu0 0.0
    %7066 = vmatpush1.msra.mxu0 0.0
    %7067 = vmatprep.subr.mxu0 0.0
    %7068 = vmatpush1.msra.mxu0 0.0
    %7069 = vmatprep.subr.mxu0 0.0
    %7070 = vmatpush1.msra.mxu0 0.0
    %7071 = vmatprep.subr.mxu0 0.0
    %7072 = vmatpush1.msra.mxu0 0.0
    %7073 = vmatprep.subr.mxu0 0.0
    %7074 = vmatpush1.msra.mxu0 0.0
    %7075 = vmatprep.subr.mxu0 0.0
    %7076 = vmatpush1.msra.mxu0 0.0
    %7077 = vmatprep.subr.mxu0 0.0
    %v7078 = vand.u32 %v603, 4294901760
    %7079 = vmatpush1.msra.mxu0 %v7078
    %7080 = vmatprep.subr.mxu0 0.0
    %v7081 = vand.u32 %v602, 4294901760
    %7082 = vmatpush1.msra.mxu0 %v7081
    %7083 = vmatprep.subr.mxu0 0.0
    %v7084 = vand.u32 %v601, 4294901760
    %7085 = vmatpush1.msra.mxu0 %v7084
    %7086 = vmatprep.subr.mxu0 0.0
    %v7087 = vand.u32 %v600, 4294901760
    %7088 = vmatpush1.msra.mxu0 %v7087
    %7089 = vmatprep.subr.mxu0 0.0
    %v7090 = vand.u32 %v599, 4294901760
    %7091 = vmatpush1.msra.mxu0 %v7090
    %7092 = vmatprep.subr.mxu0 0.0
    %v7093 = vand.u32 %v598, 4294901760
    %7094 = vmatpush1.msra.mxu0 %v7093
    %7095 = vmatprep.subr.mxu0 0.0
    %v7096 = vand.u32 %v597, 4294901760
    %7097 = vmatpush1.msra.mxu0 %v7096
    %7098 = vmatprep.subr.mxu0 0.0
    %v7099 = vand.u32 %v596, 4294901760
    %7100 = vmatpush1.msra.mxu0 %v7099
    %7101 = vmatprep.subr.mxu0 0.0
    %7102 = vmatpush2.msra.mxu0 0.0
    %7103 = vmatprep.subr.mxu0 0.0
    %7104 = vmatpush2.msra.mxu0 0.0
    %7105 = vmatprep.subr.mxu0 0.0
    %7106 = vmatpush2.msra.mxu0 0.0
    %7107 = vmatprep.subr.mxu0 0.0
    %7108 = vmatpush2.msra.mxu0 0.0
    %7109 = vmatprep.subr.mxu0 0.0
    %7110 = vmatpush2.msra.mxu0 0.0
    %7111 = vmatprep.subr.mxu0 0.0
    %7112 = vmatpush2.msra.mxu0 0.0
    %7113 = vmatprep.subr.mxu0 0.0
    %7114 = vmatpush2.msra.mxu0 0.0
    %7115 = vmatprep.subr.mxu0 0.0
    %7116 = vmatpush2.msra.mxu0 0.0
    %7117 = vmatprep.subr.mxu0 0.0
    %7118 = vmatpush2.msra.mxu0 0.0
    %7119 = vmatprep.subr.mxu0 0.0
    %7120 = vmatpush2.msra.mxu0 0.0
    %7121 = vmatprep.subr.mxu0 0.0
    %7122 = vmatpush2.msra.mxu0 0.0
    %7123 = vmatprep.subr.mxu0 0.0
    %7124 = vmatpush2.msra.mxu0 0.0
    %7125 = vmatprep.subr.mxu0 0.0
    %7126 = vmatpush2.msra.mxu0 0.0
    %7127 = vmatprep.subr.mxu0 0.0
    %7128 = vmatpush2.msra.mxu0 0.0
    %7129 = vmatprep.subr.mxu0 0.0
    %7130 = vmatpush2.msra.mxu0 0.0
    %7131 = vmatprep.subr.mxu0 0.0
    %7132 = vmatpush2.msra.mxu0 0.0
    %7133 = vmatprep.mubr.f32.mxu0 0.0
    %v7134 = vand.u32 %v6601, 4294901760
    %7135 = vmatmul.mubr.f32.gmra.mxu0 %v7134
    %v7136 = vpop.f32.mrf.mxu0
    %v7137 = vadd.f32 %v7058, %v7136
    %v7138 = vpop.f32.mrf.mxu0
    %7139 = vdwg.mxu0
    %v7140 = vxor.u32 %v7137, 2147483648
    %v7141 = vmul.f32 %v7140, 1.442695
    %v7142 = vpow.pop %v7141
    %v7143 = vadd.f32 %v7142, 1.0
    %v7144 = vrcp.pop %v7143
    %v7145 = vmul.f32 1.0, %v7144
    %v7146 = vtanh.pop %v7137
    %v7147 = vmul.f32 %v7145, %v6064
    %7149 = vrot.lane.b32.xlu0 %v7146, 64
    %v7150 = vpop.permute.xlu0 %7149
    %v7152 = vmul.f32 %v7145, %v7150
    %7154 = vrot.lane.b32.xlu0 %v7152, 32
    %v7155 = vpop.permute.xlu0 %7154
    %v7157 = vadd.f32 %v7147, %v7155
    %v7158 = vtanh.pop %v7157
    %7160 = vrot.lane.b32.xlu0 %v7158, 64
    %v7161 = vpop.permute.xlu0 %7160
    %v7163 = vmul.f32 %v7145, %v7161
    %v7164 = vrot.slane %v6588, 2
    %7165 = vrot.lane.b32.xlu0 %v7164, 32
    %v7166 = vpop.permute.xlu0 %7165
    %v7167 = vsel %vm605, %v7166, 0
    %7169 = vmatprep.subr.mxu0 0.0
    %7170 = vmatpush1.msra.mxu0 0.0
    %7171 = vmatprep.subr.mxu0 0.0
    %7172 = vmatpush1.msra.mxu0 0.0
    %7173 = vmatprep.subr.mxu0 0.0
    %7174 = vmatpush1.msra.mxu0 0.0
    %7175 = vmatprep.subr.mxu0 0.0
    %7176 = vmatpush1.msra.mxu0 0.0
    %7177 = vmatprep.subr.mxu0 0.0
    %7178 = vmatpush1.msra.mxu0 0.0
    %7179 = vmatprep.subr.mxu0 0.0
    %7180 = vmatpush1.msra.mxu0 0.0
    %7181 = vmatprep.subr.mxu0 0.0
    %7182 = vmatpush1.msra.mxu0 0.0
    %7183 = vmatprep.subr.mxu0 0.0
    %7184 = vmatpush1.msra.mxu0 0.0
    %7185 = vmatprep.subr.mxu0 0.0
    %7186 = vmatpush1.msra.mxu0 0.0
    %7187 = vmatprep.subr.mxu0 0.0
    %7188 = vmatpush1.msra.mxu0 0.0
    %7189 = vmatprep.subr.mxu0 0.0
    %7190 = vmatpush1.msra.mxu0 0.0
    %7191 = vmatprep.subr.mxu0 0.0
    %7192 = vmatpush1.msra.mxu0 0.0
    %7193 = vmatprep.subr.mxu0 0.0
    %v7194 = vand.u32 %v595, 4294901760
    %7195 = vmatpush1.msra.mxu0 %v7194
    %7196 = vmatprep.subr.mxu0 0.0
    %v7197 = vand.u32 %v594, 4294901760
    %7198 = vmatpush1.msra.mxu0 %v7197
    %7199 = vmatprep.subr.mxu0 0.0
    %v7200 = vand.u32 %v593, 4294901760
    %7201 = vmatpush1.msra.mxu0 %v7200
    %7202 = vmatprep.subr.mxu0 0.0
    %v7203 = vand.u32 %v592, 4294901760
    %7204 = vmatpush1.msra.mxu0 %v7203
    %7205 = vmatprep.subr.mxu0 0.0
    %7206 = vmatpush2.msra.mxu0 0.0
    %7207 = vmatprep.subr.mxu0 0.0
    %7208 = vmatpush2.msra.mxu0 0.0
    %7209 = vmatprep.subr.mxu0 0.0
    %7210 = vmatpush2.msra.mxu0 0.0
    %7211 = vmatprep.subr.mxu0 0.0
    %7212 = vmatpush2.msra.mxu0 0.0
    %7213 = vmatprep.subr.mxu0 0.0
    %7214 = vmatpush2.msra.mxu0 0.0
    %7215 = vmatprep.subr.mxu0 0.0
    %7216 = vmatpush2.msra.mxu0 0.0
    %7217 = vmatprep.subr.mxu0 0.0
    %7218 = vmatpush2.msra.mxu0 0.0
    %7219 = vmatprep.subr.mxu0 0.0
    %7220 = vmatpush2.msra.mxu0 0.0
    %7221 = vmatprep.subr.mxu0 0.0
    %7222 = vmatpush2.msra.mxu0 0.0
    %7223 = vmatprep.subr.mxu0 0.0
    %7224 = vmatpush2.msra.mxu0 0.0
    %7225 = vmatprep.subr.mxu0 0.0
    %7226 = vmatpush2.msra.mxu0 0.0
    %7227 = vmatprep.subr.mxu0 0.0
    %7228 = vmatpush2.msra.mxu0 0.0
    %7229 = vmatprep.subr.mxu0 0.0
    %7230 = vmatpush2.msra.mxu0 0.0
    %7231 = vmatprep.subr.mxu0 0.0
    %7232 = vmatpush2.msra.mxu0 0.0
    %7233 = vmatprep.subr.mxu0 0.0
    %7234 = vmatpush2.msra.mxu0 0.0
    %7235 = vmatprep.subr.mxu0 0.0
    %7236 = vmatpush2.msra.mxu0 0.0
    %7237 = vmatprep.mubr.f32.mxu0 0.0
    %v7238 = vand.u32 %v7167, 4294901760
    %v7239 = vsub.f32 %v7167, %v7238
    %v7240 = vand.u32 %v7239, 4294901760
    %v7241 = vsub.f32 %v7239, %v7240
    %v7242 = vand.u32 %v7241, 4294901760
    %7243 = vmatmul.mubr.f32.gmra.mxu0 %v7242
    %v7244 = vpop.f32.mrf.mxu0
    %v7245 = vadd.f32 0.0, %v7244
    %v7246 = vpop.f32.mrf.mxu0
    %7247 = vdwg.mxu0
    %7248 = vmatprep.subr.mxu0 0.0
    %7249 = vmatpush1.msra.mxu0 0.0
    %7250 = vmatprep.subr.mxu0 0.0
    %7251 = vmatpush1.msra.mxu0 0.0
    %7252 = vmatprep.subr.mxu0 0.0
    %7253 = vmatpush1.msra.mxu0 0.0
    %7254 = vmatprep.subr.mxu0 0.0
    %7255 = vmatpush1.msra.mxu0 0.0
    %7256 = vmatprep.subr.mxu0 0.0
    %7257 = vmatpush1.msra.mxu0 0.0
    %7258 = vmatprep.subr.mxu0 0.0
    %7259 = vmatpush1.msra.mxu0 0.0
    %7260 = vmatprep.subr.mxu0 0.0
    %7261 = vmatpush1.msra.mxu0 0.0
    %7262 = vmatprep.subr.mxu0 0.0
    %7263 = vmatpush1.msra.mxu0 0.0
    %7264 = vmatprep.subr.mxu0 0.0
    %7265 = vmatpush1.msra.mxu0 0.0
    %7266 = vmatprep.subr.mxu0 0.0
    %7267 = vmatpush1.msra.mxu0 0.0
    %7268 = vmatprep.subr.mxu0 0.0
    %7269 = vmatpush1.msra.mxu0 0.0
    %7270 = vmatprep.subr.mxu0 0.0
    %7271 = vmatpush1.msra.mxu0 0.0
    %7272 = vmatprep.subr.mxu0 0.0
    %v7273 = vand.u32 %v595, 4294901760
    %v7274 = vsub.f32 %v595, %v7273
    %v7275 = vand.u32 %v7274, 4294901760
    %v7276 = vsub.f32 %v7274, %v7275
    %v7277 = vand.u32 %v7276, 4294901760
    %7278 = vmatpush1.msra.mxu0 %v7277
    %7279 = vmatprep.subr.mxu0 0.0
    %v7280 = vand.u32 %v594, 4294901760
    %v7281 = vsub.f32 %v594, %v7280
    %v7282 = vand.u32 %v7281, 4294901760
    %v7283 = vsub.f32 %v7281, %v7282
    %v7284 = vand.u32 %v7283, 4294901760
    %7285 = vmatpush1.msra.mxu0 %v7284
    %7286 = vmatprep.subr.mxu0 0.0
    %v7287 = vand.u32 %v593, 4294901760
    %v7288 = vsub.f32 %v593, %v7287
    %v7289 = vand.u32 %v7288, 4294901760
    %v7290 = vsub.f32 %v7288, %v7289
    %v7291 = vand.u32 %v7290, 4294901760
    %7292 = vmatpush1.msra.mxu0 %v7291
    %7293 = vmatprep.subr.mxu0 0.0
    %v7294 = vand.u32 %v592, 4294901760
    %v7295 = vsub.f32 %v592, %v7294
    %v7296 = vand.u32 %v7295, 4294901760
    %v7297 = vsub.f32 %v7295, %v7296
    %v7298 = vand.u32 %v7297, 4294901760
    %7299 = vmatpush1.msra.mxu0 %v7298
    %7300 = vmatprep.subr.mxu0 0.0
    %7301 = vmatpush2.msra.mxu0 0.0
    %7302 = vmatprep.subr.mxu0 0.0
    %7303 = vmatpush2.msra.mxu0 0.0
    %7304 = vmatprep.subr.mxu0 0.0
    %7305 = vmatpush2.msra.mxu0 0.0
    %7306 = vmatprep.subr.mxu0 0.0
    %7307 = vmatpush2.msra.mxu0 0.0
    %7308 = vmatprep.subr.mxu0 0.0
    %7309 = vmatpush2.msra.mxu0 0.0
    %7310 = vmatprep.subr.mxu0 0.0
    %7311 = vmatpush2.msra.mxu0 0.0
    %7312 = vmatprep.subr.mxu0 0.0
    %7313 = vmatpush2.msra.mxu0 0.0
    %7314 = vmatprep.subr.mxu0 0.0
    %7315 = vmatpush2.msra.mxu0 0.0
    %7316 = vmatprep.subr.mxu0 0.0
    %7317 = vmatpush2.msra.mxu0 0.0
    %7318 = vmatprep.subr.mxu0 0.0
    %7319 = vmatpush2.msra.mxu0 0.0
    %7320 = vmatprep.subr.mxu0 0.0
    %7321 = vmatpush2.msra.mxu0 0.0
    %7322 = vmatprep.subr.mxu0 0.0
    %7323 = vmatpush2.msra.mxu0 0.0
    %7324 = vmatprep.subr.mxu0 0.0
    %7325 = vmatpush2.msra.mxu0 0.0
    %7326 = vmatprep.subr.mxu0 0.0
    %7327 = vmatpush2.msra.mxu0 0.0
    %7328 = vmatprep.subr.mxu0 0.0
    %7329 = vmatpush2.msra.mxu0 0.0
    %7330 = vmatprep.subr.mxu0 0.0
    %7331 = vmatpush2.msra.mxu0 0.0
    %7332 = vmatprep.mubr.f32.mxu0 0.0
    %v7333 = vand.u32 %v7167, 4294901760
    %7334 = vmatmul.mubr.f32.gmra.mxu0 %v7333
    %v7335 = vpop.f32.mrf.mxu0
    %v7336 = vadd.f32 %v7245, %v7335
    %v7337 = vpop.f32.mrf.mxu0
    %7338 = vdwg.mxu0
    %7339 = vmatprep.subr.mxu0 0.0
    %7340 = vmatpush1.msra.mxu0 0.0
    %7341 = vmatprep.subr.mxu0 0.0
    %7342 = vmatpush1.msra.mxu0 0.0
    %7343 = vmatprep.subr.mxu0 0.0
    %7344 = vmatpush1.msra.mxu0 0.0
    %7345 = vmatprep.subr.mxu0 0.0
    %7346 = vmatpush1.msra.mxu0 0.0
    %7347 = vmatprep.subr.mxu0 0.0
    %7348 = vmatpush1.msra.mxu0 0.0
    %7349 = vmatprep.subr.mxu0 0.0
    %7350 = vmatpush1.msra.mxu0 0.0
    %7351 = vmatprep.subr.mxu0 0.0
    %7352 = vmatpush1.msra.mxu0 0.0
    %7353 = vmatprep.subr.mxu0 0.0
    %7354 = vmatpush1.msra.mxu0 0.0
    %7355 = vmatprep.subr.mxu0 0.0
    %7356 = vmatpush1.msra.mxu0 0.0
    %7357 = vmatprep.subr.mxu0 0.0
    %7358 = vmatpush1.msra.mxu0 0.0
    %7359 = vmatprep.subr.mxu0 0.0
    %7360 = vmatpush1.msra.mxu0 0.0
    %7361 = vmatprep.subr.mxu0 0.0
    %7362 = vmatpush1.msra.mxu0 0.0
    %7363 = vmatprep.subr.mxu0 0.0
    %v7364 = vand.u32 %v595, 4294901760
    %v7365 = vsub.f32 %v595, %v7364
    %7366 = vmatpush1.msra.mxu0 %v7365
    %7367 = vmatprep.subr.mxu0 0.0
    %v7368 = vand.u32 %v594, 4294901760
    %v7369 = vsub.f32 %v594, %v7368
    %7370 = vmatpush1.msra.mxu0 %v7369
    %7371 = vmatprep.subr.mxu0 0.0
    %v7372 = vand.u32 %v593, 4294901760
    %v7373 = vsub.f32 %v593, %v7372
    %7374 = vmatpush1.msra.mxu0 %v7373
    %7375 = vmatprep.subr.mxu0 0.0
    %v7376 = vand.u32 %v592, 4294901760
    %v7377 = vsub.f32 %v592, %v7376
    %7378 = vmatpush1.msra.mxu0 %v7377
    %7379 = vmatprep.subr.mxu0 0.0
    %7380 = vmatpush2.msra.mxu0 0.0
    %7381 = vmatprep.subr.mxu0 0.0
    %7382 = vmatpush2.msra.mxu0 0.0
    %7383 = vmatprep.subr.mxu0 0.0
    %7384 = vmatpush2.msra.mxu0 0.0
    %7385 = vmatprep.subr.mxu0 0.0
    %7386 = vmatpush2.msra.mxu0 0.0
    %7387 = vmatprep.subr.mxu0 0.0
    %7388 = vmatpush2.msra.mxu0 0.0
    %7389 = vmatprep.subr.mxu0 0.0
    %7390 = vmatpush2.msra.mxu0 0.0
    %7391 = vmatprep.subr.mxu0 0.0
    %7392 = vmatpush2.msra.mxu0 0.0
    %7393 = vmatprep.subr.mxu0 0.0
    %7394 = vmatpush2.msra.mxu0 0.0
    %7395 = vmatprep.subr.mxu0 0.0
    %7396 = vmatpush2.msra.mxu0 0.0
    %7397 = vmatprep.subr.mxu0 0.0
    %7398 = vmatpush2.msra.mxu0 0.0
    %7399 = vmatprep.subr.mxu0 0.0
    %7400 = vmatpush2.msra.mxu0 0.0
    %7401 = vmatprep.subr.mxu0 0.0
    %7402 = vmatpush2.msra.mxu0 0.0
    %7403 = vmatprep.subr.mxu0 0.0
    %7404 = vmatpush2.msra.mxu0 0.0
    %7405 = vmatprep.subr.mxu0 0.0
    %7406 = vmatpush2.msra.mxu0 0.0
    %7407 = vmatprep.subr.mxu0 0.0
    %7408 = vmatpush2.msra.mxu0 0.0
    %7409 = vmatprep.subr.mxu0 0.0
    %7410 = vmatpush2.msra.mxu0 0.0
    %7411 = vmatprep.mubr.f32.mxu0 0.0
    %v7412 = vand.u32 %v7167, 4294901760
    %v7413 = vsub.f32 %v7167, %v7412
    %7414 = vmatmul.mubr.f32.gmra.mxu0 %v7413
    %v7415 = vpop.f32.mrf.mxu0
    %v7416 = vadd.f32 %v7336, %v7415
    %v7417 = vpop.f32.mrf.mxu0
    %7418 = vdwg.mxu0
    %7419 = vmatprep.subr.mxu0 0.0
    %7420 = vmatpush1.msra.mxu0 0.0
    %7421 = vmatprep.subr.mxu0 0.0
    %7422 = vmatpush1.msra.mxu0 0.0
    %7423 = vmatprep.subr.mxu0 0.0
    %7424 = vmatpush1.msra.mxu0 0.0
    %7425 = vmatprep.subr.mxu0 0.0
    %7426 = vmatpush1.msra.mxu0 0.0
    %7427 = vmatprep.subr.mxu0 0.0
    %7428 = vmatpush1.msra.mxu0 0.0
    %7429 = vmatprep.subr.mxu0 0.0
    %7430 = vmatpush1.msra.mxu0 0.0
    %7431 = vmatprep.subr.mxu0 0.0
    %7432 = vmatpush1.msra.mxu0 0.0
    %7433 = vmatprep.subr.mxu0 0.0
    %7434 = vmatpush1.msra.mxu0 0.0
    %7435 = vmatprep.subr.mxu0 0.0
    %7436 = vmatpush1.msra.mxu0 0.0
    %7437 = vmatprep.subr.mxu0 0.0
    %7438 = vmatpush1.msra.mxu0 0.0
    %7439 = vmatprep.subr.mxu0 0.0
    %7440 = vmatpush1.msra.mxu0 0.0
    %7441 = vmatprep.subr.mxu0 0.0
    %7442 = vmatpush1.msra.mxu0 0.0
    %7443 = vmatprep.subr.mxu0 0.0
    %v7444 = vand.u32 %v595, 4294901760
    %7445 = vmatpush1.msra.mxu0 %v7444
    %7446 = vmatprep.subr.mxu0 0.0
    %v7447 = vand.u32 %v594, 4294901760
    %7448 = vmatpush1.msra.mxu0 %v7447
    %7449 = vmatprep.subr.mxu0 0.0
    %v7450 = vand.u32 %v593, 4294901760
    %7451 = vmatpush1.msra.mxu0 %v7450
    %7452 = vmatprep.subr.mxu0 0.0
    %v7453 = vand.u32 %v592, 4294901760
    %7454 = vmatpush1.msra.mxu0 %v7453
    %7455 = vmatprep.subr.mxu0 0.0
    %7456 = vmatpush2.msra.mxu0 0.0
    %7457 = vmatprep.subr.mxu0 0.0
    %7458 = vmatpush2.msra.mxu0 0.0
    %7459 = vmatprep.subr.mxu0 0.0
    %7460 = vmatpush2.msra.mxu0 0.0
    %7461 = vmatprep.subr.mxu0 0.0
    %7462 = vmatpush2.msra.mxu0 0.0
    %7463 = vmatprep.subr.mxu0 0.0
    %7464 = vmatpush2.msra.mxu0 0.0
    %7465 = vmatprep.subr.mxu0 0.0
    %7466 = vmatpush2.msra.mxu0 0.0
    %7467 = vmatprep.subr.mxu0 0.0
    %7468 = vmatpush2.msra.mxu0 0.0
    %7469 = vmatprep.subr.mxu0 0.0
    %7470 = vmatpush2.msra.mxu0 0.0
    %7471 = vmatprep.subr.mxu0 0.0
    %7472 = vmatpush2.msra.mxu0 0.0
    %7473 = vmatprep.subr.mxu0 0.0
    %7474 = vmatpush2.msra.mxu0 0.0
    %7475 = vmatprep.subr.mxu0 0.0
    %7476 = vmatpush2.msra.mxu0 0.0
    %7477 = vmatprep.subr.mxu0 0.0
    %7478 = vmatpush2.msra.mxu0 0.0
    %7479 = vmatprep.subr.mxu0 0.0
    %7480 = vmatpush2.msra.mxu0 0.0
    %7481 = vmatprep.subr.mxu0 0.0
    %7482 = vmatpush2.msra.mxu0 0.0
    %7483 = vmatprep.subr.mxu0 0.0
    %7484 = vmatpush2.msra.mxu0 0.0
    %7485 = vmatprep.subr.mxu0 0.0
    %7486 = vmatpush2.msra.mxu0 0.0
    %7487 = vmatprep.mubr.f32.mxu0 0.0
    %v7488 = vand.u32 %v7167, 4294901760
    %v7489 = vsub.f32 %v7167, %v7488
    %v7490 = vand.u32 %v7489, 4294901760
    %7491 = vmatmul.mubr.f32.gmra.mxu0 %v7490
    %v7492 = vpop.f32.mrf.mxu0
    %v7493 = vadd.f32 %v7416, %v7492
    %v7494 = vpop.f32.mrf.mxu0
    %7495 = vdwg.mxu0
    %7496 = vmatprep.subr.mxu0 0.0
    %7497 = vmatpush1.msra.mxu0 0.0
    %7498 = vmatprep.subr.mxu0 0.0
    %7499 = vmatpush1.msra.mxu0 0.0
    %7500 = vmatprep.subr.mxu0 0.0
    %7501 = vmatpush1.msra.mxu0 0.0
    %7502 = vmatprep.subr.mxu0 0.0
    %7503 = vmatpush1.msra.mxu0 0.0
    %7504 = vmatprep.subr.mxu0 0.0
    %7505 = vmatpush1.msra.mxu0 0.0
    %7506 = vmatprep.subr.mxu0 0.0
    %7507 = vmatpush1.msra.mxu0 0.0
    %7508 = vmatprep.subr.mxu0 0.0
    %7509 = vmatpush1.msra.mxu0 0.0
    %7510 = vmatprep.subr.mxu0 0.0
    %7511 = vmatpush1.msra.mxu0 0.0
    %7512 = vmatprep.subr.mxu0 0.0
    %7513 = vmatpush1.msra.mxu0 0.0
    %7514 = vmatprep.subr.mxu0 0.0
    %7515 = vmatpush1.msra.mxu0 0.0
    %7516 = vmatprep.subr.mxu0 0.0
    %7517 = vmatpush1.msra.mxu0 0.0
    %7518 = vmatprep.subr.mxu0 0.0
    %7519 = vmatpush1.msra.mxu0 0.0
    %7520 = vmatprep.subr.mxu0 0.0
    %v7521 = vand.u32 %v595, 4294901760
    %v7522 = vsub.f32 %v595, %v7521
    %v7523 = vand.u32 %v7522, 4294901760
    %7524 = vmatpush1.msra.mxu0 %v7523
    %7525 = vmatprep.subr.mxu0 0.0
    %v7526 = vand.u32 %v594, 4294901760
    %v7527 = vsub.f32 %v594, %v7526
    %v7528 = vand.u32 %v7527, 4294901760
    %7529 = vmatpush1.msra.mxu0 %v7528
    %7530 = vmatprep.subr.mxu0 0.0
    %v7531 = vand.u32 %v593, 4294901760
    %v7532 = vsub.f32 %v593, %v7531
    %v7533 = vand.u32 %v7532, 4294901760
    %7534 = vmatpush1.msra.mxu0 %v7533
    %7535 = vmatprep.subr.mxu0 0.0
    %v7536 = vand.u32 %v592, 4294901760
    %v7537 = vsub.f32 %v592, %v7536
    %v7538 = vand.u32 %v7537, 4294901760
    %7539 = vmatpush1.msra.mxu0 %v7538
    %7540 = vmatprep.subr.mxu0 0.0
    %7541 = vmatpush2.msra.mxu0 0.0
    %7542 = vmatprep.subr.mxu0 0.0
    %7543 = vmatpush2.msra.mxu0 0.0
    %7544 = vmatprep.subr.mxu0 0.0
    %7545 = vmatpush2.msra.mxu0 0.0
    %7546 = vmatprep.subr.mxu0 0.0
    %7547 = vmatpush2.msra.mxu0 0.0
    %7548 = vmatprep.subr.mxu0 0.0
    %7549 = vmatpush2.msra.mxu0 0.0
    %7550 = vmatprep.subr.mxu0 0.0
    %7551 = vmatpush2.msra.mxu0 0.0
    %7552 = vmatprep.subr.mxu0 0.0
    %7553 = vmatpush2.msra.mxu0 0.0
    %7554 = vmatprep.subr.mxu0 0.0
    %7555 = vmatpush2.msra.mxu0 0.0
    %7556 = vmatprep.subr.mxu0 0.0
    %7557 = vmatpush2.msra.mxu0 0.0
    %7558 = vmatprep.subr.mxu0 0.0
    %7559 = vmatpush2.msra.mxu0 0.0
    %7560 = vmatprep.subr.mxu0 0.0
    %7561 = vmatpush2.msra.mxu0 0.0
    %7562 = vmatprep.subr.mxu0 0.0
    %7563 = vmatpush2.msra.mxu0 0.0
    %7564 = vmatprep.subr.mxu0 0.0
    %7565 = vmatpush2.msra.mxu0 0.0
    %7566 = vmatprep.subr.mxu0 0.0
    %7567 = vmatpush2.msra.mxu0 0.0
    %7568 = vmatprep.subr.mxu0 0.0
    %7569 = vmatpush2.msra.mxu0 0.0
    %7570 = vmatprep.subr.mxu0 0.0
    %7571 = vmatpush2.msra.mxu0 0.0
    %7572 = vmatprep.mubr.f32.mxu0 0.0
    %v7573 = vand.u32 %v7167, 4294901760
    %7574 = vmatmul.mubr.f32.gmra.mxu0 %v7573
    %v7575 = vpop.f32.mrf.mxu0
    %v7576 = vadd.f32 %v7493, %v7575
    %v7577 = vpop.f32.mrf.mxu0
    %7578 = vdwg.mxu0
    %7579 = vmatprep.subr.mxu0 0.0
    %7580 = vmatpush1.msra.mxu0 0.0
    %7581 = vmatprep.subr.mxu0 0.0
    %7582 = vmatpush1.msra.mxu0 0.0
    %7583 = vmatprep.subr.mxu0 0.0
    %7584 = vmatpush1.msra.mxu0 0.0
    %7585 = vmatprep.subr.mxu0 0.0
    %7586 = vmatpush1.msra.mxu0 0.0
    %7587 = vmatprep.subr.mxu0 0.0
    %7588 = vmatpush1.msra.mxu0 0.0
    %7589 = vmatprep.subr.mxu0 0.0
    %7590 = vmatpush1.msra.mxu0 0.0
    %7591 = vmatprep.subr.mxu0 0.0
    %7592 = vmatpush1.msra.mxu0 0.0
    %7593 = vmatprep.subr.mxu0 0.0
    %7594 = vmatpush1.msra.mxu0 0.0
    %7595 = vmatprep.subr.mxu0 0.0
    %7596 = vmatpush1.msra.mxu0 0.0
    %7597 = vmatprep.subr.mxu0 0.0
    %7598 = vmatpush1.msra.mxu0 0.0
    %7599 = vmatprep.subr.mxu0 0.0
    %7600 = vmatpush1.msra.mxu0 0.0
    %7601 = vmatprep.subr.mxu0 0.0
    %7602 = vmatpush1.msra.mxu0 0.0
    %7603 = vmatprep.subr.mxu0 0.0
    %v7604 = vand.u32 %v595, 4294901760
    %7605 = vmatpush1.msra.mxu0 %v7604
    %7606 = vmatprep.subr.mxu0 0.0
    %v7607 = vand.u32 %v594, 4294901760
    %7608 = vmatpush1.msra.mxu0 %v7607
    %7609 = vmatprep.subr.mxu0 0.0
    %v7610 = vand.u32 %v593, 4294901760
    %7611 = vmatpush1.msra.mxu0 %v7610
    %7612 = vmatprep.subr.mxu0 0.0
    %v7613 = vand.u32 %v592, 4294901760
    %7614 = vmatpush1.msra.mxu0 %v7613
    %7615 = vmatprep.subr.mxu0 0.0
    %7616 = vmatpush2.msra.mxu0 0.0
    %7617 = vmatprep.subr.mxu0 0.0
    %7618 = vmatpush2.msra.mxu0 0.0
    %7619 = vmatprep.subr.mxu0 0.0
    %7620 = vmatpush2.msra.mxu0 0.0
    %7621 = vmatprep.subr.mxu0 0.0
    %7622 = vmatpush2.msra.mxu0 0.0
    %7623 = vmatprep.subr.mxu0 0.0
    %7624 = vmatpush2.msra.mxu0 0.0
    %7625 = vmatprep.subr.mxu0 0.0
    %7626 = vmatpush2.msra.mxu0 0.0
    %7627 = vmatprep.subr.mxu0 0.0
    %7628 = vmatpush2.msra.mxu0 0.0
    %7629 = vmatprep.subr.mxu0 0.0
    %7630 = vmatpush2.msra.mxu0 0.0
    %7631 = vmatprep.subr.mxu0 0.0
    %7632 = vmatpush2.msra.mxu0 0.0
    %7633 = vmatprep.subr.mxu0 0.0
    %7634 = vmatpush2.msra.mxu0 0.0
    %7635 = vmatprep.subr.mxu0 0.0
    %7636 = vmatpush2.msra.mxu0 0.0
    %7637 = vmatprep.subr.mxu0 0.0
    %7638 = vmatpush2.msra.mxu0 0.0
    %7639 = vmatprep.subr.mxu0 0.0
    %7640 = vmatpush2.msra.mxu0 0.0
    %7641 = vmatprep.subr.mxu0 0.0
    %7642 = vmatpush2.msra.mxu0 0.0
    %7643 = vmatprep.subr.mxu0 0.0
    %7644 = vmatpush2.msra.mxu0 0.0
    %7645 = vmatprep.subr.mxu0 0.0
    %7646 = vmatpush2.msra.mxu0 0.0
    %7647 = vmatprep.mubr.f32.mxu0 0.0
    %v7648 = vand.u32 %v7167, 4294901760
    %7649 = vmatmul.mubr.f32.gmra.mxu0 %v7648
    %v7650 = vpop.f32.mrf.mxu0
    %v7651 = vadd.f32 %v7576, %v7650
    %v7652 = vpop.f32.mrf.mxu0
    %7653 = vdwg.mxu0
    %v7655 = vrot.slane %v7651, 4
    %v7657 = vadd.f32 %v589, %v7655
    %v7658 = vxor.u32 %v7657, 2147483648
    %v7659 = vmul.f32 %v7658, 1.442695
    %v7660 = vpow.pop %v7659
    %v7661 = vadd.f32 %v7660, 1.0
    %v7662 = vrcp.pop %v7661
    %v7663 = vmul.f32 1.0, %v7662
    %v7664 = vtanh.pop %v7657
    %v7666 = vrot.slane %v6582, 6
    %v7668 = vmul.f32 %v7663, %v7666
    %7670 = vrot.lane.b32.xlu0 %v7664, 64
    %v7671 = vpop.permute.xlu0 %7670
    %v7673 = vmul.f32 %v7663, %v7671
    %7675 = vrot.lane.b32.xlu0 %v7673, 32
    %v7676 = vpop.permute.xlu0 %7675
    %v7678 = vadd.f32 %v7668, %v7676
    %v7679 = vtanh.pop %v7678
    %7681 = vrot.lane.b32.xlu0 %v7679, 64
    %v7682 = vpop.permute.xlu0 %7681
    %v7684 = vmul.f32 %v7663, %v7682
    %7686 = vrot.lane.b32.xlu0 %v7684, 32
    %v7687 = vpop.permute.xlu0 %7686
    %v7690 = vrot.slane %v7163, 4
    %7691 = vrot.lane.b32.xlu0 %v7690, 64
    %v7692 = vpop.permute.xlu0 %7691
    %v7694 = vsel %vm605, %v7687, %v7692
    %v7696 = vrot.slane %v7694, 4
    %v7697 = vsel %vm1130, %v7696, 0
    %7699 = vmatprep.subr.mxu0 0.0
    %7700 = vmatpush1.msra.mxu0 0.0
    %7701 = vmatprep.subr.mxu0 0.0
    %7702 = vmatpush1.msra.mxu0 0.0
    %7703 = vmatprep.subr.mxu0 0.0
    %7704 = vmatpush1.msra.mxu0 0.0
    %7705 = vmatprep.subr.mxu0 0.0
    %7706 = vmatpush1.msra.mxu0 0.0
    %7707 = vmatprep.subr.mxu0 0.0
    %7708 = vmatpush1.msra.mxu0 0.0
    %7709 = vmatprep.subr.mxu0 0.0
    %7710 = vmatpush1.msra.mxu0 0.0
    %7711 = vmatprep.subr.mxu0 0.0
    %7712 = vmatpush1.msra.mxu0 0.0
    %7713 = vmatprep.subr.mxu0 0.0
    %7714 = vmatpush1.msra.mxu0 0.0
    %7715 = vmatprep.subr.mxu0 0.0
    %v7716 = vand.u32 %v603, 4294901760
    %7717 = vmatpush1.msra.mxu0 %v7716
    %7718 = vmatprep.subr.mxu0 0.0
    %v7719 = vand.u32 %v602, 4294901760
    %7720 = vmatpush1.msra.mxu0 %v7719
    %7721 = vmatprep.subr.mxu0 0.0
    %v7722 = vand.u32 %v601, 4294901760
    %7723 = vmatpush1.msra.mxu0 %v7722
    %7724 = vmatprep.subr.mxu0 0.0
    %v7725 = vand.u32 %v600, 4294901760
    %7726 = vmatpush1.msra.mxu0 %v7725
    %7727 = vmatprep.subr.mxu0 0.0
    %v7728 = vand.u32 %v599, 4294901760
    %7729 = vmatpush1.msra.mxu0 %v7728
    %7730 = vmatprep.subr.mxu0 0.0
    %v7731 = vand.u32 %v598, 4294901760
    %7732 = vmatpush1.msra.mxu0 %v7731
    %7733 = vmatprep.subr.mxu0 0.0
    %v7734 = vand.u32 %v597, 4294901760
    %7735 = vmatpush1.msra.mxu0 %v7734
    %7736 = vmatprep.subr.mxu0 0.0
    %v7737 = vand.u32 %v596, 4294901760
    %7738 = vmatpush1.msra.mxu0 %v7737
    %7739 = vmatprep.subr.mxu0 0.0
    %7740 = vmatpush2.msra.mxu0 0.0
    %7741 = vmatprep.subr.mxu0 0.0
    %7742 = vmatpush2.msra.mxu0 0.0
    %7743 = vmatprep.subr.mxu0 0.0
    %7744 = vmatpush2.msra.mxu0 0.0
    %7745 = vmatprep.subr.mxu0 0.0
    %7746 = vmatpush2.msra.mxu0 0.0
    %7747 = vmatprep.subr.mxu0 0.0
    %7748 = vmatpush2.msra.mxu0 0.0
    %7749 = vmatprep.subr.mxu0 0.0
    %7750 = vmatpush2.msra.mxu0 0.0
    %7751 = vmatprep.subr.mxu0 0.0
    %7752 = vmatpush2.msra.mxu0 0.0
    %7753 = vmatprep.subr.mxu0 0.0
    %7754 = vmatpush2.msra.mxu0 0.0
    %7755 = vmatprep.subr.mxu0 0.0
    %7756 = vmatpush2.msra.mxu0 0.0
    %7757 = vmatprep.subr.mxu0 0.0
    %7758 = vmatpush2.msra.mxu0 0.0
    %7759 = vmatprep.subr.mxu0 0.0
    %7760 = vmatpush2.msra.mxu0 0.0
    %7761 = vmatprep.subr.mxu0 0.0
    %7762 = vmatpush2.msra.mxu0 0.0
    %7763 = vmatprep.subr.mxu0 0.0
    %7764 = vmatpush2.msra.mxu0 0.0
    %7765 = vmatprep.subr.mxu0 0.0
    %7766 = vmatpush2.msra.mxu0 0.0
    %7767 = vmatprep.subr.mxu0 0.0
    %7768 = vmatpush2.msra.mxu0 0.0
    %7769 = vmatprep.subr.mxu0 0.0
    %7770 = vmatpush2.msra.mxu0 0.0
    %7771 = vmatprep.mubr.f32.mxu0 0.0
    %v7772 = vand.u32 %v7697, 4294901760
    %v7773 = vsub.f32 %v7697, %v7772
    %v7774 = vand.u32 %v7773, 4294901760
    %v7775 = vsub.f32 %v7773, %v7774
    %v7776 = vand.u32 %v7775, 4294901760
    %7777 = vmatmul.mubr.f32.gmra.mxu0 %v7776
    %v7778 = vpop.f32.mrf.mxu0
    %v7779 = vadd.f32 %v1128, %v7778
    %v7780 = vpop.f32.mrf.mxu0
    %7781 = vdwg.mxu0
    %7782 = vmatprep.subr.mxu0 0.0
    %7783 = vmatpush1.msra.mxu0 0.0
    %7784 = vmatprep.subr.mxu0 0.0
    %7785 = vmatpush1.msra.mxu0 0.0
    %7786 = vmatprep.subr.mxu0 0.0
    %7787 = vmatpush1.msra.mxu0 0.0
    %7788 = vmatprep.subr.mxu0 0.0
    %7789 = vmatpush1.msra.mxu0 0.0
    %7790 = vmatprep.subr.mxu0 0.0
    %7791 = vmatpush1.msra.mxu0 0.0
    %7792 = vmatprep.subr.mxu0 0.0
    %7793 = vmatpush1.msra.mxu0 0.0
    %7794 = vmatprep.subr.mxu0 0.0
    %7795 = vmatpush1.msra.mxu0 0.0
    %7796 = vmatprep.subr.mxu0 0.0
    %7797 = vmatpush1.msra.mxu0 0.0
    %7798 = vmatprep.subr.mxu0 0.0
    %v7799 = vand.u32 %v603, 4294901760
    %v7800 = vsub.f32 %v603, %v7799
    %v7801 = vand.u32 %v7800, 4294901760
    %v7802 = vsub.f32 %v7800, %v7801
    %v7803 = vand.u32 %v7802, 4294901760
    %7804 = vmatpush1.msra.mxu0 %v7803
    %7805 = vmatprep.subr.mxu0 0.0
    %v7806 = vand.u32 %v602, 4294901760
    %v7807 = vsub.f32 %v602, %v7806
    %v7808 = vand.u32 %v7807, 4294901760
    %v7809 = vsub.f32 %v7807, %v7808
    %v7810 = vand.u32 %v7809, 4294901760
    %7811 = vmatpush1.msra.mxu0 %v7810
    %7812 = vmatprep.subr.mxu0 0.0
    %v7813 = vand.u32 %v601, 4294901760
    %v7814 = vsub.f32 %v601, %v7813
    %v7815 = vand.u32 %v7814, 4294901760
    %v7816 = vsub.f32 %v7814, %v7815
    %v7817 = vand.u32 %v7816, 4294901760
    %7818 = vmatpush1.msra.mxu0 %v7817
    %7819 = vmatprep.subr.mxu0 0.0
    %v7820 = vand.u32 %v600, 4294901760
    %v7821 = vsub.f32 %v600, %v7820
    %v7822 = vand.u32 %v7821, 4294901760
    %v7823 = vsub.f32 %v7821, %v7822
    %v7824 = vand.u32 %v7823, 4294901760
    %7825 = vmatpush1.msra.mxu0 %v7824
    %7826 = vmatprep.subr.mxu0 0.0
    %v7827 = vand.u32 %v599, 4294901760
    %v7828 = vsub.f32 %v599, %v7827
    %v7829 = vand.u32 %v7828, 4294901760
    %v7830 = vsub.f32 %v7828, %v7829
    %v7831 = vand.u32 %v7830, 4294901760
    %7832 = vmatpush1.msra.mxu0 %v7831
    %7833 = vmatprep.subr.mxu0 0.0
    %v7834 = vand.u32 %v598, 4294901760
    %v7835 = vsub.f32 %v598, %v7834
    %v7836 = vand.u32 %v7835, 4294901760
    %v7837 = vsub.f32 %v7835, %v7836
    %v7838 = vand.u32 %v7837, 4294901760
    %7839 = vmatpush1.msra.mxu0 %v7838
    %7840 = vmatprep.subr.mxu0 0.0
    %v7841 = vand.u32 %v597, 4294901760
    %v7842 = vsub.f32 %v597, %v7841
    %v7843 = vand.u32 %v7842, 4294901760
    %v7844 = vsub.f32 %v7842, %v7843
    %v7845 = vand.u32 %v7844, 4294901760
    %7846 = vmatpush1.msra.mxu0 %v7845
    %7847 = vmatprep.subr.mxu0 0.0
    %v7848 = vand.u32 %v596, 4294901760
    %v7849 = vsub.f32 %v596, %v7848
    %v7850 = vand.u32 %v7849, 4294901760
    %v7851 = vsub.f32 %v7849, %v7850
    %v7852 = vand.u32 %v7851, 4294901760
    %7853 = vmatpush1.msra.mxu0 %v7852
    %7854 = vmatprep.subr.mxu0 0.0
    %7855 = vmatpush2.msra.mxu0 0.0
    %7856 = vmatprep.subr.mxu0 0.0
    %7857 = vmatpush2.msra.mxu0 0.0
    %7858 = vmatprep.subr.mxu0 0.0
    %7859 = vmatpush2.msra.mxu0 0.0
    %7860 = vmatprep.subr.mxu0 0.0
    %7861 = vmatpush2.msra.mxu0 0.0
    %7862 = vmatprep.subr.mxu0 0.0
    %7863 = vmatpush2.msra.mxu0 0.0
    %7864 = vmatprep.subr.mxu0 0.0
    %7865 = vmatpush2.msra.mxu0 0.0
    %7866 = vmatprep.subr.mxu0 0.0
    %7867 = vmatpush2.msra.mxu0 0.0
    %7868 = vmatprep.subr.mxu0 0.0
    %7869 = vmatpush2.msra.mxu0 0.0
    %7870 = vmatprep.subr.mxu0 0.0
    %7871 = vmatpush2.msra.mxu0 0.0
    %7872 = vmatprep.subr.mxu0 0.0
    %7873 = vmatpush2.msra.mxu0 0.0
    %7874 = vmatprep.subr.mxu0 0.0
    %7875 = vmatpush2.msra.mxu0 0.0
    %7876 = vmatprep.subr.mxu0 0.0
    %7877 = vmatpush2.msra.mxu0 0.0
    %7878 = vmatprep.subr.mxu0 0.0
    %7879 = vmatpush2.msra.mxu0 0.0
    %7880 = vmatprep.subr.mxu0 0.0
    %7881 = vmatpush2.msra.mxu0 0.0
    %7882 = vmatprep.subr.mxu0 0.0
    %7883 = vmatpush2.msra.mxu0 0.0
    %7884 = vmatprep.subr.mxu0 0.0
    %7885 = vmatpush2.msra.mxu0 0.0
    %7886 = vmatprep.mubr.f32.mxu0 0.0
    %v7887 = vand.u32 %v7697, 4294901760
    %7888 = vmatmul.mubr.f32.gmra.mxu0 %v7887
    %v7889 = vpop.f32.mrf.mxu0
    %v7890 = vadd.f32 %v7779, %v7889
    %v7891 = vpop.f32.mrf.mxu0
    %7892 = vdwg.mxu0
    %7893 = vmatprep.subr.mxu0 0.0
    %7894 = vmatpush1.msra.mxu0 0.0
    %7895 = vmatprep.subr.mxu0 0.0
    %7896 = vmatpush1.msra.mxu0 0.0
    %7897 = vmatprep.subr.mxu0 0.0
    %7898 = vmatpush1.msra.mxu0 0.0
    %7899 = vmatprep.subr.mxu0 0.0
    %7900 = vmatpush1.msra.mxu0 0.0
    %7901 = vmatprep.subr.mxu0 0.0
    %7902 = vmatpush1.msra.mxu0 0.0
    %7903 = vmatprep.subr.mxu0 0.0
    %7904 = vmatpush1.msra.mxu0 0.0
    %7905 = vmatprep.subr.mxu0 0.0
    %7906 = vmatpush1.msra.mxu0 0.0
    %7907 = vmatprep.subr.mxu0 0.0
    %7908 = vmatpush1.msra.mxu0 0.0
    %7909 = vmatprep.subr.mxu0 0.0
    %v7910 = vand.u32 %v603, 4294901760
    %v7911 = vsub.f32 %v603, %v7910
    %7912 = vmatpush1.msra.mxu0 %v7911
    %7913 = vmatprep.subr.mxu0 0.0
    %v7914 = vand.u32 %v602, 4294901760
    %v7915 = vsub.f32 %v602, %v7914
    %7916 = vmatpush1.msra.mxu0 %v7915
    %7917 = vmatprep.subr.mxu0 0.0
    %v7918 = vand.u32 %v601, 4294901760
    %v7919 = vsub.f32 %v601, %v7918
    %7920 = vmatpush1.msra.mxu0 %v7919
    %7921 = vmatprep.subr.mxu0 0.0
    %v7922 = vand.u32 %v600, 4294901760
    %v7923 = vsub.f32 %v600, %v7922
    %7924 = vmatpush1.msra.mxu0 %v7923
    %7925 = vmatprep.subr.mxu0 0.0
    %v7926 = vand.u32 %v599, 4294901760
    %v7927 = vsub.f32 %v599, %v7926
    %7928 = vmatpush1.msra.mxu0 %v7927
    %7929 = vmatprep.subr.mxu0 0.0
    %v7930 = vand.u32 %v598, 4294901760
    %v7931 = vsub.f32 %v598, %v7930
    %7932 = vmatpush1.msra.mxu0 %v7931
    %7933 = vmatprep.subr.mxu0 0.0
    %v7934 = vand.u32 %v597, 4294901760
    %v7935 = vsub.f32 %v597, %v7934
    %7936 = vmatpush1.msra.mxu0 %v7935
    %7937 = vmatprep.subr.mxu0 0.0
    %v7938 = vand.u32 %v596, 4294901760
    %v7939 = vsub.f32 %v596, %v7938
    %7940 = vmatpush1.msra.mxu0 %v7939
    %7941 = vmatprep.subr.mxu0 0.0
    %7942 = vmatpush2.msra.mxu0 0.0
    %7943 = vmatprep.subr.mxu0 0.0
    %7944 = vmatpush2.msra.mxu0 0.0
    %7945 = vmatprep.subr.mxu0 0.0
    %7946 = vmatpush2.msra.mxu0 0.0
    %7947 = vmatprep.subr.mxu0 0.0
    %7948 = vmatpush2.msra.mxu0 0.0
    %7949 = vmatprep.subr.mxu0 0.0
    %7950 = vmatpush2.msra.mxu0 0.0
    %7951 = vmatprep.subr.mxu0 0.0
    %7952 = vmatpush2.msra.mxu0 0.0
    %7953 = vmatprep.subr.mxu0 0.0
    %7954 = vmatpush2.msra.mxu0 0.0
    %7955 = vmatprep.subr.mxu0 0.0
    %7956 = vmatpush2.msra.mxu0 0.0
    %7957 = vmatprep.subr.mxu0 0.0
    %7958 = vmatpush2.msra.mxu0 0.0
    %7959 = vmatprep.subr.mxu0 0.0
    %7960 = vmatpush2.msra.mxu0 0.0
    %7961 = vmatprep.subr.mxu0 0.0
    %7962 = vmatpush2.msra.mxu0 0.0
    %7963 = vmatprep.subr.mxu0 0.0
    %7964 = vmatpush2.msra.mxu0 0.0
    %7965 = vmatprep.subr.mxu0 0.0
    %7966 = vmatpush2.msra.mxu0 0.0
    %7967 = vmatprep.subr.mxu0 0.0
    %7968 = vmatpush2.msra.mxu0 0.0
    %7969 = vmatprep.subr.mxu0 0.0
    %7970 = vmatpush2.msra.mxu0 0.0
    %7971 = vmatprep.subr.mxu0 0.0
    %7972 = vmatpush2.msra.mxu0 0.0
    %7973 = vmatprep.mubr.f32.mxu0 0.0
    %v7974 = vand.u32 %v7697, 4294901760
    %v7975 = vsub.f32 %v7697, %v7974
    %7976 = vmatmul.mubr.f32.gmra.mxu0 %v7975
    %v7977 = vpop.f32.mrf.mxu0
    %v7978 = vadd.f32 %v7890, %v7977
    %v7979 = vpop.f32.mrf.mxu0
    %7980 = vdwg.mxu0
    %7981 = vmatprep.subr.mxu0 0.0
    %7982 = vmatpush1.msra.mxu0 0.0
    %7983 = vmatprep.subr.mxu0 0.0
    %7984 = vmatpush1.msra.mxu0 0.0
    %7985 = vmatprep.subr.mxu0 0.0
    %7986 = vmatpush1.msra.mxu0 0.0
    %7987 = vmatprep.subr.mxu0 0.0
    %7988 = vmatpush1.msra.mxu0 0.0
    %7989 = vmatprep.subr.mxu0 0.0
    %7990 = vmatpush1.msra.mxu0 0.0
    %7991 = vmatprep.subr.mxu0 0.0
    %7992 = vmatpush1.msra.mxu0 0.0
    %7993 = vmatprep.subr.mxu0 0.0
    %7994 = vmatpush1.msra.mxu0 0.0
    %7995 = vmatprep.subr.mxu0 0.0
    %7996 = vmatpush1.msra.mxu0 0.0
    %7997 = vmatprep.subr.mxu0 0.0
    %v7998 = vand.u32 %v603, 4294901760
    %7999 = vmatpush1.msra.mxu0 %v7998
    %8000 = vmatprep.subr.mxu0 0.0
    %v8001 = vand.u32 %v602, 4294901760
    %8002 = vmatpush1.msra.mxu0 %v8001
    %8003 = vmatprep.subr.mxu0 0.0
    %v8004 = vand.u32 %v601, 4294901760
    %8005 = vmatpush1.msra.mxu0 %v8004
    %8006 = vmatprep.subr.mxu0 0.0
    %v8007 = vand.u32 %v600, 4294901760
    %8008 = vmatpush1.msra.mxu0 %v8007
    %8009 = vmatprep.subr.mxu0 0.0
    %v8010 = vand.u32 %v599, 4294901760
    %8011 = vmatpush1.msra.mxu0 %v8010
    %8012 = vmatprep.subr.mxu0 0.0
    %v8013 = vand.u32 %v598, 4294901760
    %8014 = vmatpush1.msra.mxu0 %v8013
    %8015 = vmatprep.subr.mxu0 0.0
    %v8016 = vand.u32 %v597, 4294901760
    %8017 = vmatpush1.msra.mxu0 %v8016
    %8018 = vmatprep.subr.mxu0 0.0
    %v8019 = vand.u32 %v596, 4294901760
    %8020 = vmatpush1.msra.mxu0 %v8019
    %8021 = vmatprep.subr.mxu0 0.0
    %8022 = vmatpush2.msra.mxu0 0.0
    %8023 = vmatprep.subr.mxu0 0.0
    %8024 = vmatpush2.msra.mxu0 0.0
    %8025 = vmatprep.subr.mxu0 0.0
    %8026 = vmatpush2.msra.mxu0 0.0
    %8027 = vmatprep.subr.mxu0 0.0
    %8028 = vmatpush2.msra.mxu0 0.0
    %8029 = vmatprep.subr.mxu0 0.0
    %8030 = vmatpush2.msra.mxu0 0.0
    %8031 = vmatprep.subr.mxu0 0.0
    %8032 = vmatpush2.msra.mxu0 0.0
    %8033 = vmatprep.subr.mxu0 0.0
    %8034 = vmatpush2.msra.mxu0 0.0
    %8035 = vmatprep.subr.mxu0 0.0
    %8036 = vmatpush2.msra.mxu0 0.0
    %8037 = vmatprep.subr.mxu0 0.0
    %8038 = vmatpush2.msra.mxu0 0.0
    %8039 = vmatprep.subr.mxu0 0.0
    %8040 = vmatpush2.msra.mxu0 0.0
    %8041 = vmatprep.subr.mxu0 0.0
    %8042 = vmatpush2.msra.mxu0 0.0
    %8043 = vmatprep.subr.mxu0 0.0
    %8044 = vmatpush2.msra.mxu0 0.0
    %8045 = vmatprep.subr.mxu0 0.0
    %8046 = vmatpush2.msra.mxu0 0.0
    %8047 = vmatprep.subr.mxu0 0.0
    %8048 = vmatpush2.msra.mxu0 0.0
    %8049 = vmatprep.subr.mxu0 0.0
    %8050 = vmatpush2.msra.mxu0 0.0
    %8051 = vmatprep.subr.mxu0 0.0
    %8052 = vmatpush2.msra.mxu0 0.0
    %8053 = vmatprep.mubr.f32.mxu0 0.0
    %v8054 = vand.u32 %v7697, 4294901760
    %v8055 = vsub.f32 %v7697, %v8054
    %v8056 = vand.u32 %v8055, 4294901760
    %8057 = vmatmul.mubr.f32.gmra.mxu0 %v8056
    %v8058 = vpop.f32.mrf.mxu0
    %v8059 = vadd.f32 %v7978, %v8058
    %v8060 = vpop.f32.mrf.mxu0
    %8061 = vdwg.mxu0
    %8062 = vmatprep.subr.mxu0 0.0
    %8063 = vmatpush1.msra.mxu0 0.0
    %8064 = vmatprep.subr.mxu0 0.0
    %8065 = vmatpush1.msra.mxu0 0.0
    %8066 = vmatprep.subr.mxu0 0.0
    %8067 = vmatpush1.msra.mxu0 0.0
    %8068 = vmatprep.subr.mxu0 0.0
    %8069 = vmatpush1.msra.mxu0 0.0
    %8070 = vmatprep.subr.mxu0 0.0
    %8071 = vmatpush1.msra.mxu0 0.0
    %8072 = vmatprep.subr.mxu0 0.0
    %8073 = vmatpush1.msra.mxu0 0.0
    %8074 = vmatprep.subr.mxu0 0.0
    %8075 = vmatpush1.msra.mxu0 0.0
    %8076 = vmatprep.subr.mxu0 0.0
    %8077 = vmatpush1.msra.mxu0 0.0
    %8078 = vmatprep.subr.mxu0 0.0
    %v8079 = vand.u32 %v603, 4294901760
    %v8080 = vsub.f32 %v603, %v8079
    %v8081 = vand.u32 %v8080, 4294901760
    %8082 = vmatpush1.msra.mxu0 %v8081
    %8083 = vmatprep.subr.mxu0 0.0
    %v8084 = vand.u32 %v602, 4294901760
    %v8085 = vsub.f32 %v602, %v8084
    %v8086 = vand.u32 %v8085, 4294901760
    %8087 = vmatpush1.msra.mxu0 %v8086
    %8088 = vmatprep.subr.mxu0 0.0
    %v8089 = vand.u32 %v601, 4294901760
    %v8090 = vsub.f32 %v601, %v8089
    %v8091 = vand.u32 %v8090, 4294901760
    %8092 = vmatpush1.msra.mxu0 %v8091
    %8093 = vmatprep.subr.mxu0 0.0
    %v8094 = vand.u32 %v600, 4294901760
    %v8095 = vsub.f32 %v600, %v8094
    %v8096 = vand.u32 %v8095, 4294901760
    %8097 = vmatpush1.msra.mxu0 %v8096
    %8098 = vmatprep.subr.mxu0 0.0
    %v8099 = vand.u32 %v599, 4294901760
    %v8100 = vsub.f32 %v599, %v8099
    %v8101 = vand.u32 %v8100, 4294901760
    %8102 = vmatpush1.msra.mxu0 %v8101
    %8103 = vmatprep.subr.mxu0 0.0
    %v8104 = vand.u32 %v598, 4294901760
    %v8105 = vsub.f32 %v598, %v8104
    %v8106 = vand.u32 %v8105, 4294901760
    %8107 = vmatpush1.msra.mxu0 %v8106
    %8108 = vmatprep.subr.mxu0 0.0
    %v8109 = vand.u32 %v597, 4294901760
    %v8110 = vsub.f32 %v597, %v8109
    %v8111 = vand.u32 %v8110, 4294901760
    %8112 = vmatpush1.msra.mxu0 %v8111
    %8113 = vmatprep.subr.mxu0 0.0
    %v8114 = vand.u32 %v596, 4294901760
    %v8115 = vsub.f32 %v596, %v8114
    %v8116 = vand.u32 %v8115, 4294901760
    %8117 = vmatpush1.msra.mxu0 %v8116
    %8118 = vmatprep.subr.mxu0 0.0
    %8119 = vmatpush2.msra.mxu0 0.0
    %8120 = vmatprep.subr.mxu0 0.0
    %8121 = vmatpush2.msra.mxu0 0.0
    %8122 = vmatprep.subr.mxu0 0.0
    %8123 = vmatpush2.msra.mxu0 0.0
    %8124 = vmatprep.subr.mxu0 0.0
    %8125 = vmatpush2.msra.mxu0 0.0
    %8126 = vmatprep.subr.mxu0 0.0
    %8127 = vmatpush2.msra.mxu0 0.0
    %8128 = vmatprep.subr.mxu0 0.0
    %8129 = vmatpush2.msra.mxu0 0.0
    %8130 = vmatprep.subr.mxu0 0.0
    %8131 = vmatpush2.msra.mxu0 0.0
    %8132 = vmatprep.subr.mxu0 0.0
    %8133 = vmatpush2.msra.mxu0 0.0
    %8134 = vmatprep.subr.mxu0 0.0
    %8135 = vmatpush2.msra.mxu0 0.0
    %8136 = vmatprep.subr.mxu0 0.0
    %8137 = vmatpush2.msra.mxu0 0.0
    %8138 = vmatprep.subr.mxu0 0.0
    %8139 = vmatpush2.msra.mxu0 0.0
    %8140 = vmatprep.subr.mxu0 0.0
    %8141 = vmatpush2.msra.mxu0 0.0
    %8142 = vmatprep.subr.mxu0 0.0
    %8143 = vmatpush2.msra.mxu0 0.0
    %8144 = vmatprep.subr.mxu0 0.0
    %8145 = vmatpush2.msra.mxu0 0.0
    %8146 = vmatprep.subr.mxu0 0.0
    %8147 = vmatpush2.msra.mxu0 0.0
    %8148 = vmatprep.subr.mxu0 0.0
    %8149 = vmatpush2.msra.mxu0 0.0
    %8150 = vmatprep.mubr.f32.mxu0 0.0
    %v8151 = vand.u32 %v7697, 4294901760
    %8152 = vmatmul.mubr.f32.gmra.mxu0 %v8151
    %v8153 = vpop.f32.mrf.mxu0
    %v8154 = vadd.f32 %v8059, %v8153
    %v8155 = vpop.f32.mrf.mxu0
    %8156 = vdwg.mxu0
    %8157 = vmatprep.subr.mxu0 0.0
    %8158 = vmatpush1.msra.mxu0 0.0
    %8159 = vmatprep.subr.mxu0 0.0
    %8160 = vmatpush1.msra.mxu0 0.0
    %8161 = vmatprep.subr.mxu0 0.0
    %8162 = vmatpush1.msra.mxu0 0.0
    %8163 = vmatprep.subr.mxu0 0.0
    %8164 = vmatpush1.msra.mxu0 0.0
    %8165 = vmatprep.subr.mxu0 0.0
    %8166 = vmatpush1.msra.mxu0 0.0
    %8167 = vmatprep.subr.mxu0 0.0
    %8168 = vmatpush1.msra.mxu0 0.0
    %8169 = vmatprep.subr.mxu0 0.0
    %8170 = vmatpush1.msra.mxu0 0.0
    %8171 = vmatprep.subr.mxu0 0.0
    %8172 = vmatpush1.msra.mxu0 0.0
    %8173 = vmatprep.subr.mxu0 0.0
    %v8174 = vand.u32 %v603, 4294901760
    %8175 = vmatpush1.msra.mxu0 %v8174
    %8176 = vmatprep.subr.mxu0 0.0
    %v8177 = vand.u32 %v602, 4294901760
    %8178 = vmatpush1.msra.mxu0 %v8177
    %8179 = vmatprep.subr.mxu0 0.0
    %v8180 = vand.u32 %v601, 4294901760
    %8181 = vmatpush1.msra.mxu0 %v8180
    %8182 = vmatprep.subr.mxu0 0.0
    %v8183 = vand.u32 %v600, 4294901760
    %8184 = vmatpush1.msra.mxu0 %v8183
    %8185 = vmatprep.subr.mxu0 0.0
    %v8186 = vand.u32 %v599, 4294901760
    %8187 = vmatpush1.msra.mxu0 %v8186
    %8188 = vmatprep.subr.mxu0 0.0
    %v8189 = vand.u32 %v598, 4294901760
    %8190 = vmatpush1.msra.mxu0 %v8189
    %8191 = vmatprep.subr.mxu0 0.0
    %v8192 = vand.u32 %v597, 4294901760
    %8193 = vmatpush1.msra.mxu0 %v8192
    %8194 = vmatprep.subr.mxu0 0.0
    %v8195 = vand.u32 %v596, 4294901760
    %8196 = vmatpush1.msra.mxu0 %v8195
    %8197 = vmatprep.subr.mxu0 0.0
    %8198 = vmatpush2.msra.mxu0 0.0
    %8199 = vmatprep.subr.mxu0 0.0
    %8200 = vmatpush2.msra.mxu0 0.0
    %8201 = vmatprep.subr.mxu0 0.0
    %8202 = vmatpush2.msra.mxu0 0.0
    %8203 = vmatprep.subr.mxu0 0.0
    %8204 = vmatpush2.msra.mxu0 0.0
    %8205 = vmatprep.subr.mxu0 0.0
    %8206 = vmatpush2.msra.mxu0 0.0
    %8207 = vmatprep.subr.mxu0 0.0
    %8208 = vmatpush2.msra.mxu0 0.0
    %8209 = vmatprep.subr.mxu0 0.0
    %8210 = vmatpush2.msra.mxu0 0.0
    %8211 = vmatprep.subr.mxu0 0.0
    %8212 = vmatpush2.msra.mxu0 0.0
    %8213 = vmatprep.subr.mxu0 0.0
    %8214 = vmatpush2.msra.mxu0 0.0
    %8215 = vmatprep.subr.mxu0 0.0
    %8216 = vmatpush2.msra.mxu0 0.0
    %8217 = vmatprep.subr.mxu0 0.0
    %8218 = vmatpush2.msra.mxu0 0.0
    %8219 = vmatprep.subr.mxu0 0.0
    %8220 = vmatpush2.msra.mxu0 0.0
    %8221 = vmatprep.subr.mxu0 0.0
    %8222 = vmatpush2.msra.mxu0 0.0
    %8223 = vmatprep.subr.mxu0 0.0
    %8224 = vmatpush2.msra.mxu0 0.0
    %8225 = vmatprep.subr.mxu0 0.0
    %8226 = vmatpush2.msra.mxu0 0.0
    %8227 = vmatprep.subr.mxu0 0.0
    %8228 = vmatpush2.msra.mxu0 0.0
    %8229 = vmatprep.mubr.f32.mxu0 0.0
    %v8230 = vand.u32 %v7697, 4294901760
    %8231 = vmatmul.mubr.f32.gmra.mxu0 %v8230
    %v8232 = vpop.f32.mrf.mxu0
    %v8233 = vadd.f32 %v8154, %v8232
    %v8234 = vpop.f32.mrf.mxu0
    %8235 = vdwg.mxu0
    %v8236 = vxor.u32 %v8233, 2147483648
    %v8237 = vmul.f32 %v8236, 1.442695
    %v8238 = vpow.pop %v8237
    %v8239 = vadd.f32 %v8238, 1.0
    %v8240 = vrcp.pop %v8239
    %v8241 = vmul.f32 1.0, %v8240
    %v8242 = vtanh.pop %v8233
    %v8243 = vmul.f32 %v8241, %v7157
    %8245 = vrot.lane.b32.xlu0 %v8242, 64
    %v8246 = vpop.permute.xlu0 %8245
    %v8248 = vmul.f32 %v8241, %v8246
    %8250 = vrot.lane.b32.xlu0 %v8248, 32
    %v8251 = vpop.permute.xlu0 %8250
    %v8253 = vadd.f32 %v8243, %v8251
    %v8254 = vtanh.pop %v8253
    %8256 = vrot.lane.b32.xlu0 %v8254, 64
    %v8257 = vpop.permute.xlu0 %8256
    %v8259 = vmul.f32 %v8241, %v8257
    %v8260 = vrot.slane %v7684, 4
    %8261 = vrot.lane.b32.xlu0 %v8260, 32
    %v8262 = vpop.permute.xlu0 %8261
    %v8263 = vsel %vm605, %v8262, 0
    %8265 = vmatprep.subr.mxu0 0.0
    %8266 = vmatpush1.msra.mxu0 0.0
    %8267 = vmatprep.subr.mxu0 0.0
    %8268 = vmatpush1.msra.mxu0 0.0
    %8269 = vmatprep.subr.mxu0 0.0
    %8270 = vmatpush1.msra.mxu0 0.0
    %8271 = vmatprep.subr.mxu0 0.0
    %8272 = vmatpush1.msra.mxu0 0.0
    %8273 = vmatprep.subr.mxu0 0.0
    %8274 = vmatpush1.msra.mxu0 0.0
    %8275 = vmatprep.subr.mxu0 0.0
    %8276 = vmatpush1.msra.mxu0 0.0
    %8277 = vmatprep.subr.mxu0 0.0
    %8278 = vmatpush1.msra.mxu0 0.0
    %8279 = vmatprep.subr.mxu0 0.0
    %8280 = vmatpush1.msra.mxu0 0.0
    %8281 = vmatprep.subr.mxu0 0.0
    %8282 = vmatpush1.msra.mxu0 0.0
    %8283 = vmatprep.subr.mxu0 0.0
    %8284 = vmatpush1.msra.mxu0 0.0
    %8285 = vmatprep.subr.mxu0 0.0
    %8286 = vmatpush1.msra.mxu0 0.0
    %8287 = vmatprep.subr.mxu0 0.0
    %8288 = vmatpush1.msra.mxu0 0.0
    %8289 = vmatprep.subr.mxu0 0.0
    %v8290 = vand.u32 %v595, 4294901760
    %8291 = vmatpush1.msra.mxu0 %v8290
    %8292 = vmatprep.subr.mxu0 0.0
    %v8293 = vand.u32 %v594, 4294901760
    %8294 = vmatpush1.msra.mxu0 %v8293
    %8295 = vmatprep.subr.mxu0 0.0
    %v8296 = vand.u32 %v593, 4294901760
    %8297 = vmatpush1.msra.mxu0 %v8296
    %8298 = vmatprep.subr.mxu0 0.0
    %v8299 = vand.u32 %v592, 4294901760
    %8300 = vmatpush1.msra.mxu0 %v8299
    %8301 = vmatprep.subr.mxu0 0.0
    %8302 = vmatpush2.msra.mxu0 0.0
    %8303 = vmatprep.subr.mxu0 0.0
    %8304 = vmatpush2.msra.mxu0 0.0
    %8305 = vmatprep.subr.mxu0 0.0
    %8306 = vmatpush2.msra.mxu0 0.0
    %8307 = vmatprep.subr.mxu0 0.0
    %8308 = vmatpush2.msra.mxu0 0.0
    %8309 = vmatprep.subr.mxu0 0.0
    %8310 = vmatpush2.msra.mxu0 0.0
    %8311 = vmatprep.subr.mxu0 0.0
    %8312 = vmatpush2.msra.mxu0 0.0
    %8313 = vmatprep.subr.mxu0 0.0
    %8314 = vmatpush2.msra.mxu0 0.0
    %8315 = vmatprep.subr.mxu0 0.0
    %8316 = vmatpush2.msra.mxu0 0.0
    %8317 = vmatprep.subr.mxu0 0.0
    %8318 = vmatpush2.msra.mxu0 0.0
    %8319 = vmatprep.subr.mxu0 0.0
    %8320 = vmatpush2.msra.mxu0 0.0
    %8321 = vmatprep.subr.mxu0 0.0
    %8322 = vmatpush2.msra.mxu0 0.0
    %8323 = vmatprep.subr.mxu0 0.0
    %8324 = vmatpush2.msra.mxu0 0.0
    %8325 = vmatprep.subr.mxu0 0.0
    %8326 = vmatpush2.msra.mxu0 0.0
    %8327 = vmatprep.subr.mxu0 0.0
    %8328 = vmatpush2.msra.mxu0 0.0
    %8329 = vmatprep.subr.mxu0 0.0
    %8330 = vmatpush2.msra.mxu0 0.0
    %8331 = vmatprep.subr.mxu0 0.0
    %8332 = vmatpush2.msra.mxu0 0.0
    %8333 = vmatprep.mubr.f32.mxu0 0.0
    %v8334 = vand.u32 %v8263, 4294901760
    %v8335 = vsub.f32 %v8263, %v8334
    %v8336 = vand.u32 %v8335, 4294901760
    %v8337 = vsub.f32 %v8335, %v8336
    %v8338 = vand.u32 %v8337, 4294901760
    %8339 = vmatmul.mubr.f32.gmra.mxu0 %v8338
    %v8340 = vpop.f32.mrf.mxu0
    %v8341 = vadd.f32 0.0, %v8340
    %v8342 = vpop.f32.mrf.mxu0
    %8343 = vdwg.mxu0
    %8344 = vmatprep.subr.mxu0 0.0
    %8345 = vmatpush1.msra.mxu0 0.0
    %8346 = vmatprep.subr.mxu0 0.0
    %8347 = vmatpush1.msra.mxu0 0.0
    %8348 = vmatprep.subr.mxu0 0.0
    %8349 = vmatpush1.msra.mxu0 0.0
    %8350 = vmatprep.subr.mxu0 0.0
    %8351 = vmatpush1.msra.mxu0 0.0
    %8352 = vmatprep.subr.mxu0 0.0
    %8353 = vmatpush1.msra.mxu0 0.0
    %8354 = vmatprep.subr.mxu0 0.0
    %8355 = vmatpush1.msra.mxu0 0.0
    %8356 = vmatprep.subr.mxu0 0.0
    %8357 = vmatpush1.msra.mxu0 0.0
    %8358 = vmatprep.subr.mxu0 0.0
    %8359 = vmatpush1.msra.mxu0 0.0
    %8360 = vmatprep.subr.mxu0 0.0
    %8361 = vmatpush1.msra.mxu0 0.0
    %8362 = vmatprep.subr.mxu0 0.0
    %8363 = vmatpush1.msra.mxu0 0.0
    %8364 = vmatprep.subr.mxu0 0.0
    %8365 = vmatpush1.msra.mxu0 0.0
    %8366 = vmatprep.subr.mxu0 0.0
    %8367 = vmatpush1.msra.mxu0 0.0
    %8368 = vmatprep.subr.mxu0 0.0
    %v8369 = vand.u32 %v595, 4294901760
    %v8370 = vsub.f32 %v595, %v8369
    %v8371 = vand.u32 %v8370, 4294901760
    %v8372 = vsub.f32 %v8370, %v8371
    %v8373 = vand.u32 %v8372, 4294901760
    %8374 = vmatpush1.msra.mxu0 %v8373
    %8375 = vmatprep.subr.mxu0 0.0
    %v8376 = vand.u32 %v594, 4294901760
    %v8377 = vsub.f32 %v594, %v8376
    %v8378 = vand.u32 %v8377, 4294901760
    %v8379 = vsub.f32 %v8377, %v8378
    %v8380 = vand.u32 %v8379, 4294901760
    %8381 = vmatpush1.msra.mxu0 %v8380
    %8382 = vmatprep.subr.mxu0 0.0
    %v8383 = vand.u32 %v593, 4294901760
    %v8384 = vsub.f32 %v593, %v8383
    %v8385 = vand.u32 %v8384, 4294901760
    %v8386 = vsub.f32 %v8384, %v8385
    %v8387 = vand.u32 %v8386, 4294901760
    %8388 = vmatpush1.msra.mxu0 %v8387
    %8389 = vmatprep.subr.mxu0 0.0
    %v8390 = vand.u32 %v592, 4294901760
    %v8391 = vsub.f32 %v592, %v8390
    %v8392 = vand.u32 %v8391, 4294901760
    %v8393 = vsub.f32 %v8391, %v8392
    %v8394 = vand.u32 %v8393, 4294901760
    %8395 = vmatpush1.msra.mxu0 %v8394
    %8396 = vmatprep.subr.mxu0 0.0
    %8397 = vmatpush2.msra.mxu0 0.0
    %8398 = vmatprep.subr.mxu0 0.0
    %8399 = vmatpush2.msra.mxu0 0.0
    %8400 = vmatprep.subr.mxu0 0.0
    %8401 = vmatpush2.msra.mxu0 0.0
    %8402 = vmatprep.subr.mxu0 0.0
    %8403 = vmatpush2.msra.mxu0 0.0
    %8404 = vmatprep.subr.mxu0 0.0
    %8405 = vmatpush2.msra.mxu0 0.0
    %8406 = vmatprep.subr.mxu0 0.0
    %8407 = vmatpush2.msra.mxu0 0.0
    %8408 = vmatprep.subr.mxu0 0.0
    %8409 = vmatpush2.msra.mxu0 0.0
    %8410 = vmatprep.subr.mxu0 0.0
    %8411 = vmatpush2.msra.mxu0 0.0
    %8412 = vmatprep.subr.mxu0 0.0
    %8413 = vmatpush2.msra.mxu0 0.0
    %8414 = vmatprep.subr.mxu0 0.0
    %8415 = vmatpush2.msra.mxu0 0.0
    %8416 = vmatprep.subr.mxu0 0.0
    %8417 = vmatpush2.msra.mxu0 0.0
    %8418 = vmatprep.subr.mxu0 0.0
    %8419 = vmatpush2.msra.mxu0 0.0
    %8420 = vmatprep.subr.mxu0 0.0
    %8421 = vmatpush2.msra.mxu0 0.0
    %8422 = vmatprep.subr.mxu0 0.0
    %8423 = vmatpush2.msra.mxu0 0.0
    %8424 = vmatprep.subr.mxu0 0.0
    %8425 = vmatpush2.msra.mxu0 0.0
    %8426 = vmatprep.subr.mxu0 0.0
    %8427 = vmatpush2.msra.mxu0 0.0
    %8428 = vmatprep.mubr.f32.mxu0 0.0
    %v8429 = vand.u32 %v8263, 4294901760
    %8430 = vmatmul.mubr.f32.gmra.mxu0 %v8429
    %v8431 = vpop.f32.mrf.mxu0
    %v8432 = vadd.f32 %v8341, %v8431
    %v8433 = vpop.f32.mrf.mxu0
    %8434 = vdwg.mxu0
    %8435 = vmatprep.subr.mxu0 0.0
    %8436 = vmatpush1.msra.mxu0 0.0
    %8437 = vmatprep.subr.mxu0 0.0
    %8438 = vmatpush1.msra.mxu0 0.0
    %8439 = vmatprep.subr.mxu0 0.0
    %8440 = vmatpush1.msra.mxu0 0.0
    %8441 = vmatprep.subr.mxu0 0.0
    %8442 = vmatpush1.msra.mxu0 0.0
    %8443 = vmatprep.subr.mxu0 0.0
    %8444 = vmatpush1.msra.mxu0 0.0
    %8445 = vmatprep.subr.mxu0 0.0
    %8446 = vmatpush1.msra.mxu0 0.0
    %8447 = vmatprep.subr.mxu0 0.0
    %8448 = vmatpush1.msra.mxu0 0.0
    %8449 = vmatprep.subr.mxu0 0.0
    %8450 = vmatpush1.msra.mxu0 0.0
    %8451 = vmatprep.subr.mxu0 0.0
    %8452 = vmatpush1.msra.mxu0 0.0
    %8453 = vmatprep.subr.mxu0 0.0
    %8454 = vmatpush1.msra.mxu0 0.0
    %8455 = vmatprep.subr.mxu0 0.0
    %8456 = vmatpush1.msra.mxu0 0.0
    %8457 = vmatprep.subr.mxu0 0.0
    %8458 = vmatpush1.msra.mxu0 0.0
    %8459 = vmatprep.subr.mxu0 0.0
    %v8460 = vand.u32 %v595, 4294901760
    %v8461 = vsub.f32 %v595, %v8460
    %8462 = vmatpush1.msra.mxu0 %v8461
    %8463 = vmatprep.subr.mxu0 0.0
    %v8464 = vand.u32 %v594, 4294901760
    %v8465 = vsub.f32 %v594, %v8464
    %8466 = vmatpush1.msra.mxu0 %v8465
    %8467 = vmatprep.subr.mxu0 0.0
    %v8468 = vand.u32 %v593, 4294901760
    %v8469 = vsub.f32 %v593, %v8468
    %8470 = vmatpush1.msra.mxu0 %v8469
    %8471 = vmatprep.subr.mxu0 0.0
    %v8472 = vand.u32 %v592, 4294901760
    %v8473 = vsub.f32 %v592, %v8472
    %8474 = vmatpush1.msra.mxu0 %v8473
    %8475 = vmatprep.subr.mxu0 0.0
    %8476 = vmatpush2.msra.mxu0 0.0
    %8477 = vmatprep.subr.mxu0 0.0
    %8478 = vmatpush2.msra.mxu0 0.0
    %8479 = vmatprep.subr.mxu0 0.0
    %8480 = vmatpush2.msra.mxu0 0.0
    %8481 = vmatprep.subr.mxu0 0.0
    %8482 = vmatpush2.msra.mxu0 0.0
    %8483 = vmatprep.subr.mxu0 0.0
    %8484 = vmatpush2.msra.mxu0 0.0
    %8485 = vmatprep.subr.mxu0 0.0
    %8486 = vmatpush2.msra.mxu0 0.0
    %8487 = vmatprep.subr.mxu0 0.0
    %8488 = vmatpush2.msra.mxu0 0.0
    %8489 = vmatprep.subr.mxu0 0.0
    %8490 = vmatpush2.msra.mxu0 0.0
    %8491 = vmatprep.subr.mxu0 0.0
    %8492 = vmatpush2.msra.mxu0 0.0
    %8493 = vmatprep.subr.mxu0 0.0
    %8494 = vmatpush2.msra.mxu0 0.0
    %8495 = vmatprep.subr.mxu0 0.0
    %8496 = vmatpush2.msra.mxu0 0.0
    %8497 = vmatprep.subr.mxu0 0.0
    %8498 = vmatpush2.msra.mxu0 0.0
    %8499 = vmatprep.subr.mxu0 0.0
    %8500 = vmatpush2.msra.mxu0 0.0
    %8501 = vmatprep.subr.mxu0 0.0
    %8502 = vmatpush2.msra.mxu0 0.0
    %8503 = vmatprep.subr.mxu0 0.0
    %8504 = vmatpush2.msra.mxu0 0.0
    %8505 = vmatprep.subr.mxu0 0.0
    %8506 = vmatpush2.msra.mxu0 0.0
    %8507 = vmatprep.mubr.f32.mxu0 0.0
    %v8508 = vand.u32 %v8263, 4294901760
    %v8509 = vsub.f32 %v8263, %v8508
    %8510 = vmatmul.mubr.f32.gmra.mxu0 %v8509
    %v8511 = vpop.f32.mrf.mxu0
    %v8512 = vadd.f32 %v8432, %v8511
    %v8513 = vpop.f32.mrf.mxu0
    %8514 = vdwg.mxu0
    %8515 = vmatprep.subr.mxu0 0.0
    %8516 = vmatpush1.msra.mxu0 0.0
    %8517 = vmatprep.subr.mxu0 0.0
    %8518 = vmatpush1.msra.mxu0 0.0
    %8519 = vmatprep.subr.mxu0 0.0
    %8520 = vmatpush1.msra.mxu0 0.0
    %8521 = vmatprep.subr.mxu0 0.0
    %8522 = vmatpush1.msra.mxu0 0.0
    %8523 = vmatprep.subr.mxu0 0.0
    %8524 = vmatpush1.msra.mxu0 0.0
    %8525 = vmatprep.subr.mxu0 0.0
    %8526 = vmatpush1.msra.mxu0 0.0
    %8527 = vmatprep.subr.mxu0 0.0
    %8528 = vmatpush1.msra.mxu0 0.0
    %8529 = vmatprep.subr.mxu0 0.0
    %8530 = vmatpush1.msra.mxu0 0.0
    %8531 = vmatprep.subr.mxu0 0.0
    %8532 = vmatpush1.msra.mxu0 0.0
    %8533 = vmatprep.subr.mxu0 0.0
    %8534 = vmatpush1.msra.mxu0 0.0
    %8535 = vmatprep.subr.mxu0 0.0
    %8536 = vmatpush1.msra.mxu0 0.0
    %8537 = vmatprep.subr.mxu0 0.0
    %8538 = vmatpush1.msra.mxu0 0.0
    %8539 = vmatprep.subr.mxu0 0.0
    %v8540 = vand.u32 %v595, 4294901760
    %8541 = vmatpush1.msra.mxu0 %v8540
    %8542 = vmatprep.subr.mxu0 0.0
    %v8543 = vand.u32 %v594, 4294901760
    %8544 = vmatpush1.msra.mxu0 %v8543
    %8545 = vmatprep.subr.mxu0 0.0
    %v8546 = vand.u32 %v593, 4294901760
    %8547 = vmatpush1.msra.mxu0 %v8546
    %8548 = vmatprep.subr.mxu0 0.0
    %v8549 = vand.u32 %v592, 4294901760
    %8550 = vmatpush1.msra.mxu0 %v8549
    %8551 = vmatprep.subr.mxu0 0.0
    %8552 = vmatpush2.msra.mxu0 0.0
    %8553 = vmatprep.subr.mxu0 0.0
    %8554 = vmatpush2.msra.mxu0 0.0
    %8555 = vmatprep.subr.mxu0 0.0
    %8556 = vmatpush2.msra.mxu0 0.0
    %8557 = vmatprep.subr.mxu0 0.0
    %8558 = vmatpush2.msra.mxu0 0.0
    %8559 = vmatprep.subr.mxu0 0.0
    %8560 = vmatpush2.msra.mxu0 0.0
    %8561 = vmatprep.subr.mxu0 0.0
    %8562 = vmatpush2.msra.mxu0 0.0
    %8563 = vmatprep.subr.mxu0 0.0
    %8564 = vmatpush2.msra.mxu0 0.0
    %8565 = vmatprep.subr.mxu0 0.0
    %8566 = vmatpush2.msra.mxu0 0.0
    %8567 = vmatprep.subr.mxu0 0.0
    %8568 = vmatpush2.msra.mxu0 0.0
    %8569 = vmatprep.subr.mxu0 0.0
    %8570 = vmatpush2.msra.mxu0 0.0
    %8571 = vmatprep.subr.mxu0 0.0
    %8572 = vmatpush2.msra.mxu0 0.0
    %8573 = vmatprep.subr.mxu0 0.0
    %8574 = vmatpush2.msra.mxu0 0.0
    %8575 = vmatprep.subr.mxu0 0.0
    %8576 = vmatpush2.msra.mxu0 0.0
    %8577 = vmatprep.subr.mxu0 0.0
    %8578 = vmatpush2.msra.mxu0 0.0
    %8579 = vmatprep.subr.mxu0 0.0
    %8580 = vmatpush2.msra.mxu0 0.0
    %8581 = vmatprep.subr.mxu0 0.0
    %8582 = vmatpush2.msra.mxu0 0.0
    %8583 = vmatprep.mubr.f32.mxu0 0.0
    %v8584 = vand.u32 %v8263, 4294901760
    %v8585 = vsub.f32 %v8263, %v8584
    %v8586 = vand.u32 %v8585, 4294901760
    %8587 = vmatmul.mubr.f32.gmra.mxu0 %v8586
    %v8588 = vpop.f32.mrf.mxu0
    %v8589 = vadd.f32 %v8512, %v8588
    %v8590 = vpop.f32.mrf.mxu0
    %8591 = vdwg.mxu0
    %8592 = vmatprep.subr.mxu0 0.0
    %8593 = vmatpush1.msra.mxu0 0.0
    %8594 = vmatprep.subr.mxu0 0.0
    %8595 = vmatpush1.msra.mxu0 0.0
    %8596 = vmatprep.subr.mxu0 0.0
    %8597 = vmatpush1.msra.mxu0 0.0
    %8598 = vmatprep.subr.mxu0 0.0
    %8599 = vmatpush1.msra.mxu0 0.0
    %8600 = vmatprep.subr.mxu0 0.0
    %8601 = vmatpush1.msra.mxu0 0.0
    %8602 = vmatprep.subr.mxu0 0.0
    %8603 = vmatpush1.msra.mxu0 0.0
    %8604 = vmatprep.subr.mxu0 0.0
    %8605 = vmatpush1.msra.mxu0 0.0
    %8606 = vmatprep.subr.mxu0 0.0
    %8607 = vmatpush1.msra.mxu0 0.0
    %8608 = vmatprep.subr.mxu0 0.0
    %8609 = vmatpush1.msra.mxu0 0.0
    %8610 = vmatprep.subr.mxu0 0.0
    %8611 = vmatpush1.msra.mxu0 0.0
    %8612 = vmatprep.subr.mxu0 0.0
    %8613 = vmatpush1.msra.mxu0 0.0
    %8614 = vmatprep.subr.mxu0 0.0
    %8615 = vmatpush1.msra.mxu0 0.0
    %8616 = vmatprep.subr.mxu0 0.0
    %v8617 = vand.u32 %v595, 4294901760
    %v8618 = vsub.f32 %v595, %v8617
    %v8619 = vand.u32 %v8618, 4294901760
    %8620 = vmatpush1.msra.mxu0 %v8619
    %8621 = vmatprep.subr.mxu0 0.0
    %v8622 = vand.u32 %v594, 4294901760
    %v8623 = vsub.f32 %v594, %v8622
    %v8624 = vand.u32 %v8623, 4294901760
    %8625 = vmatpush1.msra.mxu0 %v8624
    %8626 = vmatprep.subr.mxu0 0.0
    %v8627 = vand.u32 %v593, 4294901760
    %v8628 = vsub.f32 %v593, %v8627
    %v8629 = vand.u32 %v8628, 4294901760
    %8630 = vmatpush1.msra.mxu0 %v8629
    %8631 = vmatprep.subr.mxu0 0.0
    %v8632 = vand.u32 %v592, 4294901760
    %v8633 = vsub.f32 %v592, %v8632
    %v8634 = vand.u32 %v8633, 4294901760
    %8635 = vmatpush1.msra.mxu0 %v8634
    %8636 = vmatprep.subr.mxu0 0.0
    %8637 = vmatpush2.msra.mxu0 0.0
    %8638 = vmatprep.subr.mxu0 0.0
    %8639 = vmatpush2.msra.mxu0 0.0
    %8640 = vmatprep.subr.mxu0 0.0
    %8641 = vmatpush2.msra.mxu0 0.0
    %8642 = vmatprep.subr.mxu0 0.0
    %8643 = vmatpush2.msra.mxu0 0.0
    %8644 = vmatprep.subr.mxu0 0.0
    %8645 = vmatpush2.msra.mxu0 0.0
    %8646 = vmatprep.subr.mxu0 0.0
    %8647 = vmatpush2.msra.mxu0 0.0
    %8648 = vmatprep.subr.mxu0 0.0
    %8649 = vmatpush2.msra.mxu0 0.0
    %8650 = vmatprep.subr.mxu0 0.0
    %8651 = vmatpush2.msra.mxu0 0.0
    %8652 = vmatprep.subr.mxu0 0.0
    %8653 = vmatpush2.msra.mxu0 0.0
    %8654 = vmatprep.subr.mxu0 0.0
    %8655 = vmatpush2.msra.mxu0 0.0
    %8656 = vmatprep.subr.mxu0 0.0
    %8657 = vmatpush2.msra.mxu0 0.0
    %8658 = vmatprep.subr.mxu0 0.0
    %8659 = vmatpush2.msra.mxu0 0.0
    %8660 = vmatprep.subr.mxu0 0.0
    %8661 = vmatpush2.msra.mxu0 0.0
    %8662 = vmatprep.subr.mxu0 0.0
    %8663 = vmatpush2.msra.mxu0 0.0
    %8664 = vmatprep.subr.mxu0 0.0
    %8665 = vmatpush2.msra.mxu0 0.0
    %8666 = vmatprep.subr.mxu0 0.0
    %8667 = vmatpush2.msra.mxu0 0.0
    %8668 = vmatprep.mubr.f32.mxu0 0.0
    %v8669 = vand.u32 %v8263, 4294901760
    %8670 = vmatmul.mubr.f32.gmra.mxu0 %v8669
    %v8671 = vpop.f32.mrf.mxu0
    %v8672 = vadd.f32 %v8589, %v8671
    %v8673 = vpop.f32.mrf.mxu0
    %8674 = vdwg.mxu0
    %8675 = vmatprep.subr.mxu0 0.0
    %8676 = vmatpush1.msra.mxu0 0.0
    %8677 = vmatprep.subr.mxu0 0.0
    %8678 = vmatpush1.msra.mxu0 0.0
    %8679 = vmatprep.subr.mxu0 0.0
    %8680 = vmatpush1.msra.mxu0 0.0
    %8681 = vmatprep.subr.mxu0 0.0
    %8682 = vmatpush1.msra.mxu0 0.0
    %8683 = vmatprep.subr.mxu0 0.0
    %8684 = vmatpush1.msra.mxu0 0.0
    %8685 = vmatprep.subr.mxu0 0.0
    %8686 = vmatpush1.msra.mxu0 0.0
    %8687 = vmatprep.subr.mxu0 0.0
    %8688 = vmatpush1.msra.mxu0 0.0
    %8689 = vmatprep.subr.mxu0 0.0
    %8690 = vmatpush1.msra.mxu0 0.0
    %8691 = vmatprep.subr.mxu0 0.0
    %8692 = vmatpush1.msra.mxu0 0.0
    %8693 = vmatprep.subr.mxu0 0.0
    %8694 = vmatpush1.msra.mxu0 0.0
    %8695 = vmatprep.subr.mxu0 0.0
    %8696 = vmatpush1.msra.mxu0 0.0
    %8697 = vmatprep.subr.mxu0 0.0
    %8698 = vmatpush1.msra.mxu0 0.0
    %8699 = vmatprep.subr.mxu0 0.0
    %v8700 = vand.u32 %v595, 4294901760
    %8701 = vmatpush1.msra.mxu0 %v8700
    %8702 = vmatprep.subr.mxu0 0.0
    %v8703 = vand.u32 %v594, 4294901760
    %8704 = vmatpush1.msra.mxu0 %v8703
    %8705 = vmatprep.subr.mxu0 0.0
    %v8706 = vand.u32 %v593, 4294901760
    %8707 = vmatpush1.msra.mxu0 %v8706
    %8708 = vmatprep.subr.mxu0 0.0
    %v8709 = vand.u32 %v592, 4294901760
    %8710 = vmatpush1.msra.mxu0 %v8709
    %8711 = vmatprep.subr.mxu0 0.0
    %8712 = vmatpush2.msra.mxu0 0.0
    %8713 = vmatprep.subr.mxu0 0.0
    %8714 = vmatpush2.msra.mxu0 0.0
    %8715 = vmatprep.subr.mxu0 0.0
    %8716 = vmatpush2.msra.mxu0 0.0
    %8717 = vmatprep.subr.mxu0 0.0
    %8718 = vmatpush2.msra.mxu0 0.0
    %8719 = vmatprep.subr.mxu0 0.0
    %8720 = vmatpush2.msra.mxu0 0.0
    %8721 = vmatprep.subr.mxu0 0.0
    %8722 = vmatpush2.msra.mxu0 0.0
    %8723 = vmatprep.subr.mxu0 0.0
    %8724 = vmatpush2.msra.mxu0 0.0
    %8725 = vmatprep.subr.mxu0 0.0
    %8726 = vmatpush2.msra.mxu0 0.0
    %8727 = vmatprep.subr.mxu0 0.0
    %8728 = vmatpush2.msra.mxu0 0.0
    %8729 = vmatprep.subr.mxu0 0.0
    %8730 = vmatpush2.msra.mxu0 0.0
    %8731 = vmatprep.subr.mxu0 0.0
    %8732 = vmatpush2.msra.mxu0 0.0
    %8733 = vmatprep.subr.mxu0 0.0
    %8734 = vmatpush2.msra.mxu0 0.0
    %8735 = vmatprep.subr.mxu0 0.0
    %8736 = vmatpush2.msra.mxu0 0.0
    %8737 = vmatprep.subr.mxu0 0.0
    %8738 = vmatpush2.msra.mxu0 0.0
    %8739 = vmatprep.subr.mxu0 0.0
    %8740 = vmatpush2.msra.mxu0 0.0
    %8741 = vmatprep.subr.mxu0 0.0
    %8742 = vmatpush2.msra.mxu0 0.0
    %8743 = vmatprep.mubr.f32.mxu0 0.0
    %v8744 = vand.u32 %v8263, 4294901760
    %8745 = vmatmul.mubr.f32.gmra.mxu0 %v8744
    %v8746 = vpop.f32.mrf.mxu0
    %v8747 = vadd.f32 %v8672, %v8746
    %v8748 = vpop.f32.mrf.mxu0
    %8749 = vdwg.mxu0
    %v8751 = vrot.slane %v8747, 2
    %v8753 = vadd.f32 %v589, %v8751
    %v8754 = vxor.u32 %v8753, 2147483648
    %v8755 = vmul.f32 %v8754, 1.442695
    %v8756 = vpow.pop %v8755
    %v8757 = vadd.f32 %v8756, 1.0
    %v8758 = vrcp.pop %v8757
    %v8759 = vmul.f32 1.0, %v8758
    %v8760 = vtanh.pop %v8753
    %v8762 = vrot.slane %v7678, 6
    %v8764 = vmul.f32 %v8759, %v8762
    %8766 = vrot.lane.b32.xlu0 %v8760, 64
    %v8767 = vpop.permute.xlu0 %8766
    %v8769 = vmul.f32 %v8759, %v8767
    %8771 = vrot.lane.b32.xlu0 %v8769, 32
    %v8772 = vpop.permute.xlu0 %8771
    %v8774 = vadd.f32 %v8764, %v8772
    %v8775 = vtanh.pop %v8774
    %8777 = vrot.lane.b32.xlu0 %v8775, 64
    %v8778 = vpop.permute.xlu0 %8777
    %v8780 = vmul.f32 %v8759, %v8778
    %8782 = vrot.lane.b32.xlu0 %v8780, 32
    %v8783 = vpop.permute.xlu0 %8782
    %v8786 = vrot.slane %v8259, 2
    %8787 = vrot.lane.b32.xlu0 %v8786, 64
    %v8788 = vpop.permute.xlu0 %8787
    %v8790 = vsel %vm605, %v8783, %v8788
    %v8792 = vrot.slane %v8790, 6
    %v8793 = vsel %vm1130, %v8792, 0
    %8795 = vmatprep.subr.mxu0 0.0
    %8796 = vmatpush1.msra.mxu0 0.0
    %8797 = vmatprep.subr.mxu0 0.0
    %8798 = vmatpush1.msra.mxu0 0.0
    %8799 = vmatprep.subr.mxu0 0.0
    %8800 = vmatpush1.msra.mxu0 0.0
    %8801 = vmatprep.subr.mxu0 0.0
    %8802 = vmatpush1.msra.mxu0 0.0
    %8803 = vmatprep.subr.mxu0 0.0
    %8804 = vmatpush1.msra.mxu0 0.0
    %8805 = vmatprep.subr.mxu0 0.0
    %8806 = vmatpush1.msra.mxu0 0.0
    %8807 = vmatprep.subr.mxu0 0.0
    %8808 = vmatpush1.msra.mxu0 0.0
    %8809 = vmatprep.subr.mxu0 0.0
    %8810 = vmatpush1.msra.mxu0 0.0
    %8811 = vmatprep.subr.mxu0 0.0
    %v8812 = vand.u32 %v603, 4294901760
    %8813 = vmatpush1.msra.mxu0 %v8812
    %8814 = vmatprep.subr.mxu0 0.0
    %v8815 = vand.u32 %v602, 4294901760
    %8816 = vmatpush1.msra.mxu0 %v8815
    %8817 = vmatprep.subr.mxu0 0.0
    %v8818 = vand.u32 %v601, 4294901760
    %8819 = vmatpush1.msra.mxu0 %v8818
    %8820 = vmatprep.subr.mxu0 0.0
    %v8821 = vand.u32 %v600, 4294901760
    %8822 = vmatpush1.msra.mxu0 %v8821
    %8823 = vmatprep.subr.mxu0 0.0
    %v8824 = vand.u32 %v599, 4294901760
    %8825 = vmatpush1.msra.mxu0 %v8824
    %8826 = vmatprep.subr.mxu0 0.0
    %v8827 = vand.u32 %v598, 4294901760
    %8828 = vmatpush1.msra.mxu0 %v8827
    %8829 = vmatprep.subr.mxu0 0.0
    %v8830 = vand.u32 %v597, 4294901760
    %8831 = vmatpush1.msra.mxu0 %v8830
    %8832 = vmatprep.subr.mxu0 0.0
    %v8833 = vand.u32 %v596, 4294901760
    %8834 = vmatpush1.msra.mxu0 %v8833
    %8835 = vmatprep.subr.mxu0 0.0
    %8836 = vmatpush2.msra.mxu0 0.0
    %8837 = vmatprep.subr.mxu0 0.0
    %8838 = vmatpush2.msra.mxu0 0.0
    %8839 = vmatprep.subr.mxu0 0.0
    %8840 = vmatpush2.msra.mxu0 0.0
    %8841 = vmatprep.subr.mxu0 0.0
    %8842 = vmatpush2.msra.mxu0 0.0
    %8843 = vmatprep.subr.mxu0 0.0
    %8844 = vmatpush2.msra.mxu0 0.0
    %8845 = vmatprep.subr.mxu0 0.0
    %8846 = vmatpush2.msra.mxu0 0.0
    %8847 = vmatprep.subr.mxu0 0.0
    %8848 = vmatpush2.msra.mxu0 0.0
    %8849 = vmatprep.subr.mxu0 0.0
    %8850 = vmatpush2.msra.mxu0 0.0
    %8851 = vmatprep.subr.mxu0 0.0
    %8852 = vmatpush2.msra.mxu0 0.0
    %8853 = vmatprep.subr.mxu0 0.0
    %8854 = vmatpush2.msra.mxu0 0.0
    %8855 = vmatprep.subr.mxu0 0.0
    %8856 = vmatpush2.msra.mxu0 0.0
    %8857 = vmatprep.subr.mxu0 0.0
    %8858 = vmatpush2.msra.mxu0 0.0
    %8859 = vmatprep.subr.mxu0 0.0
    %8860 = vmatpush2.msra.mxu0 0.0
    %8861 = vmatprep.subr.mxu0 0.0
    %8862 = vmatpush2.msra.mxu0 0.0
    %8863 = vmatprep.subr.mxu0 0.0
    %8864 = vmatpush2.msra.mxu0 0.0
    %8865 = vmatprep.subr.mxu0 0.0
    %8866 = vmatpush2.msra.mxu0 0.0
    %8867 = vmatprep.mubr.f32.mxu0 0.0
    %v8868 = vand.u32 %v8793, 4294901760
    %v8869 = vsub.f32 %v8793, %v8868
    %v8870 = vand.u32 %v8869, 4294901760
    %v8871 = vsub.f32 %v8869, %v8870
    %v8872 = vand.u32 %v8871, 4294901760
    %8873 = vmatmul.mubr.f32.gmra.mxu0 %v8872
    %v8874 = vpop.f32.mrf.mxu0
    %v8875 = vadd.f32 %v1128, %v8874
    %v8876 = vpop.f32.mrf.mxu0
    %8877 = vdwg.mxu0
    %8878 = vmatprep.subr.mxu0 0.0
    %8879 = vmatpush1.msra.mxu0 0.0
    %8880 = vmatprep.subr.mxu0 0.0
    %8881 = vmatpush1.msra.mxu0 0.0
    %8882 = vmatprep.subr.mxu0 0.0
    %8883 = vmatpush1.msra.mxu0 0.0
    %8884 = vmatprep.subr.mxu0 0.0
    %8885 = vmatpush1.msra.mxu0 0.0
    %8886 = vmatprep.subr.mxu0 0.0
    %8887 = vmatpush1.msra.mxu0 0.0
    %8888 = vmatprep.subr.mxu0 0.0
    %8889 = vmatpush1.msra.mxu0 0.0
    %8890 = vmatprep.subr.mxu0 0.0
    %8891 = vmatpush1.msra.mxu0 0.0
    %8892 = vmatprep.subr.mxu0 0.0
    %8893 = vmatpush1.msra.mxu0 0.0
    %8894 = vmatprep.subr.mxu0 0.0
    %v8895 = vand.u32 %v603, 4294901760
    %v8896 = vsub.f32 %v603, %v8895
    %v8897 = vand.u32 %v8896, 4294901760
    %v8898 = vsub.f32 %v8896, %v8897
    %v8899 = vand.u32 %v8898, 4294901760
    %8900 = vmatpush1.msra.mxu0 %v8899
    %8901 = vmatprep.subr.mxu0 0.0
    %v8902 = vand.u32 %v602, 4294901760
    %v8903 = vsub.f32 %v602, %v8902
    %v8904 = vand.u32 %v8903, 4294901760
    %v8905 = vsub.f32 %v8903, %v8904
    %v8906 = vand.u32 %v8905, 4294901760
    %8907 = vmatpush1.msra.mxu0 %v8906
    %8908 = vmatprep.subr.mxu0 0.0
    %v8909 = vand.u32 %v601, 4294901760
    %v8910 = vsub.f32 %v601, %v8909
    %v8911 = vand.u32 %v8910, 4294901760
    %v8912 = vsub.f32 %v8910, %v8911
    %v8913 = vand.u32 %v8912, 4294901760
    %8914 = vmatpush1.msra.mxu0 %v8913
    %8915 = vmatprep.subr.mxu0 0.0
    %v8916 = vand.u32 %v600, 4294901760
    %v8917 = vsub.f32 %v600, %v8916
    %v8918 = vand.u32 %v8917, 4294901760
    %v8919 = vsub.f32 %v8917, %v8918
    %v8920 = vand.u32 %v8919, 4294901760
    %8921 = vmatpush1.msra.mxu0 %v8920
    %8922 = vmatprep.subr.mxu0 0.0
    %v8923 = vand.u32 %v599, 4294901760
    %v8924 = vsub.f32 %v599, %v8923
    %v8925 = vand.u32 %v8924, 4294901760
    %v8926 = vsub.f32 %v8924, %v8925
    %v8927 = vand.u32 %v8926, 4294901760
    %8928 = vmatpush1.msra.mxu0 %v8927
    %8929 = vmatprep.subr.mxu0 0.0
    %v8930 = vand.u32 %v598, 4294901760
    %v8931 = vsub.f32 %v598, %v8930
    %v8932 = vand.u32 %v8931, 4294901760
    %v8933 = vsub.f32 %v8931, %v8932
    %v8934 = vand.u32 %v8933, 4294901760
    %8935 = vmatpush1.msra.mxu0 %v8934
    %8936 = vmatprep.subr.mxu0 0.0
    %v8937 = vand.u32 %v597, 4294901760
    %v8938 = vsub.f32 %v597, %v8937
    %v8939 = vand.u32 %v8938, 4294901760
    %v8940 = vsub.f32 %v8938, %v8939
    %v8941 = vand.u32 %v8940, 4294901760
    %8942 = vmatpush1.msra.mxu0 %v8941
    %8943 = vmatprep.subr.mxu0 0.0
    %v8944 = vand.u32 %v596, 4294901760
    %v8945 = vsub.f32 %v596, %v8944
    %v8946 = vand.u32 %v8945, 4294901760
    %v8947 = vsub.f32 %v8945, %v8946
    %v8948 = vand.u32 %v8947, 4294901760
    %8949 = vmatpush1.msra.mxu0 %v8948
    %8950 = vmatprep.subr.mxu0 0.0
    %8951 = vmatpush2.msra.mxu0 0.0
    %8952 = vmatprep.subr.mxu0 0.0
    %8953 = vmatpush2.msra.mxu0 0.0
    %8954 = vmatprep.subr.mxu0 0.0
    %8955 = vmatpush2.msra.mxu0 0.0
    %8956 = vmatprep.subr.mxu0 0.0
    %8957 = vmatpush2.msra.mxu0 0.0
    %8958 = vmatprep.subr.mxu0 0.0
    %8959 = vmatpush2.msra.mxu0 0.0
    %8960 = vmatprep.subr.mxu0 0.0
    %8961 = vmatpush2.msra.mxu0 0.0
    %8962 = vmatprep.subr.mxu0 0.0
    %8963 = vmatpush2.msra.mxu0 0.0
    %8964 = vmatprep.subr.mxu0 0.0
    %8965 = vmatpush2.msra.mxu0 0.0
    %8966 = vmatprep.subr.mxu0 0.0
    %8967 = vmatpush2.msra.mxu0 0.0
    %8968 = vmatprep.subr.mxu0 0.0
    %8969 = vmatpush2.msra.mxu0 0.0
    %8970 = vmatprep.subr.mxu0 0.0
    %8971 = vmatpush2.msra.mxu0 0.0
    %8972 = vmatprep.subr.mxu0 0.0
    %8973 = vmatpush2.msra.mxu0 0.0
    %8974 = vmatprep.subr.mxu0 0.0
    %8975 = vmatpush2.msra.mxu0 0.0
    %8976 = vmatprep.subr.mxu0 0.0
    %8977 = vmatpush2.msra.mxu0 0.0
    %8978 = vmatprep.subr.mxu0 0.0
    %8979 = vmatpush2.msra.mxu0 0.0
    %8980 = vmatprep.subr.mxu0 0.0
    %8981 = vmatpush2.msra.mxu0 0.0
    %8982 = vmatprep.mubr.f32.mxu0 0.0
    %v8983 = vand.u32 %v8793, 4294901760
    %8984 = vmatmul.mubr.f32.gmra.mxu0 %v8983
    %v8985 = vpop.f32.mrf.mxu0
    %v8986 = vadd.f32 %v8875, %v8985
    %v8987 = vpop.f32.mrf.mxu0
    %8988 = vdwg.mxu0
    %8989 = vmatprep.subr.mxu0 0.0
    %8990 = vmatpush1.msra.mxu0 0.0
    %8991 = vmatprep.subr.mxu0 0.0
    %8992 = vmatpush1.msra.mxu0 0.0
    %8993 = vmatprep.subr.mxu0 0.0
    %8994 = vmatpush1.msra.mxu0 0.0
    %8995 = vmatprep.subr.mxu0 0.0
    %8996 = vmatpush1.msra.mxu0 0.0
    %8997 = vmatprep.subr.mxu0 0.0
    %8998 = vmatpush1.msra.mxu0 0.0
    %8999 = vmatprep.subr.mxu0 0.0
    %9000 = vmatpush1.msra.mxu0 0.0
    %9001 = vmatprep.subr.mxu0 0.0
    %9002 = vmatpush1.msra.mxu0 0.0
    %9003 = vmatprep.subr.mxu0 0.0
    %9004 = vmatpush1.msra.mxu0 0.0
    %9005 = vmatprep.subr.mxu0 0.0
    %v9006 = vand.u32 %v603, 4294901760
    %v9007 = vsub.f32 %v603, %v9006
    %9008 = vmatpush1.msra.mxu0 %v9007
    %9009 = vmatprep.subr.mxu0 0.0
    %v9010 = vand.u32 %v602, 4294901760
    %v9011 = vsub.f32 %v602, %v9010
    %9012 = vmatpush1.msra.mxu0 %v9011
    %9013 = vmatprep.subr.mxu0 0.0
    %v9014 = vand.u32 %v601, 4294901760
    %v9015 = vsub.f32 %v601, %v9014
    %9016 = vmatpush1.msra.mxu0 %v9015
    %9017 = vmatprep.subr.mxu0 0.0
    %v9018 = vand.u32 %v600, 4294901760
    %v9019 = vsub.f32 %v600, %v9018
    %9020 = vmatpush1.msra.mxu0 %v9019
    %9021 = vmatprep.subr.mxu0 0.0
    %v9022 = vand.u32 %v599, 4294901760
    %v9023 = vsub.f32 %v599, %v9022
    %9024 = vmatpush1.msra.mxu0 %v9023
    %9025 = vmatprep.subr.mxu0 0.0
    %v9026 = vand.u32 %v598, 4294901760
    %v9027 = vsub.f32 %v598, %v9026
    %9028 = vmatpush1.msra.mxu0 %v9027
    %9029 = vmatprep.subr.mxu0 0.0
    %v9030 = vand.u32 %v597, 4294901760
    %v9031 = vsub.f32 %v597, %v9030
    %9032 = vmatpush1.msra.mxu0 %v9031
    %9033 = vmatprep.subr.mxu0 0.0
    %v9034 = vand.u32 %v596, 4294901760
    %v9035 = vsub.f32 %v596, %v9034
    %9036 = vmatpush1.msra.mxu0 %v9035
    %9037 = vmatprep.subr.mxu0 0.0
    %9038 = vmatpush2.msra.mxu0 0.0
    %9039 = vmatprep.subr.mxu0 0.0
    %9040 = vmatpush2.msra.mxu0 0.0
    %9041 = vmatprep.subr.mxu0 0.0
    %9042 = vmatpush2.msra.mxu0 0.0
    %9043 = vmatprep.subr.mxu0 0.0
    %9044 = vmatpush2.msra.mxu0 0.0
    %9045 = vmatprep.subr.mxu0 0.0
    %9046 = vmatpush2.msra.mxu0 0.0
    %9047 = vmatprep.subr.mxu0 0.0
    %9048 = vmatpush2.msra.mxu0 0.0
    %9049 = vmatprep.subr.mxu0 0.0
    %9050 = vmatpush2.msra.mxu0 0.0
    %9051 = vmatprep.subr.mxu0 0.0
    %9052 = vmatpush2.msra.mxu0 0.0
    %9053 = vmatprep.subr.mxu0 0.0
    %9054 = vmatpush2.msra.mxu0 0.0
    %9055 = vmatprep.subr.mxu0 0.0
    %9056 = vmatpush2.msra.mxu0 0.0
    %9057 = vmatprep.subr.mxu0 0.0
    %9058 = vmatpush2.msra.mxu0 0.0
    %9059 = vmatprep.subr.mxu0 0.0
    %9060 = vmatpush2.msra.mxu0 0.0
    %9061 = vmatprep.subr.mxu0 0.0
    %9062 = vmatpush2.msra.mxu0 0.0
    %9063 = vmatprep.subr.mxu0 0.0
    %9064 = vmatpush2.msra.mxu0 0.0
    %9065 = vmatprep.subr.mxu0 0.0
    %9066 = vmatpush2.msra.mxu0 0.0
    %9067 = vmatprep.subr.mxu0 0.0
    %9068 = vmatpush2.msra.mxu0 0.0
    %9069 = vmatprep.mubr.f32.mxu0 0.0
    %v9070 = vand.u32 %v8793, 4294901760
    %v9071 = vsub.f32 %v8793, %v9070
    %9072 = vmatmul.mubr.f32.gmra.mxu0 %v9071
    %v9073 = vpop.f32.mrf.mxu0
    %v9074 = vadd.f32 %v8986, %v9073
    %v9075 = vpop.f32.mrf.mxu0
    %9076 = vdwg.mxu0
    %9077 = vmatprep.subr.mxu0 0.0
    %9078 = vmatpush1.msra.mxu0 0.0
    %9079 = vmatprep.subr.mxu0 0.0
    %9080 = vmatpush1.msra.mxu0 0.0
    %9081 = vmatprep.subr.mxu0 0.0
    %9082 = vmatpush1.msra.mxu0 0.0
    %9083 = vmatprep.subr.mxu0 0.0
    %9084 = vmatpush1.msra.mxu0 0.0
    %9085 = vmatprep.subr.mxu0 0.0
    %9086 = vmatpush1.msra.mxu0 0.0
    %9087 = vmatprep.subr.mxu0 0.0
    %9088 = vmatpush1.msra.mxu0 0.0
    %9089 = vmatprep.subr.mxu0 0.0
    %9090 = vmatpush1.msra.mxu0 0.0
    %9091 = vmatprep.subr.mxu0 0.0
    %9092 = vmatpush1.msra.mxu0 0.0
    %9093 = vmatprep.subr.mxu0 0.0
    %v9094 = vand.u32 %v603, 4294901760
    %9095 = vmatpush1.msra.mxu0 %v9094
    %9096 = vmatprep.subr.mxu0 0.0
    %v9097 = vand.u32 %v602, 4294901760
    %9098 = vmatpush1.msra.mxu0 %v9097
    %9099 = vmatprep.subr.mxu0 0.0
    %v9100 = vand.u32 %v601, 4294901760
    %9101 = vmatpush1.msra.mxu0 %v9100
    %9102 = vmatprep.subr.mxu0 0.0
    %v9103 = vand.u32 %v600, 4294901760
    %9104 = vmatpush1.msra.mxu0 %v9103
    %9105 = vmatprep.subr.mxu0 0.0
    %v9106 = vand.u32 %v599, 4294901760
    %9107 = vmatpush1.msra.mxu0 %v9106
    %9108 = vmatprep.subr.mxu0 0.0
    %v9109 = vand.u32 %v598, 4294901760
    %9110 = vmatpush1.msra.mxu0 %v9109
    %9111 = vmatprep.subr.mxu0 0.0
    %v9112 = vand.u32 %v597, 4294901760
    %9113 = vmatpush1.msra.mxu0 %v9112
    %9114 = vmatprep.subr.mxu0 0.0
    %v9115 = vand.u32 %v596, 4294901760
    %9116 = vmatpush1.msra.mxu0 %v9115
    %9117 = vmatprep.subr.mxu0 0.0
    %9118 = vmatpush2.msra.mxu0 0.0
    %9119 = vmatprep.subr.mxu0 0.0
    %9120 = vmatpush2.msra.mxu0 0.0
    %9121 = vmatprep.subr.mxu0 0.0
    %9122 = vmatpush2.msra.mxu0 0.0
    %9123 = vmatprep.subr.mxu0 0.0
    %9124 = vmatpush2.msra.mxu0 0.0
    %9125 = vmatprep.subr.mxu0 0.0
    %9126 = vmatpush2.msra.mxu0 0.0
    %9127 = vmatprep.subr.mxu0 0.0
    %9128 = vmatpush2.msra.mxu0 0.0
    %9129 = vmatprep.subr.mxu0 0.0
    %9130 = vmatpush2.msra.mxu0 0.0
    %9131 = vmatprep.subr.mxu0 0.0
    %9132 = vmatpush2.msra.mxu0 0.0
    %9133 = vmatprep.subr.mxu0 0.0
    %9134 = vmatpush2.msra.mxu0 0.0
    %9135 = vmatprep.subr.mxu0 0.0
    %9136 = vmatpush2.msra.mxu0 0.0
    %9137 = vmatprep.subr.mxu0 0.0
    %9138 = vmatpush2.msra.mxu0 0.0
    %9139 = vmatprep.subr.mxu0 0.0
    %9140 = vmatpush2.msra.mxu0 0.0
    %9141 = vmatprep.subr.mxu0 0.0
    %9142 = vmatpush2.msra.mxu0 0.0
    %9143 = vmatprep.subr.mxu0 0.0
    %9144 = vmatpush2.msra.mxu0 0.0
    %9145 = vmatprep.subr.mxu0 0.0
    %9146 = vmatpush2.msra.mxu0 0.0
    %9147 = vmatprep.subr.mxu0 0.0
    %9148 = vmatpush2.msra.mxu0 0.0
    %9149 = vmatprep.mubr.f32.mxu0 0.0
    %v9150 = vand.u32 %v8793, 4294901760
    %v9151 = vsub.f32 %v8793, %v9150
    %v9152 = vand.u32 %v9151, 4294901760
    %9153 = vmatmul.mubr.f32.gmra.mxu0 %v9152
    %v9154 = vpop.f32.mrf.mxu0
    %v9155 = vadd.f32 %v9074, %v9154
    %v9156 = vpop.f32.mrf.mxu0
    %9157 = vdwg.mxu0
    %9158 = vmatprep.subr.mxu0 0.0
    %9159 = vmatpush1.msra.mxu0 0.0
    %9160 = vmatprep.subr.mxu0 0.0
    %9161 = vmatpush1.msra.mxu0 0.0
    %9162 = vmatprep.subr.mxu0 0.0
    %9163 = vmatpush1.msra.mxu0 0.0
    %9164 = vmatprep.subr.mxu0 0.0
    %9165 = vmatpush1.msra.mxu0 0.0
    %9166 = vmatprep.subr.mxu0 0.0
    %9167 = vmatpush1.msra.mxu0 0.0
    %9168 = vmatprep.subr.mxu0 0.0
    %9169 = vmatpush1.msra.mxu0 0.0
    %9170 = vmatprep.subr.mxu0 0.0
    %9171 = vmatpush1.msra.mxu0 0.0
    %9172 = vmatprep.subr.mxu0 0.0
    %9173 = vmatpush1.msra.mxu0 0.0
    %9174 = vmatprep.subr.mxu0 0.0
    %v9175 = vand.u32 %v603, 4294901760
    %v9176 = vsub.f32 %v603, %v9175
    %v9177 = vand.u32 %v9176, 4294901760
    %9178 = vmatpush1.msra.mxu0 %v9177
    %9179 = vmatprep.subr.mxu0 0.0
    %v9180 = vand.u32 %v602, 4294901760
    %v9181 = vsub.f32 %v602, %v9180
    %v9182 = vand.u32 %v9181, 4294901760
    %9183 = vmatpush1.msra.mxu0 %v9182
    %9184 = vmatprep.subr.mxu0 0.0
    %v9185 = vand.u32 %v601, 4294901760
    %v9186 = vsub.f32 %v601, %v9185
    %v9187 = vand.u32 %v9186, 4294901760
    %9188 = vmatpush1.msra.mxu0 %v9187
    %9189 = vmatprep.subr.mxu0 0.0
    %v9190 = vand.u32 %v600, 4294901760
    %v9191 = vsub.f32 %v600, %v9190
    %v9192 = vand.u32 %v9191, 4294901760
    %9193 = vmatpush1.msra.mxu0 %v9192
    %9194 = vmatprep.subr.mxu0 0.0
    %v9195 = vand.u32 %v599, 4294901760
    %v9196 = vsub.f32 %v599, %v9195
    %v9197 = vand.u32 %v9196, 4294901760
    %9198 = vmatpush1.msra.mxu0 %v9197
    %9199 = vmatprep.subr.mxu0 0.0
    %v9200 = vand.u32 %v598, 4294901760
    %v9201 = vsub.f32 %v598, %v9200
    %v9202 = vand.u32 %v9201, 4294901760
    %9203 = vmatpush1.msra.mxu0 %v9202
    %9204 = vmatprep.subr.mxu0 0.0
    %v9205 = vand.u32 %v597, 4294901760
    %v9206 = vsub.f32 %v597, %v9205
    %v9207 = vand.u32 %v9206, 4294901760
    %9208 = vmatpush1.msra.mxu0 %v9207
    %9209 = vmatprep.subr.mxu0 0.0
    %v9210 = vand.u32 %v596, 4294901760
    %v9211 = vsub.f32 %v596, %v9210
    %v9212 = vand.u32 %v9211, 4294901760
    %9213 = vmatpush1.msra.mxu0 %v9212
    %9214 = vmatprep.subr.mxu0 0.0
    %9215 = vmatpush2.msra.mxu0 0.0
    %9216 = vmatprep.subr.mxu0 0.0
    %9217 = vmatpush2.msra.mxu0 0.0
    %9218 = vmatprep.subr.mxu0 0.0
    %9219 = vmatpush2.msra.mxu0 0.0
    %9220 = vmatprep.subr.mxu0 0.0
    %9221 = vmatpush2.msra.mxu0 0.0
    %9222 = vmatprep.subr.mxu0 0.0
    %9223 = vmatpush2.msra.mxu0 0.0
    %9224 = vmatprep.subr.mxu0 0.0
    %9225 = vmatpush2.msra.mxu0 0.0
    %9226 = vmatprep.subr.mxu0 0.0
    %9227 = vmatpush2.msra.mxu0 0.0
    %9228 = vmatprep.subr.mxu0 0.0
    %9229 = vmatpush2.msra.mxu0 0.0
    %9230 = vmatprep.subr.mxu0 0.0
    %9231 = vmatpush2.msra.mxu0 0.0
    %9232 = vmatprep.subr.mxu0 0.0
    %9233 = vmatpush2.msra.mxu0 0.0
    %9234 = vmatprep.subr.mxu0 0.0
    %9235 = vmatpush2.msra.mxu0 0.0
    %9236 = vmatprep.subr.mxu0 0.0
    %9237 = vmatpush2.msra.mxu0 0.0
    %9238 = vmatprep.subr.mxu0 0.0
    %9239 = vmatpush2.msra.mxu0 0.0
    %9240 = vmatprep.subr.mxu0 0.0
    %9241 = vmatpush2.msra.mxu0 0.0
    %9242 = vmatprep.subr.mxu0 0.0
    %9243 = vmatpush2.msra.mxu0 0.0
    %9244 = vmatprep.subr.mxu0 0.0
    %9245 = vmatpush2.msra.mxu0 0.0
    %9246 = vmatprep.mubr.f32.mxu0 0.0
    %v9247 = vand.u32 %v8793, 4294901760
    %9248 = vmatmul.mubr.f32.gmra.mxu0 %v9247
    %v9249 = vpop.f32.mrf.mxu0
    %v9250 = vadd.f32 %v9155, %v9249
    %v9251 = vpop.f32.mrf.mxu0
    %9252 = vdwg.mxu0
    %9253 = vmatprep.subr.mxu0 0.0
    %9254 = vmatpush1.msra.mxu0 0.0
    %9255 = vmatprep.subr.mxu0 0.0
    %9256 = vmatpush1.msra.mxu0 0.0
    %9257 = vmatprep.subr.mxu0 0.0
    %9258 = vmatpush1.msra.mxu0 0.0
    %9259 = vmatprep.subr.mxu0 0.0
    %9260 = vmatpush1.msra.mxu0 0.0
    %9261 = vmatprep.subr.mxu0 0.0
    %9262 = vmatpush1.msra.mxu0 0.0
    %9263 = vmatprep.subr.mxu0 0.0
    %9264 = vmatpush1.msra.mxu0 0.0
    %9265 = vmatprep.subr.mxu0 0.0
    %9266 = vmatpush1.msra.mxu0 0.0
    %9267 = vmatprep.subr.mxu0 0.0
    %9268 = vmatpush1.msra.mxu0 0.0
    %9269 = vmatprep.subr.mxu0 0.0
    %v9270 = vand.u32 %v603, 4294901760
    %9271 = vmatpush1.msra.mxu0 %v9270
    %9272 = vmatprep.subr.mxu0 0.0
    %v9273 = vand.u32 %v602, 4294901760
    %9274 = vmatpush1.msra.mxu0 %v9273
    %9275 = vmatprep.subr.mxu0 0.0
    %v9276 = vand.u32 %v601, 4294901760
    %9277 = vmatpush1.msra.mxu0 %v9276
    %9278 = vmatprep.subr.mxu0 0.0
    %v9279 = vand.u32 %v600, 4294901760
    %9280 = vmatpush1.msra.mxu0 %v9279
    %9281 = vmatprep.subr.mxu0 0.0
    %v9282 = vand.u32 %v599, 4294901760
    %9283 = vmatpush1.msra.mxu0 %v9282
    %9284 = vmatprep.subr.mxu0 0.0
    %v9285 = vand.u32 %v598, 4294901760
    %9286 = vmatpush1.msra.mxu0 %v9285
    %9287 = vmatprep.subr.mxu0 0.0
    %v9288 = vand.u32 %v597, 4294901760
    %9289 = vmatpush1.msra.mxu0 %v9288
    %9290 = vmatprep.subr.mxu0 0.0
    %v9291 = vand.u32 %v596, 4294901760
    %9292 = vmatpush1.msra.mxu0 %v9291
    %9293 = vmatprep.subr.mxu0 0.0
    %9294 = vmatpush2.msra.mxu0 0.0
    %9295 = vmatprep.subr.mxu0 0.0
    %9296 = vmatpush2.msra.mxu0 0.0
    %9297 = vmatprep.subr.mxu0 0.0
    %9298 = vmatpush2.msra.mxu0 0.0
    %9299 = vmatprep.subr.mxu0 0.0
    %9300 = vmatpush2.msra.mxu0 0.0
    %9301 = vmatprep.subr.mxu0 0.0
    %9302 = vmatpush2.msra.mxu0 0.0
    %9303 = vmatprep.subr.mxu0 0.0
    %9304 = vmatpush2.msra.mxu0 0.0
    %9305 = vmatprep.subr.mxu0 0.0
    %9306 = vmatpush2.msra.mxu0 0.0
    %9307 = vmatprep.subr.mxu0 0.0
    %9308 = vmatpush2.msra.mxu0 0.0
    %9309 = vmatprep.subr.mxu0 0.0
    %9310 = vmatpush2.msra.mxu0 0.0
    %9311 = vmatprep.subr.mxu0 0.0
    %9312 = vmatpush2.msra.mxu0 0.0
    %9313 = vmatprep.subr.mxu0 0.0
    %9314 = vmatpush2.msra.mxu0 0.0
    %9315 = vmatprep.subr.mxu0 0.0
    %9316 = vmatpush2.msra.mxu0 0.0
    %9317 = vmatprep.subr.mxu0 0.0
    %9318 = vmatpush2.msra.mxu0 0.0
    %9319 = vmatprep.subr.mxu0 0.0
    %9320 = vmatpush2.msra.mxu0 0.0
    %9321 = vmatprep.subr.mxu0 0.0
    %9322 = vmatpush2.msra.mxu0 0.0
    %9323 = vmatprep.subr.mxu0 0.0
    %9324 = vmatpush2.msra.mxu0 0.0
    %9325 = vmatprep.mubr.f32.mxu0 0.0
    %v9326 = vand.u32 %v8793, 4294901760
    %9327 = vmatmul.mubr.f32.gmra.mxu0 %v9326
    %v9328 = vpop.f32.mrf.mxu0
    %v9329 = vadd.f32 %v9250, %v9328
    %v9330 = vpop.f32.mrf.mxu0
    %9331 = vdwg.mxu0
    %v9332 = vxor.u32 %v9329, 2147483648
    %v9333 = vmul.f32 %v9332, 1.442695
    %v9334 = vpow.pop %v9333
    %v9335 = vadd.f32 %v9334, 1.0
    %v9336 = vrcp.pop %v9335
    %v9337 = vmul.f32 1.0, %v9336
    %v9338 = vtanh.pop %v9329
    %v9339 = vmul.f32 %v9337, %v8253
    %9341 = vrot.lane.b32.xlu0 %v9338, 64
    %v9342 = vpop.permute.xlu0 %9341
    %v9344 = vmul.f32 %v9337, %v9342
    %9346 = vrot.lane.b32.xlu0 %v9344, 32
    %v9347 = vpop.permute.xlu0 %9346
    %v9349 = vadd.f32 %v9339, %v9347
    %v9350 = vtanh.pop %v9349
    %9352 = vrot.lane.b32.xlu0 %v9350, 64
    %v9353 = vpop.permute.xlu0 %9352
    %v9355 = vmul.f32 %v9337, %v9353
    %v9356 = vld [vmem:[%s6] sm:$0xff]
    %v9357 = vld [vmem:[%s6 + $0x8] sm:$0xff]
    %v9358 = vld [vmem:[%s6 + $0x10] sm:$0xff]
    %v9359 = vld [vmem:[%s6 + $0x18] sm:$0xff]
    %v9360 = vld [vmem:[%s7] sm:$0x1]
    %v9362 = vlaneseq
    %v9363 = vshrl.u32 %v9362, 7
    %v9364 = vsub.s32 0, %v9363
    %v9365 = vrot.slane %v9360, %v9364
    %9368 = vrot.lane.b32.xlu0 %v9355, 32
    %v9369 = vpop.permute.xlu0 %9368
    %v9370 = vsel %vm605, %v9369, 0
    %9372 = vmatprep.subr.mxu0 0.0
    %9373 = vmatpush1.msra.mxu0 0.0
    %9374 = vmatprep.subr.mxu0 0.0
    %9375 = vmatpush1.msra.mxu0 0.0
    %9376 = vmatprep.subr.mxu0 0.0
    %9377 = vmatpush1.msra.mxu0 0.0
    %9378 = vmatprep.subr.mxu0 0.0
    %9379 = vmatpush1.msra.mxu0 0.0
    %9380 = vmatprep.subr.mxu0 0.0
    %9381 = vmatpush1.msra.mxu0 0.0
    %9382 = vmatprep.subr.mxu0 0.0
    %9383 = vmatpush1.msra.mxu0 0.0
    %9384 = vmatprep.subr.mxu0 0.0
    %9385 = vmatpush1.msra.mxu0 0.0
    %9386 = vmatprep.subr.mxu0 0.0
    %9387 = vmatpush1.msra.mxu0 0.0
    %9388 = vmatprep.subr.mxu0 0.0
    %9389 = vmatpush1.msra.mxu0 0.0
    %9390 = vmatprep.subr.mxu0 0.0
    %9391 = vmatpush1.msra.mxu0 0.0
    %9392 = vmatprep.subr.mxu0 0.0
    %9393 = vmatpush1.msra.mxu0 0.0
    %9394 = vmatprep.subr.mxu0 0.0
    %9395 = vmatpush1.msra.mxu0 0.0
    %9396 = vmatprep.subr.mxu0 0.0
    %v9397 = vand.u32 %v9359, 4294901760
    %9398 = vmatpush1.msra.mxu0 %v9397
    %9399 = vmatprep.subr.mxu0 0.0
    %v9400 = vand.u32 %v9358, 4294901760
    %9401 = vmatpush1.msra.mxu0 %v9400
    %9402 = vmatprep.subr.mxu0 0.0
    %v9403 = vand.u32 %v9357, 4294901760
    %9404 = vmatpush1.msra.mxu0 %v9403
    %9405 = vmatprep.subr.mxu0 0.0
    %v9406 = vand.u32 %v9356, 4294901760
    %9407 = vmatpush1.msra.mxu0 %v9406
    %9408 = vmatprep.subr.mxu0 0.0
    %9409 = vmatpush2.msra.mxu0 0.0
    %9410 = vmatprep.subr.mxu0 0.0
    %9411 = vmatpush2.msra.mxu0 0.0
    %9412 = vmatprep.subr.mxu0 0.0
    %9413 = vmatpush2.msra.mxu0 0.0
    %9414 = vmatprep.subr.mxu0 0.0
    %9415 = vmatpush2.msra.mxu0 0.0
    %9416 = vmatprep.subr.mxu0 0.0
    %9417 = vmatpush2.msra.mxu0 0.0
    %9418 = vmatprep.subr.mxu0 0.0
    %9419 = vmatpush2.msra.mxu0 0.0
    %9420 = vmatprep.subr.mxu0 0.0
    %9421 = vmatpush2.msra.mxu0 0.0
    %9422 = vmatprep.subr.mxu0 0.0
    %9423 = vmatpush2.msra.mxu0 0.0
    %9424 = vmatprep.subr.mxu0 0.0
    %9425 = vmatpush2.msra.mxu0 0.0
    %9426 = vmatprep.subr.mxu0 0.0
    %9427 = vmatpush2.msra.mxu0 0.0
    %9428 = vmatprep.subr.mxu0 0.0
    %9429 = vmatpush2.msra.mxu0 0.0
    %9430 = vmatprep.subr.mxu0 0.0
    %9431 = vmatpush2.msra.mxu0 0.0
    %9432 = vmatprep.subr.mxu0 0.0
    %9433 = vmatpush2.msra.mxu0 0.0
    %9434 = vmatprep.subr.mxu0 0.0
    %9435 = vmatpush2.msra.mxu0 0.0
    %9436 = vmatprep.subr.mxu0 0.0
    %9437 = vmatpush2.msra.mxu0 0.0
    %9438 = vmatprep.subr.mxu0 0.0
    %9439 = vmatpush2.msra.mxu0 0.0
    %9440 = vmatprep.mubr.f32.mxu0 0.0
    %v9441 = vand.u32 %v9370, 4294901760
    %v9442 = vsub.f32 %v9370, %v9441
    %v9443 = vand.u32 %v9442, 4294901760
    %v9444 = vsub.f32 %v9442, %v9443
    %v9445 = vand.u32 %v9444, 4294901760
    %9446 = vmatmul.mubr.f32.gmra.mxu0 %v9445
    %v9447 = vpop.f32.mrf.mxu0
    %v9448 = vadd.f32 %v9365, %v9447
    %v9449 = vpop.f32.mrf.mxu0
    %9450 = vdwg.mxu0
    %9451 = vmatprep.subr.mxu0 0.0
    %9452 = vmatpush1.msra.mxu0 0.0
    %9453 = vmatprep.subr.mxu0 0.0
    %9454 = vmatpush1.msra.mxu0 0.0
    %9455 = vmatprep.subr.mxu0 0.0
    %9456 = vmatpush1.msra.mxu0 0.0
    %9457 = vmatprep.subr.mxu0 0.0
    %9458 = vmatpush1.msra.mxu0 0.0
    %9459 = vmatprep.subr.mxu0 0.0
    %9460 = vmatpush1.msra.mxu0 0.0
    %9461 = vmatprep.subr.mxu0 0.0
    %9462 = vmatpush1.msra.mxu0 0.0
    %9463 = vmatprep.subr.mxu0 0.0
    %9464 = vmatpush1.msra.mxu0 0.0
    %9465 = vmatprep.subr.mxu0 0.0
    %9466 = vmatpush1.msra.mxu0 0.0
    %9467 = vmatprep.subr.mxu0 0.0
    %9468 = vmatpush1.msra.mxu0 0.0
    %9469 = vmatprep.subr.mxu0 0.0
    %9470 = vmatpush1.msra.mxu0 0.0
    %9471 = vmatprep.subr.mxu0 0.0
    %9472 = vmatpush1.msra.mxu0 0.0
    %9473 = vmatprep.subr.mxu0 0.0
    %9474 = vmatpush1.msra.mxu0 0.0
    %9475 = vmatprep.subr.mxu0 0.0
    %v9476 = vand.u32 %v9359, 4294901760
    %v9477 = vsub.f32 %v9359, %v9476
    %v9478 = vand.u32 %v9477, 4294901760
    %v9479 = vsub.f32 %v9477, %v9478
    %v9480 = vand.u32 %v9479, 4294901760
    %9481 = vmatpush1.msra.mxu0 %v9480
    %9482 = vmatprep.subr.mxu0 0.0
    %v9483 = vand.u32 %v9358, 4294901760
    %v9484 = vsub.f32 %v9358, %v9483
    %v9485 = vand.u32 %v9484, 4294901760
    %v9486 = vsub.f32 %v9484, %v9485
    %v9487 = vand.u32 %v9486, 4294901760
    %9488 = vmatpush1.msra.mxu0 %v9487
    %9489 = vmatprep.subr.mxu0 0.0
    %v9490 = vand.u32 %v9357, 4294901760
    %v9491 = vsub.f32 %v9357, %v9490
    %v9492 = vand.u32 %v9491, 4294901760
    %v9493 = vsub.f32 %v9491, %v9492
    %v9494 = vand.u32 %v9493, 4294901760
    %9495 = vmatpush1.msra.mxu0 %v9494
    %9496 = vmatprep.subr.mxu0 0.0
    %v9497 = vand.u32 %v9356, 4294901760
    %v9498 = vsub.f32 %v9356, %v9497
    %v9499 = vand.u32 %v9498, 4294901760
    %v9500 = vsub.f32 %v9498, %v9499
    %v9501 = vand.u32 %v9500, 4294901760
    %9502 = vmatpush1.msra.mxu0 %v9501
    %9503 = vmatprep.subr.mxu0 0.0
    %9504 = vmatpush2.msra.mxu0 0.0
    %9505 = vmatprep.subr.mxu0 0.0
    %9506 = vmatpush2.msra.mxu0 0.0
    %9507 = vmatprep.subr.mxu0 0.0
    %9508 = vmatpush2.msra.mxu0 0.0
    %9509 = vmatprep.subr.mxu0 0.0
    %9510 = vmatpush2.msra.mxu0 0.0
    %9511 = vmatprep.subr.mxu0 0.0
    %9512 = vmatpush2.msra.mxu0 0.0
    %9513 = vmatprep.subr.mxu0 0.0
    %9514 = vmatpush2.msra.mxu0 0.0
    %9515 = vmatprep.subr.mxu0 0.0
    %9516 = vmatpush2.msra.mxu0 0.0
    %9517 = vmatprep.subr.mxu0 0.0
    %9518 = vmatpush2.msra.mxu0 0.0
    %9519 = vmatprep.subr.mxu0 0.0
    %9520 = vmatpush2.msra.mxu0 0.0
    %9521 = vmatprep.subr.mxu0 0.0
    %9522 = vmatpush2.msra.mxu0 0.0
    %9523 = vmatprep.subr.mxu0 0.0
    %9524 = vmatpush2.msra.mxu0 0.0
    %9525 = vmatprep.subr.mxu0 0.0
    %9526 = vmatpush2.msra.mxu0 0.0
    %9527 = vmatprep.subr.mxu0 0.0
    %9528 = vmatpush2.msra.mxu0 0.0
    %9529 = vmatprep.subr.mxu0 0.0
    %9530 = vmatpush2.msra.mxu0 0.0
    %9531 = vmatprep.subr.mxu0 0.0
    %9532 = vmatpush2.msra.mxu0 0.0
    %9533 = vmatprep.subr.mxu0 0.0
    %9534 = vmatpush2.msra.mxu0 0.0
    %9535 = vmatprep.mubr.f32.mxu0 0.0
    %v9536 = vand.u32 %v9370, 4294901760
    %9537 = vmatmul.mubr.f32.gmra.mxu0 %v9536
    %v9538 = vpop.f32.mrf.mxu0
    %v9539 = vadd.f32 %v9448, %v9538
    %v9540 = vpop.f32.mrf.mxu0
    %9541 = vdwg.mxu0
    %9542 = vmatprep.subr.mxu0 0.0
    %9543 = vmatpush1.msra.mxu0 0.0
    %9544 = vmatprep.subr.mxu0 0.0
    %9545 = vmatpush1.msra.mxu0 0.0
    %9546 = vmatprep.subr.mxu0 0.0
    %9547 = vmatpush1.msra.mxu0 0.0
    %9548 = vmatprep.subr.mxu0 0.0
    %9549 = vmatpush1.msra.mxu0 0.0
    %9550 = vmatprep.subr.mxu0 0.0
    %9551 = vmatpush1.msra.mxu0 0.0
    %9552 = vmatprep.subr.mxu0 0.0
    %9553 = vmatpush1.msra.mxu0 0.0
    %9554 = vmatprep.subr.mxu0 0.0
    %9555 = vmatpush1.msra.mxu0 0.0
    %9556 = vmatprep.subr.mxu0 0.0
    %9557 = vmatpush1.msra.mxu0 0.0
    %9558 = vmatprep.subr.mxu0 0.0
    %9559 = vmatpush1.msra.mxu0 0.0
    %9560 = vmatprep.subr.mxu0 0.0
    %9561 = vmatpush1.msra.mxu0 0.0
    %9562 = vmatprep.subr.mxu0 0.0
    %9563 = vmatpush1.msra.mxu0 0.0
    %9564 = vmatprep.subr.mxu0 0.0
    %9565 = vmatpush1.msra.mxu0 0.0
    %9566 = vmatprep.subr.mxu0 0.0
    %v9567 = vand.u32 %v9359, 4294901760
    %v9568 = vsub.f32 %v9359, %v9567
    %9569 = vmatpush1.msra.mxu0 %v9568
    %9570 = vmatprep.subr.mxu0 0.0
    %v9571 = vand.u32 %v9358, 4294901760
    %v9572 = vsub.f32 %v9358, %v9571
    %9573 = vmatpush1.msra.mxu0 %v9572
    %9574 = vmatprep.subr.mxu0 0.0
    %v9575 = vand.u32 %v9357, 4294901760
    %v9576 = vsub.f32 %v9357, %v9575
    %9577 = vmatpush1.msra.mxu0 %v9576
    %9578 = vmatprep.subr.mxu0 0.0
    %v9579 = vand.u32 %v9356, 4294901760
    %v9580 = vsub.f32 %v9356, %v9579
    %9581 = vmatpush1.msra.mxu0 %v9580
    %9582 = vmatprep.subr.mxu0 0.0
    %9583 = vmatpush2.msra.mxu0 0.0
    %9584 = vmatprep.subr.mxu0 0.0
    %9585 = vmatpush2.msra.mxu0 0.0
    %9586 = vmatprep.subr.mxu0 0.0
    %9587 = vmatpush2.msra.mxu0 0.0
    %9588 = vmatprep.subr.mxu0 0.0
    %9589 = vmatpush2.msra.mxu0 0.0
    %9590 = vmatprep.subr.mxu0 0.0
    %9591 = vmatpush2.msra.mxu0 0.0
    %9592 = vmatprep.subr.mxu0 0.0
    %9593 = vmatpush2.msra.mxu0 0.0
    %9594 = vmatprep.subr.mxu0 0.0
    %9595 = vmatpush2.msra.mxu0 0.0
    %9596 = vmatprep.subr.mxu0 0.0
    %9597 = vmatpush2.msra.mxu0 0.0
    %9598 = vmatprep.subr.mxu0 0.0
    %9599 = vmatpush2.msra.mxu0 0.0
    %9600 = vmatprep.subr.mxu0 0.0
    %9601 = vmatpush2.msra.mxu0 0.0
    %9602 = vmatprep.subr.mxu0 0.0
    %9603 = vmatpush2.msra.mxu0 0.0
    %9604 = vmatprep.subr.mxu0 0.0
    %9605 = vmatpush2.msra.mxu0 0.0
    %9606 = vmatprep.subr.mxu0 0.0
    %9607 = vmatpush2.msra.mxu0 0.0
    %9608 = vmatprep.subr.mxu0 0.0
    %9609 = vmatpush2.msra.mxu0 0.0
    %9610 = vmatprep.subr.mxu0 0.0
    %9611 = vmatpush2.msra.mxu0 0.0
    %9612 = vmatprep.subr.mxu0 0.0
    %9613 = vmatpush2.msra.mxu0 0.0
    %9614 = vmatprep.mubr.f32.mxu0 0.0
    %v9615 = vand.u32 %v9370, 4294901760
    %v9616 = vsub.f32 %v9370, %v9615
    %9617 = vmatmul.mubr.f32.gmra.mxu0 %v9616
    %v9618 = vpop.f32.mrf.mxu0
    %v9619 = vadd.f32 %v9539, %v9618
    %v9620 = vpop.f32.mrf.mxu0
    %9621 = vdwg.mxu0
    %9622 = vmatprep.subr.mxu0 0.0
    %9623 = vmatpush1.msra.mxu0 0.0
    %9624 = vmatprep.subr.mxu0 0.0
    %9625 = vmatpush1.msra.mxu0 0.0
    %9626 = vmatprep.subr.mxu0 0.0
    %9627 = vmatpush1.msra.mxu0 0.0
    %9628 = vmatprep.subr.mxu0 0.0
    %9629 = vmatpush1.msra.mxu0 0.0
    %9630 = vmatprep.subr.mxu0 0.0
    %9631 = vmatpush1.msra.mxu0 0.0
    %9632 = vmatprep.subr.mxu0 0.0
    %9633 = vmatpush1.msra.mxu0 0.0
    %9634 = vmatprep.subr.mxu0 0.0
    %9635 = vmatpush1.msra.mxu0 0.0
    %9636 = vmatprep.subr.mxu0 0.0
    %9637 = vmatpush1.msra.mxu0 0.0
    %9638 = vmatprep.subr.mxu0 0.0
    %9639 = vmatpush1.msra.mxu0 0.0
    %9640 = vmatprep.subr.mxu0 0.0
    %9641 = vmatpush1.msra.mxu0 0.0
    %9642 = vmatprep.subr.mxu0 0.0
    %9643 = vmatpush1.msra.mxu0 0.0
    %9644 = vmatprep.subr.mxu0 0.0
    %9645 = vmatpush1.msra.mxu0 0.0
    %9646 = vmatprep.subr.mxu0 0.0
    %v9647 = vand.u32 %v9359, 4294901760
    %9648 = vmatpush1.msra.mxu0 %v9647
    %9649 = vmatprep.subr.mxu0 0.0
    %v9650 = vand.u32 %v9358, 4294901760
    %9651 = vmatpush1.msra.mxu0 %v9650
    %9652 = vmatprep.subr.mxu0 0.0
    %v9653 = vand.u32 %v9357, 4294901760
    %9654 = vmatpush1.msra.mxu0 %v9653
    %9655 = vmatprep.subr.mxu0 0.0
    %v9656 = vand.u32 %v9356, 4294901760
    %9657 = vmatpush1.msra.mxu0 %v9656
    %9658 = vmatprep.subr.mxu0 0.0
    %9659 = vmatpush2.msra.mxu0 0.0
    %9660 = vmatprep.subr.mxu0 0.0
    %9661 = vmatpush2.msra.mxu0 0.0
    %9662 = vmatprep.subr.mxu0 0.0
    %9663 = vmatpush2.msra.mxu0 0.0
    %9664 = vmatprep.subr.mxu0 0.0
    %9665 = vmatpush2.msra.mxu0 0.0
    %9666 = vmatprep.subr.mxu0 0.0
    %9667 = vmatpush2.msra.mxu0 0.0
    %9668 = vmatprep.subr.mxu0 0.0
    %9669 = vmatpush2.msra.mxu0 0.0
    %9670 = vmatprep.subr.mxu0 0.0
    %9671 = vmatpush2.msra.mxu0 0.0
    %9672 = vmatprep.subr.mxu0 0.0
    %9673 = vmatpush2.msra.mxu0 0.0
    %9674 = vmatprep.subr.mxu0 0.0
    %9675 = vmatpush2.msra.mxu0 0.0
    %9676 = vmatprep.subr.mxu0 0.0
    %9677 = vmatpush2.msra.mxu0 0.0
    %9678 = vmatprep.subr.mxu0 0.0
    %9679 = vmatpush2.msra.mxu0 0.0
    %9680 = vmatprep.subr.mxu0 0.0
    %9681 = vmatpush2.msra.mxu0 0.0
    %9682 = vmatprep.subr.mxu0 0.0
    %9683 = vmatpush2.msra.mxu0 0.0
    %9684 = vmatprep.subr.mxu0 0.0
    %9685 = vmatpush2.msra.mxu0 0.0
    %9686 = vmatprep.subr.mxu0 0.0
    %9687 = vmatpush2.msra.mxu0 0.0
    %9688 = vmatprep.subr.mxu0 0.0
    %9689 = vmatpush2.msra.mxu0 0.0
    %9690 = vmatprep.mubr.f32.mxu0 0.0
    %v9691 = vand.u32 %v9370, 4294901760
    %v9692 = vsub.f32 %v9370, %v9691
    %v9693 = vand.u32 %v9692, 4294901760
    %9694 = vmatmul.mubr.f32.gmra.mxu0 %v9693
    %v9695 = vpop.f32.mrf.mxu0
    %v9696 = vadd.f32 %v9619, %v9695
    %v9697 = vpop.f32.mrf.mxu0
    %9698 = vdwg.mxu0
    %9699 = vmatprep.subr.mxu0 0.0
    %9700 = vmatpush1.msra.mxu0 0.0
    %9701 = vmatprep.subr.mxu0 0.0
    %9702 = vmatpush1.msra.mxu0 0.0
    %9703 = vmatprep.subr.mxu0 0.0
    %9704 = vmatpush1.msra.mxu0 0.0
    %9705 = vmatprep.subr.mxu0 0.0
    %9706 = vmatpush1.msra.mxu0 0.0
    %9707 = vmatprep.subr.mxu0 0.0
    %9708 = vmatpush1.msra.mxu0 0.0
    %9709 = vmatprep.subr.mxu0 0.0
    %9710 = vmatpush1.msra.mxu0 0.0
    %9711 = vmatprep.subr.mxu0 0.0
    %9712 = vmatpush1.msra.mxu0 0.0
    %9713 = vmatprep.subr.mxu0 0.0
    %9714 = vmatpush1.msra.mxu0 0.0
    %9715 = vmatprep.subr.mxu0 0.0
    %9716 = vmatpush1.msra.mxu0 0.0
    %9717 = vmatprep.subr.mxu0 0.0
    %9718 = vmatpush1.msra.mxu0 0.0
    %9719 = vmatprep.subr.mxu0 0.0
    %9720 = vmatpush1.msra.mxu0 0.0
    %9721 = vmatprep.subr.mxu0 0.0
    %9722 = vmatpush1.msra.mxu0 0.0
    %9723 = vmatprep.subr.mxu0 0.0
    %v9724 = vand.u32 %v9359, 4294901760
    %v9725 = vsub.f32 %v9359, %v9724
    %v9726 = vand.u32 %v9725, 4294901760
    %9727 = vmatpush1.msra.mxu0 %v9726
    %9728 = vmatprep.subr.mxu0 0.0
    %v9729 = vand.u32 %v9358, 4294901760
    %v9730 = vsub.f32 %v9358, %v9729
    %v9731 = vand.u32 %v9730, 4294901760
    %9732 = vmatpush1.msra.mxu0 %v9731
    %9733 = vmatprep.subr.mxu0 0.0
    %v9734 = vand.u32 %v9357, 4294901760
    %v9735 = vsub.f32 %v9357, %v9734
    %v9736 = vand.u32 %v9735, 4294901760
    %9737 = vmatpush1.msra.mxu0 %v9736
    %9738 = vmatprep.subr.mxu0 0.0
    %v9739 = vand.u32 %v9356, 4294901760
    %v9740 = vsub.f32 %v9356, %v9739
    %v9741 = vand.u32 %v9740, 4294901760
    %9742 = vmatpush1.msra.mxu0 %v9741
    %9743 = vmatprep.subr.mxu0 0.0
    %9744 = vmatpush2.msra.mxu0 0.0
    %9745 = vmatprep.subr.mxu0 0.0
    %9746 = vmatpush2.msra.mxu0 0.0
    %9747 = vmatprep.subr.mxu0 0.0
    %9748 = vmatpush2.msra.mxu0 0.0
    %9749 = vmatprep.subr.mxu0 0.0
    %9750 = vmatpush2.msra.mxu0 0.0
    %9751 = vmatprep.subr.mxu0 0.0
    %9752 = vmatpush2.msra.mxu0 0.0
    %9753 = vmatprep.subr.mxu0 0.0
    %9754 = vmatpush2.msra.mxu0 0.0
    %9755 = vmatprep.subr.mxu0 0.0
    %9756 = vmatpush2.msra.mxu0 0.0
    %9757 = vmatprep.subr.mxu0 0.0
    %9758 = vmatpush2.msra.mxu0 0.0
    %9759 = vmatprep.subr.mxu0 0.0
    %9760 = vmatpush2.msra.mxu0 0.0
    %9761 = vmatprep.subr.mxu0 0.0
    %9762 = vmatpush2.msra.mxu0 0.0
    %9763 = vmatprep.subr.mxu0 0.0
    %9764 = vmatpush2.msra.mxu0 0.0
    %9765 = vmatprep.subr.mxu0 0.0
    %9766 = vmatpush2.msra.mxu0 0.0
    %9767 = vmatprep.subr.mxu0 0.0
    %9768 = vmatpush2.msra.mxu0 0.0
    %9769 = vmatprep.subr.mxu0 0.0
    %9770 = vmatpush2.msra.mxu0 0.0
    %9771 = vmatprep.subr.mxu0 0.0
    %9772 = vmatpush2.msra.mxu0 0.0
    %9773 = vmatprep.subr.mxu0 0.0
    %9774 = vmatpush2.msra.mxu0 0.0
    %9775 = vmatprep.mubr.f32.mxu0 0.0
    %v9776 = vand.u32 %v9370, 4294901760
    %9777 = vmatmul.mubr.f32.gmra.mxu0 %v9776
    %v9778 = vpop.f32.mrf.mxu0
    %v9779 = vadd.f32 %v9696, %v9778
    %v9780 = vpop.f32.mrf.mxu0
    %9781 = vdwg.mxu0
    %9782 = vmatprep.subr.mxu0 0.0
    %9783 = vmatpush1.msra.mxu0 0.0
    %9784 = vmatprep.subr.mxu0 0.0
    %9785 = vmatpush1.msra.mxu0 0.0
    %9786 = vmatprep.subr.mxu0 0.0
    %9787 = vmatpush1.msra.mxu0 0.0
    %9788 = vmatprep.subr.mxu0 0.0
    %9789 = vmatpush1.msra.mxu0 0.0
    %9790 = vmatprep.subr.mxu0 0.0
    %9791 = vmatpush1.msra.mxu0 0.0
    %9792 = vmatprep.subr.mxu0 0.0
    %9793 = vmatpush1.msra.mxu0 0.0
    %9794 = vmatprep.subr.mxu0 0.0
    %9795 = vmatpush1.msra.mxu0 0.0
    %9796 = vmatprep.subr.mxu0 0.0
    %9797 = vmatpush1.msra.mxu0 0.0
    %9798 = vmatprep.subr.mxu0 0.0
    %9799 = vmatpush1.msra.mxu0 0.0
    %9800 = vmatprep.subr.mxu0 0.0
    %9801 = vmatpush1.msra.mxu0 0.0
    %9802 = vmatprep.subr.mxu0 0.0
    %9803 = vmatpush1.msra.mxu0 0.0
    %9804 = vmatprep.subr.mxu0 0.0
    %9805 = vmatpush1.msra.mxu0 0.0
    %9806 = vmatprep.subr.mxu0 0.0
    %v9807 = vand.u32 %v9359, 4294901760
    %9808 = vmatpush1.msra.mxu0 %v9807
    %9809 = vmatprep.subr.mxu0 0.0
    %v9810 = vand.u32 %v9358, 4294901760
    %9811 = vmatpush1.msra.mxu0 %v9810
    %9812 = vmatprep.subr.mxu0 0.0
    %v9813 = vand.u32 %v9357, 4294901760
    %9814 = vmatpush1.msra.mxu0 %v9813
    %9815 = vmatprep.subr.mxu0 0.0
    %v9816 = vand.u32 %v9356, 4294901760
    %9817 = vmatpush1.msra.mxu0 %v9816
    %9818 = vmatprep.subr.mxu0 0.0
    %9819 = vmatpush2.msra.mxu0 0.0
    %9820 = vmatprep.subr.mxu0 0.0
    %9821 = vmatpush2.msra.mxu0 0.0
    %9822 = vmatprep.subr.mxu0 0.0
    %9823 = vmatpush2.msra.mxu0 0.0
    %9824 = vmatprep.subr.mxu0 0.0
    %9825 = vmatpush2.msra.mxu0 0.0
    %9826 = vmatprep.subr.mxu0 0.0
    %9827 = vmatpush2.msra.mxu0 0.0
    %9828 = vmatprep.subr.mxu0 0.0
    %9829 = vmatpush2.msra.mxu0 0.0
    %9830 = vmatprep.subr.mxu0 0.0
    %9831 = vmatpush2.msra.mxu0 0.0
    %9832 = vmatprep.subr.mxu0 0.0
    %9833 = vmatpush2.msra.mxu0 0.0
    %9834 = vmatprep.subr.mxu0 0.0
    %9835 = vmatpush2.msra.mxu0 0.0
    %9836 = vmatprep.subr.mxu0 0.0
    %9837 = vmatpush2.msra.mxu0 0.0
    %9838 = vmatprep.subr.mxu0 0.0
    %9839 = vmatpush2.msra.mxu0 0.0
    %9840 = vmatprep.subr.mxu0 0.0
    %9841 = vmatpush2.msra.mxu0 0.0
    %9842 = vmatprep.subr.mxu0 0.0
    %9843 = vmatpush2.msra.mxu0 0.0
    %9844 = vmatprep.subr.mxu0 0.0
    %9845 = vmatpush2.msra.mxu0 0.0
    %9846 = vmatprep.subr.mxu0 0.0
    %9847 = vmatpush2.msra.mxu0 0.0
    %9848 = vmatprep.subr.mxu0 0.0
    %9849 = vmatpush2.msra.mxu0 0.0
    %9850 = vmatprep.mubr.f32.mxu0 0.0
    %v9851 = vand.u32 %v9370, 4294901760
    %9852 = vmatmul.mubr.f32.gmra.mxu0 %v9851
    %v9853 = vpop.f32.mrf.mxu0
    %v9854 = vadd.f32 %v9779, %v9853
    %v9855 = vpop.f32.mrf.mxu0
    %9856 = vdwg.mxu0
    %v9857 = vmax.f32 %v9854, 0.0
    %v9858 = vld [vmem:[%s8] sm:$0xff]
    %v9859 = vld [vmem:[%s8 + $0x8] sm:$0xff]
    %v9860 = vld [vmem:[%s8 + $0x10] sm:$0xff]
    %v9861 = vld [vmem:[%s8 + $0x18] sm:$0xff]
    %v9862 = vld [vmem:[%s8 + $0x20] sm:$0xff]
    %v9863 = vld [vmem:[%s8 + $0x28] sm:$0xff]
    %v9864 = vld [vmem:[%s8 + $0x30] sm:$0xff]
    %v9865 = vld [vmem:[%s8 + $0x38] sm:$0xff]
    %v9866 = vld [vmem:[%s8 + $0x40] sm:$0xff]
    %v9867 = vld [vmem:[%s8 + $0x48] sm:$0xff]
    %v9868 = vld [vmem:[%s8 + $0x50] sm:$0xff]
    %v9869 = vld [vmem:[%s8 + $0x58] sm:$0xff]
    %v9870 = vld [vmem:[%s8 + $0x60] sm:$0xff]
    %v9871 = vld [vmem:[%s8 + $0x68] sm:$0xff]
    %v9872 = vld [vmem:[%s8 + $0x70] sm:$0xff]
    %v9873 = vld [vmem:[%s8 + $0x78] sm:$0xff]
    %v9874 = vld [vmem:[%s9] sm:$0x1]
    %v9876 = vlaneseq
    %v9877 = vshrl.u32 %v9876, 7
    %v9878 = vsub.s32 0, %v9877
    %v9879 = vrot.slane %v9874, %v9878
    %9881 = vmatprep.subr.mxu0 0.0
    %v9882 = vand.u32 %v9873, 4294901760
    %9883 = vmatpush1.msra.mxu0 %v9882
    %9884 = vmatprep.subr.mxu0 0.0
    %v9885 = vand.u32 %v9872, 4294901760
    %9886 = vmatpush1.msra.mxu0 %v9885
    %9887 = vmatprep.subr.mxu0 0.0
    %v9888 = vand.u32 %v9871, 4294901760
    %9889 = vmatpush1.msra.mxu0 %v9888
    %9890 = vmatprep.subr.mxu0 0.0
    %v9891 = vand.u32 %v9870, 4294901760
    %9892 = vmatpush1.msra.mxu0 %v9891
    %9893 = vmatprep.subr.mxu0 0.0
    %v9894 = vand.u32 %v9869, 4294901760
    %9895 = vmatpush1.msra.mxu0 %v9894
    %9896 = vmatprep.subr.mxu0 0.0
    %v9897 = vand.u32 %v9868, 4294901760
    %9898 = vmatpush1.msra.mxu0 %v9897
    %9899 = vmatprep.subr.mxu0 0.0
    %v9900 = vand.u32 %v9867, 4294901760
    %9901 = vmatpush1.msra.mxu0 %v9900
    %9902 = vmatprep.subr.mxu0 0.0
    %v9903 = vand.u32 %v9866, 4294901760
    %9904 = vmatpush1.msra.mxu0 %v9903
    %9905 = vmatprep.subr.mxu0 0.0
    %v9906 = vand.u32 %v9865, 4294901760
    %9907 = vmatpush1.msra.mxu0 %v9906
    %9908 = vmatprep.subr.mxu0 0.0
    %v9909 = vand.u32 %v9864, 4294901760
    %9910 = vmatpush1.msra.mxu0 %v9909
    %9911 = vmatprep.subr.mxu0 0.0
    %v9912 = vand.u32 %v9863, 4294901760
    %9913 = vmatpush1.msra.mxu0 %v9912
    %9914 = vmatprep.subr.mxu0 0.0
    %v9915 = vand.u32 %v9862, 4294901760
    %9916 = vmatpush1.msra.mxu0 %v9915
    %9917 = vmatprep.subr.mxu0 0.0
    %v9918 = vand.u32 %v9861, 4294901760
    %9919 = vmatpush1.msra.mxu0 %v9918
    %9920 = vmatprep.subr.mxu0 0.0
    %v9921 = vand.u32 %v9860, 4294901760
    %9922 = vmatpush1.msra.mxu0 %v9921
    %9923 = vmatprep.subr.mxu0 0.0
    %v9924 = vand.u32 %v9859, 4294901760
    %9925 = vmatpush1.msra.mxu0 %v9924
    %9926 = vmatprep.subr.mxu0 0.0
    %v9927 = vand.u32 %v9858, 4294901760
    %9928 = vmatpush1.msra.mxu0 %v9927
    %9929 = vmatprep.subr.mxu0 0.0
    %9930 = vmatpush2.msra.mxu0 0.0
    %9931 = vmatprep.subr.mxu0 0.0
    %9932 = vmatpush2.msra.mxu0 0.0
    %9933 = vmatprep.subr.mxu0 0.0
    %9934 = vmatpush2.msra.mxu0 0.0
    %9935 = vmatprep.subr.mxu0 0.0
    %9936 = vmatpush2.msra.mxu0 0.0
    %9937 = vmatprep.subr.mxu0 0.0
    %9938 = vmatpush2.msra.mxu0 0.0
    %9939 = vmatprep.subr.mxu0 0.0
    %9940 = vmatpush2.msra.mxu0 0.0
    %9941 = vmatprep.subr.mxu0 0.0
    %9942 = vmatpush2.msra.mxu0 0.0
    %9943 = vmatprep.subr.mxu0 0.0
    %9944 = vmatpush2.msra.mxu0 0.0
    %9945 = vmatprep.subr.mxu0 0.0
    %9946 = vmatpush2.msra.mxu0 0.0
    %9947 = vmatprep.subr.mxu0 0.0
    %9948 = vmatpush2.msra.mxu0 0.0
    %9949 = vmatprep.subr.mxu0 0.0
    %9950 = vmatpush2.msra.mxu0 0.0
    %9951 = vmatprep.subr.mxu0 0.0
    %9952 = vmatpush2.msra.mxu0 0.0
    %9953 = vmatprep.subr.mxu0 0.0
    %9954 = vmatpush2.msra.mxu0 0.0
    %9955 = vmatprep.subr.mxu0 0.0
    %9956 = vmatpush2.msra.mxu0 0.0
    %9957 = vmatprep.subr.mxu0 0.0
    %9958 = vmatpush2.msra.mxu0 0.0
    %9959 = vmatprep.subr.mxu0 0.0
    %9960 = vmatpush2.msra.mxu0 0.0
    %9961 = vmatprep.mubr.f32.mxu0 0.0
    %v9962 = vand.u32 %v9857, 4294901760
    %v9963 = vsub.f32 %v9857, %v9962
    %v9964 = vand.u32 %v9963, 4294901760
    %v9965 = vsub.f32 %v9963, %v9964
    %v9966 = vand.u32 %v9965, 4294901760
    %9967 = vmatmul.mubr.f32.gmra.mxu0 %v9966
    %v9968 = vpop.f32.mrf.mxu0
    %v9969 = vadd.f32 %v9879, %v9968
    %v9970 = vpop.f32.mrf.mxu0
    %9971 = vdwg.mxu0
    %9972 = vmatprep.subr.mxu0 0.0
    %v9973 = vand.u32 %v9873, 4294901760
    %v9974 = vsub.f32 %v9873, %v9973
    %v9975 = vand.u32 %v9974, 4294901760
    %v9976 = vsub.f32 %v9974, %v9975
    %v9977 = vand.u32 %v9976, 4294901760
    %9978 = vmatpush1.msra.mxu0 %v9977
    %9979 = vmatprep.subr.mxu0 0.0
    %v9980 = vand.u32 %v9872, 4294901760
    %v9981 = vsub.f32 %v9872, %v9980
    %v9982 = vand.u32 %v9981, 4294901760
    %v9983 = vsub.f32 %v9981, %v9982
    %v9984 = vand.u32 %v9983, 4294901760
    %9985 = vmatpush1.msra.mxu0 %v9984
    %9986 = vmatprep.subr.mxu0 0.0
    %v9987 = vand.u32 %v9871, 4294901760
    %v9988 = vsub.f32 %v9871, %v9987
    %v9989 = vand.u32 %v9988, 4294901760
    %v9990 = vsub.f32 %v9988, %v9989
    %v9991 = vand.u32 %v9990, 4294901760
    %9992 = vmatpush1.msra.mxu0 %v9991
    %9993 = vmatprep.subr.mxu0 0.0
    %v9994 = vand.u32 %v9870, 4294901760
    %v9995 = vsub.f32 %v9870, %v9994
    %v9996 = vand.u32 %v9995, 4294901760
    %v9997 = vsub.f32 %v9995, %v9996
    %v9998 = vand.u32 %v9997, 4294901760
    %9999 = vmatpush1.msra.mxu0 %v9998
    %10000 = vmatprep.subr.mxu0 0.0
    %v10001 = vand.u32 %v9869, 4294901760
    %v10002 = vsub.f32 %v9869, %v10001
    %v10003 = vand.u32 %v10002, 4294901760
    %v10004 = vsub.f32 %v10002, %v10003
    %v10005 = vand.u32 %v10004, 4294901760
    %10006 = vmatpush1.msra.mxu0 %v10005
    %10007 = vmatprep.subr.mxu0 0.0
    %v10008 = vand.u32 %v9868, 4294901760
    %v10009 = vsub.f32 %v9868, %v10008
    %v10010 = vand.u32 %v10009, 4294901760
    %v10011 = vsub.f32 %v10009, %v10010
    %v10012 = vand.u32 %v10011, 4294901760
    %10013 = vmatpush1.msra.mxu0 %v10012
    %10014 = vmatprep.subr.mxu0 0.0
    %v10015 = vand.u32 %v9867, 4294901760
    %v10016 = vsub.f32 %v9867, %v10015
    %v10017 = vand.u32 %v10016, 4294901760
    %v10018 = vsub.f32 %v10016, %v10017
    %v10019 = vand.u32 %v10018, 4294901760
    %10020 = vmatpush1.msra.mxu0 %v10019
    %10021 = vmatprep.subr.mxu0 0.0
    %v10022 = vand.u32 %v9866, 4294901760
    %v10023 = vsub.f32 %v9866, %v10022
    %v10024 = vand.u32 %v10023, 4294901760
    %v10025 = vsub.f32 %v10023, %v10024
    %v10026 = vand.u32 %v10025, 4294901760
    %10027 = vmatpush1.msra.mxu0 %v10026
    %10028 = vmatprep.subr.mxu0 0.0
    %v10029 = vand.u32 %v9865, 4294901760
    %v10030 = vsub.f32 %v9865, %v10029
    %v10031 = vand.u32 %v10030, 4294901760
    %v10032 = vsub.f32 %v10030, %v10031
    %v10033 = vand.u32 %v10032, 4294901760
    %10034 = vmatpush1.msra.mxu0 %v10033
    %10035 = vmatprep.subr.mxu0 0.0
    %v10036 = vand.u32 %v9864, 4294901760
    %v10037 = vsub.f32 %v9864, %v10036
    %v10038 = vand.u32 %v10037, 4294901760
    %v10039 = vsub.f32 %v10037, %v10038
    %v10040 = vand.u32 %v10039, 4294901760
    %10041 = vmatpush1.msra.mxu0 %v10040
    %10042 = vmatprep.subr.mxu0 0.0
    %v10043 = vand.u32 %v9863, 4294901760
    %v10044 = vsub.f32 %v9863, %v10043
    %v10045 = vand.u32 %v10044, 4294901760
    %v10046 = vsub.f32 %v10044, %v10045
    %v10047 = vand.u32 %v10046, 4294901760
    %10048 = vmatpush1.msra.mxu0 %v10047
    %10049 = vmatprep.subr.mxu0 0.0
    %v10050 = vand.u32 %v9862, 4294901760
    %v10051 = vsub.f32 %v9862, %v10050
    %v10052 = vand.u32 %v10051, 4294901760
    %v10053 = vsub.f32 %v10051, %v10052
    %v10054 = vand.u32 %v10053, 4294901760
    %10055 = vmatpush1.msra.mxu0 %v10054
    %10056 = vmatprep.subr.mxu0 0.0
    %v10057 = vand.u32 %v9861, 4294901760
    %v10058 = vsub.f32 %v9861, %v10057
    %v10059 = vand.u32 %v10058, 4294901760
    %v10060 = vsub.f32 %v10058, %v10059
    %v10061 = vand.u32 %v10060, 4294901760
    %10062 = vmatpush1.msra.mxu0 %v10061
    %10063 = vmatprep.subr.mxu0 0.0
    %v10064 = vand.u32 %v9860, 4294901760
    %v10065 = vsub.f32 %v9860, %v10064
    %v10066 = vand.u32 %v10065, 4294901760
    %v10067 = vsub.f32 %v10065, %v10066
    %v10068 = vand.u32 %v10067, 4294901760
    %10069 = vmatpush1.msra.mxu0 %v10068
    %10070 = vmatprep.subr.mxu0 0.0
    %v10071 = vand.u32 %v9859, 4294901760
    %v10072 = vsub.f32 %v9859, %v10071
    %v10073 = vand.u32 %v10072, 4294901760
    %v10074 = vsub.f32 %v10072, %v10073
    %v10075 = vand.u32 %v10074, 4294901760
    %10076 = vmatpush1.msra.mxu0 %v10075
    %10077 = vmatprep.subr.mxu0 0.0
    %v10078 = vand.u32 %v9858, 4294901760
    %v10079 = vsub.f32 %v9858, %v10078
    %v10080 = vand.u32 %v10079, 4294901760
    %v10081 = vsub.f32 %v10079, %v10080
    %v10082 = vand.u32 %v10081, 4294901760
    %10083 = vmatpush1.msra.mxu0 %v10082
    %10084 = vmatprep.subr.mxu0 0.0
    %10085 = vmatpush2.msra.mxu0 0.0
    %10086 = vmatprep.subr.mxu0 0.0
    %10087 = vmatpush2.msra.mxu0 0.0
    %10088 = vmatprep.subr.mxu0 0.0
    %10089 = vmatpush2.msra.mxu0 0.0
    %10090 = vmatprep.subr.mxu0 0.0
    %10091 = vmatpush2.msra.mxu0 0.0
    %10092 = vmatprep.subr.mxu0 0.0
    %10093 = vmatpush2.msra.mxu0 0.0
    %10094 = vmatprep.subr.mxu0 0.0
    %10095 = vmatpush2.msra.mxu0 0.0
    %10096 = vmatprep.subr.mxu0 0.0
    %10097 = vmatpush2.msra.mxu0 0.0
    %10098 = vmatprep.subr.mxu0 0.0
    %10099 = vmatpush2.msra.mxu0 0.0
    %10100 = vmatprep.subr.mxu0 0.0
    %10101 = vmatpush2.msra.mxu0 0.0
    %10102 = vmatprep.subr.mxu0 0.0
    %10103 = vmatpush2.msra.mxu0 0.0
    %10104 = vmatprep.subr.mxu0 0.0
    %10105 = vmatpush2.msra.mxu0 0.0
    %10106 = vmatprep.subr.mxu0 0.0
    %10107 = vmatpush2.msra.mxu0 0.0
    %10108 = vmatprep.subr.mxu0 0.0
    %10109 = vmatpush2.msra.mxu0 0.0
    %10110 = vmatprep.subr.mxu0 0.0
    %10111 = vmatpush2.msra.mxu0 0.0
    %10112 = vmatprep.subr.mxu0 0.0
    %10113 = vmatpush2.msra.mxu0 0.0
    %10114 = vmatprep.subr.mxu0 0.0
    %10115 = vmatpush2.msra.mxu0 0.0
    %10116 = vmatprep.mubr.f32.mxu0 0.0
    %v10117 = vand.u32 %v9857, 4294901760
    %10118 = vmatmul.mubr.f32.gmra.mxu0 %v10117
    %v10119 = vpop.f32.mrf.mxu0
    %v10120 = vadd.f32 %v9969, %v10119
    %v10121 = vpop.f32.mrf.mxu0
    %10122 = vdwg.mxu0
    %10123 = vmatprep.subr.mxu0 0.0
    %v10124 = vand.u32 %v9873, 4294901760
    %v10125 = vsub.f32 %v9873, %v10124
    %10126 = vmatpush1.msra.mxu0 %v10125
    %10127 = vmatprep.subr.mxu0 0.0
    %v10128 = vand.u32 %v9872, 4294901760
    %v10129 = vsub.f32 %v9872, %v10128
    %10130 = vmatpush1.msra.mxu0 %v10129
    %10131 = vmatprep.subr.mxu0 0.0
    %v10132 = vand.u32 %v9871, 4294901760
    %v10133 = vsub.f32 %v9871, %v10132
    %10134 = vmatpush1.msra.mxu0 %v10133
    %10135 = vmatprep.subr.mxu0 0.0
    %v10136 = vand.u32 %v9870, 4294901760
    %v10137 = vsub.f32 %v9870, %v10136
    %10138 = vmatpush1.msra.mxu0 %v10137
    %10139 = vmatprep.subr.mxu0 0.0
    %v10140 = vand.u32 %v9869, 4294901760
    %v10141 = vsub.f32 %v9869, %v10140
    %10142 = vmatpush1.msra.mxu0 %v10141
    %10143 = vmatprep.subr.mxu0 0.0
    %v10144 = vand.u32 %v9868, 4294901760
    %v10145 = vsub.f32 %v9868, %v10144
    %10146 = vmatpush1.msra.mxu0 %v10145
    %10147 = vmatprep.subr.mxu0 0.0
    %v10148 = vand.u32 %v9867, 4294901760
    %v10149 = vsub.f32 %v9867, %v10148
    %10150 = vmatpush1.msra.mxu0 %v10149
    %10151 = vmatprep.subr.mxu0 0.0
    %v10152 = vand.u32 %v9866, 4294901760
    %v10153 = vsub.f32 %v9866, %v10152
    %10154 = vmatpush1.msra.mxu0 %v10153
    %10155 = vmatprep.subr.mxu0 0.0
    %v10156 = vand.u32 %v9865, 4294901760
    %v10157 = vsub.f32 %v9865, %v10156
    %10158 = vmatpush1.msra.mxu0 %v10157
    %10159 = vmatprep.subr.mxu0 0.0
    %v10160 = vand.u32 %v9864, 4294901760
    %v10161 = vsub.f32 %v9864, %v10160
    %10162 = vmatpush1.msra.mxu0 %v10161
    %10163 = vmatprep.subr.mxu0 0.0
    %v10164 = vand.u32 %v9863, 4294901760
    %v10165 = vsub.f32 %v9863, %v10164
    %10166 = vmatpush1.msra.mxu0 %v10165
    %10167 = vmatprep.subr.mxu0 0.0
    %v10168 = vand.u32 %v9862, 4294901760
    %v10169 = vsub.f32 %v9862, %v10168
    %10170 = vmatpush1.msra.mxu0 %v10169
    %10171 = vmatprep.subr.mxu0 0.0
    %v10172 = vand.u32 %v9861, 4294901760
    %v10173 = vsub.f32 %v9861, %v10172
    %10174 = vmatpush1.msra.mxu0 %v10173
    %10175 = vmatprep.subr.mxu0 0.0
    %v10176 = vand.u32 %v9860, 4294901760
    %v10177 = vsub.f32 %v9860, %v10176
    %10178 = vmatpush1.msra.mxu0 %v10177
    %10179 = vmatprep.subr.mxu0 0.0
    %v10180 = vand.u32 %v9859, 4294901760
    %v10181 = vsub.f32 %v9859, %v10180
    %10182 = vmatpush1.msra.mxu0 %v10181
    %10183 = vmatprep.subr.mxu0 0.0
    %v10184 = vand.u32 %v9858, 4294901760
    %v10185 = vsub.f32 %v9858, %v10184
    %10186 = vmatpush1.msra.mxu0 %v10185
    %10187 = vmatprep.subr.mxu0 0.0
    %10188 = vmatpush2.msra.mxu0 0.0
    %10189 = vmatprep.subr.mxu0 0.0
    %10190 = vmatpush2.msra.mxu0 0.0
    %10191 = vmatprep.subr.mxu0 0.0
    %10192 = vmatpush2.msra.mxu0 0.0
    %10193 = vmatprep.subr.mxu0 0.0
    %10194 = vmatpush2.msra.mxu0 0.0
    %10195 = vmatprep.subr.mxu0 0.0
    %10196 = vmatpush2.msra.mxu0 0.0
    %10197 = vmatprep.subr.mxu0 0.0
    %10198 = vmatpush2.msra.mxu0 0.0
    %10199 = vmatprep.subr.mxu0 0.0
    %10200 = vmatpush2.msra.mxu0 0.0
    %10201 = vmatprep.subr.mxu0 0.0
    %10202 = vmatpush2.msra.mxu0 0.0
    %10203 = vmatprep.subr.mxu0 0.0
    %10204 = vmatpush2.msra.mxu0 0.0
    %10205 = vmatprep.subr.mxu0 0.0
    %10206 = vmatpush2.msra.mxu0 0.0
    %10207 = vmatprep.subr.mxu0 0.0
    %10208 = vmatpush2.msra.mxu0 0.0
    %10209 = vmatprep.subr.mxu0 0.0
    %10210 = vmatpush2.msra.mxu0 0.0
    %10211 = vmatprep.subr.mxu0 0.0
    %10212 = vmatpush2.msra.mxu0 0.0
    %10213 = vmatprep.subr.mxu0 0.0
    %10214 = vmatpush2.msra.mxu0 0.0
    %10215 = vmatprep.subr.mxu0 0.0
    %10216 = vmatpush2.msra.mxu0 0.0
    %10217 = vmatprep.subr.mxu0 0.0
    %10218 = vmatpush2.msra.mxu0 0.0
    %10219 = vmatprep.mubr.f32.mxu0 0.0
    %v10220 = vand.u32 %v9857, 4294901760
    %v10221 = vsub.f32 %v9857, %v10220
    %10222 = vmatmul.mubr.f32.gmra.mxu0 %v10221
    %v10223 = vpop.f32.mrf.mxu0
    %v10224 = vadd.f32 %v10120, %v10223
    %v10225 = vpop.f32.mrf.mxu0
    %10226 = vdwg.mxu0
    %10227 = vmatprep.subr.mxu0 0.0
    %v10228 = vand.u32 %v9873, 4294901760
    %10229 = vmatpush1.msra.mxu0 %v10228
    %10230 = vmatprep.subr.mxu0 0.0
    %v10231 = vand.u32 %v9872, 4294901760
    %10232 = vmatpush1.msra.mxu0 %v10231
    %10233 = vmatprep.subr.mxu0 0.0
    %v10234 = vand.u32 %v9871, 4294901760
    %10235 = vmatpush1.msra.mxu0 %v10234
    %10236 = vmatprep.subr.mxu0 0.0
    %v10237 = vand.u32 %v9870, 4294901760
    %10238 = vmatpush1.msra.mxu0 %v10237
    %10239 = vmatprep.subr.mxu0 0.0
    %v10240 = vand.u32 %v9869, 4294901760
    %10241 = vmatpush1.msra.mxu0 %v10240
    %10242 = vmatprep.subr.mxu0 0.0
    %v10243 = vand.u32 %v9868, 4294901760
    %10244 = vmatpush1.msra.mxu0 %v10243
    %10245 = vmatprep.subr.mxu0 0.0
    %v10246 = vand.u32 %v9867, 4294901760
    %10247 = vmatpush1.msra.mxu0 %v10246
    %10248 = vmatprep.subr.mxu0 0.0
    %v10249 = vand.u32 %v9866, 4294901760
    %10250 = vmatpush1.msra.mxu0 %v10249
    %10251 = vmatprep.subr.mxu0 0.0
    %v10252 = vand.u32 %v9865, 4294901760
    %10253 = vmatpush1.msra.mxu0 %v10252
    %10254 = vmatprep.subr.mxu0 0.0
    %v10255 = vand.u32 %v9864, 4294901760
    %10256 = vmatpush1.msra.mxu0 %v10255
    %10257 = vmatprep.subr.mxu0 0.0
    %v10258 = vand.u32 %v9863, 4294901760
    %10259 = vmatpush1.msra.mxu0 %v10258
    %10260 = vmatprep.subr.mxu0 0.0
    %v10261 = vand.u32 %v9862, 4294901760
    %10262 = vmatpush1.msra.mxu0 %v10261
    %10263 = vmatprep.subr.mxu0 0.0
    %v10264 = vand.u32 %v9861, 4294901760
    %10265 = vmatpush1.msra.mxu0 %v10264
    %10266 = vmatprep.subr.mxu0 0.0
    %v10267 = vand.u32 %v9860, 4294901760
    %10268 = vmatpush1.msra.mxu0 %v10267
    %10269 = vmatprep.subr.mxu0 0.0
    %v10270 = vand.u32 %v9859, 4294901760
    %10271 = vmatpush1.msra.mxu0 %v10270
    %10272 = vmatprep.subr.mxu0 0.0
    %v10273 = vand.u32 %v9858, 4294901760
    %10274 = vmatpush1.msra.mxu0 %v10273
    %10275 = vmatprep.subr.mxu0 0.0
    %10276 = vmatpush2.msra.mxu0 0.0
    %10277 = vmatprep.subr.mxu0 0.0
    %10278 = vmatpush2.msra.mxu0 0.0
    %10279 = vmatprep.subr.mxu0 0.0
    %10280 = vmatpush2.msra.mxu0 0.0
    %10281 = vmatprep.subr.mxu0 0.0
    %10282 = vmatpush2.msra.mxu0 0.0
    %10283 = vmatprep.subr.mxu0 0.0
    %10284 = vmatpush2.msra.mxu0 0.0
    %10285 = vmatprep.subr.mxu0 0.0
    %10286 = vmatpush2.msra.mxu0 0.0
    %10287 = vmatprep.subr.mxu0 0.0
    %10288 = vmatpush2.msra.mxu0 0.0
    %10289 = vmatprep.subr.mxu0 0.0
    %10290 = vmatpush2.msra.mxu0 0.0
    %10291 = vmatprep.subr.mxu0 0.0
    %10292 = vmatpush2.msra.mxu0 0.0
    %10293 = vmatprep.subr.mxu0 0.0
    %10294 = vmatpush2.msra.mxu0 0.0
    %10295 = vmatprep.subr.mxu0 0.0
    %10296 = vmatpush2.msra.mxu0 0.0
    %10297 = vmatprep.subr.mxu0 0.0
    %10298 = vmatpush2.msra.mxu0 0.0
    %10299 = vmatprep.subr.mxu0 0.0
    %10300 = vmatpush2.msra.mxu0 0.0
    %10301 = vmatprep.subr.mxu0 0.0
    %10302 = vmatpush2.msra.mxu0 0.0
    %10303 = vmatprep.subr.mxu0 0.0
    %10304 = vmatpush2.msra.mxu0 0.0
    %10305 = vmatprep.subr.mxu0 0.0
    %10306 = vmatpush2.msra.mxu0 0.0
    %10307 = vmatprep.mubr.f32.mxu0 0.0
    %v10308 = vand.u32 %v9857, 4294901760
    %v10309 = vsub.f32 %v9857, %v10308
    %v10310 = vand.u32 %v10309, 4294901760
    %10311 = vmatmul.mubr.f32.gmra.mxu0 %v10310
    %v10312 = vpop.f32.mrf.mxu0
    %v10313 = vadd.f32 %v10224, %v10312
    %v10314 = vpop.f32.mrf.mxu0
    %10315 = vdwg.mxu0
    %10316 = vmatprep.subr.mxu0 0.0
    %v10317 = vand.u32 %v9873, 4294901760
    %v10318 = vsub.f32 %v9873, %v10317
    %v10319 = vand.u32 %v10318, 4294901760
    %10320 = vmatpush1.msra.mxu0 %v10319
    %10321 = vmatprep.subr.mxu0 0.0
    %v10322 = vand.u32 %v9872, 4294901760
    %v10323 = vsub.f32 %v9872, %v10322
    %v10324 = vand.u32 %v10323, 4294901760
    %10325 = vmatpush1.msra.mxu0 %v10324
    %10326 = vmatprep.subr.mxu0 0.0
    %v10327 = vand.u32 %v9871, 4294901760
    %v10328 = vsub.f32 %v9871, %v10327
    %v10329 = vand.u32 %v10328, 4294901760
    %10330 = vmatpush1.msra.mxu0 %v10329
    %10331 = vmatprep.subr.mxu0 0.0
    %v10332 = vand.u32 %v9870, 4294901760
    %v10333 = vsub.f32 %v9870, %v10332
    %v10334 = vand.u32 %v10333, 4294901760
    %10335 = vmatpush1.msra.mxu0 %v10334
    %10336 = vmatprep.subr.mxu0 0.0
    %v10337 = vand.u32 %v9869, 4294901760
    %v10338 = vsub.f32 %v9869, %v10337
    %v10339 = vand.u32 %v10338, 4294901760
    %10340 = vmatpush1.msra.mxu0 %v10339
    %10341 = vmatprep.subr.mxu0 0.0
    %v10342 = vand.u32 %v9868, 4294901760
    %v10343 = vsub.f32 %v9868, %v10342
    %v10344 = vand.u32 %v10343, 4294901760
    %10345 = vmatpush1.msra.mxu0 %v10344
    %10346 = vmatprep.subr.mxu0 0.0
    %v10347 = vand.u32 %v9867, 4294901760
    %v10348 = vsub.f32 %v9867, %v10347
    %v10349 = vand.u32 %v10348, 4294901760
    %10350 = vmatpush1.msra.mxu0 %v10349
    %10351 = vmatprep.subr.mxu0 0.0
    %v10352 = vand.u32 %v9866, 4294901760
    %v10353 = vsub.f32 %v9866, %v10352
    %v10354 = vand.u32 %v10353, 4294901760
    %10355 = vmatpush1.msra.mxu0 %v10354
    %10356 = vmatprep.subr.mxu0 0.0
    %v10357 = vand.u32 %v9865, 4294901760
    %v10358 = vsub.f32 %v9865, %v10357
    %v10359 = vand.u32 %v10358, 4294901760
    %10360 = vmatpush1.msra.mxu0 %v10359
    %10361 = vmatprep.subr.mxu0 0.0
    %v10362 = vand.u32 %v9864, 4294901760
    %v10363 = vsub.f32 %v9864, %v10362
    %v10364 = vand.u32 %v10363, 4294901760
    %10365 = vmatpush1.msra.mxu0 %v10364
    %10366 = vmatprep.subr.mxu0 0.0
    %v10367 = vand.u32 %v9863, 4294901760
    %v10368 = vsub.f32 %v9863, %v10367
    %v10369 = vand.u32 %v10368, 4294901760
    %10370 = vmatpush1.msra.mxu0 %v10369
    %10371 = vmatprep.subr.mxu0 0.0
    %v10372 = vand.u32 %v9862, 4294901760
    %v10373 = vsub.f32 %v9862, %v10372
    %v10374 = vand.u32 %v10373, 4294901760
    %10375 = vmatpush1.msra.mxu0 %v10374
    %10376 = vmatprep.subr.mxu0 0.0
    %v10377 = vand.u32 %v9861, 4294901760
    %v10378 = vsub.f32 %v9861, %v10377
    %v10379 = vand.u32 %v10378, 4294901760
    %10380 = vmatpush1.msra.mxu0 %v10379
    %10381 = vmatprep.subr.mxu0 0.0
    %v10382 = vand.u32 %v9860, 4294901760
    %v10383 = vsub.f32 %v9860, %v10382
    %v10384 = vand.u32 %v10383, 4294901760
    %10385 = vmatpush1.msra.mxu0 %v10384
    %10386 = vmatprep.subr.mxu0 0.0
    %v10387 = vand.u32 %v9859, 4294901760
    %v10388 = vsub.f32 %v9859, %v10387
    %v10389 = vand.u32 %v10388, 4294901760
    %10390 = vmatpush1.msra.mxu0 %v10389
    %10391 = vmatprep.subr.mxu0 0.0
    %v10392 = vand.u32 %v9858, 4294901760
    %v10393 = vsub.f32 %v9858, %v10392
    %v10394 = vand.u32 %v10393, 4294901760
    %10395 = vmatpush1.msra.mxu0 %v10394
    %10396 = vmatprep.subr.mxu0 0.0
    %10397 = vmatpush2.msra.mxu0 0.0
    %10398 = vmatprep.subr.mxu0 0.0
    %10399 = vmatpush2.msra.mxu0 0.0
    %10400 = vmatprep.subr.mxu0 0.0
    %10401 = vmatpush2.msra.mxu0 0.0
    %10402 = vmatprep.subr.mxu0 0.0
    %10403 = vmatpush2.msra.mxu0 0.0
    %10404 = vmatprep.subr.mxu0 0.0
    %10405 = vmatpush2.msra.mxu0 0.0
    %10406 = vmatprep.subr.mxu0 0.0
    %10407 = vmatpush2.msra.mxu0 0.0
    %10408 = vmatprep.subr.mxu0 0.0
    %10409 = vmatpush2.msra.mxu0 0.0
    %10410 = vmatprep.subr.mxu0 0.0
    %10411 = vmatpush2.msra.mxu0 0.0
    %10412 = vmatprep.subr.mxu0 0.0
    %10413 = vmatpush2.msra.mxu0 0.0
    %10414 = vmatprep.subr.mxu0 0.0
    %10415 = vmatpush2.msra.mxu0 0.0
    %10416 = vmatprep.subr.mxu0 0.0
    %10417 = vmatpush2.msra.mxu0 0.0
    %10418 = vmatprep.subr.mxu0 0.0
    %10419 = vmatpush2.msra.mxu0 0.0
    %10420 = vmatprep.subr.mxu0 0.0
    %10421 = vmatpush2.msra.mxu0 0.0
    %10422 = vmatprep.subr.mxu0 0.0
    %10423 = vmatpush2.msra.mxu0 0.0
    %10424 = vmatprep.subr.mxu0 0.0
    %10425 = vmatpush2.msra.mxu0 0.0
    %10426 = vmatprep.subr.mxu0 0.0
    %10427 = vmatpush2.msra.mxu0 0.0
    %10428 = vmatprep.mubr.f32.mxu0 0.0
    %v10429 = vand.u32 %v9857, 4294901760
    %10430 = vmatmul.mubr.f32.gmra.mxu0 %v10429
    %v10431 = vpop.f32.mrf.mxu0
    %v10432 = vadd.f32 %v10313, %v10431
    %v10433 = vpop.f32.mrf.mxu0
    %10434 = vdwg.mxu0
    %10435 = vmatprep.subr.mxu0 0.0
    %v10436 = vand.u32 %v9873, 4294901760
    %10437 = vmatpush1.msra.mxu0 %v10436
    %10438 = vmatprep.subr.mxu0 0.0
    %v10439 = vand.u32 %v9872, 4294901760
    %10440 = vmatpush1.msra.mxu0 %v10439
    %10441 = vmatprep.subr.mxu0 0.0
    %v10442 = vand.u32 %v9871, 4294901760
    %10443 = vmatpush1.msra.mxu0 %v10442
    %10444 = vmatprep.subr.mxu0 0.0
    %v10445 = vand.u32 %v9870, 4294901760
    %10446 = vmatpush1.msra.mxu0 %v10445
    %10447 = vmatprep.subr.mxu0 0.0
    %v10448 = vand.u32 %v9869, 4294901760
    %10449 = vmatpush1.msra.mxu0 %v10448
    %10450 = vmatprep.subr.mxu0 0.0
    %v10451 = vand.u32 %v9868, 4294901760
    %10452 = vmatpush1.msra.mxu0 %v10451
    %10453 = vmatprep.subr.mxu0 0.0
    %v10454 = vand.u32 %v9867, 4294901760
    %10455 = vmatpush1.msra.mxu0 %v10454
    %10456 = vmatprep.subr.mxu0 0.0
    %v10457 = vand.u32 %v9866, 4294901760
    %10458 = vmatpush1.msra.mxu0 %v10457
    %10459 = vmatprep.subr.mxu0 0.0
    %v10460 = vand.u32 %v9865, 4294901760
    %10461 = vmatpush1.msra.mxu0 %v10460
    %10462 = vmatprep.subr.mxu0 0.0
    %v10463 = vand.u32 %v9864, 4294901760
    %10464 = vmatpush1.msra.mxu0 %v10463
    %10465 = vmatprep.subr.mxu0 0.0
    %v10466 = vand.u32 %v9863, 4294901760
    %10467 = vmatpush1.msra.mxu0 %v10466
    %10468 = vmatprep.subr.mxu0 0.0
    %v10469 = vand.u32 %v9862, 4294901760
    %10470 = vmatpush1.msra.mxu0 %v10469
    %10471 = vmatprep.subr.mxu0 0.0
    %v10472 = vand.u32 %v9861, 4294901760
    %10473 = vmatpush1.msra.mxu0 %v10472
    %10474 = vmatprep.subr.mxu0 0.0
    %v10475 = vand.u32 %v9860, 4294901760
    %10476 = vmatpush1.msra.mxu0 %v10475
    %10477 = vmatprep.subr.mxu0 0.0
    %v10478 = vand.u32 %v9859, 4294901760
    %10479 = vmatpush1.msra.mxu0 %v10478
    %10480 = vmatprep.subr.mxu0 0.0
    %v10481 = vand.u32 %v9858, 4294901760
    %10482 = vmatpush1.msra.mxu0 %v10481
    %10483 = vmatprep.subr.mxu0 0.0
    %10484 = vmatpush2.msra.mxu0 0.0
    %10485 = vmatprep.subr.mxu0 0.0
    %10486 = vmatpush2.msra.mxu0 0.0
    %10487 = vmatprep.subr.mxu0 0.0
    %10488 = vmatpush2.msra.mxu0 0.0
    %10489 = vmatprep.subr.mxu0 0.0
    %10490 = vmatpush2.msra.mxu0 0.0
    %10491 = vmatprep.subr.mxu0 0.0
    %10492 = vmatpush2.msra.mxu0 0.0
    %10493 = vmatprep.subr.mxu0 0.0
    %10494 = vmatpush2.msra.mxu0 0.0
    %10495 = vmatprep.subr.mxu0 0.0
    %10496 = vmatpush2.msra.mxu0 0.0
    %10497 = vmatprep.subr.mxu0 0.0
    %10498 = vmatpush2.msra.mxu0 0.0
    %10499 = vmatprep.subr.mxu0 0.0
    %10500 = vmatpush2.msra.mxu0 0.0
    %10501 = vmatprep.subr.mxu0 0.0
    %10502 = vmatpush2.msra.mxu0 0.0
    %10503 = vmatprep.subr.mxu0 0.0
    %10504 = vmatpush2.msra.mxu0 0.0
    %10505 = vmatprep.subr.mxu0 0.0
    %10506 = vmatpush2.msra.mxu0 0.0
    %10507 = vmatprep.subr.mxu0 0.0
    %10508 = vmatpush2.msra.mxu0 0.0
    %10509 = vmatprep.subr.mxu0 0.0
    %10510 = vmatpush2.msra.mxu0 0.0
    %10511 = vmatprep.subr.mxu0 0.0
    %10512 = vmatpush2.msra.mxu0 0.0
    %10513 = vmatprep.subr.mxu0 0.0
    %10514 = vmatpush2.msra.mxu0 0.0
    %10515 = vmatprep.mubr.f32.mxu0 0.0
    %v10516 = vand.u32 %v9857, 4294901760
    %10517 = vmatmul.mubr.f32.gmra.mxu0 %v10516
    %v10518 = vpop.f32.mrf.mxu0
    %v10519 = vadd.f32 %v10432, %v10518
    %v10520 = vpop.f32.mrf.mxu0
    %10521 = vdwg.mxu0
    %v10522 = vmax.f32 %v10519, 0.0
    %v10523 = vld [vmem:[%s10] sm:$0xff]
    %v10524 = vld [vmem:[%s10 + $0x8] sm:$0xff]
    %v10525 = vld [vmem:[%s10 + $0x10] sm:$0xff]
    %v10526 = vld [vmem:[%s10 + $0x18] sm:$0xff]
    %v10527 = vld [vmem:[%s10 + $0x20] sm:$0xff]
    %v10528 = vld [vmem:[%s10 + $0x28] sm:$0xff]
    %v10529 = vld [vmem:[%s10 + $0x30] sm:$0xff]
    %v10530 = vld [vmem:[%s10 + $0x38] sm:$0xff]
    %v10531 = vld [vmem:[%s11] sm:$0x1]
    %v10533 = vlaneseq
    %v10534 = vshrl.u32 %v10533, 7
    %v10535 = vsub.s32 0, %v10534
    %v10536 = vrot.slane %v10531, %v10535
    %v10539 = vsel %vm1130, %v10522, 0
    %10541 = vmatprep.subr.mxu0 0.0
    %10542 = vmatpush1.msra.mxu0 0.0
    %10543 = vmatprep.subr.mxu0 0.0
    %10544 = vmatpush1.msra.mxu0 0.0
    %10545 = vmatprep.subr.mxu0 0.0
    %10546 = vmatpush1.msra.mxu0 0.0
    %10547 = vmatprep.subr.mxu0 0.0
    %10548 = vmatpush1.msra.mxu0 0.0
    %10549 = vmatprep.subr.mxu0 0.0
    %10550 = vmatpush1.msra.mxu0 0.0
    %10551 = vmatprep.subr.mxu0 0.0
    %10552 = vmatpush1.msra.mxu0 0.0
    %10553 = vmatprep.subr.mxu0 0.0
    %10554 = vmatpush1.msra.mxu0 0.0
    %10555 = vmatprep.subr.mxu0 0.0
    %10556 = vmatpush1.msra.mxu0 0.0
    %10557 = vmatprep.subr.mxu0 0.0
    %v10558 = vand.u32 %v10530, 4294901760
    %10559 = vmatpush1.msra.mxu0 %v10558
    %10560 = vmatprep.subr.mxu0 0.0
    %v10561 = vand.u32 %v10529, 4294901760
    %10562 = vmatpush1.msra.mxu0 %v10561
    %10563 = vmatprep.subr.mxu0 0.0
    %v10564 = vand.u32 %v10528, 4294901760
    %10565 = vmatpush1.msra.mxu0 %v10564
    %10566 = vmatprep.subr.mxu0 0.0
    %v10567 = vand.u32 %v10527, 4294901760
    %10568 = vmatpush1.msra.mxu0 %v10567
    %10569 = vmatprep.subr.mxu0 0.0
    %v10570 = vand.u32 %v10526, 4294901760
    %10571 = vmatpush1.msra.mxu0 %v10570
    %10572 = vmatprep.subr.mxu0 0.0
    %v10573 = vand.u32 %v10525, 4294901760
    %10574 = vmatpush1.msra.mxu0 %v10573
    %10575 = vmatprep.subr.mxu0 0.0
    %v10576 = vand.u32 %v10524, 4294901760
    %10577 = vmatpush1.msra.mxu0 %v10576
    %10578 = vmatprep.subr.mxu0 0.0
    %v10579 = vand.u32 %v10523, 4294901760
    %10580 = vmatpush1.msra.mxu0 %v10579
    %10581 = vmatprep.subr.mxu0 0.0
    %10582 = vmatpush2.msra.mxu0 0.0
    %10583 = vmatprep.subr.mxu0 0.0
    %10584 = vmatpush2.msra.mxu0 0.0
    %10585 = vmatprep.subr.mxu0 0.0
    %10586 = vmatpush2.msra.mxu0 0.0
    %10587 = vmatprep.subr.mxu0 0.0
    %10588 = vmatpush2.msra.mxu0 0.0
    %10589 = vmatprep.subr.mxu0 0.0
    %10590 = vmatpush2.msra.mxu0 0.0
    %10591 = vmatprep.subr.mxu0 0.0
    %10592 = vmatpush2.msra.mxu0 0.0
    %10593 = vmatprep.subr.mxu0 0.0
    %10594 = vmatpush2.msra.mxu0 0.0
    %10595 = vmatprep.subr.mxu0 0.0
    %10596 = vmatpush2.msra.mxu0 0.0
    %10597 = vmatprep.subr.mxu0 0.0
    %10598 = vmatpush2.msra.mxu0 0.0
    %10599 = vmatprep.subr.mxu0 0.0
    %10600 = vmatpush2.msra.mxu0 0.0
    %10601 = vmatprep.subr.mxu0 0.0
    %10602 = vmatpush2.msra.mxu0 0.0
    %10603 = vmatprep.subr.mxu0 0.0
    %10604 = vmatpush2.msra.mxu0 0.0
    %10605 = vmatprep.subr.mxu0 0.0
    %10606 = vmatpush2.msra.mxu0 0.0
    %10607 = vmatprep.subr.mxu0 0.0
    %10608 = vmatpush2.msra.mxu0 0.0
    %10609 = vmatprep.subr.mxu0 0.0
    %10610 = vmatpush2.msra.mxu0 0.0
    %10611 = vmatprep.subr.mxu0 0.0
    %10612 = vmatpush2.msra.mxu0 0.0
    %10613 = vmatprep.mubr.f32.mxu0 0.0
    %v10614 = vand.u32 %v10539, 4294901760
    %v10615 = vsub.f32 %v10539, %v10614
    %v10616 = vand.u32 %v10615, 4294901760
    %v10617 = vsub.f32 %v10615, %v10616
    %v10618 = vand.u32 %v10617, 4294901760
    %10619 = vmatmul.mubr.f32.gmra.mxu0 %v10618
    %v10620 = vpop.f32.mrf.mxu0
    %v10621 = vadd.f32 %v10536, %v10620
    %v10622 = vpop.f32.mrf.mxu0
    %10623 = vdwg.mxu0
    %10624 = vmatprep.subr.mxu0 0.0
    %10625 = vmatpush1.msra.mxu0 0.0
    %10626 = vmatprep.subr.mxu0 0.0
    %10627 = vmatpush1.msra.mxu0 0.0
    %10628 = vmatprep.subr.mxu0 0.0
    %10629 = vmatpush1.msra.mxu0 0.0
    %10630 = vmatprep.subr.mxu0 0.0
    %10631 = vmatpush1.msra.mxu0 0.0
    %10632 = vmatprep.subr.mxu0 0.0
    %10633 = vmatpush1.msra.mxu0 0.0
    %10634 = vmatprep.subr.mxu0 0.0
    %10635 = vmatpush1.msra.mxu0 0.0
    %10636 = vmatprep.subr.mxu0 0.0
    %10637 = vmatpush1.msra.mxu0 0.0
    %10638 = vmatprep.subr.mxu0 0.0
    %10639 = vmatpush1.msra.mxu0 0.0
    %10640 = vmatprep.subr.mxu0 0.0
    %v10641 = vand.u32 %v10530, 4294901760
    %v10642 = vsub.f32 %v10530, %v10641
    %v10643 = vand.u32 %v10642, 4294901760
    %v10644 = vsub.f32 %v10642, %v10643
    %v10645 = vand.u32 %v10644, 4294901760
    %10646 = vmatpush1.msra.mxu0 %v10645
    %10647 = vmatprep.subr.mxu0 0.0
    %v10648 = vand.u32 %v10529, 4294901760
    %v10649 = vsub.f32 %v10529, %v10648
    %v10650 = vand.u32 %v10649, 4294901760
    %v10651 = vsub.f32 %v10649, %v10650
    %v10652 = vand.u32 %v10651, 4294901760
    %10653 = vmatpush1.msra.mxu0 %v10652
    %10654 = vmatprep.subr.mxu0 0.0
    %v10655 = vand.u32 %v10528, 4294901760
    %v10656 = vsub.f32 %v10528, %v10655
    %v10657 = vand.u32 %v10656, 4294901760
    %v10658 = vsub.f32 %v10656, %v10657
    %v10659 = vand.u32 %v10658, 4294901760
    %10660 = vmatpush1.msra.mxu0 %v10659
    %10661 = vmatprep.subr.mxu0 0.0
    %v10662 = vand.u32 %v10527, 4294901760
    %v10663 = vsub.f32 %v10527, %v10662
    %v10664 = vand.u32 %v10663, 4294901760
    %v10665 = vsub.f32 %v10663, %v10664
    %v10666 = vand.u32 %v10665, 4294901760
    %10667 = vmatpush1.msra.mxu0 %v10666
    %10668 = vmatprep.subr.mxu0 0.0
    %v10669 = vand.u32 %v10526, 4294901760
    %v10670 = vsub.f32 %v10526, %v10669
    %v10671 = vand.u32 %v10670, 4294901760
    %v10672 = vsub.f32 %v10670, %v10671
    %v10673 = vand.u32 %v10672, 4294901760
    %10674 = vmatpush1.msra.mxu0 %v10673
    %10675 = vmatprep.subr.mxu0 0.0
    %v10676 = vand.u32 %v10525, 4294901760
    %v10677 = vsub.f32 %v10525, %v10676
    %v10678 = vand.u32 %v10677, 4294901760
    %v10679 = vsub.f32 %v10677, %v10678
    %v10680 = vand.u32 %v10679, 4294901760
    %10681 = vmatpush1.msra.mxu0 %v10680
    %10682 = vmatprep.subr.mxu0 0.0
    %v10683 = vand.u32 %v10524, 4294901760
    %v10684 = vsub.f32 %v10524, %v10683
    %v10685 = vand.u32 %v10684, 4294901760
    %v10686 = vsub.f32 %v10684, %v10685
    %v10687 = vand.u32 %v10686, 4294901760
    %10688 = vmatpush1.msra.mxu0 %v10687
    %10689 = vmatprep.subr.mxu0 0.0
    %v10690 = vand.u32 %v10523, 4294901760
    %v10691 = vsub.f32 %v10523, %v10690
    %v10692 = vand.u32 %v10691, 4294901760
    %v10693 = vsub.f32 %v10691, %v10692
    %v10694 = vand.u32 %v10693, 4294901760
    %10695 = vmatpush1.msra.mxu0 %v10694
    %10696 = vmatprep.subr.mxu0 0.0
    %10697 = vmatpush2.msra.mxu0 0.0
    %10698 = vmatprep.subr.mxu0 0.0
    %10699 = vmatpush2.msra.mxu0 0.0
    %10700 = vmatprep.subr.mxu0 0.0
    %10701 = vmatpush2.msra.mxu0 0.0
    %10702 = vmatprep.subr.mxu0 0.0
    %10703 = vmatpush2.msra.mxu0 0.0
    %10704 = vmatprep.subr.mxu0 0.0
    %10705 = vmatpush2.msra.mxu0 0.0
    %10706 = vmatprep.subr.mxu0 0.0
    %10707 = vmatpush2.msra.mxu0 0.0
    %10708 = vmatprep.subr.mxu0 0.0
    %10709 = vmatpush2.msra.mxu0 0.0
    %10710 = vmatprep.subr.mxu0 0.0
    %10711 = vmatpush2.msra.mxu0 0.0
    %10712 = vmatprep.subr.mxu0 0.0
    %10713 = vmatpush2.msra.mxu0 0.0
    %10714 = vmatprep.subr.mxu0 0.0
    %10715 = vmatpush2.msra.mxu0 0.0
    %10716 = vmatprep.subr.mxu0 0.0
    %10717 = vmatpush2.msra.mxu0 0.0
    %10718 = vmatprep.subr.mxu0 0.0
    %10719 = vmatpush2.msra.mxu0 0.0
    %10720 = vmatprep.subr.mxu0 0.0
    %10721 = vmatpush2.msra.mxu0 0.0
    %10722 = vmatprep.subr.mxu0 0.0
    %10723 = vmatpush2.msra.mxu0 0.0
    %10724 = vmatprep.subr.mxu0 0.0
    %10725 = vmatpush2.msra.mxu0 0.0
    %10726 = vmatprep.subr.mxu0 0.0
    %10727 = vmatpush2.msra.mxu0 0.0
    %10728 = vmatprep.mubr.f32.mxu0 0.0
    %v10729 = vand.u32 %v10539, 4294901760
    %10730 = vmatmul.mubr.f32.gmra.mxu0 %v10729
    %v10731 = vpop.f32.mrf.mxu0
    %v10732 = vadd.f32 %v10621, %v10731
    %v10733 = vpop.f32.mrf.mxu0
    %10734 = vdwg.mxu0
    %10735 = vmatprep.subr.mxu0 0.0
    %10736 = vmatpush1.msra.mxu0 0.0
    %10737 = vmatprep.subr.mxu0 0.0
    %10738 = vmatpush1.msra.mxu0 0.0
    %10739 = vmatprep.subr.mxu0 0.0
    %10740 = vmatpush1.msra.mxu0 0.0
    %10741 = vmatprep.subr.mxu0 0.0
    %10742 = vmatpush1.msra.mxu0 0.0
    %10743 = vmatprep.subr.mxu0 0.0
    %10744 = vmatpush1.msra.mxu0 0.0
    %10745 = vmatprep.subr.mxu0 0.0
    %10746 = vmatpush1.msra.mxu0 0.0
    %10747 = vmatprep.subr.mxu0 0.0
    %10748 = vmatpush1.msra.mxu0 0.0
    %10749 = vmatprep.subr.mxu0 0.0
    %10750 = vmatpush1.msra.mxu0 0.0
    %10751 = vmatprep.subr.mxu0 0.0
    %v10752 = vand.u32 %v10530, 4294901760
    %v10753 = vsub.f32 %v10530, %v10752
    %10754 = vmatpush1.msra.mxu0 %v10753
    %10755 = vmatprep.subr.mxu0 0.0
    %v10756 = vand.u32 %v10529, 4294901760
    %v10757 = vsub.f32 %v10529, %v10756
    %10758 = vmatpush1.msra.mxu0 %v10757
    %10759 = vmatprep.subr.mxu0 0.0
    %v10760 = vand.u32 %v10528, 4294901760
    %v10761 = vsub.f32 %v10528, %v10760
    %10762 = vmatpush1.msra.mxu0 %v10761
    %10763 = vmatprep.subr.mxu0 0.0
    %v10764 = vand.u32 %v10527, 4294901760
    %v10765 = vsub.f32 %v10527, %v10764
    %10766 = vmatpush1.msra.mxu0 %v10765
    %10767 = vmatprep.subr.mxu0 0.0
    %v10768 = vand.u32 %v10526, 4294901760
    %v10769 = vsub.f32 %v10526, %v10768
    %10770 = vmatpush1.msra.mxu0 %v10769
    %10771 = vmatprep.subr.mxu0 0.0
    %v10772 = vand.u32 %v10525, 4294901760
    %v10773 = vsub.f32 %v10525, %v10772
    %10774 = vmatpush1.msra.mxu0 %v10773
    %10775 = vmatprep.subr.mxu0 0.0
    %v10776 = vand.u32 %v10524, 4294901760
    %v10777 = vsub.f32 %v10524, %v10776
    %10778 = vmatpush1.msra.mxu0 %v10777
    %10779 = vmatprep.subr.mxu0 0.0
    %v10780 = vand.u32 %v10523, 4294901760
    %v10781 = vsub.f32 %v10523, %v10780
    %10782 = vmatpush1.msra.mxu0 %v10781
    %10783 = vmatprep.subr.mxu0 0.0
    %10784 = vmatpush2.msra.mxu0 0.0
    %10785 = vmatprep.subr.mxu0 0.0
    %10786 = vmatpush2.msra.mxu0 0.0
    %10787 = vmatprep.subr.mxu0 0.0
    %10788 = vmatpush2.msra.mxu0 0.0
    %10789 = vmatprep.subr.mxu0 0.0
    %10790 = vmatpush2.msra.mxu0 0.0
    %10791 = vmatprep.subr.mxu0 0.0
    %10792 = vmatpush2.msra.mxu0 0.0
    %10793 = vmatprep.subr.mxu0 0.0
    %10794 = vmatpush2.msra.mxu0 0.0
    %10795 = vmatprep.subr.mxu0 0.0
    %10796 = vmatpush2.msra.mxu0 0.0
    %10797 = vmatprep.subr.mxu0 0.0
    %10798 = vmatpush2.msra.mxu0 0.0
    %10799 = vmatprep.subr.mxu0 0.0
    %10800 = vmatpush2.msra.mxu0 0.0
    %10801 = vmatprep.subr.mxu0 0.0
    %10802 = vmatpush2.msra.mxu0 0.0
    %10803 = vmatprep.subr.mxu0 0.0
    %10804 = vmatpush2.msra.mxu0 0.0
    %10805 = vmatprep.subr.mxu0 0.0
    %10806 = vmatpush2.msra.mxu0 0.0
    %10807 = vmatprep.subr.mxu0 0.0
    %10808 = vmatpush2.msra.mxu0 0.0
    %10809 = vmatprep.subr.mxu0 0.0
    %10810 = vmatpush2.msra.mxu0 0.0
    %10811 = vmatprep.subr.mxu0 0.0
    %10812 = vmatpush2.msra.mxu0 0.0
    %10813 = vmatprep.subr.mxu0 0.0
    %10814 = vmatpush2.msra.mxu0 0.0
    %10815 = vmatprep.mubr.f32.mxu0 0.0
    %v10816 = vand.u32 %v10539, 4294901760
    %v10817 = vsub.f32 %v10539, %v10816
    %10818 = vmatmul.mubr.f32.gmra.mxu0 %v10817
    %v10819 = vpop.f32.mrf.mxu0
    %v10820 = vadd.f32 %v10732, %v10819
    %v10821 = vpop.f32.mrf.mxu0
    %10822 = vdwg.mxu0
    %10823 = vmatprep.subr.mxu0 0.0
    %10824 = vmatpush1.msra.mxu0 0.0
    %10825 = vmatprep.subr.mxu0 0.0
    %10826 = vmatpush1.msra.mxu0 0.0
    %10827 = vmatprep.subr.mxu0 0.0
    %10828 = vmatpush1.msra.mxu0 0.0
    %10829 = vmatprep.subr.mxu0 0.0
    %10830 = vmatpush1.msra.mxu0 0.0
    %10831 = vmatprep.subr.mxu0 0.0
    %10832 = vmatpush1.msra.mxu0 0.0
    %10833 = vmatprep.subr.mxu0 0.0
    %10834 = vmatpush1.msra.mxu0 0.0
    %10835 = vmatprep.subr.mxu0 0.0
    %10836 = vmatpush1.msra.mxu0 0.0
    %10837 = vmatprep.subr.mxu0 0.0
    %10838 = vmatpush1.msra.mxu0 0.0
    %10839 = vmatprep.subr.mxu0 0.0
    %v10840 = vand.u32 %v10530, 4294901760
    %10841 = vmatpush1.msra.mxu0 %v10840
    %10842 = vmatprep.subr.mxu0 0.0
    %v10843 = vand.u32 %v10529, 4294901760
    %10844 = vmatpush1.msra.mxu0 %v10843
    %10845 = vmatprep.subr.mxu0 0.0
    %v10846 = vand.u32 %v10528, 4294901760
    %10847 = vmatpush1.msra.mxu0 %v10846
    %10848 = vmatprep.subr.mxu0 0.0
    %v10849 = vand.u32 %v10527, 4294901760
    %10850 = vmatpush1.msra.mxu0 %v10849
    %10851 = vmatprep.subr.mxu0 0.0
    %v10852 = vand.u32 %v10526, 4294901760
    %10853 = vmatpush1.msra.mxu0 %v10852
    %10854 = vmatprep.subr.mxu0 0.0
    %v10855 = vand.u32 %v10525, 4294901760
    %10856 = vmatpush1.msra.mxu0 %v10855
    %10857 = vmatprep.subr.mxu0 0.0
    %v10858 = vand.u32 %v10524, 4294901760
    %10859 = vmatpush1.msra.mxu0 %v10858
    %10860 = vmatprep.subr.mxu0 0.0
    %v10861 = vand.u32 %v10523, 4294901760
    %10862 = vmatpush1.msra.mxu0 %v10861
    %10863 = vmatprep.subr.mxu0 0.0
    %10864 = vmatpush2.msra.mxu0 0.0
    %10865 = vmatprep.subr.mxu0 0.0
    %10866 = vmatpush2.msra.mxu0 0.0
    %10867 = vmatprep.subr.mxu0 0.0
    %10868 = vmatpush2.msra.mxu0 0.0
    %10869 = vmatprep.subr.mxu0 0.0
    %10870 = vmatpush2.msra.mxu0 0.0
    %10871 = vmatprep.subr.mxu0 0.0
    %10872 = vmatpush2.msra.mxu0 0.0
    %10873 = vmatprep.subr.mxu0 0.0
    %10874 = vmatpush2.msra.mxu0 0.0
    %10875 = vmatprep.subr.mxu0 0.0
    %10876 = vmatpush2.msra.mxu0 0.0
    %10877 = vmatprep.subr.mxu0 0.0
    %10878 = vmatpush2.msra.mxu0 0.0
    %10879 = vmatprep.subr.mxu0 0.0
    %10880 = vmatpush2.msra.mxu0 0.0
    %10881 = vmatprep.subr.mxu0 0.0
    %10882 = vmatpush2.msra.mxu0 0.0
    %10883 = vmatprep.subr.mxu0 0.0
    %10884 = vmatpush2.msra.mxu0 0.0
    %10885 = vmatprep.subr.mxu0 0.0
    %10886 = vmatpush2.msra.mxu0 0.0
    %10887 = vmatprep.subr.mxu0 0.0
    %10888 = vmatpush2.msra.mxu0 0.0
    %10889 = vmatprep.subr.mxu0 0.0
    %10890 = vmatpush2.msra.mxu0 0.0
    %10891 = vmatprep.subr.mxu0 0.0
    %10892 = vmatpush2.msra.mxu0 0.0
    %10893 = vmatprep.subr.mxu0 0.0
    %10894 = vmatpush2.msra.mxu0 0.0
    %10895 = vmatprep.mubr.f32.mxu0 0.0
    %v10896 = vand.u32 %v10539, 4294901760
    %v10897 = vsub.f32 %v10539, %v10896
    %v10898 = vand.u32 %v10897, 4294901760
    %10899 = vmatmul.mubr.f32.gmra.mxu0 %v10898
    %v10900 = vpop.f32.mrf.mxu0
    %v10901 = vadd.f32 %v10820, %v10900
    %v10902 = vpop.f32.mrf.mxu0
    %10903 = vdwg.mxu0
    %10904 = vmatprep.subr.mxu0 0.0
    %10905 = vmatpush1.msra.mxu0 0.0
    %10906 = vmatprep.subr.mxu0 0.0
    %10907 = vmatpush1.msra.mxu0 0.0
    %10908 = vmatprep.subr.mxu0 0.0
    %10909 = vmatpush1.msra.mxu0 0.0
    %10910 = vmatprep.subr.mxu0 0.0
    %10911 = vmatpush1.msra.mxu0 0.0
    %10912 = vmatprep.subr.mxu0 0.0
    %10913 = vmatpush1.msra.mxu0 0.0
    %10914 = vmatprep.subr.mxu0 0.0
    %10915 = vmatpush1.msra.mxu0 0.0
    %10916 = vmatprep.subr.mxu0 0.0
    %10917 = vmatpush1.msra.mxu0 0.0
    %10918 = vmatprep.subr.mxu0 0.0
    %10919 = vmatpush1.msra.mxu0 0.0
    %10920 = vmatprep.subr.mxu0 0.0
    %v10921 = vand.u32 %v10530, 4294901760
    %v10922 = vsub.f32 %v10530, %v10921
    %v10923 = vand.u32 %v10922, 4294901760
    %10924 = vmatpush1.msra.mxu0 %v10923
    %10925 = vmatprep.subr.mxu0 0.0
    %v10926 = vand.u32 %v10529, 4294901760
    %v10927 = vsub.f32 %v10529, %v10926
    %v10928 = vand.u32 %v10927, 4294901760
    %10929 = vmatpush1.msra.mxu0 %v10928
    %10930 = vmatprep.subr.mxu0 0.0
    %v10931 = vand.u32 %v10528, 4294901760
    %v10932 = vsub.f32 %v10528, %v10931
    %v10933 = vand.u32 %v10932, 4294901760
    %10934 = vmatpush1.msra.mxu0 %v10933
    %10935 = vmatprep.subr.mxu0 0.0
    %v10936 = vand.u32 %v10527, 4294901760
    %v10937 = vsub.f32 %v10527, %v10936
    %v10938 = vand.u32 %v10937, 4294901760
    %10939 = vmatpush1.msra.mxu0 %v10938
    %10940 = vmatprep.subr.mxu0 0.0
    %v10941 = vand.u32 %v10526, 4294901760
    %v10942 = vsub.f32 %v10526, %v10941
    %v10943 = vand.u32 %v10942, 4294901760
    %10944 = vmatpush1.msra.mxu0 %v10943
    %10945 = vmatprep.subr.mxu0 0.0
    %v10946 = vand.u32 %v10525, 4294901760
    %v10947 = vsub.f32 %v10525, %v10946
    %v10948 = vand.u32 %v10947, 4294901760
    %10949 = vmatpush1.msra.mxu0 %v10948
    %10950 = vmatprep.subr.mxu0 0.0
    %v10951 = vand.u32 %v10524, 4294901760
    %v10952 = vsub.f32 %v10524, %v10951
    %v10953 = vand.u32 %v10952, 4294901760
    %10954 = vmatpush1.msra.mxu0 %v10953
    %10955 = vmatprep.subr.mxu0 0.0
    %v10956 = vand.u32 %v10523, 4294901760
    %v10957 = vsub.f32 %v10523, %v10956
    %v10958 = vand.u32 %v10957, 4294901760
    %10959 = vmatpush1.msra.mxu0 %v10958
    %10960 = vmatprep.subr.mxu0 0.0
    %10961 = vmatpush2.msra.mxu0 0.0
    %10962 = vmatprep.subr.mxu0 0.0
    %10963 = vmatpush2.msra.mxu0 0.0
    %10964 = vmatprep.subr.mxu0 0.0
    %10965 = vmatpush2.msra.mxu0 0.0
    %10966 = vmatprep.subr.mxu0 0.0
    %10967 = vmatpush2.msra.mxu0 0.0
    %10968 = vmatprep.subr.mxu0 0.0
    %10969 = vmatpush2.msra.mxu0 0.0
    %10970 = vmatprep.subr.mxu0 0.0
    %10971 = vmatpush2.msra.mxu0 0.0
    %10972 = vmatprep.subr.mxu0 0.0
    %10973 = vmatpush2.msra.mxu0 0.0
    %10974 = vmatprep.subr.mxu0 0.0
    %10975 = vmatpush2.msra.mxu0 0.0
    %10976 = vmatprep.subr.mxu0 0.0
    %10977 = vmatpush2.msra.mxu0 0.0
    %10978 = vmatprep.subr.mxu0 0.0
    %10979 = vmatpush2.msra.mxu0 0.0
    %10980 = vmatprep.subr.mxu0 0.0
    %10981 = vmatpush2.msra.mxu0 0.0
    %10982 = vmatprep.subr.mxu0 0.0
    %10983 = vmatpush2.msra.mxu0 0.0
    %10984 = vmatprep.subr.mxu0 0.0
    %10985 = vmatpush2.msra.mxu0 0.0
    %10986 = vmatprep.subr.mxu0 0.0
    %10987 = vmatpush2.msra.mxu0 0.0
    %10988 = vmatprep.subr.mxu0 0.0
    %10989 = vmatpush2.msra.mxu0 0.0
    %10990 = vmatprep.subr.mxu0 0.0
    %10991 = vmatpush2.msra.mxu0 0.0
    %10992 = vmatprep.mubr.f32.mxu0 0.0
    %v10993 = vand.u32 %v10539, 4294901760
    %10994 = vmatmul.mubr.f32.gmra.mxu0 %v10993
    %v10995 = vpop.f32.mrf.mxu0
    %v10996 = vadd.f32 %v10901, %v10995
    %v10997 = vpop.f32.mrf.mxu0
    %10998 = vdwg.mxu0
    %10999 = vmatprep.subr.mxu0 0.0
    %11000 = vmatpush1.msra.mxu0 0.0
    %11001 = vmatprep.subr.mxu0 0.0
    %11002 = vmatpush1.msra.mxu0 0.0
    %11003 = vmatprep.subr.mxu0 0.0
    %11004 = vmatpush1.msra.mxu0 0.0
    %11005 = vmatprep.subr.mxu0 0.0
    %11006 = vmatpush1.msra.mxu0 0.0
    %11007 = vmatprep.subr.mxu0 0.0
    %11008 = vmatpush1.msra.mxu0 0.0
    %11009 = vmatprep.subr.mxu0 0.0
    %11010 = vmatpush1.msra.mxu0 0.0
    %11011 = vmatprep.subr.mxu0 0.0
    %11012 = vmatpush1.msra.mxu0 0.0
    %11013 = vmatprep.subr.mxu0 0.0
    %11014 = vmatpush1.msra.mxu0 0.0
    %11015 = vmatprep.subr.mxu0 0.0
    %v11016 = vand.u32 %v10530, 4294901760
    %11017 = vmatpush1.msra.mxu0 %v11016
    %11018 = vmatprep.subr.mxu0 0.0
    %v11019 = vand.u32 %v10529, 4294901760
    %11020 = vmatpush1.msra.mxu0 %v11019
    %11021 = vmatprep.subr.mxu0 0.0
    %v11022 = vand.u32 %v10528, 4294901760
    %11023 = vmatpush1.msra.mxu0 %v11022
    %11024 = vmatprep.subr.mxu0 0.0
    %v11025 = vand.u32 %v10527, 4294901760
    %11026 = vmatpush1.msra.mxu0 %v11025
    %11027 = vmatprep.subr.mxu0 0.0
    %v11028 = vand.u32 %v10526, 4294901760
    %11029 = vmatpush1.msra.mxu0 %v11028
    %11030 = vmatprep.subr.mxu0 0.0
    %v11031 = vand.u32 %v10525, 4294901760
    %11032 = vmatpush1.msra.mxu0 %v11031
    %11033 = vmatprep.subr.mxu0 0.0
    %v11034 = vand.u32 %v10524, 4294901760
    %11035 = vmatpush1.msra.mxu0 %v11034
    %11036 = vmatprep.subr.mxu0 0.0
    %v11037 = vand.u32 %v10523, 4294901760
    %11038 = vmatpush1.msra.mxu0 %v11037
    %11039 = vmatprep.subr.mxu0 0.0
    %11040 = vmatpush2.msra.mxu0 0.0
    %11041 = vmatprep.subr.mxu0 0.0
    %11042 = vmatpush2.msra.mxu0 0.0
    %11043 = vmatprep.subr.mxu0 0.0
    %11044 = vmatpush2.msra.mxu0 0.0
    %11045 = vmatprep.subr.mxu0 0.0
    %11046 = vmatpush2.msra.mxu0 0.0
    %11047 = vmatprep.subr.mxu0 0.0
    %11048 = vmatpush2.msra.mxu0 0.0
    %11049 = vmatprep.subr.mxu0 0.0
    %11050 = vmatpush2.msra.mxu0 0.0
    %11051 = vmatprep.subr.mxu0 0.0
    %11052 = vmatpush2.msra.mxu0 0.0
    %11053 = vmatprep.subr.mxu0 0.0
    %11054 = vmatpush2.msra.mxu0 0.0
    %11055 = vmatprep.subr.mxu0 0.0
    %11056 = vmatpush2.msra.mxu0 0.0
    %11057 = vmatprep.subr.mxu0 0.0
    %11058 = vmatpush2.msra.mxu0 0.0
    %11059 = vmatprep.subr.mxu0 0.0
    %11060 = vmatpush2.msra.mxu0 0.0
    %11061 = vmatprep.subr.mxu0 0.0
    %11062 = vmatpush2.msra.mxu0 0.0
    %11063 = vmatprep.subr.mxu0 0.0
    %11064 = vmatpush2.msra.mxu0 0.0
    %11065 = vmatprep.subr.mxu0 0.0
    %11066 = vmatpush2.msra.mxu0 0.0
    %11067 = vmatprep.subr.mxu0 0.0
    %11068 = vmatpush2.msra.mxu0 0.0
    %11069 = vmatprep.subr.mxu0 0.0
    %11070 = vmatpush2.msra.mxu0 0.0
    %11071 = vmatprep.mubr.f32.mxu0 0.0
    %v11072 = vand.u32 %v10539, 4294901760
    %11073 = vmatmul.mubr.f32.gmra.mxu0 %v11072
    %v11074 = vpop.f32.mrf.mxu0
    %v11075 = vadd.f32 %v10996, %v11074
    %v11076 = vpop.f32.mrf.mxu0
    %11077 = vdwg.mxu0
    %v11078 = vmax.f32 %v11075, 0.0
    %v11079 = vld [vmem:[%s12] sm:$0xff]
    %v11080 = vld [vmem:[%s12 + $0x8] sm:$0xff]
    %v11081 = vld [vmem:[%s12 + $0x10] sm:$0xff]
    %v11082 = vld [vmem:[%s12 + $0x18] sm:$0xff]
    %v11083 = vld [vmem:[%s13] sm:$0x1]
    %v11085 = vlaneseq
    %v11086 = vshrl.u32 %v11085, 7
    %v11087 = vsub.s32 0, %v11086
    %v11088 = vrot.slane %v11083, %v11087
    %v11091 = vsel %vm605, %v11078, 0
    %11093 = vmatprep.subr.mxu0 0.0
    %11094 = vmatpush1.msra.mxu0 0.0
    %11095 = vmatprep.subr.mxu0 0.0
    %11096 = vmatpush1.msra.mxu0 0.0
    %11097 = vmatprep.subr.mxu0 0.0
    %11098 = vmatpush1.msra.mxu0 0.0
    %11099 = vmatprep.subr.mxu0 0.0
    %11100 = vmatpush1.msra.mxu0 0.0
    %11101 = vmatprep.subr.mxu0 0.0
    %11102 = vmatpush1.msra.mxu0 0.0
    %11103 = vmatprep.subr.mxu0 0.0
    %11104 = vmatpush1.msra.mxu0 0.0
    %11105 = vmatprep.subr.mxu0 0.0
    %11106 = vmatpush1.msra.mxu0 0.0
    %11107 = vmatprep.subr.mxu0 0.0
    %11108 = vmatpush1.msra.mxu0 0.0
    %11109 = vmatprep.subr.mxu0 0.0
    %11110 = vmatpush1.msra.mxu0 0.0
    %11111 = vmatprep.subr.mxu0 0.0
    %11112 = vmatpush1.msra.mxu0 0.0
    %11113 = vmatprep.subr.mxu0 0.0
    %11114 = vmatpush1.msra.mxu0 0.0
    %11115 = vmatprep.subr.mxu0 0.0
    %11116 = vmatpush1.msra.mxu0 0.0
    %11117 = vmatprep.subr.mxu0 0.0
    %v11118 = vand.u32 %v11082, 4294901760
    %11119 = vmatpush1.msra.mxu0 %v11118
    %11120 = vmatprep.subr.mxu0 0.0
    %v11121 = vand.u32 %v11081, 4294901760
    %11122 = vmatpush1.msra.mxu0 %v11121
    %11123 = vmatprep.subr.mxu0 0.0
    %v11124 = vand.u32 %v11080, 4294901760
    %11125 = vmatpush1.msra.mxu0 %v11124
    %11126 = vmatprep.subr.mxu0 0.0
    %v11127 = vand.u32 %v11079, 4294901760
    %11128 = vmatpush1.msra.mxu0 %v11127
    %11129 = vmatprep.subr.mxu0 0.0
    %11130 = vmatpush2.msra.mxu0 0.0
    %11131 = vmatprep.subr.mxu0 0.0
    %11132 = vmatpush2.msra.mxu0 0.0
    %11133 = vmatprep.subr.mxu0 0.0
    %11134 = vmatpush2.msra.mxu0 0.0
    %11135 = vmatprep.subr.mxu0 0.0
    %11136 = vmatpush2.msra.mxu0 0.0
    %11137 = vmatprep.subr.mxu0 0.0
    %11138 = vmatpush2.msra.mxu0 0.0
    %11139 = vmatprep.subr.mxu0 0.0
    %11140 = vmatpush2.msra.mxu0 0.0
    %11141 = vmatprep.subr.mxu0 0.0
    %11142 = vmatpush2.msra.mxu0 0.0
    %11143 = vmatprep.subr.mxu0 0.0
    %11144 = vmatpush2.msra.mxu0 0.0
    %11145 = vmatprep.subr.mxu0 0.0
    %11146 = vmatpush2.msra.mxu0 0.0
    %11147 = vmatprep.subr.mxu0 0.0
    %11148 = vmatpush2.msra.mxu0 0.0
    %11149 = vmatprep.subr.mxu0 0.0
    %11150 = vmatpush2.msra.mxu0 0.0
    %11151 = vmatprep.subr.mxu0 0.0
    %11152 = vmatpush2.msra.mxu0 0.0
    %11153 = vmatprep.subr.mxu0 0.0
    %11154 = vmatpush2.msra.mxu0 0.0
    %11155 = vmatprep.subr.mxu0 0.0
    %11156 = vmatpush2.msra.mxu0 0.0
    %11157 = vmatprep.subr.mxu0 0.0
    %11158 = vmatpush2.msra.mxu0 0.0
    %11159 = vmatprep.subr.mxu0 0.0
    %11160 = vmatpush2.msra.mxu0 0.0
    %11161 = vmatprep.mubr.f32.mxu0 0.0
    %v11162 = vand.u32 %v11091, 4294901760
    %v11163 = vsub.f32 %v11091, %v11162
    %v11164 = vand.u32 %v11163, 4294901760
    %v11165 = vsub.f32 %v11163, %v11164
    %v11166 = vand.u32 %v11165, 4294901760
    %11167 = vmatmul.mubr.f32.gmra.mxu0 %v11166
    %v11168 = vpop.f32.mrf.mxu0
    %v11169 = vadd.f32 %v11088, %v11168
    %v11170 = vpop.f32.mrf.mxu0
    %11171 = vdwg.mxu0
    %11172 = vmatprep.subr.mxu0 0.0
    %11173 = vmatpush1.msra.mxu0 0.0
    %11174 = vmatprep.subr.mxu0 0.0
    %11175 = vmatpush1.msra.mxu0 0.0
    %11176 = vmatprep.subr.mxu0 0.0
    %11177 = vmatpush1.msra.mxu0 0.0
    %11178 = vmatprep.subr.mxu0 0.0
    %11179 = vmatpush1.msra.mxu0 0.0
    %11180 = vmatprep.subr.mxu0 0.0
    %11181 = vmatpush1.msra.mxu0 0.0
    %11182 = vmatprep.subr.mxu0 0.0
    %11183 = vmatpush1.msra.mxu0 0.0
    %11184 = vmatprep.subr.mxu0 0.0
    %11185 = vmatpush1.msra.mxu0 0.0
    %11186 = vmatprep.subr.mxu0 0.0
    %11187 = vmatpush1.msra.mxu0 0.0
    %11188 = vmatprep.subr.mxu0 0.0
    %11189 = vmatpush1.msra.mxu0 0.0
    %11190 = vmatprep.subr.mxu0 0.0
    %11191 = vmatpush1.msra.mxu0 0.0
    %11192 = vmatprep.subr.mxu0 0.0
    %11193 = vmatpush1.msra.mxu0 0.0
    %11194 = vmatprep.subr.mxu0 0.0
    %11195 = vmatpush1.msra.mxu0 0.0
    %11196 = vmatprep.subr.mxu0 0.0
    %v11197 = vand.u32 %v11082, 4294901760
    %v11198 = vsub.f32 %v11082, %v11197
    %v11199 = vand.u32 %v11198, 4294901760
    %v11200 = vsub.f32 %v11198, %v11199
    %v11201 = vand.u32 %v11200, 4294901760
    %11202 = vmatpush1.msra.mxu0 %v11201
    %11203 = vmatprep.subr.mxu0 0.0
    %v11204 = vand.u32 %v11081, 4294901760
    %v11205 = vsub.f32 %v11081, %v11204
    %v11206 = vand.u32 %v11205, 4294901760
    %v11207 = vsub.f32 %v11205, %v11206
    %v11208 = vand.u32 %v11207, 4294901760
    %11209 = vmatpush1.msra.mxu0 %v11208
    %11210 = vmatprep.subr.mxu0 0.0
    %v11211 = vand.u32 %v11080, 4294901760
    %v11212 = vsub.f32 %v11080, %v11211
    %v11213 = vand.u32 %v11212, 4294901760
    %v11214 = vsub.f32 %v11212, %v11213
    %v11215 = vand.u32 %v11214, 4294901760
    %11216 = vmatpush1.msra.mxu0 %v11215
    %11217 = vmatprep.subr.mxu0 0.0
    %v11218 = vand.u32 %v11079, 4294901760
    %v11219 = vsub.f32 %v11079, %v11218
    %v11220 = vand.u32 %v11219, 4294901760
    %v11221 = vsub.f32 %v11219, %v11220
    %v11222 = vand.u32 %v11221, 4294901760
    %11223 = vmatpush1.msra.mxu0 %v11222
    %11224 = vmatprep.subr.mxu0 0.0
    %11225 = vmatpush2.msra.mxu0 0.0
    %11226 = vmatprep.subr.mxu0 0.0
    %11227 = vmatpush2.msra.mxu0 0.0
    %11228 = vmatprep.subr.mxu0 0.0
    %11229 = vmatpush2.msra.mxu0 0.0
    %11230 = vmatprep.subr.mxu0 0.0
    %11231 = vmatpush2.msra.mxu0 0.0
    %11232 = vmatprep.subr.mxu0 0.0
    %11233 = vmatpush2.msra.mxu0 0.0
    %11234 = vmatprep.subr.mxu0 0.0
    %11235 = vmatpush2.msra.mxu0 0.0
    %11236 = vmatprep.subr.mxu0 0.0
    %11237 = vmatpush2.msra.mxu0 0.0
    %11238 = vmatprep.subr.mxu0 0.0
    %11239 = vmatpush2.msra.mxu0 0.0
    %11240 = vmatprep.subr.mxu0 0.0
    %11241 = vmatpush2.msra.mxu0 0.0
    %11242 = vmatprep.subr.mxu0 0.0
    %11243 = vmatpush2.msra.mxu0 0.0
    %11244 = vmatprep.subr.mxu0 0.0
    %11245 = vmatpush2.msra.mxu0 0.0
    %11246 = vmatprep.subr.mxu0 0.0
    %11247 = vmatpush2.msra.mxu0 0.0
    %11248 = vmatprep.subr.mxu0 0.0
    %11249 = vmatpush2.msra.mxu0 0.0
    %11250 = vmatprep.subr.mxu0 0.0
    %11251 = vmatpush2.msra.mxu0 0.0
    %11252 = vmatprep.subr.mxu0 0.0
    %11253 = vmatpush2.msra.mxu0 0.0
    %11254 = vmatprep.subr.mxu0 0.0
    %11255 = vmatpush2.msra.mxu0 0.0
    %11256 = vmatprep.mubr.f32.mxu0 0.0
    %v11257 = vand.u32 %v11091, 4294901760
    %11258 = vmatmul.mubr.f32.gmra.mxu0 %v11257
    %v11259 = vpop.f32.mrf.mxu0
    %v11260 = vadd.f32 %v11169, %v11259
    %v11261 = vpop.f32.mrf.mxu0
    %11262 = vdwg.mxu0
    %11263 = vmatprep.subr.mxu0 0.0
    %11264 = vmatpush1.msra.mxu0 0.0
    %11265 = vmatprep.subr.mxu0 0.0
    %11266 = vmatpush1.msra.mxu0 0.0
    %11267 = vmatprep.subr.mxu0 0.0
    %11268 = vmatpush1.msra.mxu0 0.0
    %11269 = vmatprep.subr.mxu0 0.0
    %11270 = vmatpush1.msra.mxu0 0.0
    %11271 = vmatprep.subr.mxu0 0.0
    %11272 = vmatpush1.msra.mxu0 0.0
    %11273 = vmatprep.subr.mxu0 0.0
    %11274 = vmatpush1.msra.mxu0 0.0
    %11275 = vmatprep.subr.mxu0 0.0
    %11276 = vmatpush1.msra.mxu0 0.0
    %11277 = vmatprep.subr.mxu0 0.0
    %11278 = vmatpush1.msra.mxu0 0.0
    %11279 = vmatprep.subr.mxu0 0.0
    %11280 = vmatpush1.msra.mxu0 0.0
    %11281 = vmatprep.subr.mxu0 0.0
    %11282 = vmatpush1.msra.mxu0 0.0
    %11283 = vmatprep.subr.mxu0 0.0
    %11284 = vmatpush1.msra.mxu0 0.0
    %11285 = vmatprep.subr.mxu0 0.0
    %11286 = vmatpush1.msra.mxu0 0.0
    %11287 = vmatprep.subr.mxu0 0.0
    %v11288 = vand.u32 %v11082, 4294901760
    %v11289 = vsub.f32 %v11082, %v11288
    %11290 = vmatpush1.msra.mxu0 %v11289
    %11291 = vmatprep.subr.mxu0 0.0
    %v11292 = vand.u32 %v11081, 4294901760
    %v11293 = vsub.f32 %v11081, %v11292
    %11294 = vmatpush1.msra.mxu0 %v11293
    %11295 = vmatprep.subr.mxu0 0.0
    %v11296 = vand.u32 %v11080, 4294901760
    %v11297 = vsub.f32 %v11080, %v11296
    %11298 = vmatpush1.msra.mxu0 %v11297
    %11299 = vmatprep.subr.mxu0 0.0
    %v11300 = vand.u32 %v11079, 4294901760
    %v11301 = vsub.f32 %v11079, %v11300
    %11302 = vmatpush1.msra.mxu0 %v11301
    %11303 = vmatprep.subr.mxu0 0.0
    %11304 = vmatpush2.msra.mxu0 0.0
    %11305 = vmatprep.subr.mxu0 0.0
    %11306 = vmatpush2.msra.mxu0 0.0
    %11307 = vmatprep.subr.mxu0 0.0
    %11308 = vmatpush2.msra.mxu0 0.0
    %11309 = vmatprep.subr.mxu0 0.0
    %11310 = vmatpush2.msra.mxu0 0.0
    %11311 = vmatprep.subr.mxu0 0.0
    %11312 = vmatpush2.msra.mxu0 0.0
    %11313 = vmatprep.subr.mxu0 0.0
    %11314 = vmatpush2.msra.mxu0 0.0
    %11315 = vmatprep.subr.mxu0 0.0
    %11316 = vmatpush2.msra.mxu0 0.0
    %11317 = vmatprep.subr.mxu0 0.0
    %11318 = vmatpush2.msra.mxu0 0.0
    %11319 = vmatprep.subr.mxu0 0.0
    %11320 = vmatpush2.msra.mxu0 0.0
    %11321 = vmatprep.subr.mxu0 0.0
    %11322 = vmatpush2.msra.mxu0 0.0
    %11323 = vmatprep.subr.mxu0 0.0
    %11324 = vmatpush2.msra.mxu0 0.0
    %11325 = vmatprep.subr.mxu0 0.0
    %11326 = vmatpush2.msra.mxu0 0.0
    %11327 = vmatprep.subr.mxu0 0.0
    %11328 = vmatpush2.msra.mxu0 0.0
    %11329 = vmatprep.subr.mxu0 0.0
    %11330 = vmatpush2.msra.mxu0 0.0
    %11331 = vmatprep.subr.mxu0 0.0
    %11332 = vmatpush2.msra.mxu0 0.0
    %11333 = vmatprep.subr.mxu0 0.0
    %11334 = vmatpush2.msra.mxu0 0.0
    %11335 = vmatprep.mubr.f32.mxu0 0.0
    %v11336 = vand.u32 %v11091, 4294901760
    %v11337 = vsub.f32 %v11091, %v11336
    %11338 = vmatmul.mubr.f32.gmra.mxu0 %v11337
    %v11339 = vpop.f32.mrf.mxu0
    %v11340 = vadd.f32 %v11260, %v11339
    %v11341 = vpop.f32.mrf.mxu0
    %11342 = vdwg.mxu0
    %11343 = vmatprep.subr.mxu0 0.0
    %11344 = vmatpush1.msra.mxu0 0.0
    %11345 = vmatprep.subr.mxu0 0.0
    %11346 = vmatpush1.msra.mxu0 0.0
    %11347 = vmatprep.subr.mxu0 0.0
    %11348 = vmatpush1.msra.mxu0 0.0
    %11349 = vmatprep.subr.mxu0 0.0
    %11350 = vmatpush1.msra.mxu0 0.0
    %11351 = vmatprep.subr.mxu0 0.0
    %11352 = vmatpush1.msra.mxu0 0.0
    %11353 = vmatprep.subr.mxu0 0.0
    %11354 = vmatpush1.msra.mxu0 0.0
    %11355 = vmatprep.subr.mxu0 0.0
    %11356 = vmatpush1.msra.mxu0 0.0
    %11357 = vmatprep.subr.mxu0 0.0
    %11358 = vmatpush1.msra.mxu0 0.0
    %11359 = vmatprep.subr.mxu0 0.0
    %11360 = vmatpush1.msra.mxu0 0.0
    %11361 = vmatprep.subr.mxu0 0.0
    %11362 = vmatpush1.msra.mxu0 0.0
    %11363 = vmatprep.subr.mxu0 0.0
    %11364 = vmatpush1.msra.mxu0 0.0
    %11365 = vmatprep.subr.mxu0 0.0
    %11366 = vmatpush1.msra.mxu0 0.0
    %11367 = vmatprep.subr.mxu0 0.0
    %v11368 = vand.u32 %v11082, 4294901760
    %11369 = vmatpush1.msra.mxu0 %v11368
    %11370 = vmatprep.subr.mxu0 0.0
    %v11371 = vand.u32 %v11081, 4294901760
    %11372 = vmatpush1.msra.mxu0 %v11371
    %11373 = vmatprep.subr.mxu0 0.0
    %v11374 = vand.u32 %v11080, 4294901760
    %11375 = vmatpush1.msra.mxu0 %v11374
    %11376 = vmatprep.subr.mxu0 0.0
    %v11377 = vand.u32 %v11079, 4294901760
    %11378 = vmatpush1.msra.mxu0 %v11377
    %11379 = vmatprep.subr.mxu0 0.0
    %11380 = vmatpush2.msra.mxu0 0.0
    %11381 = vmatprep.subr.mxu0 0.0
    %11382 = vmatpush2.msra.mxu0 0.0
    %11383 = vmatprep.subr.mxu0 0.0
    %11384 = vmatpush2.msra.mxu0 0.0
    %11385 = vmatprep.subr.mxu0 0.0
    %11386 = vmatpush2.msra.mxu0 0.0
    %11387 = vmatprep.subr.mxu0 0.0
    %11388 = vmatpush2.msra.mxu0 0.0
    %11389 = vmatprep.subr.mxu0 0.0
    %11390 = vmatpush2.msra.mxu0 0.0
    %11391 = vmatprep.subr.mxu0 0.0
    %11392 = vmatpush2.msra.mxu0 0.0
    %11393 = vmatprep.subr.mxu0 0.0
    %11394 = vmatpush2.msra.mxu0 0.0
    %11395 = vmatprep.subr.mxu0 0.0
    %11396 = vmatpush2.msra.mxu0 0.0
    %11397 = vmatprep.subr.mxu0 0.0
    %11398 = vmatpush2.msra.mxu0 0.0
    %11399 = vmatprep.subr.mxu0 0.0
    %11400 = vmatpush2.msra.mxu0 0.0
    %11401 = vmatprep.subr.mxu0 0.0
    %11402 = vmatpush2.msra.mxu0 0.0
    %11403 = vmatprep.subr.mxu0 0.0
    %11404 = vmatpush2.msra.mxu0 0.0
    %11405 = vmatprep.subr.mxu0 0.0
    %11406 = vmatpush2.msra.mxu0 0.0
    %11407 = vmatprep.subr.mxu0 0.0
    %11408 = vmatpush2.msra.mxu0 0.0
    %11409 = vmatprep.subr.mxu0 0.0
    %11410 = vmatpush2.msra.mxu0 0.0
    %11411 = vmatprep.mubr.f32.mxu0 0.0
    %v11412 = vand.u32 %v11091, 4294901760
    %v11413 = vsub.f32 %v11091, %v11412
    %v11414 = vand.u32 %v11413, 4294901760
    %11415 = vmatmul.mubr.f32.gmra.mxu0 %v11414
    %v11416 = vpop.f32.mrf.mxu0
    %v11417 = vadd.f32 %v11340, %v11416
    %v11418 = vpop.f32.mrf.mxu0
    %11419 = vdwg.mxu0
    %11420 = vmatprep.subr.mxu0 0.0
    %11421 = vmatpush1.msra.mxu0 0.0
    %11422 = vmatprep.subr.mxu0 0.0
    %11423 = vmatpush1.msra.mxu0 0.0
    %11424 = vmatprep.subr.mxu0 0.0
    %11425 = vmatpush1.msra.mxu0 0.0
    %11426 = vmatprep.subr.mxu0 0.0
    %11427 = vmatpush1.msra.mxu0 0.0
    %11428 = vmatprep.subr.mxu0 0.0
    %11429 = vmatpush1.msra.mxu0 0.0
    %11430 = vmatprep.subr.mxu0 0.0
    %11431 = vmatpush1.msra.mxu0 0.0
    %11432 = vmatprep.subr.mxu0 0.0
    %11433 = vmatpush1.msra.mxu0 0.0
    %11434 = vmatprep.subr.mxu0 0.0
    %11435 = vmatpush1.msra.mxu0 0.0
    %11436 = vmatprep.subr.mxu0 0.0
    %11437 = vmatpush1.msra.mxu0 0.0
    %11438 = vmatprep.subr.mxu0 0.0
    %11439 = vmatpush1.msra.mxu0 0.0
    %11440 = vmatprep.subr.mxu0 0.0
    %11441 = vmatpush1.msra.mxu0 0.0
    %11442 = vmatprep.subr.mxu0 0.0
    %11443 = vmatpush1.msra.mxu0 0.0
    %11444 = vmatprep.subr.mxu0 0.0
    %v11445 = vand.u32 %v11082, 4294901760
    %v11446 = vsub.f32 %v11082, %v11445
    %v11447 = vand.u32 %v11446, 4294901760
    %11448 = vmatpush1.msra.mxu0 %v11447
    %11449 = vmatprep.subr.mxu0 0.0
    %v11450 = vand.u32 %v11081, 4294901760
    %v11451 = vsub.f32 %v11081, %v11450
    %v11452 = vand.u32 %v11451, 4294901760
    %11453 = vmatpush1.msra.mxu0 %v11452
    %11454 = vmatprep.subr.mxu0 0.0
    %v11455 = vand.u32 %v11080, 4294901760
    %v11456 = vsub.f32 %v11080, %v11455
    %v11457 = vand.u32 %v11456, 4294901760
    %11458 = vmatpush1.msra.mxu0 %v11457
    %11459 = vmatprep.subr.mxu0 0.0
    %v11460 = vand.u32 %v11079, 4294901760
    %v11461 = vsub.f32 %v11079, %v11460
    %v11462 = vand.u32 %v11461, 4294901760
    %11463 = vmatpush1.msra.mxu0 %v11462
    %11464 = vmatprep.subr.mxu0 0.0
    %11465 = vmatpush2.msra.mxu0 0.0
    %11466 = vmatprep.subr.mxu0 0.0
    %11467 = vmatpush2.msra.mxu0 0.0
    %11468 = vmatprep.subr.mxu0 0.0
    %11469 = vmatpush2.msra.mxu0 0.0
    %11470 = vmatprep.subr.mxu0 0.0
    %11471 = vmatpush2.msra.mxu0 0.0
    %11472 = vmatprep.subr.mxu0 0.0
    %11473 = vmatpush2.msra.mxu0 0.0
    %11474 = vmatprep.subr.mxu0 0.0
    %11475 = vmatpush2.msra.mxu0 0.0
    %11476 = vmatprep.subr.mxu0 0.0
    %11477 = vmatpush2.msra.mxu0 0.0
    %11478 = vmatprep.subr.mxu0 0.0
    %11479 = vmatpush2.msra.mxu0 0.0
    %11480 = vmatprep.subr.mxu0 0.0
    %11481 = vmatpush2.msra.mxu0 0.0
    %11482 = vmatprep.subr.mxu0 0.0
    %11483 = vmatpush2.msra.mxu0 0.0
    %11484 = vmatprep.subr.mxu0 0.0
    %11485 = vmatpush2.msra.mxu0 0.0
    %11486 = vmatprep.subr.mxu0 0.0
    %11487 = vmatpush2.msra.mxu0 0.0
    %11488 = vmatprep.subr.mxu0 0.0
    %11489 = vmatpush2.msra.mxu0 0.0
    %11490 = vmatprep.subr.mxu0 0.0
    %11491 = vmatpush2.msra.mxu0 0.0
    %11492 = vmatprep.subr.mxu0 0.0
    %11493 = vmatpush2.msra.mxu0 0.0
    %11494 = vmatprep.subr.mxu0 0.0
    %11495 = vmatpush2.msra.mxu0 0.0
    %11496 = vmatprep.mubr.f32.mxu0 0.0
    %v11497 = vand.u32 %v11091, 4294901760
    %11498 = vmatmul.mubr.f32.gmra.mxu0 %v11497
    %v11499 = vpop.f32.mrf.mxu0
    %v11500 = vadd.f32 %v11417, %v11499
    %v11501 = vpop.f32.mrf.mxu0
    %11502 = vdwg.mxu0
    %11503 = vmatprep.subr.mxu0 0.0
    %11504 = vmatpush1.msra.mxu0 0.0
    %11505 = vmatprep.subr.mxu0 0.0
    %11506 = vmatpush1.msra.mxu0 0.0
    %11507 = vmatprep.subr.mxu0 0.0
    %11508 = vmatpush1.msra.mxu0 0.0
    %11509 = vmatprep.subr.mxu0 0.0
    %11510 = vmatpush1.msra.mxu0 0.0
    %11511 = vmatprep.subr.mxu0 0.0
    %11512 = vmatpush1.msra.mxu0 0.0
    %11513 = vmatprep.subr.mxu0 0.0
    %11514 = vmatpush1.msra.mxu0 0.0
    %11515 = vmatprep.subr.mxu0 0.0
    %11516 = vmatpush1.msra.mxu0 0.0
    %11517 = vmatprep.subr.mxu0 0.0
    %11518 = vmatpush1.msra.mxu0 0.0
    %11519 = vmatprep.subr.mxu0 0.0
    %11520 = vmatpush1.msra.mxu0 0.0
    %11521 = vmatprep.subr.mxu0 0.0
    %11522 = vmatpush1.msra.mxu0 0.0
    %11523 = vmatprep.subr.mxu0 0.0
    %11524 = vmatpush1.msra.mxu0 0.0
    %11525 = vmatprep.subr.mxu0 0.0
    %11526 = vmatpush1.msra.mxu0 0.0
    %11527 = vmatprep.subr.mxu0 0.0
    %v11528 = vand.u32 %v11082, 4294901760
    %11529 = vmatpush1.msra.mxu0 %v11528
    %11530 = vmatprep.subr.mxu0 0.0
    %v11531 = vand.u32 %v11081, 4294901760
    %11532 = vmatpush1.msra.mxu0 %v11531
    %11533 = vmatprep.subr.mxu0 0.0
    %v11534 = vand.u32 %v11080, 4294901760
    %11535 = vmatpush1.msra.mxu0 %v11534
    %11536 = vmatprep.subr.mxu0 0.0
    %v11537 = vand.u32 %v11079, 4294901760
    %11538 = vmatpush1.msra.mxu0 %v11537
    %11539 = vmatprep.subr.mxu0 0.0
    %11540 = vmatpush2.msra.mxu0 0.0
    %11541 = vmatprep.subr.mxu0 0.0
    %11542 = vmatpush2.msra.mxu0 0.0
    %11543 = vmatprep.subr.mxu0 0.0
    %11544 = vmatpush2.msra.mxu0 0.0
    %11545 = vmatprep.subr.mxu0 0.0
    %11546 = vmatpush2.msra.mxu0 0.0
    %11547 = vmatprep.subr.mxu0 0.0
    %11548 = vmatpush2.msra.mxu0 0.0
    %11549 = vmatprep.subr.mxu0 0.0
    %11550 = vmatpush2.msra.mxu0 0.0
    %11551 = vmatprep.subr.mxu0 0.0
    %11552 = vmatpush2.msra.mxu0 0.0
    %11553 = vmatprep.subr.mxu0 0.0
    %11554 = vmatpush2.msra.mxu0 0.0
    %11555 = vmatprep.subr.mxu0 0.0
    %11556 = vmatpush2.msra.mxu0 0.0
    %11557 = vmatprep.subr.mxu0 0.0
    %11558 = vmatpush2.msra.mxu0 0.0
    %11559 = vmatprep.subr.mxu0 0.0
    %11560 = vmatpush2.msra.mxu0 0.0
    %11561 = vmatprep.subr.mxu0 0.0
    %11562 = vmatpush2.msra.mxu0 0.0
    %11563 = vmatprep.subr.mxu0 0.0
    %11564 = vmatpush2.msra.mxu0 0.0
    %11565 = vmatprep.subr.mxu0 0.0
    %11566 = vmatpush2.msra.mxu0 0.0
    %11567 = vmatprep.subr.mxu0 0.0
    %11568 = vmatpush2.msra.mxu0 0.0
    %11569 = vmatprep.subr.mxu0 0.0
    %11570 = vmatpush2.msra.mxu0 0.0
    %11571 = vmatprep.mubr.f32.mxu0 0.0
    %v11572 = vand.u32 %v11091, 4294901760
    %11573 = vmatmul.mubr.f32.gmra.mxu0 %v11572
    %v11574 = vpop.f32.mrf.mxu0
    %v11575 = vadd.f32 %v11500, %v11574
    %v11576 = vpop.f32.mrf.mxu0
    %11577 = vdwg.mxu0
    %11578 = vst [vmem:[#allocation3] sm:$0x3] %v11575
    // Predicated region
    $region58: #{driver_monitor_forward.1} parent=1 // pred_check
      _
    $region59: #{driver_monitor_forward.1} parent=1 // pred_check_branch
      %11580 = sbr.rel (0) target = $region61
    $region60: #{driver_monitor_forward.1} parent=1 // pred_region
      %s11582 = ssub.s32 32, 32
      %11583 = vsyncadd [#allocation4], %s11582
      %s11585 = sshll.u32 [#allocation3], 4
      %s11586 = int_to_ptr.vmem [resolvable:$true] %s11585
      %11588 = dma.vmem_to_hbm [thread:$0]  %s11586, 32, %s14, [#allocation4]
    $region61: #{driver_monitor_forward.1} parent=1 // pred_fallthru
      _
    // Predicated region
    $region62: #{driver_monitor_forward.1} parent=1 // pred_check
      _
    $region63: #{driver_monitor_forward.1} parent=1 // pred_check_branch
      %11590 = sbr.rel (0) target = $region65
    $region64: #{driver_monitor_forward.1} parent=1 // pred_region
      %11591 = dma.done [#allocation4], 32
    $region65: #{driver_monitor_forward.1} parent=1 // pred_fallthru
      _
    %11592 = vsyncpa [#allocation4], 1

</llo_original>
